<compile_context>
chip_gen: v7x
topology: tpu7x:2x2x1
jax: 0.10.0
libtpu: 0.0.40
codegen_flags: <defaults>
</compile_context>

<pallas_src>
import numpy as np

import jax
import jax.numpy as jnp
from jax import lax
from jax.experimental import pallas as pl
from jax.experimental.pallas import tpu as pltpu


# --------------------------------------------------------------------------
# Small shape helpers (host side, static python ints)
# --------------------------------------------------------------------------
def _conv_out(n, k, s, p):
    return (n + 2 * p - k) // s + 1


def _final_spatial(h, w):
    # stem 7x7/s2/p3 -> maxpool 3x3/s2/p1 -> layer1 (s1) -> layer2 (s2) -> layer3 (s2)
    for k, s, p in ((7, 2, 3), (3, 2, 1), (3, 1, 1), (3, 2, 1), (3, 2, 1)):
        h, w = _conv_out(h, k, s, p), _conv_out(w, k, s, p)
    return h, w


def _tap_selectors(h, w, k, stride, pad):
    """0/1 selection matrices S[t] (M_out, M_in), one per kernel tap.

    S[t] @ act(M_in, C) gathers, for every output position, the input pixel the
    tap (i, j) reads; padded positions get an all-zero row (== zero padding)."""
    ho, wo = _conv_out(h, k, stride, pad), _conv_out(w, k, stride, pad)
    S = np.zeros((k * k, ho * wo, h * w), np.float32)
    for i in range(k):
        for j in range(k):
            for oy in range(ho):
                for ox in range(wo):
                    iy, ix = stride * oy + i - pad, stride * ox + j - pad
                    if 0 <= iy < h and 0 <= ix < w:
                        S[i * k + j, oy * wo + ox, iy * w + ix] = 1.0
    return S, ho, wo


def _decim_selector(h, w, stride):
    """Row-selection matrix for a 1x1 stride-s conv (spatial decimation)."""
    ho, wo = _conv_out(h, 1, stride, 0), _conv_out(w, 1, stride, 0)
    S = np.zeros((ho * wo, h * w), np.float32)
    for oy in range(ho):
        for ox in range(wo):
            S[oy * wo + ox, stride * oy * w + stride * ox] = 1.0
    return S, ho, wo


def _im2col_batched(x, k, stride, pad):
    # x: (N, H, W, C) bf16 -> patches (N, Ho*Wo, k*k*C)   (host/XLA, stem only)
    n, h, w, c = x.shape
    xp = jnp.pad(x, ((0, 0), (pad, pad), (pad, pad), (0, 0)))
    ho, wo = _conv_out(h, k, stride, pad), _conv_out(w, k, stride, pad)
    cols = [xp[:, i:i + stride * ho:stride, j:j + stride * wo:stride, :]
            for i in range(k) for j in range(k)]
    patches = jnp.stack(cols, axis=3)                  # (N, Ho, Wo, k*k, C)
    return patches.reshape(n, ho * wo, k * k * c), ho, wo


# --------------------------------------------------------------------------
# Pallas kernel: the whole backbone for one image per grid step
# --------------------------------------------------------------------------
def _dot(a, b):
    return jnp.dot(a, b, preferred_element_type=jnp.float32)


def _conv3x3_taps(h, w_ref, s_ref):
    # sum_t  S_t @ h @ W_t  ;  S_t are exact 0/1 row selections (zero rows = pad)
    g = _dot(s_ref[0], h).astype(jnp.bfloat16)
    acc = _dot(g, w_ref[0])
    for t in range(1, 9):
        g = _dot(s_ref[t], h).astype(jnp.bfloat16)
        acc = acc + _dot(g, w_ref[t])
    return acc


def _bottleneck(x, w1, b1, w2, b2, s2, w3, b3, wd, bd, sd):
    # conv1(1x1)+BN+ReLU -> conv2(3x3, stride)+BN+ReLU -> conv3(1x1)+BN
    # -> (+ downsample(x)) -> ReLU.  BN scale already folded into weights.
    h = jnp.maximum(_dot(x, w1[...]) + b1[...], 0.0).astype(jnp.bfloat16)
    h = jnp.maximum(_conv3x3_taps(h, w2, s2) + b2[...], 0.0).astype(jnp.bfloat16)
    if sd is None:                       # stride 1: no spatial decimation
        xd = x
    else:                                # stride 2: constant row selection
        xd = _dot(sd[...], x).astype(jnp.bfloat16)
    iden = _dot(xd, wd[...]) + bd[...]
    y = _dot(h, w3[...]) + b3[...] + iden
    return jnp.maximum(y, 0.0).astype(jnp.bfloat16)


def _backbone_kernel(p_ref, ws_ref, bs_ref, sp_ref,
                     l1_w1, l1_b1, l1_w2, l1_b2, l1_s2, l1_w3, l1_b3, l1_wd, l1_bd,
                     l2_w1, l2_b1, l2_w2, l2_b2, l2_s2, l2_w3, l2_b3, l2_wd, l2_bd, l2_sd,
                     l3_w1, l3_b1, l3_w2, l3_b2, l3_s2, l3_w3, l3_b3, l3_wd, l3_bd, l3_sd,
                     o_ref):
    # Stem: 7x7/s2 conv (host im2col patches) + folded BN + ReLU.
    a = jnp.maximum(_dot(p_ref[0], ws_ref[...]) + bs_ref[...], 0.0)
    a = a.astype(jnp.bfloat16)                          # (H1*W1, base)

    # 3x3/s2/p1 maxpool = elementwise max over 9 tap selections.
    m = _dot(sp_ref[0], a)
    for t in range(1, 9):
        m = jnp.maximum(m, _dot(sp_ref[t], a))
    x = m.astype(jnp.bfloat16)                          # (H2*W2, base)

    x = _bottleneck(x, l1_w1, l1_b1, l1_w2, l1_b2, l1_s2,
                    l1_w3, l1_b3, l1_wd, l1_bd, None)
    x = _bottleneck(x, l2_w1, l2_b1, l2_w2, l2_b2, l2_s2,
                    l2_w3, l2_b3, l2_wd, l2_bd, l2_sd)
    x = _bottleneck(x, l3_w1, l3_b1, l3_w2, l3_b2, l3_s2,
                    l3_w3, l3_b3, l3_wd, l3_bd, l3_sd)

    o_ref[0] = x.astype(jnp.float32)                    # (Hf*Wf, num_channels)


# --------------------------------------------------------------------------
# Parameter construction (deterministic, synthetic; NOT a checkpoint load)
# --------------------------------------------------------------------------
def _init_conv(key, kh, kw, cin, cout):
    fan_in = kh * kw * cin
    return (jax.random.normal(key, (kh, kw, cin, cout), jnp.float32)
            * (2.0 / fan_in) ** 0.5 * 0.5)


def _init_frozen_bn(key, n):
    # Buffers as FrozenBatchNorm2d registers them, folded into (scale, bias).
    k1, k2, k3, k4 = jax.random.split(key, 4)
    weight = 1.0 + 0.1 * jax.random.normal(k1, (n,), jnp.float32)
    bias = 0.1 * jax.random.normal(k2, (n,), jnp.float32)
    running_mean = 0.1 * jax.random.normal(k3, (n,), jnp.float32)
    running_var = 1.0 + 0.5 * jax.random.uniform(k4, (n,), jnp.float32)
    eps = 1e-5
    scale = weight * jax.lax.rsqrt(running_var + eps)
    bias_eff = bias - running_mean * scale
    return scale, bias_eff


def _init_bottleneck(key, cin, cmid, cout):
    ks = jax.random.split(key, 8)
    return {
        "w1": _init_conv(ks[0], 1, 1, cin, cmid), "bn1": _init_frozen_bn(ks[1], cmid),
        "w2": _init_conv(ks[2], 3, 3, cmid, cmid), "bn2": _init_frozen_bn(ks[3], cmid),
        "w3": _init_conv(ks[4], 1, 1, cmid, cout), "bn3": _init_frozen_bn(ks[5], cout),
        "wd": _init_conv(ks[6], 1, 1, cin, cout), "bnd": _init_frozen_bn(ks[7], cout),
    }


def make_backbone_params(key, cin=4, base=8):
    ks = jax.random.split(key, 5)
    params = {
        "stem_w": _init_conv(ks[0], 7, 7, cin, base),
        "stem_bn": _init_frozen_bn(ks[1], base),
        "layer1": _init_bottleneck(ks[2], base, base, 4 * base),          # stride 1
        "layer2": _init_bottleneck(ks[3], 4 * base, 2 * base, 8 * base),  # stride 2
        "layer3": _init_bottleneck(ks[4], 8 * base, 4 * base, 16 * base), # stride 2
    }
    return params, 16 * base


def build_kernel_constants(params, h_in, w_in):
    """Fold BN scale into conv weights (bf16), build bias rows (f32) and the
    constant spatial-selection matrices (bf16).  Order matches the kernel."""
    bf = jnp.bfloat16

    def fold(w, scale):
        return jnp.asarray(w * scale, bf)              # scale folded per Cout

    def as_bias(b):
        return jnp.asarray(b, jnp.float32).reshape(1, -1)

    h1, w1 = _conv_out(h_in, 7, 2, 3), _conv_out(w_in, 7, 2, 3)
    sp, h2, w2 = _tap_selectors(h1, w1, 3, 2, 1)        # maxpool taps

    s_scale, s_bias = params["stem_bn"]
    w_stem = fold(params["stem_w"], s_scale).reshape(-1, params["stem_w"].shape[-1])
    consts = [w_stem, as_bias(s_bias), jnp.asarray(sp, bf)]

    hh, ww = h2, w2
    for name, stride in (("layer1", 1), ("layer2", 2), ("layer3", 2)):
        p = params[name]
        cmid = p["w1"].shape[-1]
        s2, ho, wo = _tap_selectors(hh, ww, 3, stride, 1)
        consts += [
            fold(p["w1"], p["bn1"][0])[0, 0], as_bias(p["bn1"][1]),
            fold(p["w2"], p["bn2"][0]).reshape(9, cmid, cmid), as_bias(p["bn2"][1]),
            jnp.asarray(s2, bf),
            fold(p["w3"], p["bn3"][0])[0, 0], as_bias(p["bn3"][1]),
            fold(p["wd"], p["bnd"][0])[0, 0], as_bias(p["bnd"][1]),
        ]
        if stride != 1:
            sd, _, _ = _decim_selector(hh, ww, stride)
            consts.append(jnp.asarray(sd, bf))
        hh, ww = ho, wo
    return consts


# --------------------------------------------------------------------------
# Forward passes
# --------------------------------------------------------------------------
def backbone_forward(x_nchw, consts, num_channels):
    """Backbone.forward: x (N, C, H, W) -> feature map (N, num_channels, H', W')."""
    n, _, h_in, w_in = x_nchw.shape
    x = jnp.transpose(x_nchw, (0, 2, 3, 1)).astype(jnp.bfloat16)   # NHWC bf16
    patches, _, _ = _im2col_batched(x, 7, 2, 3)                     # stem im2col

    h_f, w_f = _final_spatial(h_in, w_in)
    m_f = h_f * w_f

    in_specs = [pl.BlockSpec((1, patches.shape[1], patches.shape[2]),
                             lambda b: (b, 0, 0))]
    for c in consts:  # whole array, same block every step -> VMEM resident
        in_specs.append(pl.BlockSpec(c.shape, lambda b, _nd=c.ndim: (0,) * _nd))

    out = pl.pallas_call(
        _backbone_kernel,
        out_shape=jax.ShapeDtypeStruct((n, m_f, num_channels), jnp.float32),
        grid_spec=pltpu.PrefetchScalarGridSpec(
            num_scalar_prefetch=0,
            grid=(n,),
            in_specs=in_specs,
            out_specs=pl.BlockSpec((1, m_f, num_channels), lambda b: (b, 0, 0))),
        compiler_params=pltpu.CompilerParams(
            dimension_semantics=("parallel",),          # batch across TCs (v7x)
            vmem_limit_bytes=32 * 1024 * 1024),
    )(patches, *consts)

    out = out.reshape(n, h_f, w_f, num_channels)
    return jnp.transpose(out, (0, 3, 1, 2))             # -> NCHW


def backbone_reference(x_nchw, params):
    """Pure-XLA f32 reference with identical FrozenBatchNorm semantics."""
    x = jnp.transpose(x_nchw, (0, 2, 3, 1)).astype(jnp.float32)

    def conv_bn(x, w, bn, stride, pad, relu):
        scale, bias = bn
        y = lax.conv_general_dilated(
            x, w, window_strides=(stride, stride),
            padding=((pad, pad), (pad, pad)),
            dimension_numbers=("NHWC", "HWIO", "NHWC"))
        y = y * scale + bias
        return jnp.maximum(y, 0.0) if relu else y

    x = conv_bn(x, params["stem_w"], params["stem_bn"], 2, 3, True)
    x = lax.reduce_window(x, -jnp.inf, lax.max, (1, 3, 3, 1), (1, 2, 2, 1),
                          ((0, 0), (1, 1), (1, 1), (0, 0)))

    def block(x, p, stride):
        out = conv_bn(x, p["w1"], p["bn1"], 1, 0, True)
        out = conv_bn(out, p["w2"], p["bn2"], stride, 1, True)
        out = conv_bn(out, p["w3"], p["bn3"], 1, 0, False)
        iden = conv_bn(x, p["wd"], p["bnd"], stride, 0, False)
        return jnp.maximum(out + iden, 0.0)

    x = block(x, params["layer1"], 1)
    x = block(x, params["layer2"], 2)
    x = block(x, params["layer3"], 2)
    return jnp.transpose(x, (0, 3, 1, 2))


# --------------------------------------------------------------------------
if __name__ == "__main__":
    key = jax.random.PRNGKey(0)
    kp, kx = jax.random.split(key)
    params, num_channels = make_backbone_params(kp, cin=4, base=8)
    consts = build_kernel_constants(params, 16, 16)

    # small NCHW input, matching the PyTorch module's convention
    x = jax.random.normal(kx, (2, 4, 16, 16), jnp.float32)

    fwd = jax.jit(lambda inp: backbone_forward(inp, consts, num_channels))
    out = fwd(x)
    jax.block_until_ready(out)

    assert out.shape == (2, num_channels, 1, 1)
    assert bool(jnp.all(jnp.isfinite(out)))

    # Tolerance check against the f32 XLA reference (kernel stores activations /
    # weights in bf16, so allow a generous normalized error).
    ref = jax.jit(lambda inp: backbone_reference(inp, params))(x)
    jax.block_until_ready(ref)
    denom = jnp.maximum(jnp.max(jnp.abs(ref)), 1e-3)
    err = float(jnp.max(jnp.abs(out - ref)) / denom)
    assert err < 0.1, f"mismatch vs f32 reference: {err}"

    print("KERNEL_OK")
</pallas_src>

<mosaic_0001>
module attributes {stable_mosaic.version = 11 : i64} {
  func.func @_backbone_kernel(%arg0: i32, %arg1: memref<1x64x196xbf16, #tpu.memory_space<vmem>>, %arg2: memref<196x8xbf16, #tpu.memory_space<vmem>>, %arg3: memref<1x8xf32, #tpu.memory_space<vmem>>, %arg4: memref<9x16x64xbf16, #tpu.memory_space<vmem>>, %arg5: memref<8x8xbf16, #tpu.memory_space<vmem>>, %arg6: memref<1x8xf32, #tpu.memory_space<vmem>>, %arg7: memref<9x8x8xbf16, #tpu.memory_space<vmem>>, %arg8: memref<1x8xf32, #tpu.memory_space<vmem>>, %arg9: memref<9x16x16xbf16, #tpu.memory_space<vmem>>, %arg10: memref<8x32xbf16, #tpu.memory_space<vmem>>, %arg11: memref<1x32xf32, #tpu.memory_space<vmem>>, %arg12: memref<8x32xbf16, #tpu.memory_space<vmem>>, %arg13: memref<1x32xf32, #tpu.memory_space<vmem>>, %arg14: memref<32x16xbf16, #tpu.memory_space<vmem>>, %arg15: memref<1x16xf32, #tpu.memory_space<vmem>>, %arg16: memref<9x16x16xbf16, #tpu.memory_space<vmem>>, %arg17: memref<1x16xf32, #tpu.memory_space<vmem>>, %arg18: memref<9x4x16xbf16, #tpu.memory_space<vmem>>, %arg19: memref<16x64xbf16, #tpu.memory_space<vmem>>, %arg20: memref<1x64xf32, #tpu.memory_space<vmem>>, %arg21: memref<32x64xbf16, #tpu.memory_space<vmem>>, %arg22: memref<1x64xf32, #tpu.memory_space<vmem>>, %arg23: memref<4x16xbf16, #tpu.memory_space<vmem>>, %arg24: memref<64x32xbf16, #tpu.memory_space<vmem>>, %arg25: memref<1x32xf32, #tpu.memory_space<vmem>>, %arg26: memref<9x32x32xbf16, #tpu.memory_space<vmem>>, %arg27: memref<1x32xf32, #tpu.memory_space<vmem>>, %arg28: memref<9x1x4xbf16, #tpu.memory_space<vmem>>, %arg29: memref<32x128xbf16, #tpu.memory_space<vmem>>, %arg30: memref<1x128xf32, #tpu.memory_space<vmem>>, %arg31: memref<64x128xbf16, #tpu.memory_space<vmem>>, %arg32: memref<1x128xf32, #tpu.memory_space<vmem>>, %arg33: memref<1x4xbf16, #tpu.memory_space<vmem>>, %arg34: memref<1x1x128xf32, #tpu.memory_space<vmem>>) attributes {dimension_semantics = [#tpu.dimension_semantics<parallel>], iteration_bounds = array<i64: 2>, scalar_prefetch = 0 : i64, scratch_operands = 0 : i64, tpu.core_type = #tpu.core_type<tc>, window_params = [{transform_indices = @transform_0, window_bounds = array<i64: 1, 64, 196>}, {pipeline_mode = #tpu.pipeline_mode<synchronous>, transform_indices = @transform_1, window_bounds = array<i64: 196, 8>}, {pipeline_mode = #tpu.pipeline_mode<synchronous>, transform_indices = @transform_2, window_bounds = array<i64: 1, 8>}, {pipeline_mode = #tpu.pipeline_mode<synchronous>, transform_indices = @transform_3, window_bounds = array<i64: 9, 16, 64>}, {pipeline_mode = #tpu.pipeline_mode<synchronous>, transform_indices = @transform_4, window_bounds = array<i64: 8, 8>}, {pipeline_mode = #tpu.pipeline_mode<synchronous>, transform_indices = @transform_5, window_bounds = array<i64: 1, 8>}, {pipeline_mode = #tpu.pipeline_mode<synchronous>, transform_indices = @transform_6, window_bounds = array<i64: 9, 8, 8>}, {pipeline_mode = #tpu.pipeline_mode<synchronous>, transform_indices = @transform_7, window_bounds = array<i64: 1, 8>}, {pipeline_mode = #tpu.pipeline_mode<synchronous>, transform_indices = @transform_8, window_bounds = array<i64: 9, 16, 16>}, {pipeline_mode = #tpu.pipeline_mode<synchronous>, transform_indices = @transform_9, window_bounds = array<i64: 8, 32>}, {pipeline_mode = #tpu.pipeline_mode<synchronous>, transform_indices = @transform_10, window_bounds = array<i64: 1, 32>}, {pipeline_mode = #tpu.pipeline_mode<synchronous>, transform_indices = @transform_11, window_bounds = array<i64: 8, 32>}, {pipeline_mode = #tpu.pipeline_mode<synchronous>, transform_indices = @transform_12, window_bounds = array<i64: 1, 32>}, {pipeline_mode = #tpu.pipeline_mode<synchronous>, transform_indices = @transform_13, window_bounds = array<i64: 32, 16>}, {pipeline_mode = #tpu.pipeline_mode<synchronous>, transform_indices = @transform_14, window_bounds = array<i64: 1, 16>}, {pipeline_mode = #tpu.pipeline_mode<synchronous>, transform_indices = @transform_15, window_bounds = array<i64: 9, 16, 16>}, {pipeline_mode = #tpu.pipeline_mode<synchronous>, transform_indices = @transform_16, window_bounds = array<i64: 1, 16>}, {pipeline_mode = #tpu.pipeline_mode<synchronous>, transform_indices = @transform_17, window_bounds = array<i64: 9, 4, 16>}, {pipeline_mode = #tpu.pipeline_mode<synchronous>, transform_indices = @transform_18, window_bounds = array<i64: 16, 64>}, {pipeline_mode = #tpu.pipeline_mode<synchronous>, transform_indices = @transform_19, window_bounds = array<i64: 1, 64>}, {pipeline_mode = #tpu.pipeline_mode<synchronous>, transform_indices = @transform_20, window_bounds = array<i64: 32, 64>}, {pipeline_mode = #tpu.pipeline_mode<synchronous>, transform_indices = @transform_21, window_bounds = array<i64: 1, 64>}, {pipeline_mode = #tpu.pipeline_mode<synchronous>, transform_indices = @transform_22, window_bounds = array<i64: 4, 16>}, {pipeline_mode = #tpu.pipeline_mode<synchronous>, transform_indices = @transform_23, window_bounds = array<i64: 64, 32>}, {pipeline_mode = #tpu.pipeline_mode<synchronous>, transform_indices = @transform_24, window_bounds = array<i64: 1, 32>}, {pipeline_mode = #tpu.pipeline_mode<synchronous>, transform_indices = @transform_25, window_bounds = array<i64: 9, 32, 32>}, {pipeline_mode = #tpu.pipeline_mode<synchronous>, transform_indices = @transform_26, window_bounds = array<i64: 1, 32>}, {pipeline_mode = #tpu.pipeline_mode<synchronous>, transform_indices = @transform_27, window_bounds = array<i64: 9, 1, 4>}, {pipeline_mode = #tpu.pipeline_mode<synchronous>, transform_indices = @transform_28, window_bounds = array<i64: 32, 128>}, {pipeline_mode = #tpu.pipeline_mode<synchronous>, transform_indices = @transform_29, window_bounds = array<i64: 1, 128>}, {pipeline_mode = #tpu.pipeline_mode<synchronous>, transform_indices = @transform_30, window_bounds = array<i64: 64, 128>}, {pipeline_mode = #tpu.pipeline_mode<synchronous>, transform_indices = @transform_31, window_bounds = array<i64: 1, 128>}, {pipeline_mode = #tpu.pipeline_mode<synchronous>, transform_indices = @transform_32, window_bounds = array<i64: 1, 4>}, {transform_indices = @transform_33, window_bounds = array<i64: 1, 1, 128>}]} {
    %c0 = arith.constant 0 : index
    %c0_0 = arith.constant 0 : index
    %c0_1 = arith.constant 0 : index
    %0 = vector.load %arg1[%c0, %c0_0, %c0_1] : memref<1x64x196xbf16, #tpu.memory_space<vmem>>, vector<1x64x196xbf16>
    %1 = vector.shape_cast %0 : vector<1x64x196xbf16> to vector<64x196xbf16>
    %c0_2 = arith.constant 0 : index
    %c0_3 = arith.constant 0 : index
    %2 = vector.load %arg2[%c0_2, %c0_3] : memref<196x8xbf16, #tpu.memory_space<vmem>>, vector<196x8xbf16>
    %cst = arith.constant dense<0.000000e+00> : vector<64x8xf32>
    %3 = tpu.matmul %1, %2, %cst {dimension_numbers = #tpu.dot_dimension_numbers<[1], [0], [0], [1], [0, 0, 1, 1], [], []>} : vector<64x196xbf16>, vector<196x8xbf16>, vector<64x8xf32> -> vector<64x8xf32>
    %c0_4 = arith.constant 0 : index
    %c0_5 = arith.constant 0 : index
    %4 = vector.load %arg3[%c0_4, %c0_5] : memref<1x8xf32, #tpu.memory_space<vmem>>, vector<1x8xf32>
    %5 = vector.broadcast %4 : vector<1x8xf32> to vector<64x8xf32>
    %6 = arith.addf %3, %5 : vector<64x8xf32>
    %cst_6 = arith.constant 0.000000e+00 : f32
    %7 = vector.broadcast %cst_6 : f32 to vector<64x8xf32>
    %8 = arith.maximumf %6, %7 : vector<64x8xf32>
    %9 = arith.truncf %8 : vector<64x8xf32> to vector<64x8xbf16>
    %c0_7 = arith.constant 0 : index
    %c0_8 = arith.constant 0 : index
    %c0_9 = arith.constant 0 : index
    %10 = vector.load %arg4[%c0_7, %c0_8, %c0_9] : memref<9x16x64xbf16, #tpu.memory_space<vmem>>, vector<1x16x64xbf16>
    %11 = vector.shape_cast %10 : vector<1x16x64xbf16> to vector<16x64xbf16>
    %cst_10 = arith.constant dense<0.000000e+00> : vector<16x8xf32>
    %12 = tpu.matmul %11, %9, %cst_10 {dimension_numbers = #tpu.dot_dimension_numbers<[1], [0], [0], [1], [0, 0, 1, 1], [], []>} : vector<16x64xbf16>, vector<64x8xbf16>, vector<16x8xf32> -> vector<16x8xf32>
    %c1 = arith.constant 1 : index
    %c0_11 = arith.constant 0 : index
    %c0_12 = arith.constant 0 : index
    %13 = vector.load %arg4[%c1, %c0_11, %c0_12] : memref<9x16x64xbf16, #tpu.memory_space<vmem>>, vector<1x16x64xbf16>
    %14 = vector.shape_cast %13 : vector<1x16x64xbf16> to vector<16x64xbf16>
    %cst_13 = arith.constant dense<0.000000e+00> : vector<16x8xf32>
    %15 = tpu.matmul %14, %9, %cst_13 {dimension_numbers = #tpu.dot_dimension_numbers<[1], [0], [0], [1], [0, 0, 1, 1], [], []>} : vector<16x64xbf16>, vector<64x8xbf16>, vector<16x8xf32> -> vector<16x8xf32>
    %16 = arith.maximumf %12, %15 : vector<16x8xf32>
    %c2 = arith.constant 2 : index
    %c0_14 = arith.constant 0 : index
    %c0_15 = arith.constant 0 : index
    %17 = vector.load %arg4[%c2, %c0_14, %c0_15] : memref<9x16x64xbf16, #tpu.memory_space<vmem>>, vector<1x16x64xbf16>
    %18 = vector.shape_cast %17 : vector<1x16x64xbf16> to vector<16x64xbf16>
    %cst_16 = arith.constant dense<0.000000e+00> : vector<16x8xf32>
    %19 = tpu.matmul %18, %9, %cst_16 {dimension_numbers = #tpu.dot_dimension_numbers<[1], [0], [0], [1], [0, 0, 1, 1], [], []>} : vector<16x64xbf16>, vector<64x8xbf16>, vector<16x8xf32> -> vector<16x8xf32>
    %20 = arith.maximumf %16, %19 : vector<16x8xf32>
    %c3 = arith.constant 3 : index
    %c0_17 = arith.constant 0 : index
    %c0_18 = arith.constant 0 : index
    %21 = vector.load %arg4[%c3, %c0_17, %c0_18] : memref<9x16x64xbf16, #tpu.memory_space<vmem>>, vector<1x16x64xbf16>
    %22 = vector.shape_cast %21 : vector<1x16x64xbf16> to vector<16x64xbf16>
    %cst_19 = arith.constant dense<0.000000e+00> : vector<16x8xf32>
    %23 = tpu.matmul %22, %9, %cst_19 {dimension_numbers = #tpu.dot_dimension_numbers<[1], [0], [0], [1], [0, 0, 1, 1], [], []>} : vector<16x64xbf16>, vector<64x8xbf16>, vector<16x8xf32> -> vector<16x8xf32>
    %24 = arith.maximumf %20, %23 : vector<16x8xf32>
    %c4 = arith.constant 4 : index
    %c0_20 = arith.constant 0 : index
    %c0_21 = arith.constant 0 : index
    %25 = vector.load %arg4[%c4, %c0_20, %c0_21] : memref<9x16x64xbf16, #tpu.memory_space<vmem>>, vector<1x16x64xbf16>
    %26 = vector.shape_cast %25 : vector<1x16x64xbf16> to vector<16x64xbf16>
    %cst_22 = arith.constant dense<0.000000e+00> : vector<16x8xf32>
    %27 = tpu.matmul %26, %9, %cst_22 {dimension_numbers = #tpu.dot_dimension_numbers<[1], [0], [0], [1], [0, 0, 1, 1], [], []>} : vector<16x64xbf16>, vector<64x8xbf16>, vector<16x8xf32> -> vector<16x8xf32>
    %28 = arith.maximumf %24, %27 : vector<16x8xf32>
    %c5 = arith.constant 5 : index
    %c0_23 = arith.constant 0 : index
    %c0_24 = arith.constant 0 : index
    %29 = vector.load %arg4[%c5, %c0_23, %c0_24] : memref<9x16x64xbf16, #tpu.memory_space<vmem>>, vector<1x16x64xbf16>
    %30 = vector.shape_cast %29 : vector<1x16x64xbf16> to vector<16x64xbf16>
    %cst_25 = arith.constant dense<0.000000e+00> : vector<16x8xf32>
    %31 = tpu.matmul %30, %9, %cst_25 {dimension_numbers = #tpu.dot_dimension_numbers<[1], [0], [0], [1], [0, 0, 1, 1], [], []>} : vector<16x64xbf16>, vector<64x8xbf16>, vector<16x8xf32> -> vector<16x8xf32>
    %32 = arith.maximumf %28, %31 : vector<16x8xf32>
    %c6 = arith.constant 6 : index
    %c0_26 = arith.constant 0 : index
    %c0_27 = arith.constant 0 : index
    %33 = vector.load %arg4[%c6, %c0_26, %c0_27] : memref<9x16x64xbf16, #tpu.memory_space<vmem>>, vector<1x16x64xbf16>
    %34 = vector.shape_cast %33 : vector<1x16x64xbf16> to vector<16x64xbf16>
    %cst_28 = arith.constant dense<0.000000e+00> : vector<16x8xf32>
    %35 = tpu.matmul %34, %9, %cst_28 {dimension_numbers = #tpu.dot_dimension_numbers<[1], [0], [0], [1], [0, 0, 1, 1], [], []>} : vector<16x64xbf16>, vector<64x8xbf16>, vector<16x8xf32> -> vector<16x8xf32>
    %36 = arith.maximumf %32, %35 : vector<16x8xf32>
    %c7 = arith.constant 7 : index
    %c0_29 = arith.constant 0 : index
    %c0_30 = arith.constant 0 : index
    %37 = vector.load %arg4[%c7, %c0_29, %c0_30] : memref<9x16x64xbf16, #tpu.memory_space<vmem>>, vector<1x16x64xbf16>
    %38 = vector.shape_cast %37 : vector<1x16x64xbf16> to vector<16x64xbf16>
    %cst_31 = arith.constant dense<0.000000e+00> : vector<16x8xf32>
    %39 = tpu.matmul %38, %9, %cst_31 {dimension_numbers = #tpu.dot_dimension_numbers<[1], [0], [0], [1], [0, 0, 1, 1], [], []>} : vector<16x64xbf16>, vector<64x8xbf16>, vector<16x8xf32> -> vector<16x8xf32>
    %40 = arith.maximumf %36, %39 : vector<16x8xf32>
    %c8 = arith.constant 8 : index
    %c0_32 = arith.constant 0 : index
    %c0_33 = arith.constant 0 : index
    %41 = vector.load %arg4[%c8, %c0_32, %c0_33] : memref<9x16x64xbf16, #tpu.memory_space<vmem>>, vector<1x16x64xbf16>
    %42 = vector.shape_cast %41 : vector<1x16x64xbf16> to vector<16x64xbf16>
    %cst_34 = arith.constant dense<0.000000e+00> : vector<16x8xf32>
    %43 = tpu.matmul %42, %9, %cst_34 {dimension_numbers = #tpu.dot_dimension_numbers<[1], [0], [0], [1], [0, 0, 1, 1], [], []>} : vector<16x64xbf16>, vector<64x8xbf16>, vector<16x8xf32> -> vector<16x8xf32>
    %44 = arith.maximumf %40, %43 : vector<16x8xf32>
    %45 = arith.truncf %44 : vector<16x8xf32> to vector<16x8xbf16>
    %c0_35 = arith.constant 0 : index
    %c0_36 = arith.constant 0 : index
    %46 = vector.load %arg5[%c0_35, %c0_36] : memref<8x8xbf16, #tpu.memory_space<vmem>>, vector<8x8xbf16>
    %cst_37 = arith.constant dense<0.000000e+00> : vector<16x8xf32>
    %47 = tpu.matmul %45, %46, %cst_37 {dimension_numbers = #tpu.dot_dimension_numbers<[1], [0], [0], [1], [0, 0, 1, 1], [], []>} : vector<16x8xbf16>, vector<8x8xbf16>, vector<16x8xf32> -> vector<16x8xf32>
    %c0_38 = arith.constant 0 : index
    %c0_39 = arith.constant 0 : index
    %48 = vector.load %arg6[%c0_38, %c0_39] : memref<1x8xf32, #tpu.memory_space<vmem>>, vector<1x8xf32>
    %49 = vector.broadcast %48 : vector<1x8xf32> to vector<16x8xf32>
    %50 = arith.addf %47, %49 : vector<16x8xf32>
    %cst_40 = arith.constant 0.000000e+00 : f32
    %51 = vector.broadcast %cst_40 : f32 to vector<16x8xf32>
    %52 = arith.maximumf %50, %51 : vector<16x8xf32>
    %53 = arith.truncf %52 : vector<16x8xf32> to vector<16x8xbf16>
    %c0_41 = arith.constant 0 : index
    %c0_42 = arith.constant 0 : index
    %c0_43 = arith.constant 0 : index
    %54 = vector.load %arg9[%c0_41, %c0_42, %c0_43] : memref<9x16x16xbf16, #tpu.memory_space<vmem>>, vector<1x16x16xbf16>
    %55 = vector.shape_cast %54 : vector<1x16x16xbf16> to vector<16x16xbf16>
    %cst_44 = arith.constant dense<0.000000e+00> : vector<16x8xf32>
    %56 = tpu.matmul %55, %53, %cst_44 {dimension_numbers = #tpu.dot_dimension_numbers<[1], [0], [0], [1], [0, 0, 1, 1], [], []>} : vector<16x16xbf16>, vector<16x8xbf16>, vector<16x8xf32> -> vector<16x8xf32>
    %57 = arith.truncf %56 : vector<16x8xf32> to vector<16x8xbf16>
    %c0_45 = arith.constant 0 : index
    %c0_46 = arith.constant 0 : index
    %c0_47 = arith.constant 0 : index
    %58 = vector.load %arg7[%c0_45, %c0_46, %c0_47] : memref<9x8x8xbf16, #tpu.memory_space<vmem>>, vector<1x8x8xbf16>
    %59 = vector.shape_cast %58 : vector<1x8x8xbf16> to vector<8x8xbf16>
    %cst_48 = arith.constant dense<0.000000e+00> : vector<16x8xf32>
    %60 = tpu.matmul %57, %59, %cst_48 {dimension_numbers = #tpu.dot_dimension_numbers<[1], [0], [0], [1], [0, 0, 1, 1], [], []>} : vector<16x8xbf16>, vector<8x8xbf16>, vector<16x8xf32> -> vector<16x8xf32>
    %c1_49 = arith.constant 1 : index
    %c0_50 = arith.constant 0 : index
    %c0_51 = arith.constant 0 : index
    %61 = vector.load %arg9[%c1_49, %c0_50, %c0_51] : memref<9x16x16xbf16, #tpu.memory_space<vmem>>, vector<1x16x16xbf16>
    %62 = vector.shape_cast %61 : vector<1x16x16xbf16> to vector<16x16xbf16>
    %cst_52 = arith.constant dense<0.000000e+00> : vector<16x8xf32>
    %63 = tpu.matmul %62, %53, %cst_52 {dimension_numbers = #tpu.dot_dimension_numbers<[1], [0], [0], [1], [0, 0, 1, 1], [], []>} : vector<16x16xbf16>, vector<16x8xbf16>, vector<16x8xf32> -> vector<16x8xf32>
    %64 = arith.truncf %63 : vector<16x8xf32> to vector<16x8xbf16>
    %c1_53 = arith.constant 1 : index
    %c0_54 = arith.constant 0 : index
    %c0_55 = arith.constant 0 : index
    %65 = vector.load %arg7[%c1_53, %c0_54, %c0_55] : memref<9x8x8xbf16, #tpu.memory_space<vmem>>, vector<1x8x8xbf16>
    %66 = vector.shape_cast %65 : vector<1x8x8xbf16> to vector<8x8xbf16>
    %cst_56 = arith.constant dense<0.000000e+00> : vector<16x8xf32>
    %67 = tpu.matmul %64, %66, %cst_56 {dimension_numbers = #tpu.dot_dimension_numbers<[1], [0], [0], [1], [0, 0, 1, 1], [], []>} : vector<16x8xbf16>, vector<8x8xbf16>, vector<16x8xf32> -> vector<16x8xf32>
    %68 = arith.addf %60, %67 : vector<16x8xf32>
    %c2_57 = arith.constant 2 : index
    %c0_58 = arith.constant 0 : index
    %c0_59 = arith.constant 0 : index
    %69 = vector.load %arg9[%c2_57, %c0_58, %c0_59] : memref<9x16x16xbf16, #tpu.memory_space<vmem>>, vector<1x16x16xbf16>
    %70 = vector.shape_cast %69 : vector<1x16x16xbf16> to vector<16x16xbf16>
    %cst_60 = arith.constant dense<0.000000e+00> : vector<16x8xf32>
    %71 = tpu.matmul %70, %53, %cst_60 {dimension_numbers = #tpu.dot_dimension_numbers<[1], [0], [0], [1], [0, 0, 1, 1], [], []>} : vector<16x16xbf16>, vector<16x8xbf16>, vector<16x8xf32> -> vector<16x8xf32>
    %72 = arith.truncf %71 : vector<16x8xf32> to vector<16x8xbf16>
    %c2_61 = arith.constant 2 : index
    %c0_62 = arith.constant 0 : index
    %c0_63 = arith.constant 0 : index
    %73 = vector.load %arg7[%c2_61, %c0_62, %c0_63] : memref<9x8x8xbf16, #tpu.memory_space<vmem>>, vector<1x8x8xbf16>
    %74 = vector.shape_cast %73 : vector<1x8x8xbf16> to vector<8x8xbf16>
    %cst_64 = arith.constant dense<0.000000e+00> : vector<16x8xf32>
    %75 = tpu.matmul %72, %74, %cst_64 {dimension_numbers = #tpu.dot_dimension_numbers<[1], [0], [0], [1], [0, 0, 1, 1], [], []>} : vector<16x8xbf16>, vector<8x8xbf16>, vector<16x8xf32> -> vector<16x8xf32>
    %76 = arith.addf %68, %75 : vector<16x8xf32>
    %c3_65 = arith.constant 3 : index
    %c0_66 = arith.constant 0 : index
    %c0_67 = arith.constant 0 : index
    %77 = vector.load %arg9[%c3_65, %c0_66, %c0_67] : memref<9x16x16xbf16, #tpu.memory_space<vmem>>, vector<1x16x16xbf16>
    %78 = vector.shape_cast %77 : vector<1x16x16xbf16> to vector<16x16xbf16>
    %cst_68 = arith.constant dense<0.000000e+00> : vector<16x8xf32>
    %79 = tpu.matmul %78, %53, %cst_68 {dimension_numbers = #tpu.dot_dimension_numbers<[1], [0], [0], [1], [0, 0, 1, 1], [], []>} : vector<16x16xbf16>, vector<16x8xbf16>, vector<16x8xf32> -> vector<16x8xf32>
    %80 = arith.truncf %79 : vector<16x8xf32> to vector<16x8xbf16>
    %c3_69 = arith.constant 3 : index
    %c0_70 = arith.constant 0 : index
    %c0_71 = arith.constant 0 : index
    %81 = vector.load %arg7[%c3_69, %c0_70, %c0_71] : memref<9x8x8xbf16, #tpu.memory_space<vmem>>, vector<1x8x8xbf16>
    %82 = vector.shape_cast %81 : vector<1x8x8xbf16> to vector<8x8xbf16>
    %cst_72 = arith.constant dense<0.000000e+00> : vector<16x8xf32>
    %83 = tpu.matmul %80, %82, %cst_72 {dimension_numbers = #tpu.dot_dimension_numbers<[1], [0], [0], [1], [0, 0, 1, 1], [], []>} : vector<16x8xbf16>, vector<8x8xbf16>, vector<16x8xf32> -> vector<16x8xf32>
    %84 = arith.addf %76, %83 : vector<16x8xf32>
    %c4_73 = arith.constant 4 : index
    %c0_74 = arith.constant 0 : index
    %c0_75 = arith.constant 0 : index
    %85 = vector.load %arg9[%c4_73, %c0_74, %c0_75] : memref<9x16x16xbf16, #tpu.memory_space<vmem>>, vector<1x16x16xbf16>
    %86 = vector.shape_cast %85 : vector<1x16x16xbf16> to vector<16x16xbf16>
    %cst_76 = arith.constant dense<0.000000e+00> : vector<16x8xf32>
    %87 = tpu.matmul %86, %53, %cst_76 {dimension_numbers = #tpu.dot_dimension_numbers<[1], [0], [0], [1], [0, 0, 1, 1], [], []>} : vector<16x16xbf16>, vector<16x8xbf16>, vector<16x8xf32> -> vector<16x8xf32>
    %88 = arith.truncf %87 : vector<16x8xf32> to vector<16x8xbf16>
    %c4_77 = arith.constant 4 : index
    %c0_78 = arith.constant 0 : index
    %c0_79 = arith.constant 0 : index
    %89 = vector.load %arg7[%c4_77, %c0_78, %c0_79] : memref<9x8x8xbf16, #tpu.memory_space<vmem>>, vector<1x8x8xbf16>
    %90 = vector.shape_cast %89 : vector<1x8x8xbf16> to vector<8x8xbf16>
    %cst_80 = arith.constant dense<0.000000e+00> : vector<16x8xf32>
    %91 = tpu.matmul %88, %90, %cst_80 {dimension_numbers = #tpu.dot_dimension_numbers<[1], [0], [0], [1], [0, 0, 1, 1], [], []>} : vector<16x8xbf16>, vector<8x8xbf16>, vector<16x8xf32> -> vector<16x8xf32>
    %92 = arith.addf %84, %91 : vector<16x8xf32>
    %c5_81 = arith.constant 5 : index
    %c0_82 = arith.constant 0 : index
    %c0_83 = arith.constant 0 : index
    %93 = vector.load %arg9[%c5_81, %c0_82, %c0_83] : memref<9x16x16xbf16, #tpu.memory_space<vmem>>, vector<1x16x16xbf16>
    %94 = vector.shape_cast %93 : vector<1x16x16xbf16> to vector<16x16xbf16>
    %cst_84 = arith.constant dense<0.000000e+00> : vector<16x8xf32>
    %95 = tpu.matmul %94, %53, %cst_84 {dimension_numbers = #tpu.dot_dimension_numbers<[1], [0], [0], [1], [0, 0, 1, 1], [], []>} : vector<16x16xbf16>, vector<16x8xbf16>, vector<16x8xf32> -> vector<16x8xf32>
    %96 = arith.truncf %95 : vector<16x8xf32> to vector<16x8xbf16>
    %c5_85 = arith.constant 5 : index
    %c0_86 = arith.constant 0 : index
    %c0_87 = arith.constant 0 : index
    %97 = vector.load %arg7[%c5_85, %c0_86, %c0_87] : memref<9x8x8xbf16, #tpu.memory_space<vmem>>, vector<1x8x8xbf16>
    %98 = vector.shape_cast %97 : vector<1x8x8xbf16> to vector<8x8xbf16>
    %cst_88 = arith.constant dense<0.000000e+00> : vector<16x8xf32>
    %99 = tpu.matmul %96, %98, %cst_88 {dimension_numbers = #tpu.dot_dimension_numbers<[1], [0], [0], [1], [0, 0, 1, 1], [], []>} : vector<16x8xbf16>, vector<8x8xbf16>, vector<16x8xf32> -> vector<16x8xf32>
    %100 = arith.addf %92, %99 : vector<16x8xf32>
    %c6_89 = arith.constant 6 : index
    %c0_90 = arith.constant 0 : index
    %c0_91 = arith.constant 0 : index
    %101 = vector.load %arg9[%c6_89, %c0_90, %c0_91] : memref<9x16x16xbf16, #tpu.memory_space<vmem>>, vector<1x16x16xbf16>
    %102 = vector.shape_cast %101 : vector<1x16x16xbf16> to vector<16x16xbf16>
    %cst_92 = arith.constant dense<0.000000e+00> : vector<16x8xf32>
    %103 = tpu.matmul %102, %53, %cst_92 {dimension_numbers = #tpu.dot_dimension_numbers<[1], [0], [0], [1], [0, 0, 1, 1], [], []>} : vector<16x16xbf16>, vector<16x8xbf16>, vector<16x8xf32> -> vector<16x8xf32>
    %104 = arith.truncf %103 : vector<16x8xf32> to vector<16x8xbf16>
    %c6_93 = arith.constant 6 : index
    %c0_94 = arith.constant 0 : index
    %c0_95 = arith.constant 0 : index
    %105 = vector.load %arg7[%c6_93, %c0_94, %c0_95] : memref<9x8x8xbf16, #tpu.memory_space<vmem>>, vector<1x8x8xbf16>
    %106 = vector.shape_cast %105 : vector<1x8x8xbf16> to vector<8x8xbf16>
    %cst_96 = arith.constant dense<0.000000e+00> : vector<16x8xf32>
    %107 = tpu.matmul %104, %106, %cst_96 {dimension_numbers = #tpu.dot_dimension_numbers<[1], [0], [0], [1], [0, 0, 1, 1], [], []>} : vector<16x8xbf16>, vector<8x8xbf16>, vector<16x8xf32> -> vector<16x8xf32>
    %108 = arith.addf %100, %107 : vector<16x8xf32>
    %c7_97 = arith.constant 7 : index
    %c0_98 = arith.constant 0 : index
    %c0_99 = arith.constant 0 : index
    %109 = vector.load %arg9[%c7_97, %c0_98, %c0_99] : memref<9x16x16xbf16, #tpu.memory_space<vmem>>, vector<1x16x16xbf16>
    %110 = vector.shape_cast %109 : vector<1x16x16xbf16> to vector<16x16xbf16>
    %cst_100 = arith.constant dense<0.000000e+00> : vector<16x8xf32>
    %111 = tpu.matmul %110, %53, %cst_100 {dimension_numbers = #tpu.dot_dimension_numbers<[1], [0], [0], [1], [0, 0, 1, 1], [], []>} : vector<16x16xbf16>, vector<16x8xbf16>, vector<16x8xf32> -> vector<16x8xf32>
    %112 = arith.truncf %111 : vector<16x8xf32> to vector<16x8xbf16>
    %c7_101 = arith.constant 7 : index
    %c0_102 = arith.constant 0 : index
    %c0_103 = arith.constant 0 : index
    %113 = vector.load %arg7[%c7_101, %c0_102, %c0_103] : memref<9x8x8xbf16, #tpu.memory_space<vmem>>, vector<1x8x8xbf16>
    %114 = vector.shape_cast %113 : vector<1x8x8xbf16> to vector<8x8xbf16>
    %cst_104 = arith.constant dense<0.000000e+00> : vector<16x8xf32>
    %115 = tpu.matmul %112, %114, %cst_104 {dimension_numbers = #tpu.dot_dimension_numbers<[1], [0], [0], [1], [0, 0, 1, 1], [], []>} : vector<16x8xbf16>, vector<8x8xbf16>, vector<16x8xf32> -> vector<16x8xf32>
    %116 = arith.addf %108, %115 : vector<16x8xf32>
    %c8_105 = arith.constant 8 : index
    %c0_106 = arith.constant 0 : index
    %c0_107 = arith.constant 0 : index
    %117 = vector.load %arg9[%c8_105, %c0_106, %c0_107] : memref<9x16x16xbf16, #tpu.memory_space<vmem>>, vector<1x16x16xbf16>
    %118 = vector.shape_cast %117 : vector<1x16x16xbf16> to vector<16x16xbf16>
    %cst_108 = arith.constant dense<0.000000e+00> : vector<16x8xf32>
    %119 = tpu.matmul %118, %53, %cst_108 {dimension_numbers = #tpu.dot_dimension_numbers<[1], [0], [0], [1], [0, 0, 1, 1], [], []>} : vector<16x16xbf16>, vector<16x8xbf16>, vector<16x8xf32> -> vector<16x8xf32>
    %120 = arith.truncf %119 : vector<16x8xf32> to vector<16x8xbf16>
    %c8_109 = arith.constant 8 : index
    %c0_110 = arith.constant 0 : index
    %c0_111 = arith.constant 0 : index
    %121 = vector.load %arg7[%c8_109, %c0_110, %c0_111] : memref<9x8x8xbf16, #tpu.memory_space<vmem>>, vector<1x8x8xbf16>
    %122 = vector.shape_cast %121 : vector<1x8x8xbf16> to vector<8x8xbf16>
    %cst_112 = arith.constant dense<0.000000e+00> : vector<16x8xf32>
    %123 = tpu.matmul %120, %122, %cst_112 {dimension_numbers = #tpu.dot_dimension_numbers<[1], [0], [0], [1], [0, 0, 1, 1], [], []>} : vector<16x8xbf16>, vector<8x8xbf16>, vector<16x8xf32> -> vector<16x8xf32>
    %124 = arith.addf %116, %123 : vector<16x8xf32>
    %c0_113 = arith.constant 0 : index
    %c0_114 = arith.constant 0 : index
    %125 = vector.load %arg8[%c0_113, %c0_114] : memref<1x8xf32, #tpu.memory_space<vmem>>, vector<1x8xf32>
    %126 = vector.broadcast %125 : vector<1x8xf32> to vector<16x8xf32>
    %127 = arith.addf %124, %126 : vector<16x8xf32>
    %cst_115 = arith.constant 0.000000e+00 : f32
    %128 = vector.broadcast %cst_115 : f32 to vector<16x8xf32>
    %129 = arith.maximumf %127, %128 : vector<16x8xf32>
    %130 = arith.truncf %129 : vector<16x8xf32> to vector<16x8xbf16>
    %c0_116 = arith.constant 0 : index
    %c0_117 = arith.constant 0 : index
    %131 = vector.load %arg12[%c0_116, %c0_117] : memref<8x32xbf16, #tpu.memory_space<vmem>>, vector<8x32xbf16>
    %cst_118 = arith.constant dense<0.000000e+00> : vector<16x32xf32>
    %132 = tpu.matmul %45, %131, %cst_118 {dimension_numbers = #tpu.dot_dimension_numbers<[1], [0], [0], [1], [0, 0, 1, 1], [], []>} : vector<16x8xbf16>, vector<8x32xbf16>, vector<16x32xf32> -> vector<16x32xf32>
    %c0_119 = arith.constant 0 : index
    %c0_120 = arith.constant 0 : index
    %133 = vector.load %arg13[%c0_119, %c0_120] : memref<1x32xf32, #tpu.memory_space<vmem>>, vector<1x32xf32>
    %134 = vector.broadcast %133 : vector<1x32xf32> to vector<16x32xf32>
    %135 = arith.addf %132, %134 : vector<16x32xf32>
    %c0_121 = arith.constant 0 : index
    %c0_122 = arith.constant 0 : index
    %136 = vector.load %arg10[%c0_121, %c0_122] : memref<8x32xbf16, #tpu.memory_space<vmem>>, vector<8x32xbf16>
    %cst_123 = arith.constant dense<0.000000e+00> : vector<16x32xf32>
    %137 = tpu.matmul %130, %136, %cst_123 {dimension_numbers = #tpu.dot_dimension_numbers<[1], [0], [0], [1], [0, 0, 1, 1], [], []>} : vector<16x8xbf16>, vector<8x32xbf16>, vector<16x32xf32> -> vector<16x32xf32>
    %c0_124 = arith.constant 0 : index
    %c0_125 = arith.constant 0 : index
    %138 = vector.load %arg11[%c0_124, %c0_125] : memref<1x32xf32, #tpu.memory_space<vmem>>, vector<1x32xf32>
    %139 = vector.broadcast %138 : vector<1x32xf32> to vector<16x32xf32>
    %140 = arith.addf %137, %139 : vector<16x32xf32>
    %141 = arith.addf %140, %135 : vector<16x32xf32>
    %cst_126 = arith.constant 0.000000e+00 : f32
    %142 = vector.broadcast %cst_126 : f32 to vector<16x32xf32>
    %143 = arith.maximumf %141, %142 : vector<16x32xf32>
    %144 = arith.truncf %143 : vector<16x32xf32> to vector<16x32xbf16>
    %c0_127 = arith.constant 0 : index
    %c0_128 = arith.constant 0 : index
    %145 = vector.load %arg14[%c0_127, %c0_128] : memref<32x16xbf16, #tpu.memory_space<vmem>>, vector<32x16xbf16>
    %cst_129 = arith.constant dense<0.000000e+00> : vector<16x16xf32>
    %146 = tpu.matmul %144, %145, %cst_129 {dimension_numbers = #tpu.dot_dimension_numbers<[1], [0], [0], [1], [0, 0, 1, 1], [], []>} : vector<16x32xbf16>, vector<32x16xbf16>, vector<16x16xf32> -> vector<16x16xf32>
    %c0_130 = arith.constant 0 : index
    %c0_131 = arith.constant 0 : index
    %147 = vector.load %arg15[%c0_130, %c0_131] : memref<1x16xf32, #tpu.memory_space<vmem>>, vector<1x16xf32>
    %148 = vector.broadcast %147 : vector<1x16xf32> to vector<16x16xf32>
    %149 = arith.addf %146, %148 : vector<16x16xf32>
    %cst_132 = arith.constant 0.000000e+00 : f32
    %150 = vector.broadcast %cst_132 : f32 to vector<16x16xf32>
    %151 = arith.maximumf %149, %150 : vector<16x16xf32>
    %152 = arith.truncf %151 : vector<16x16xf32> to vector<16x16xbf16>
    %c0_133 = arith.constant 0 : index
    %c0_134 = arith.constant 0 : index
    %c0_135 = arith.constant 0 : index
    %153 = vector.load %arg18[%c0_133, %c0_134, %c0_135] : memref<9x4x16xbf16, #tpu.memory_space<vmem>>, vector<1x4x16xbf16>
    %154 = vector.shape_cast %153 : vector<1x4x16xbf16> to vector<4x16xbf16>
    %cst_136 = arith.constant dense<0.000000e+00> : vector<4x16xf32>
    %155 = tpu.matmul %154, %152, %cst_136 {dimension_numbers = #tpu.dot_dimension_numbers<[1], [0], [0], [1], [0, 0, 1, 1], [], []>} : vector<4x16xbf16>, vector<16x16xbf16>, vector<4x16xf32> -> vector<4x16xf32>
    %156 = arith.truncf %155 : vector<4x16xf32> to vector<4x16xbf16>
    %c0_137 = arith.constant 0 : index
    %c0_138 = arith.constant 0 : index
    %c0_139 = arith.constant 0 : index
    %157 = vector.load %arg16[%c0_137, %c0_138, %c0_139] : memref<9x16x16xbf16, #tpu.memory_space<vmem>>, vector<1x16x16xbf16>
    %158 = vector.shape_cast %157 : vector<1x16x16xbf16> to vector<16x16xbf16>
    %cst_140 = arith.constant dense<0.000000e+00> : vector<4x16xf32>
    %159 = tpu.matmul %156, %158, %cst_140 {dimension_numbers = #tpu.dot_dimension_numbers<[1], [0], [0], [1], [0, 0, 1, 1], [], []>} : vector<4x16xbf16>, vector<16x16xbf16>, vector<4x16xf32> -> vector<4x16xf32>
    %c1_141 = arith.constant 1 : index
    %c0_142 = arith.constant 0 : index
    %c0_143 = arith.constant 0 : index
    %160 = vector.load %arg18[%c1_141, %c0_142, %c0_143] : memref<9x4x16xbf16, #tpu.memory_space<vmem>>, vector<1x4x16xbf16>
    %161 = vector.shape_cast %160 : vector<1x4x16xbf16> to vector<4x16xbf16>
    %cst_144 = arith.constant dense<0.000000e+00> : vector<4x16xf32>
    %162 = tpu.matmul %161, %152, %cst_144 {dimension_numbers = #tpu.dot_dimension_numbers<[1], [0], [0], [1], [0, 0, 1, 1], [], []>} : vector<4x16xbf16>, vector<16x16xbf16>, vector<4x16xf32> -> vector<4x16xf32>
    %163 = arith.truncf %162 : vector<4x16xf32> to vector<4x16xbf16>
    %c1_145 = arith.constant 1 : index
    %c0_146 = arith.constant 0 : index
    %c0_147 = arith.constant 0 : index
    %164 = vector.load %arg16[%c1_145, %c0_146, %c0_147] : memref<9x16x16xbf16, #tpu.memory_space<vmem>>, vector<1x16x16xbf16>
    %165 = vector.shape_cast %164 : vector<1x16x16xbf16> to vector<16x16xbf16>
    %cst_148 = arith.constant dense<0.000000e+00> : vector<4x16xf32>
    %166 = tpu.matmul %163, %165, %cst_148 {dimension_numbers = #tpu.dot_dimension_numbers<[1], [0], [0], [1], [0, 0, 1, 1], [], []>} : vector<4x16xbf16>, vector<16x16xbf16>, vector<4x16xf32> -> vector<4x16xf32>
    %167 = arith.addf %159, %166 : vector<4x16xf32>
    %c2_149 = arith.constant 2 : index
    %c0_150 = arith.constant 0 : index
    %c0_151 = arith.constant 0 : index
    %168 = vector.load %arg18[%c2_149, %c0_150, %c0_151] : memref<9x4x16xbf16, #tpu.memory_space<vmem>>, vector<1x4x16xbf16>
    %169 = vector.shape_cast %168 : vector<1x4x16xbf16> to vector<4x16xbf16>
    %cst_152 = arith.constant dense<0.000000e+00> : vector<4x16xf32>
    %170 = tpu.matmul %169, %152, %cst_152 {dimension_numbers = #tpu.dot_dimension_numbers<[1], [0], [0], [1], [0, 0, 1, 1], [], []>} : vector<4x16xbf16>, vector<16x16xbf16>, vector<4x16xf32> -> vector<4x16xf32>
    %171 = arith.truncf %170 : vector<4x16xf32> to vector<4x16xbf16>
    %c2_153 = arith.constant 2 : index
    %c0_154 = arith.constant 0 : index
    %c0_155 = arith.constant 0 : index
    %172 = vector.load %arg16[%c2_153, %c0_154, %c0_155] : memref<9x16x16xbf16, #tpu.memory_space<vmem>>, vector<1x16x16xbf16>
    %173 = vector.shape_cast %172 : vector<1x16x16xbf16> to vector<16x16xbf16>
    %cst_156 = arith.constant dense<0.000000e+00> : vector<4x16xf32>
    %174 = tpu.matmul %171, %173, %cst_156 {dimension_numbers = #tpu.dot_dimension_numbers<[1], [0], [0], [1], [0, 0, 1, 1], [], []>} : vector<4x16xbf16>, vector<16x16xbf16>, vector<4x16xf32> -> vector<4x16xf32>
    %175 = arith.addf %167, %174 : vector<4x16xf32>
    %c3_157 = arith.constant 3 : index
    %c0_158 = arith.constant 0 : index
    %c0_159 = arith.constant 0 : index
    %176 = vector.load %arg18[%c3_157, %c0_158, %c0_159] : memref<9x4x16xbf16, #tpu.memory_space<vmem>>, vector<1x4x16xbf16>
    %177 = vector.shape_cast %176 : vector<1x4x16xbf16> to vector<4x16xbf16>
    %cst_160 = arith.constant dense<0.000000e+00> : vector<4x16xf32>
    %178 = tpu.matmul %177, %152, %cst_160 {dimension_numbers = #tpu.dot_dimension_numbers<[1], [0], [0], [1], [0, 0, 1, 1], [], []>} : vector<4x16xbf16>, vector<16x16xbf16>, vector<4x16xf32> -> vector<4x16xf32>
    %179 = arith.truncf %178 : vector<4x16xf32> to vector<4x16xbf16>
    %c3_161 = arith.constant 3 : index
    %c0_162 = arith.constant 0 : index
    %c0_163 = arith.constant 0 : index
    %180 = vector.load %arg16[%c3_161, %c0_162, %c0_163] : memref<9x16x16xbf16, #tpu.memory_space<vmem>>, vector<1x16x16xbf16>
    %181 = vector.shape_cast %180 : vector<1x16x16xbf16> to vector<16x16xbf16>
    %cst_164 = arith.constant dense<0.000000e+00> : vector<4x16xf32>
    %182 = tpu.matmul %179, %181, %cst_164 {dimension_numbers = #tpu.dot_dimension_numbers<[1], [0], [0], [1], [0, 0, 1, 1], [], []>} : vector<4x16xbf16>, vector<16x16xbf16>, vector<4x16xf32> -> vector<4x16xf32>
    %183 = arith.addf %175, %182 : vector<4x16xf32>
    %c4_165 = arith.constant 4 : index
    %c0_166 = arith.constant 0 : index
    %c0_167 = arith.constant 0 : index
    %184 = vector.load %arg18[%c4_165, %c0_166, %c0_167] : memref<9x4x16xbf16, #tpu.memory_space<vmem>>, vector<1x4x16xbf16>
    %185 = vector.shape_cast %184 : vector<1x4x16xbf16> to vector<4x16xbf16>
    %cst_168 = arith.constant dense<0.000000e+00> : vector<4x16xf32>
    %186 = tpu.matmul %185, %152, %cst_168 {dimension_numbers = #tpu.dot_dimension_numbers<[1], [0], [0], [1], [0, 0, 1, 1], [], []>} : vector<4x16xbf16>, vector<16x16xbf16>, vector<4x16xf32> -> vector<4x16xf32>
    %187 = arith.truncf %186 : vector<4x16xf32> to vector<4x16xbf16>
    %c4_169 = arith.constant 4 : index
    %c0_170 = arith.constant 0 : index
    %c0_171 = arith.constant 0 : index
    %188 = vector.load %arg16[%c4_169, %c0_170, %c0_171] : memref<9x16x16xbf16, #tpu.memory_space<vmem>>, vector<1x16x16xbf16>
    %189 = vector.shape_cast %188 : vector<1x16x16xbf16> to vector<16x16xbf16>
    %cst_172 = arith.constant dense<0.000000e+00> : vector<4x16xf32>
    %190 = tpu.matmul %187, %189, %cst_172 {dimension_numbers = #tpu.dot_dimension_numbers<[1], [0], [0], [1], [0, 0, 1, 1], [], []>} : vector<4x16xbf16>, vector<16x16xbf16>, vector<4x16xf32> -> vector<4x16xf32>
    %191 = arith.addf %183, %190 : vector<4x16xf32>
    %c5_173 = arith.constant 5 : index
    %c0_174 = arith.constant 0 : index
    %c0_175 = arith.constant 0 : index
    %192 = vector.load %arg18[%c5_173, %c0_174, %c0_175] : memref<9x4x16xbf16, #tpu.memory_space<vmem>>, vector<1x4x16xbf16>
    %193 = vector.shape_cast %192 : vector<1x4x16xbf16> to vector<4x16xbf16>
    %cst_176 = arith.constant dense<0.000000e+00> : vector<4x16xf32>
    %194 = tpu.matmul %193, %152, %cst_176 {dimension_numbers = #tpu.dot_dimension_numbers<[1], [0], [0], [1], [0, 0, 1, 1], [], []>} : vector<4x16xbf16>, vector<16x16xbf16>, vector<4x16xf32> -> vector<4x16xf32>
    %195 = arith.truncf %194 : vector<4x16xf32> to vector<4x16xbf16>
    %c5_177 = arith.constant 5 : index
    %c0_178 = arith.constant 0 : index
    %c0_179 = arith.constant 0 : index
    %196 = vector.load %arg16[%c5_177, %c0_178, %c0_179] : memref<9x16x16xbf16, #tpu.memory_space<vmem>>, vector<1x16x16xbf16>
    %197 = vector.shape_cast %196 : vector<1x16x16xbf16> to vector<16x16xbf16>
    %cst_180 = arith.constant dense<0.000000e+00> : vector<4x16xf32>
    %198 = tpu.matmul %195, %197, %cst_180 {dimension_numbers = #tpu.dot_dimension_numbers<[1], [0], [0], [1], [0, 0, 1, 1], [], []>} : vector<4x16xbf16>, vector<16x16xbf16>, vector<4x16xf32> -> vector<4x16xf32>
    %199 = arith.addf %191, %198 : vector<4x16xf32>
    %c6_181 = arith.constant 6 : index
    %c0_182 = arith.constant 0 : index
    %c0_183 = arith.constant 0 : index
    %200 = vector.load %arg18[%c6_181, %c0_182, %c0_183] : memref<9x4x16xbf16, #tpu.memory_space<vmem>>, vector<1x4x16xbf16>
    %201 = vector.shape_cast %200 : vector<1x4x16xbf16> to vector<4x16xbf16>
    %cst_184 = arith.constant dense<0.000000e+00> : vector<4x16xf32>
    %202 = tpu.matmul %201, %152, %cst_184 {dimension_numbers = #tpu.dot_dimension_numbers<[1], [0], [0], [1], [0, 0, 1, 1], [], []>} : vector<4x16xbf16>, vector<16x16xbf16>, vector<4x16xf32> -> vector<4x16xf32>
    %203 = arith.truncf %202 : vector<4x16xf32> to vector<4x16xbf16>
    %c6_185 = arith.constant 6 : index
    %c0_186 = arith.constant 0 : index
    %c0_187 = arith.constant 0 : index
    %204 = vector.load %arg16[%c6_185, %c0_186, %c0_187] : memref<9x16x16xbf16, #tpu.memory_space<vmem>>, vector<1x16x16xbf16>
    %205 = vector.shape_cast %204 : vector<1x16x16xbf16> to vector<16x16xbf16>
    %cst_188 = arith.constant dense<0.000000e+00> : vector<4x16xf32>
    %206 = tpu.matmul %203, %205, %cst_188 {dimension_numbers = #tpu.dot_dimension_numbers<[1], [0], [0], [1], [0, 0, 1, 1], [], []>} : vector<4x16xbf16>, vector<16x16xbf16>, vector<4x16xf32> -> vector<4x16xf32>
    %207 = arith.addf %199, %206 : vector<4x16xf32>
    %c7_189 = arith.constant 7 : index
    %c0_190 = arith.constant 0 : index
    %c0_191 = arith.constant 0 : index
    %208 = vector.load %arg18[%c7_189, %c0_190, %c0_191] : memref<9x4x16xbf16, #tpu.memory_space<vmem>>, vector<1x4x16xbf16>
    %209 = vector.shape_cast %208 : vector<1x4x16xbf16> to vector<4x16xbf16>
    %cst_192 = arith.constant dense<0.000000e+00> : vector<4x16xf32>
    %210 = tpu.matmul %209, %152, %cst_192 {dimension_numbers = #tpu.dot_dimension_numbers<[1], [0], [0], [1], [0, 0, 1, 1], [], []>} : vector<4x16xbf16>, vector<16x16xbf16>, vector<4x16xf32> -> vector<4x16xf32>
    %211 = arith.truncf %210 : vector<4x16xf32> to vector<4x16xbf16>
    %c7_193 = arith.constant 7 : index
    %c0_194 = arith.constant 0 : index
    %c0_195 = arith.constant 0 : index
    %212 = vector.load %arg16[%c7_193, %c0_194, %c0_195] : memref<9x16x16xbf16, #tpu.memory_space<vmem>>, vector<1x16x16xbf16>
    %213 = vector.shape_cast %212 : vector<1x16x16xbf16> to vector<16x16xbf16>
    %cst_196 = arith.constant dense<0.000000e+00> : vector<4x16xf32>
    %214 = tpu.matmul %211, %213, %cst_196 {dimension_numbers = #tpu.dot_dimension_numbers<[1], [0], [0], [1], [0, 0, 1, 1], [], []>} : vector<4x16xbf16>, vector<16x16xbf16>, vector<4x16xf32> -> vector<4x16xf32>
    %215 = arith.addf %207, %214 : vector<4x16xf32>
    %c8_197 = arith.constant 8 : index
    %c0_198 = arith.constant 0 : index
    %c0_199 = arith.constant 0 : index
    %216 = vector.load %arg18[%c8_197, %c0_198, %c0_199] : memref<9x4x16xbf16, #tpu.memory_space<vmem>>, vector<1x4x16xbf16>
    %217 = vector.shape_cast %216 : vector<1x4x16xbf16> to vector<4x16xbf16>
    %cst_200 = arith.constant dense<0.000000e+00> : vector<4x16xf32>
    %218 = tpu.matmul %217, %152, %cst_200 {dimension_numbers = #tpu.dot_dimension_numbers<[1], [0], [0], [1], [0, 0, 1, 1], [], []>} : vector<4x16xbf16>, vector<16x16xbf16>, vector<4x16xf32> -> vector<4x16xf32>
    %219 = arith.truncf %218 : vector<4x16xf32> to vector<4x16xbf16>
    %c8_201 = arith.constant 8 : index
    %c0_202 = arith.constant 0 : index
    %c0_203 = arith.constant 0 : index
    %220 = vector.load %arg16[%c8_201, %c0_202, %c0_203] : memref<9x16x16xbf16, #tpu.memory_space<vmem>>, vector<1x16x16xbf16>
    %221 = vector.shape_cast %220 : vector<1x16x16xbf16> to vector<16x16xbf16>
    %cst_204 = arith.constant dense<0.000000e+00> : vector<4x16xf32>
    %222 = tpu.matmul %219, %221, %cst_204 {dimension_numbers = #tpu.dot_dimension_numbers<[1], [0], [0], [1], [0, 0, 1, 1], [], []>} : vector<4x16xbf16>, vector<16x16xbf16>, vector<4x16xf32> -> vector<4x16xf32>
    %223 = arith.addf %215, %222 : vector<4x16xf32>
    %c0_205 = arith.constant 0 : index
    %c0_206 = arith.constant 0 : index
    %224 = vector.load %arg17[%c0_205, %c0_206] : memref<1x16xf32, #tpu.memory_space<vmem>>, vector<1x16xf32>
    %225 = vector.broadcast %224 : vector<1x16xf32> to vector<4x16xf32>
    %226 = arith.addf %223, %225 : vector<4x16xf32>
    %cst_207 = arith.constant 0.000000e+00 : f32
    %227 = vector.broadcast %cst_207 : f32 to vector<4x16xf32>
    %228 = arith.maximumf %226, %227 : vector<4x16xf32>
    %229 = arith.truncf %228 : vector<4x16xf32> to vector<4x16xbf16>
    %c0_208 = arith.constant 0 : index
    %c0_209 = arith.constant 0 : index
    %230 = vector.load %arg23[%c0_208, %c0_209] : memref<4x16xbf16, #tpu.memory_space<vmem>>, vector<4x16xbf16>
    %cst_210 = arith.constant dense<0.000000e+00> : vector<4x32xf32>
    %231 = tpu.matmul %230, %144, %cst_210 {dimension_numbers = #tpu.dot_dimension_numbers<[1], [0], [0], [1], [0, 0, 1, 1], [], []>} : vector<4x16xbf16>, vector<16x32xbf16>, vector<4x32xf32> -> vector<4x32xf32>
    %232 = arith.truncf %231 : vector<4x32xf32> to vector<4x32xbf16>
    %c0_211 = arith.constant 0 : index
    %c0_212 = arith.constant 0 : index
    %233 = vector.load %arg21[%c0_211, %c0_212] : memref<32x64xbf16, #tpu.memory_space<vmem>>, vector<32x64xbf16>
    %cst_213 = arith.constant dense<0.000000e+00> : vector<4x64xf32>
    %234 = tpu.matmul %232, %233, %cst_213 {dimension_numbers = #tpu.dot_dimension_numbers<[1], [0], [0], [1], [0, 0, 1, 1], [], []>} : vector<4x32xbf16>, vector<32x64xbf16>, vector<4x64xf32> -> vector<4x64xf32>
    %c0_214 = arith.constant 0 : index
    %c0_215 = arith.constant 0 : index
    %235 = vector.load %arg22[%c0_214, %c0_215] : memref<1x64xf32, #tpu.memory_space<vmem>>, vector<1x64xf32>
    %236 = vector.broadcast %235 : vector<1x64xf32> to vector<4x64xf32>
    %237 = arith.addf %234, %236 : vector<4x64xf32>
    %c0_216 = arith.constant 0 : index
    %c0_217 = arith.constant 0 : index
    %238 = vector.load %arg19[%c0_216, %c0_217] : memref<16x64xbf16, #tpu.memory_space<vmem>>, vector<16x64xbf16>
    %cst_218 = arith.constant dense<0.000000e+00> : vector<4x64xf32>
    %239 = tpu.matmul %229, %238, %cst_218 {dimension_numbers = #tpu.dot_dimension_numbers<[1], [0], [0], [1], [0, 0, 1, 1], [], []>} : vector<4x16xbf16>, vector<16x64xbf16>, vector<4x64xf32> -> vector<4x64xf32>
    %c0_219 = arith.constant 0 : index
    %c0_220 = arith.constant 0 : index
    %240 = vector.load %arg20[%c0_219, %c0_220] : memref<1x64xf32, #tpu.memory_space<vmem>>, vector<1x64xf32>
    %241 = vector.broadcast %240 : vector<1x64xf32> to vector<4x64xf32>
    %242 = arith.addf %239, %241 : vector<4x64xf32>
    %243 = arith.addf %242, %237 : vector<4x64xf32>
    %cst_221 = arith.constant 0.000000e+00 : f32
    %244 = vector.broadcast %cst_221 : f32 to vector<4x64xf32>
    %245 = arith.maximumf %243, %244 : vector<4x64xf32>
    %246 = arith.truncf %245 : vector<4x64xf32> to vector<4x64xbf16>
    %c0_222 = arith.constant 0 : index
    %c0_223 = arith.constant 0 : index
    %247 = vector.load %arg24[%c0_222, %c0_223] : memref<64x32xbf16, #tpu.memory_space<vmem>>, vector<64x32xbf16>
    %cst_224 = arith.constant dense<0.000000e+00> : vector<4x32xf32>
    %248 = tpu.matmul %246, %247, %cst_224 {dimension_numbers = #tpu.dot_dimension_numbers<[1], [0], [0], [1], [0, 0, 1, 1], [], []>} : vector<4x64xbf16>, vector<64x32xbf16>, vector<4x32xf32> -> vector<4x32xf32>
    %c0_225 = arith.constant 0 : index
    %c0_226 = arith.constant 0 : index
    %249 = vector.load %arg25[%c0_225, %c0_226] : memref<1x32xf32, #tpu.memory_space<vmem>>, vector<1x32xf32>
    %250 = vector.broadcast %249 : vector<1x32xf32> to vector<4x32xf32>
    %251 = arith.addf %248, %250 : vector<4x32xf32>
    %cst_227 = arith.constant 0.000000e+00 : f32
    %252 = vector.broadcast %cst_227 : f32 to vector<4x32xf32>
    %253 = arith.maximumf %251, %252 : vector<4x32xf32>
    %254 = arith.truncf %253 : vector<4x32xf32> to vector<4x32xbf16>
    %c0_228 = arith.constant 0 : index
    %c0_229 = arith.constant 0 : index
    %c0_230 = arith.constant 0 : index
    %255 = vector.load %arg28[%c0_228, %c0_229, %c0_230] : memref<9x1x4xbf16, #tpu.memory_space<vmem>>, vector<1x1x4xbf16>
    %256 = vector.shape_cast %255 : vector<1x1x4xbf16> to vector<1x4xbf16>
    %cst_231 = arith.constant dense<0.000000e+00> : vector<1x32xf32>
    %257 = tpu.matmul %256, %254, %cst_231 {dimension_numbers = #tpu.dot_dimension_numbers<[1], [0], [0], [1], [0, 0, 1, 1], [], []>} : vector<1x4xbf16>, vector<4x32xbf16>, vector<1x32xf32> -> vector<1x32xf32>
    %258 = arith.truncf %257 : vector<1x32xf32> to vector<1x32xbf16>
    %c0_232 = arith.constant 0 : index
    %c0_233 = arith.constant 0 : index
    %c0_234 = arith.constant 0 : index
    %259 = vector.load %arg26[%c0_232, %c0_233, %c0_234] : memref<9x32x32xbf16, #tpu.memory_space<vmem>>, vector<1x32x32xbf16>
    %260 = vector.shape_cast %259 : vector<1x32x32xbf16> to vector<32x32xbf16>
    %cst_235 = arith.constant dense<0.000000e+00> : vector<1x32xf32>
    %261 = tpu.matmul %258, %260, %cst_235 {dimension_numbers = #tpu.dot_dimension_numbers<[1], [0], [0], [1], [0, 0, 1, 1], [], []>} : vector<1x32xbf16>, vector<32x32xbf16>, vector<1x32xf32> -> vector<1x32xf32>
    %c1_236 = arith.constant 1 : index
    %c0_237 = arith.constant 0 : index
    %c0_238 = arith.constant 0 : index
    %262 = vector.load %arg28[%c1_236, %c0_237, %c0_238] : memref<9x1x4xbf16, #tpu.memory_space<vmem>>, vector<1x1x4xbf16>
    %263 = vector.shape_cast %262 : vector<1x1x4xbf16> to vector<1x4xbf16>
    %cst_239 = arith.constant dense<0.000000e+00> : vector<1x32xf32>
    %264 = tpu.matmul %263, %254, %cst_239 {dimension_numbers = #tpu.dot_dimension_numbers<[1], [0], [0], [1], [0, 0, 1, 1], [], []>} : vector<1x4xbf16>, vector<4x32xbf16>, vector<1x32xf32> -> vector<1x32xf32>
    %265 = arith.truncf %264 : vector<1x32xf32> to vector<1x32xbf16>
    %c1_240 = arith.constant 1 : index
    %c0_241 = arith.constant 0 : index
    %c0_242 = arith.constant 0 : index
    %266 = vector.load %arg26[%c1_240, %c0_241, %c0_242] : memref<9x32x32xbf16, #tpu.memory_space<vmem>>, vector<1x32x32xbf16>
    %267 = vector.shape_cast %266 : vector<1x32x32xbf16> to vector<32x32xbf16>
    %cst_243 = arith.constant dense<0.000000e+00> : vector<1x32xf32>
    %268 = tpu.matmul %265, %267, %cst_243 {dimension_numbers = #tpu.dot_dimension_numbers<[1], [0], [0], [1], [0, 0, 1, 1], [], []>} : vector<1x32xbf16>, vector<32x32xbf16>, vector<1x32xf32> -> vector<1x32xf32>
    %269 = arith.addf %261, %268 : vector<1x32xf32>
    %c2_244 = arith.constant 2 : index
    %c0_245 = arith.constant 0 : index
    %c0_246 = arith.constant 0 : index
    %270 = vector.load %arg28[%c2_244, %c0_245, %c0_246] : memref<9x1x4xbf16, #tpu.memory_space<vmem>>, vector<1x1x4xbf16>
    %271 = vector.shape_cast %270 : vector<1x1x4xbf16> to vector<1x4xbf16>
    %cst_247 = arith.constant dense<0.000000e+00> : vector<1x32xf32>
    %272 = tpu.matmul %271, %254, %cst_247 {dimension_numbers = #tpu.dot_dimension_numbers<[1], [0], [0], [1], [0, 0, 1, 1], [], []>} : vector<1x4xbf16>, vector<4x32xbf16>, vector<1x32xf32> -> vector<1x32xf32>
    %273 = arith.truncf %272 : vector<1x32xf32> to vector<1x32xbf16>
    %c2_248 = arith.constant 2 : index
    %c0_249 = arith.constant 0 : index
    %c0_250 = arith.constant 0 : index
    %274 = vector.load %arg26[%c2_248, %c0_249, %c0_250] : memref<9x32x32xbf16, #tpu.memory_space<vmem>>, vector<1x32x32xbf16>
    %275 = vector.shape_cast %274 : vector<1x32x32xbf16> to vector<32x32xbf16>
    %cst_251 = arith.constant dense<0.000000e+00> : vector<1x32xf32>
    %276 = tpu.matmul %273, %275, %cst_251 {dimension_numbers = #tpu.dot_dimension_numbers<[1], [0], [0], [1], [0, 0, 1, 1], [], []>} : vector<1x32xbf16>, vector<32x32xbf16>, vector<1x32xf32> -> vector<1x32xf32>
    %277 = arith.addf %269, %276 : vector<1x32xf32>
    %c3_252 = arith.constant 3 : index
    %c0_253 = arith.constant 0 : index
    %c0_254 = arith.constant 0 : index
    %278 = vector.load %arg28[%c3_252, %c0_253, %c0_254] : memref<9x1x4xbf16, #tpu.memory_space<vmem>>, vector<1x1x4xbf16>
    %279 = vector.shape_cast %278 : vector<1x1x4xbf16> to vector<1x4xbf16>
    %cst_255 = arith.constant dense<0.000000e+00> : vector<1x32xf32>
    %280 = tpu.matmul %279, %254, %cst_255 {dimension_numbers = #tpu.dot_dimension_numbers<[1], [0], [0], [1], [0, 0, 1, 1], [], []>} : vector<1x4xbf16>, vector<4x32xbf16>, vector<1x32xf32> -> vector<1x32xf32>
    %281 = arith.truncf %280 : vector<1x32xf32> to vector<1x32xbf16>
    %c3_256 = arith.constant 3 : index
    %c0_257 = arith.constant 0 : index
    %c0_258 = arith.constant 0 : index
    %282 = vector.load %arg26[%c3_256, %c0_257, %c0_258] : memref<9x32x32xbf16, #tpu.memory_space<vmem>>, vector<1x32x32xbf16>
    %283 = vector.shape_cast %282 : vector<1x32x32xbf16> to vector<32x32xbf16>
    %cst_259 = arith.constant dense<0.000000e+00> : vector<1x32xf32>
    %284 = tpu.matmul %281, %283, %cst_259 {dimension_numbers = #tpu.dot_dimension_numbers<[1], [0], [0], [1], [0, 0, 1, 1], [], []>} : vector<1x32xbf16>, vector<32x32xbf16>, vector<1x32xf32> -> vector<1x32xf32>
    %285 = arith.addf %277, %284 : vector<1x32xf32>
    %c4_260 = arith.constant 4 : index
    %c0_261 = arith.constant 0 : index
    %c0_262 = arith.constant 0 : index
    %286 = vector.load %arg28[%c4_260, %c0_261, %c0_262] : memref<9x1x4xbf16, #tpu.memory_space<vmem>>, vector<1x1x4xbf16>
    %287 = vector.shape_cast %286 : vector<1x1x4xbf16> to vector<1x4xbf16>
    %cst_263 = arith.constant dense<0.000000e+00> : vector<1x32xf32>
    %288 = tpu.matmul %287, %254, %cst_263 {dimension_numbers = #tpu.dot_dimension_numbers<[1], [0], [0], [1], [0, 0, 1, 1], [], []>} : vector<1x4xbf16>, vector<4x32xbf16>, vector<1x32xf32> -> vector<1x32xf32>
    %289 = arith.truncf %288 : vector<1x32xf32> to vector<1x32xbf16>
    %c4_264 = arith.constant 4 : index
    %c0_265 = arith.constant 0 : index
    %c0_266 = arith.constant 0 : index
    %290 = vector.load %arg26[%c4_264, %c0_265, %c0_266] : memref<9x32x32xbf16, #tpu.memory_space<vmem>>, vector<1x32x32xbf16>
    %291 = vector.shape_cast %290 : vector<1x32x32xbf16> to vector<32x32xbf16>
    %cst_267 = arith.constant dense<0.000000e+00> : vector<1x32xf32>
    %292 = tpu.matmul %289, %291, %cst_267 {dimension_numbers = #tpu.dot_dimension_numbers<[1], [0], [0], [1], [0, 0, 1, 1], [], []>} : vector<1x32xbf16>, vector<32x32xbf16>, vector<1x32xf32> -> vector<1x32xf32>
    %293 = arith.addf %285, %292 : vector<1x32xf32>
    %c5_268 = arith.constant 5 : index
    %c0_269 = arith.constant 0 : index
    %c0_270 = arith.constant 0 : index
    %294 = vector.load %arg28[%c5_268, %c0_269, %c0_270] : memref<9x1x4xbf16, #tpu.memory_space<vmem>>, vector<1x1x4xbf16>
    %295 = vector.shape_cast %294 : vector<1x1x4xbf16> to vector<1x4xbf16>
    %cst_271 = arith.constant dense<0.000000e+00> : vector<1x32xf32>
    %296 = tpu.matmul %295, %254, %cst_271 {dimension_numbers = #tpu.dot_dimension_numbers<[1], [0], [0], [1], [0, 0, 1, 1], [], []>} : vector<1x4xbf16>, vector<4x32xbf16>, vector<1x32xf32> -> vector<1x32xf32>
    %297 = arith.truncf %296 : vector<1x32xf32> to vector<1x32xbf16>
    %c5_272 = arith.constant 5 : index
    %c0_273 = arith.constant 0 : index
    %c0_274 = arith.constant 0 : index
    %298 = vector.load %arg26[%c5_272, %c0_273, %c0_274] : memref<9x32x32xbf16, #tpu.memory_space<vmem>>, vector<1x32x32xbf16>
    %299 = vector.shape_cast %298 : vector<1x32x32xbf16> to vector<32x32xbf16>
    %cst_275 = arith.constant dense<0.000000e+00> : vector<1x32xf32>
    %300 = tpu.matmul %297, %299, %cst_275 {dimension_numbers = #tpu.dot_dimension_numbers<[1], [0], [0], [1], [0, 0, 1, 1], [], []>} : vector<1x32xbf16>, vector<32x32xbf16>, vector<1x32xf32> -> vector<1x32xf32>
    %301 = arith.addf %293, %300 : vector<1x32xf32>
    %c6_276 = arith.constant 6 : index
    %c0_277 = arith.constant 0 : index
    %c0_278 = arith.constant 0 : index
    %302 = vector.load %arg28[%c6_276, %c0_277, %c0_278] : memref<9x1x4xbf16, #tpu.memory_space<vmem>>, vector<1x1x4xbf16>
    %303 = vector.shape_cast %302 : vector<1x1x4xbf16> to vector<1x4xbf16>
    %cst_279 = arith.constant dense<0.000000e+00> : vector<1x32xf32>
    %304 = tpu.matmul %303, %254, %cst_279 {dimension_numbers = #tpu.dot_dimension_numbers<[1], [0], [0], [1], [0, 0, 1, 1], [], []>} : vector<1x4xbf16>, vector<4x32xbf16>, vector<1x32xf32> -> vector<1x32xf32>
    %305 = arith.truncf %304 : vector<1x32xf32> to vector<1x32xbf16>
    %c6_280 = arith.constant 6 : index
    %c0_281 = arith.constant 0 : index
    %c0_282 = arith.constant 0 : index
    %306 = vector.load %arg26[%c6_280, %c0_281, %c0_282] : memref<9x32x32xbf16, #tpu.memory_space<vmem>>, vector<1x32x32xbf16>
    %307 = vector.shape_cast %306 : vector<1x32x32xbf16> to vector<32x32xbf16>
    %cst_283 = arith.constant dense<0.000000e+00> : vector<1x32xf32>
    %308 = tpu.matmul %305, %307, %cst_283 {dimension_numbers = #tpu.dot_dimension_numbers<[1], [0], [0], [1], [0, 0, 1, 1], [], []>} : vector<1x32xbf16>, vector<32x32xbf16>, vector<1x32xf32> -> vector<1x32xf32>
    %309 = arith.addf %301, %308 : vector<1x32xf32>
    %c7_284 = arith.constant 7 : index
    %c0_285 = arith.constant 0 : index
    %c0_286 = arith.constant 0 : index
    %310 = vector.load %arg28[%c7_284, %c0_285, %c0_286] : memref<9x1x4xbf16, #tpu.memory_space<vmem>>, vector<1x1x4xbf16>
    %311 = vector.shape_cast %310 : vector<1x1x4xbf16> to vector<1x4xbf16>
    %cst_287 = arith.constant dense<0.000000e+00> : vector<1x32xf32>
    %312 = tpu.matmul %311, %254, %cst_287 {dimension_numbers = #tpu.dot_dimension_numbers<[1], [0], [0], [1], [0, 0, 1, 1], [], []>} : vector<1x4xbf16>, vector<4x32xbf16>, vector<1x32xf32> -> vector<1x32xf32>
    %313 = arith.truncf %312 : vector<1x32xf32> to vector<1x32xbf16>
    %c7_288 = arith.constant 7 : index
    %c0_289 = arith.constant 0 : index
    %c0_290 = arith.constant 0 : index
    %314 = vector.load %arg26[%c7_288, %c0_289, %c0_290] : memref<9x32x32xbf16, #tpu.memory_space<vmem>>, vector<1x32x32xbf16>
    %315 = vector.shape_cast %314 : vector<1x32x32xbf16> to vector<32x32xbf16>
    %cst_291 = arith.constant dense<0.000000e+00> : vector<1x32xf32>
    %316 = tpu.matmul %313, %315, %cst_291 {dimension_numbers = #tpu.dot_dimension_numbers<[1], [0], [0], [1], [0, 0, 1, 1], [], []>} : vector<1x32xbf16>, vector<32x32xbf16>, vector<1x32xf32> -> vector<1x32xf32>
    %317 = arith.addf %309, %316 : vector<1x32xf32>
    %c8_292 = arith.constant 8 : index
    %c0_293 = arith.constant 0 : index
    %c0_294 = arith.constant 0 : index
    %318 = vector.load %arg28[%c8_292, %c0_293, %c0_294] : memref<9x1x4xbf16, #tpu.memory_space<vmem>>, vector<1x1x4xbf16>
    %319 = vector.shape_cast %318 : vector<1x1x4xbf16> to vector<1x4xbf16>
    %cst_295 = arith.constant dense<0.000000e+00> : vector<1x32xf32>
    %320 = tpu.matmul %319, %254, %cst_295 {dimension_numbers = #tpu.dot_dimension_numbers<[1], [0], [0], [1], [0, 0, 1, 1], [], []>} : vector<1x4xbf16>, vector<4x32xbf16>, vector<1x32xf32> -> vector<1x32xf32>
    %321 = arith.truncf %320 : vector<1x32xf32> to vector<1x32xbf16>
    %c8_296 = arith.constant 8 : index
    %c0_297 = arith.constant 0 : index
    %c0_298 = arith.constant 0 : index
    %322 = vector.load %arg26[%c8_296, %c0_297, %c0_298] : memref<9x32x32xbf16, #tpu.memory_space<vmem>>, vector<1x32x32xbf16>
    %323 = vector.shape_cast %322 : vector<1x32x32xbf16> to vector<32x32xbf16>
    %cst_299 = arith.constant dense<0.000000e+00> : vector<1x32xf32>
    %324 = tpu.matmul %321, %323, %cst_299 {dimension_numbers = #tpu.dot_dimension_numbers<[1], [0], [0], [1], [0, 0, 1, 1], [], []>} : vector<1x32xbf16>, vector<32x32xbf16>, vector<1x32xf32> -> vector<1x32xf32>
    %325 = arith.addf %317, %324 : vector<1x32xf32>
    %c0_300 = arith.constant 0 : index
    %c0_301 = arith.constant 0 : index
    %326 = vector.load %arg27[%c0_300, %c0_301] : memref<1x32xf32, #tpu.memory_space<vmem>>, vector<1x32xf32>
    %327 = arith.addf %325, %326 : vector<1x32xf32>
    %cst_302 = arith.constant 0.000000e+00 : f32
    %328 = vector.broadcast %cst_302 : f32 to vector<1x32xf32>
    %329 = arith.maximumf %327, %328 : vector<1x32xf32>
    %330 = arith.truncf %329 : vector<1x32xf32> to vector<1x32xbf16>
    %c0_303 = arith.constant 0 : index
    %c0_304 = arith.constant 0 : index
    %331 = vector.load %arg33[%c0_303, %c0_304] : memref<1x4xbf16, #tpu.memory_space<vmem>>, vector<1x4xbf16>
    %cst_305 = arith.constant dense<0.000000e+00> : vector<1x64xf32>
    %332 = tpu.matmul %331, %246, %cst_305 {dimension_numbers = #tpu.dot_dimension_numbers<[1], [0], [0], [1], [0, 0, 1, 1], [], []>} : vector<1x4xbf16>, vector<4x64xbf16>, vector<1x64xf32> -> vector<1x64xf32>
    %333 = arith.truncf %332 : vector<1x64xf32> to vector<1x64xbf16>
    %c0_306 = arith.constant 0 : index
    %c0_307 = arith.constant 0 : index
    %334 = vector.load %arg31[%c0_306, %c0_307] : memref<64x128xbf16, #tpu.memory_space<vmem>>, vector<64x128xbf16>
    %cst_308 = arith.constant dense<0.000000e+00> : vector<1x128xf32>
    %335 = tpu.matmul %333, %334, %cst_308 {dimension_numbers = #tpu.dot_dimension_numbers<[1], [0], [0], [1], [0, 0, 1, 1], [], []>} : vector<1x64xbf16>, vector<64x128xbf16>, vector<1x128xf32> -> vector<1x128xf32>
    %c0_309 = arith.constant 0 : index
    %c0_310 = arith.constant 0 : index
    %336 = vector.load %arg32[%c0_309, %c0_310] : memref<1x128xf32, #tpu.memory_space<vmem>>, vector<1x128xf32>
    %337 = arith.addf %335, %336 : vector<1x128xf32>
    %c0_311 = arith.constant 0 : index
    %c0_312 = arith.constant 0 : index
    %338 = vector.load %arg29[%c0_311, %c0_312] : memref<32x128xbf16, #tpu.memory_space<vmem>>, vector<32x128xbf16>
    %cst_313 = arith.constant dense<0.000000e+00> : vector<1x128xf32>
    %339 = tpu.matmul %330, %338, %cst_313 {dimension_numbers = #tpu.dot_dimension_numbers<[1], [0], [0], [1], [0, 0, 1, 1], [], []>} : vector<1x32xbf16>, vector<32x128xbf16>, vector<1x128xf32> -> vector<1x128xf32>
    %c0_314 = arith.constant 0 : index
    %c0_315 = arith.constant 0 : index
    %340 = vector.load %arg30[%c0_314, %c0_315] : memref<1x128xf32, #tpu.memory_space<vmem>>, vector<1x128xf32>
    %341 = arith.addf %339, %340 : vector<1x128xf32>
    %342 = arith.addf %341, %337 : vector<1x128xf32>
    %cst_316 = arith.constant 0.000000e+00 : f32
    %343 = vector.broadcast %cst_316 : f32 to vector<1x128xf32>
    %344 = arith.maximumf %342, %343 : vector<1x128xf32>
    %345 = arith.truncf %344 : vector<1x128xf32> to vector<1x128xbf16>
    %346 = arith.extf %345 : vector<1x128xbf16> to vector<1x128xf32>
    %c0_317 = arith.constant 0 : index
    %c0_318 = arith.constant 0 : index
    %c0_319 = arith.constant 0 : index
    %347 = vector.load %arg34[%c0_317, %c0_318, %c0_319] : memref<1x1x128xf32, #tpu.memory_space<vmem>>, vector<1x1x128xf32>
    %348 = vector.shape_cast %347 : vector<1x1x128xf32> to vector<1x128xf32>
    %349 = vector.shape_cast %346 : vector<1x128xf32> to vector<1x1x128xf32>
    tpu.vector_store %arg34[%c0_317, %c0_318, %c0_319], %349 {strides = array<i32>} : memref<1x1x128xf32, #tpu.memory_space<vmem>>, vector<1x1x128xf32>,
    return
  }
  func.func @transform_0(%arg0: i32) -> (i32, i32, i32) {
    %c0_i32 = arith.constant 0 : i32
    %c0_i32_0 = arith.constant 0 : i32
    %c0_i32_1 = arith.constant 0 : i32
    return %arg0, %c0_i32, %c0_i32_0 : i32, i32, i32
  }
  func.func @transform_1(%arg0: i32) -> (i32, i32) {
    %c0_i32 = arith.constant 0 : i32
    %c0_i32_0 = arith.constant 0 : i32
    %c0_i32_1 = arith.constant 0 : i32
    return %c0_i32, %c0_i32_0 : i32, i32
  }
  func.func @transform_2(%arg0: i32) -> (i32, i32) {
    %c0_i32 = arith.constant 0 : i32
    %c0_i32_0 = arith.constant 0 : i32
    %c0_i32_1 = arith.constant 0 : i32
    return %c0_i32, %c0_i32_0 : i32, i32
  }
  func.func @transform_3(%arg0: i32) -> (i32, i32, i32) {
    %c0_i32 = arith.constant 0 : i32
    %c0_i32_0 = arith.constant 0 : i32
    %c0_i32_1 = arith.constant 0 : i32
    %c0_i32_2 = arith.constant 0 : i32
    return %c0_i32, %c0_i32_0, %c0_i32_1 : i32, i32, i32
  }
  func.func @transform_4(%arg0: i32) -> (i32, i32) {
    %c0_i32 = arith.constant 0 : i32
    %c0_i32_0 = arith.constant 0 : i32
    %c0_i32_1 = arith.constant 0 : i32
    return %c0_i32, %c0_i32_0 : i32, i32
  }
  func.func @transform_5(%arg0: i32) -> (i32, i32) {
    %c0_i32 = arith.constant 0 : i32
    %c0_i32_0 = arith.constant 0 : i32
    %c0_i32_1 = arith.constant 0 : i32
    return %c0_i32, %c0_i32_0 : i32, i32
  }
  func.func @transform_6(%arg0: i32) -> (i32, i32, i32) {
    %c0_i32 = arith.constant 0 : i32
    %c0_i32_0 = arith.constant 0 : i32
    %c0_i32_1 = arith.constant 0 : i32
    %c0_i32_2 = arith.constant 0 : i32
    return %c0_i32, %c0_i32_0, %c0_i32_1 : i32, i32, i32
  }
  func.func @transform_7(%arg0: i32) -> (i32, i32) {
    %c0_i32 = arith.constant 0 : i32
    %c0_i32_0 = arith.constant 0 : i32
    %c0_i32_1 = arith.constant 0 : i32
    return %c0_i32, %c0_i32_0 : i32, i32
  }
  func.func @transform_8(%arg0: i32) -> (i32, i32, i32) {
    %c0_i32 = arith.constant 0 : i32
    %c0_i32_0 = arith.constant 0 : i32
    %c0_i32_1 = arith.constant 0 : i32
    %c0_i32_2 = arith.constant 0 : i32
    return %c0_i32, %c0_i32_0, %c0_i32_1 : i32, i32, i32
  }
  func.func @transform_9(%arg0: i32) -> (i32, i32) {
    %c0_i32 = arith.constant 0 : i32
    %c0_i32_0 = arith.constant 0 : i32
    %c0_i32_1 = arith.constant 0 : i32
    return %c0_i32, %c0_i32_0 : i32, i32
  }
  func.func @transform_10(%arg0: i32) -> (i32, i32) {
    %c0_i32 = arith.constant 0 : i32
    %c0_i32_0 = arith.constant 0 : i32
    %c0_i32_1 = arith.constant 0 : i32
    return %c0_i32, %c0_i32_0 : i32, i32
  }
  func.func @transform_11(%arg0: i32) -> (i32, i32) {
    %c0_i32 = arith.constant 0 : i32
    %c0_i32_0 = arith.constant 0 : i32
    %c0_i32_1 = arith.constant 0 : i32
    return %c0_i32, %c0_i32_0 : i32, i32
  }
  func.func @transform_12(%arg0: i32) -> (i32, i32) {
    %c0_i32 = arith.constant 0 : i32
    %c0_i32_0 = arith.constant 0 : i32
    %c0_i32_1 = arith.constant 0 : i32
    return %c0_i32, %c0_i32_0 : i32, i32
  }
  func.func @transform_13(%arg0: i32) -> (i32, i32) {
    %c0_i32 = arith.constant 0 : i32
    %c0_i32_0 = arith.constant 0 : i32
    %c0_i32_1 = arith.constant 0 : i32
    return %c0_i32, %c0_i32_0 : i32, i32
  }
  func.func @transform_14(%arg0: i32) -> (i32, i32) {
    %c0_i32 = arith.constant 0 : i32
    %c0_i32_0 = arith.constant 0 : i32
    %c0_i32_1 = arith.constant 0 : i32
    return %c0_i32, %c0_i32_0 : i32, i32
  }
  func.func @transform_15(%arg0: i32) -> (i32, i32, i32) {
    %c0_i32 = arith.constant 0 : i32
    %c0_i32_0 = arith.constant 0 : i32
    %c0_i32_1 = arith.constant 0 : i32
    %c0_i32_2 = arith.constant 0 : i32
    return %c0_i32, %c0_i32_0, %c0_i32_1 : i32, i32, i32
  }
  func.func @transform_16(%arg0: i32) -> (i32, i32) {
    %c0_i32 = arith.constant 0 : i32
    %c0_i32_0 = arith.constant 0 : i32
    %c0_i32_1 = arith.constant 0 : i32
    return %c0_i32, %c0_i32_0 : i32, i32
  }
  func.func @transform_17(%arg0: i32) -> (i32, i32, i32) {
    %c0_i32 = arith.constant 0 : i32
    %c0_i32_0 = arith.constant 0 : i32
    %c0_i32_1 = arith.constant 0 : i32
    %c0_i32_2 = arith.constant 0 : i32
    return %c0_i32, %c0_i32_0, %c0_i32_1 : i32, i32, i32
  }
  func.func @transform_18(%arg0: i32) -> (i32, i32) {
    %c0_i32 = arith.constant 0 : i32
    %c0_i32_0 = arith.constant 0 : i32
    %c0_i32_1 = arith.constant 0 : i32
    return %c0_i32, %c0_i32_0 : i32, i32
  }
  func.func @transform_19(%arg0: i32) -> (i32, i32) {
    %c0_i32 = arith.constant 0 : i32
    %c0_i32_0 = arith.constant 0 : i32
    %c0_i32_1 = arith.constant 0 : i32
    return %c0_i32, %c0_i32_0 : i32, i32
  }
  func.func @transform_20(%arg0: i32) -> (i32, i32) {
    %c0_i32 = arith.constant 0 : i32
    %c0_i32_0 = arith.constant 0 : i32
    %c0_i32_1 = arith.constant 0 : i32
    return %c0_i32, %c0_i32_0 : i32, i32
  }
  func.func @transform_21(%arg0: i32) -> (i32, i32) {
    %c0_i32 = arith.constant 0 : i32
    %c0_i32_0 = arith.constant 0 : i32
    %c0_i32_1 = arith.constant 0 : i32
    return %c0_i32, %c0_i32_0 : i32, i32
  }
  func.func @transform_22(%arg0: i32) -> (i32, i32) {
    %c0_i32 = arith.constant 0 : i32
    %c0_i32_0 = arith.constant 0 : i32
    %c0_i32_1 = arith.constant 0 : i32
    return %c0_i32, %c0_i32_0 : i32, i32
  }
  func.func @transform_23(%arg0: i32) -> (i32, i32) {
    %c0_i32 = arith.constant 0 : i32
    %c0_i32_0 = arith.constant 0 : i32
    %c0_i32_1 = arith.constant 0 : i32
    return %c0_i32, %c0_i32_0 : i32, i32
  }
  func.func @transform_24(%arg0: i32) -> (i32, i32) {
    %c0_i32 = arith.constant 0 : i32
    %c0_i32_0 = arith.constant 0 : i32
    %c0_i32_1 = arith.constant 0 : i32
    return %c0_i32, %c0_i32_0 : i32, i32
  }
  func.func @transform_25(%arg0: i32) -> (i32, i32, i32) {
    %c0_i32 = arith.constant 0 : i32
    %c0_i32_0 = arith.constant 0 : i32
    %c0_i32_1 = arith.constant 0 : i32
    %c0_i32_2 = arith.constant 0 : i32
    return %c0_i32, %c0_i32_0, %c0_i32_1 : i32, i32, i32
  }
  func.func @transform_26(%arg0: i32) -> (i32, i32) {
    %c0_i32 = arith.constant 0 : i32
    %c0_i32_0 = arith.constant 0 : i32
    %c0_i32_1 = arith.constant 0 : i32
    return %c0_i32, %c0_i32_0 : i32, i32
  }
  func.func @transform_27(%arg0: i32) -> (i32, i32, i32) {
    %c0_i32 = arith.constant 0 : i32
    %c0_i32_0 = arith.constant 0 : i32
    %c0_i32_1 = arith.constant 0 : i32
    %c0_i32_2 = arith.constant 0 : i32
    return %c0_i32, %c0_i32_0, %c0_i32_1 : i32, i32, i32
  }
  func.func @transform_28(%arg0: i32) -> (i32, i32) {
    %c0_i32 = arith.constant 0 : i32
    %c0_i32_0 = arith.constant 0 : i32
    %c0_i32_1 = arith.constant 0 : i32
    return %c0_i32, %c0_i32_0 : i32, i32
  }
  func.func @transform_29(%arg0: i32) -> (i32, i32) {
    %c0_i32 = arith.constant 0 : i32
    %c0_i32_0 = arith.constant 0 : i32
    %c0_i32_1 = arith.constant 0 : i32
    return %c0_i32, %c0_i32_0 : i32, i32
  }
  func.func @transform_30(%arg0: i32) -> (i32, i32) {
    %c0_i32 = arith.constant 0 : i32
    %c0_i32_0 = arith.constant 0 : i32
    %c0_i32_1 = arith.constant 0 : i32
    return %c0_i32, %c0_i32_0 : i32, i32
  }
  func.func @transform_31(%arg0: i32) -> (i32, i32) {
    %c0_i32 = arith.constant 0 : i32
    %c0_i32_0 = arith.constant 0 : i32
    %c0_i32_1 = arith.constant 0 : i32
    return %c0_i32, %c0_i32_0 : i32, i32
  }
  func.func @transform_32(%arg0: i32) -> (i32, i32) {
    %c0_i32 = arith.constant 0 : i32
    %c0_i32_0 = arith.constant 0 : i32
    %c0_i32_1 = arith.constant 0 : i32
    return %c0_i32, %c0_i32_0 : i32, i32
  }
  func.func @transform_33(%arg0: i32) -> (i32, i32, i32) {
    %c0_i32 = arith.constant 0 : i32
    %c0_i32_0 = arith.constant 0 : i32
    %c0_i32_1 = arith.constant 0 : i32
    return %arg0, %c0_i32, %c0_i32_0 : i32, i32, i32
  }
}

</mosaic_0001>

<llo_original>
// kernel: _lambda_.1
$region0: #{_lambda_.1}
  #allocation0 [shape = 'u32[]', space=smem, size = 0x4, offset = 0x4, fixed_abs, tag = 'smem constant byte address 0x4 - core index']
  #allocation1 [shape = 'u32[144,128]{1,0:T(1,128)}', space=vmem, size = 0x12000, scoped, tag = 'internal scratch']
  %s0 = inlined_call_operand.smem [shape: u32[34], index: -1, kind: input, shape index: {}]
  %s1 = sld [smem:[%s0]]
  %s2 = scalar_lea.smem %s0, 1
  %s3 = sld [smem:[%s2]]
  %s4 = scalar_lea.smem %s0, 2
  %s5 = sld [smem:[%s4]]
  %s6 = scalar_lea.smem %s0, 3
  %s7 = sld [smem:[%s6]]
  %s8 = scalar_lea.smem %s0, 4
  %s9 = sld [smem:[%s8]]
  %s10 = scalar_lea.smem %s0, 5
  %s11 = sld [smem:[%s10]]
  %s12 = scalar_lea.smem %s0, 6
  %s13 = sld [smem:[%s12]]
  %s14 = scalar_lea.smem %s0, 7
  %s15 = sld [smem:[%s14]]
  %s16 = scalar_lea.smem %s0, 8
  %s17 = sld [smem:[%s16]]
  %s18 = scalar_lea.smem %s0, 9
  %s19 = sld [smem:[%s18]]
  %s20 = scalar_lea.smem %s0, 10
  %s21 = sld [smem:[%s20]]
  %s22 = scalar_lea.smem %s0, 11
  %s23 = sld [smem:[%s22]]
  %s24 = scalar_lea.smem %s0, 12
  %s25 = sld [smem:[%s24]]
  %s26 = scalar_lea.smem %s0, 13
  %s27 = sld [smem:[%s26]]
  %s28 = scalar_lea.smem %s0, 14
  %s29 = sld [smem:[%s28]]
  %s30 = scalar_lea.smem %s0, 15
  %s31 = sld [smem:[%s30]]
  %s32 = scalar_lea.smem %s0, 16
  %s33 = sld [smem:[%s32]]
  %s34 = scalar_lea.smem %s0, 17
  %s35 = sld [smem:[%s34]]
  %s36 = scalar_lea.smem %s0, 18
  %s37 = sld [smem:[%s36]]
  %s38 = scalar_lea.smem %s0, 19
  %s39 = sld [smem:[%s38]]
  %s40 = scalar_lea.smem %s0, 20
  %s41 = sld [smem:[%s40]]
  %s42 = scalar_lea.smem %s0, 21
  %s43 = sld [smem:[%s42]]
  %s44 = scalar_lea.smem %s0, 22
  %s45 = sld [smem:[%s44]]
  %s46 = scalar_lea.smem %s0, 23
  %s47 = sld [smem:[%s46]]
  %s48 = scalar_lea.smem %s0, 24
  %s49 = sld [smem:[%s48]]
  %s50 = scalar_lea.smem %s0, 25
  %s51 = sld [smem:[%s50]]
  %s52 = scalar_lea.smem %s0, 26
  %s53 = sld [smem:[%s52]]
  %s54 = scalar_lea.smem %s0, 27
  %s55 = sld [smem:[%s54]]
  %s56 = scalar_lea.smem %s0, 28
  %s57 = sld [smem:[%s56]]
  %s58 = scalar_lea.smem %s0, 29
  %s59 = sld [smem:[%s58]]
  %s60 = scalar_lea.smem %s0, 30
  %s61 = sld [smem:[%s60]]
  %s62 = scalar_lea.smem %s0, 31
  %s63 = sld [smem:[%s62]]
  %s64 = scalar_lea.smem %s0, 32
  %s65 = sld [smem:[%s64]]
  %s66 = scalar_lea.smem %s0, 33
  %s67 = sld [smem:[%s66]]
  %s68 = sld [smem:[#allocation0]]
  $region165: #{_lambda_.1} parent=0
    _
  %s70 = ssub.s32 1, %s68
  %s71 = scalar_select 0, %s70, %s68
  $region1: #{_lambda_.1} parent=0
    #allocation2 [shape = 'u8[1024]{0}', space=vmem, size = 0x400, scoped, tag = 'output window, operand 0']
    #allocation3 [shape = 's32[2]{0}', space=sflag, size = 0x8, scoped, tag = 'scoped memory for _lambda_.1']
    %72 = vsyncpa [#allocation3], 0
    %s73 = scalar_lea.sflag [#allocation3], 1
    %74 = vsyncpa %s73, 0
    loop: start=0, step=1, limit=4
    $region2: #{_lambda_.1} parent=1 // loop_pre_header
      _
    $region3: #{_lambda_.1} parent=1 // loop_header
      %s76 = sphi 0, %s80
      %p77 = scmp.ge.s32.totalorder %s76, 4
      %s86 = sphi 0, %s88
      %s89 = sphi 0, %s86
      %s90 = sphi 0, %s89
      %s106 = sphi 0, %s90
      %s110 = sphi 0, %s110
      %s112 = sphi 0, %s110
      %s113 = sphi 0, %s112
      %s127 = sphi 0, %s113
      %s131 = sphi 0, %s131
      %s133 = sphi 0, %s131
      %s134 = sphi 0, %s133
      %s148 = sphi 0, %s134
      %s152 = sphi 0, %s152
      %s154 = sphi 0, %s152
      %s155 = sphi 0, %s154
      %s169 = sphi 0, %s155
      %s173 = sphi 0, %s173
      %s175 = sphi 0, %s173
      %s176 = sphi 0, %s175
      %s190 = sphi 0, %s176
      %s194 = sphi 0, %s194
      %s196 = sphi 0, %s194
      %s197 = sphi 0, %s196
      %s211 = sphi 0, %s197
      %s215 = sphi 0, %s215
      %s217 = sphi 0, %s215
      %s218 = sphi 0, %s217
      %s232 = sphi 0, %s218
      %s236 = sphi 0, %s236
      %s238 = sphi 0, %s236
      %s239 = sphi 0, %s238
      %s253 = sphi 0, %s239
      %s257 = sphi 0, %s257
      %s259 = sphi 0, %s257
      %s260 = sphi 0, %s259
      %s274 = sphi 0, %s260
      %s278 = sphi 0, %s278
      %s280 = sphi 0, %s278
      %s281 = sphi 0, %s280
      %s295 = sphi 0, %s281
      %s299 = sphi 0, %s299
      %s301 = sphi 0, %s299
      %s302 = sphi 0, %s301
      %s316 = sphi 0, %s302
      %s320 = sphi 0, %s320
      %s322 = sphi 0, %s320
      %s323 = sphi 0, %s322
      %s337 = sphi 0, %s323
      %s341 = sphi 0, %s341
      %s343 = sphi 0, %s341
      %s344 = sphi 0, %s343
      %s358 = sphi 0, %s344
      %s362 = sphi 0, %s362
      %s364 = sphi 0, %s362
      %s365 = sphi 0, %s364
      %s379 = sphi 0, %s365
      %s383 = sphi 0, %s383
      %s385 = sphi 0, %s383
      %s386 = sphi 0, %s385
      %s400 = sphi 0, %s386
      %s404 = sphi 0, %s404
      %s406 = sphi 0, %s404
      %s407 = sphi 0, %s406
      %s421 = sphi 0, %s407
      %s425 = sphi 0, %s425
      %s427 = sphi 0, %s425
      %s428 = sphi 0, %s427
      %s442 = sphi 0, %s428
      %s446 = sphi 0, %s446
      %s448 = sphi 0, %s446
      %s449 = sphi 0, %s448
      %s463 = sphi 0, %s449
      %s467 = sphi 0, %s467
      %s469 = sphi 0, %s467
      %s470 = sphi 0, %s469
      %s484 = sphi 0, %s470
      %s488 = sphi 0, %s488
      %s490 = sphi 0, %s488
      %s491 = sphi 0, %s490
      %s505 = sphi 0, %s491
      %s509 = sphi 0, %s509
      %s511 = sphi 0, %s509
      %s512 = sphi 0, %s511
      %s526 = sphi 0, %s512
      %s530 = sphi 0, %s530
      %s532 = sphi 0, %s530
      %s533 = sphi 0, %s532
      %s547 = sphi 0, %s533
      %s551 = sphi 0, %s551
      %s553 = sphi 0, %s551
      %s554 = sphi 0, %s553
      %s568 = sphi 0, %s554
      %s572 = sphi 0, %s572
      %s574 = sphi 0, %s572
      %s575 = sphi 0, %s574
      %s589 = sphi 0, %s575
      %s593 = sphi 0, %s593
      %s595 = sphi 0, %s593
      %s596 = sphi 0, %s595
      %s610 = sphi 0, %s596
      %s614 = sphi 0, %s614
      %s616 = sphi 0, %s614
      %s617 = sphi 0, %s616
      %s631 = sphi 0, %s617
      %s635 = sphi 0, %s635
      %s637 = sphi 0, %s635
      %s638 = sphi 0, %s637
      %s652 = sphi 0, %s638
      %s656 = sphi 0, %s656
      %s658 = sphi 0, %s656
      %s659 = sphi 0, %s658
      %s673 = sphi 0, %s659
      %s677 = sphi 0, %s677
      %s679 = sphi 0, %s677
      %s680 = sphi 0, %s679
      %s694 = sphi 0, %s680
      %s698 = sphi 0, %s698
      %s700 = sphi 0, %s698
      %s701 = sphi 0, %s700
      %s715 = sphi 0, %s701
      %s719 = sphi 0, %s719
      %s721 = sphi 0, %s719
      %s722 = sphi 0, %s721
      %s736 = sphi 0, %s722
      %s740 = sphi 0, %s740
      %s742 = sphi 0, %s740
      %s743 = sphi 0, %s742
      %s757 = sphi 0, %s743
      %s761 = sphi 0, %s761
      %s763 = sphi 0, %s761
      %s764 = sphi 0, %s763
      %s778 = sphi 0, %s764
      %s784 = sphi 0, %s786
      %s787 = sphi 0, %s784
      %s788 = sphi 0, %s787
      %s804 = sphi 0, %s788
    $region4: #{_lambda_.1} parent=1 // loop_header_branch
      %79 = sbr.rel (%p77) target = $region8
    $region5: #{_lambda_.1} parent=1 // loop_body
      %s81 = ssub.s32 %s76, 1
      %s82 = ssub.s32 %s76, 2
      %s83 = sadd.s32 %s76, 1
      %s84 = ssub.s32 %s76, %s83
      %p85 = scmp.eq.s32.totalorder %s84, 0
      %s87 = sadd.s32 %s86, 1
      %s88 = scalar_select %p85, %s86, %s87
      %p91 = pneg %p85
      %p92 = scmp.eq.s32.totalorder %s76, 1
      %p93 = por %p91, %p92
      %p94 = scmp.ne.s32.totalorder %s86, %s89
      %p95 = scmp.eq.s32.totalorder %s76, 0
      %p96 = por %p94, %p95
      %p97 = scmp.ne.s32.totalorder %s86, %s89
      %p98 = scmp.eq.s32.totalorder %s81, 1
      %p99 = por %p97, %p98
      %p100 = scmp.ne.s32.totalorder %s89, %s90
      %p101 = scmp.eq.s32.totalorder %s81, 0
      %p102 = por %p100, %p101
      %p103 = scmp.ne.s32.totalorder %s89, %s90
      %p104 = scmp.eq.s32.totalorder %s82, 1
      %p105 = por %p103, %p104
      %p107 = scmp.ne.s32.totalorder %s90, %s106
      %p108 = scmp.eq.s32.totalorder %s82, 0
      %p109 = por %p107, %p108
      %s111 = sadd.s32 %s110, 1
      %p114 = scmp.eq.s32.totalorder %s76, 1
      %p115 = scmp.ne.s32.totalorder %s110, %s112
      %p116 = scmp.eq.s32.totalorder %s76, 0
      %p117 = por %p115, %p116
      %p118 = scmp.ne.s32.totalorder %s110, %s112
      %p119 = scmp.eq.s32.totalorder %s81, 1
      %p120 = por %p118, %p119
      %p121 = scmp.ne.s32.totalorder %s112, %s113
      %p122 = scmp.eq.s32.totalorder %s81, 0
      %p123 = por %p121, %p122
      %p124 = scmp.ne.s32.totalorder %s112, %s113
      %p125 = scmp.eq.s32.totalorder %s82, 1
      %p126 = por %p124, %p125
      %p128 = scmp.ne.s32.totalorder %s113, %s127
      %p129 = scmp.eq.s32.totalorder %s82, 0
      %p130 = por %p128, %p129
      %s132 = sadd.s32 %s131, 1
      %p135 = scmp.eq.s32.totalorder %s76, 1
      %p136 = scmp.ne.s32.totalorder %s131, %s133
      %p137 = scmp.eq.s32.totalorder %s76, 0
      %p138 = por %p136, %p137
      %p139 = scmp.ne.s32.totalorder %s131, %s133
      %p140 = scmp.eq.s32.totalorder %s81, 1
      %p141 = por %p139, %p140
      %p142 = scmp.ne.s32.totalorder %s133, %s134
      %p143 = scmp.eq.s32.totalorder %s81, 0
      %p144 = por %p142, %p143
      %p145 = scmp.ne.s32.totalorder %s133, %s134
      %p146 = scmp.eq.s32.totalorder %s82, 1
      %p147 = por %p145, %p146
      %p149 = scmp.ne.s32.totalorder %s134, %s148
      %p150 = scmp.eq.s32.totalorder %s82, 0
      %p151 = por %p149, %p150
      %s153 = sadd.s32 %s152, 1
      %p156 = scmp.eq.s32.totalorder %s76, 1
      %p157 = scmp.ne.s32.totalorder %s152, %s154
      %p158 = scmp.eq.s32.totalorder %s76, 0
      %p159 = por %p157, %p158
      %p160 = scmp.ne.s32.totalorder %s152, %s154
      %p161 = scmp.eq.s32.totalorder %s81, 1
      %p162 = por %p160, %p161
      %p163 = scmp.ne.s32.totalorder %s154, %s155
      %p164 = scmp.eq.s32.totalorder %s81, 0
      %p165 = por %p163, %p164
      %p166 = scmp.ne.s32.totalorder %s154, %s155
      %p167 = scmp.eq.s32.totalorder %s82, 1
      %p168 = por %p166, %p167
      %p170 = scmp.ne.s32.totalorder %s155, %s169
      %p171 = scmp.eq.s32.totalorder %s82, 0
      %p172 = por %p170, %p171
      %s174 = sadd.s32 %s173, 1
      %p177 = scmp.eq.s32.totalorder %s76, 1
      %p178 = scmp.ne.s32.totalorder %s173, %s175
      %p179 = scmp.eq.s32.totalorder %s76, 0
      %p180 = por %p178, %p179
      %p181 = scmp.ne.s32.totalorder %s173, %s175
      %p182 = scmp.eq.s32.totalorder %s81, 1
      %p183 = por %p181, %p182
      %p184 = scmp.ne.s32.totalorder %s175, %s176
      %p185 = scmp.eq.s32.totalorder %s81, 0
      %p186 = por %p184, %p185
      %p187 = scmp.ne.s32.totalorder %s175, %s176
      %p188 = scmp.eq.s32.totalorder %s82, 1
      %p189 = por %p187, %p188
      %p191 = scmp.ne.s32.totalorder %s176, %s190
      %p192 = scmp.eq.s32.totalorder %s82, 0
      %p193 = por %p191, %p192
      %s195 = sadd.s32 %s194, 1
      %p198 = scmp.eq.s32.totalorder %s76, 1
      %p199 = scmp.ne.s32.totalorder %s194, %s196
      %p200 = scmp.eq.s32.totalorder %s76, 0
      %p201 = por %p199, %p200
      %p202 = scmp.ne.s32.totalorder %s194, %s196
      %p203 = scmp.eq.s32.totalorder %s81, 1
      %p204 = por %p202, %p203
      %p205 = scmp.ne.s32.totalorder %s196, %s197
      %p206 = scmp.eq.s32.totalorder %s81, 0
      %p207 = por %p205, %p206
      %p208 = scmp.ne.s32.totalorder %s196, %s197
      %p209 = scmp.eq.s32.totalorder %s82, 1
      %p210 = por %p208, %p209
      %p212 = scmp.ne.s32.totalorder %s197, %s211
      %p213 = scmp.eq.s32.totalorder %s82, 0
      %p214 = por %p212, %p213
      %s216 = sadd.s32 %s215, 1
      %p219 = scmp.eq.s32.totalorder %s76, 1
      %p220 = scmp.ne.s32.totalorder %s215, %s217
      %p221 = scmp.eq.s32.totalorder %s76, 0
      %p222 = por %p220, %p221
      %p223 = scmp.ne.s32.totalorder %s215, %s217
      %p224 = scmp.eq.s32.totalorder %s81, 1
      %p225 = por %p223, %p224
      %p226 = scmp.ne.s32.totalorder %s217, %s218
      %p227 = scmp.eq.s32.totalorder %s81, 0
      %p228 = por %p226, %p227
      %p229 = scmp.ne.s32.totalorder %s217, %s218
      %p230 = scmp.eq.s32.totalorder %s82, 1
      %p231 = por %p229, %p230
      %p233 = scmp.ne.s32.totalorder %s218, %s232
      %p234 = scmp.eq.s32.totalorder %s82, 0
      %p235 = por %p233, %p234
      %s237 = sadd.s32 %s236, 1
      %p240 = scmp.eq.s32.totalorder %s76, 1
      %p241 = scmp.ne.s32.totalorder %s236, %s238
      %p242 = scmp.eq.s32.totalorder %s76, 0
      %p243 = por %p241, %p242
      %p244 = scmp.ne.s32.totalorder %s236, %s238
      %p245 = scmp.eq.s32.totalorder %s81, 1
      %p246 = por %p244, %p245
      %p247 = scmp.ne.s32.totalorder %s238, %s239
      %p248 = scmp.eq.s32.totalorder %s81, 0
      %p249 = por %p247, %p248
      %p250 = scmp.ne.s32.totalorder %s238, %s239
      %p251 = scmp.eq.s32.totalorder %s82, 1
      %p252 = por %p250, %p251
      %p254 = scmp.ne.s32.totalorder %s239, %s253
      %p255 = scmp.eq.s32.totalorder %s82, 0
      %p256 = por %p254, %p255
      %s258 = sadd.s32 %s257, 1
      %p261 = scmp.eq.s32.totalorder %s76, 1
      %p262 = scmp.ne.s32.totalorder %s257, %s259
      %p263 = scmp.eq.s32.totalorder %s76, 0
      %p264 = por %p262, %p263
      %p265 = scmp.ne.s32.totalorder %s257, %s259
      %p266 = scmp.eq.s32.totalorder %s81, 1
      %p267 = por %p265, %p266
      %p268 = scmp.ne.s32.totalorder %s259, %s260
      %p269 = scmp.eq.s32.totalorder %s81, 0
      %p270 = por %p268, %p269
      %p271 = scmp.ne.s32.totalorder %s259, %s260
      %p272 = scmp.eq.s32.totalorder %s82, 1
      %p273 = por %p271, %p272
      %p275 = scmp.ne.s32.totalorder %s260, %s274
      %p276 = scmp.eq.s32.totalorder %s82, 0
      %p277 = por %p275, %p276
      %s279 = sadd.s32 %s278, 1
      %p282 = scmp.eq.s32.totalorder %s76, 1
      %p283 = scmp.ne.s32.totalorder %s278, %s280
      %p284 = scmp.eq.s32.totalorder %s76, 0
      %p285 = por %p283, %p284
      %p286 = scmp.ne.s32.totalorder %s278, %s280
      %p287 = scmp.eq.s32.totalorder %s81, 1
      %p288 = por %p286, %p287
      %p289 = scmp.ne.s32.totalorder %s280, %s281
      %p290 = scmp.eq.s32.totalorder %s81, 0
      %p291 = por %p289, %p290
      %p292 = scmp.ne.s32.totalorder %s280, %s281
      %p293 = scmp.eq.s32.totalorder %s82, 1
      %p294 = por %p292, %p293
      %p296 = scmp.ne.s32.totalorder %s281, %s295
      %p297 = scmp.eq.s32.totalorder %s82, 0
      %p298 = por %p296, %p297
      %s300 = sadd.s32 %s299, 1
      %p303 = scmp.eq.s32.totalorder %s76, 1
      %p304 = scmp.ne.s32.totalorder %s299, %s301
      %p305 = scmp.eq.s32.totalorder %s76, 0
      %p306 = por %p304, %p305
      %p307 = scmp.ne.s32.totalorder %s299, %s301
      %p308 = scmp.eq.s32.totalorder %s81, 1
      %p309 = por %p307, %p308
      %p310 = scmp.ne.s32.totalorder %s301, %s302
      %p311 = scmp.eq.s32.totalorder %s81, 0
      %p312 = por %p310, %p311
      %p313 = scmp.ne.s32.totalorder %s301, %s302
      %p314 = scmp.eq.s32.totalorder %s82, 1
      %p315 = por %p313, %p314
      %p317 = scmp.ne.s32.totalorder %s302, %s316
      %p318 = scmp.eq.s32.totalorder %s82, 0
      %p319 = por %p317, %p318
      %s321 = sadd.s32 %s320, 1
      %p324 = scmp.eq.s32.totalorder %s76, 1
      %p325 = scmp.ne.s32.totalorder %s320, %s322
      %p326 = scmp.eq.s32.totalorder %s76, 0
      %p327 = por %p325, %p326
      %p328 = scmp.ne.s32.totalorder %s320, %s322
      %p329 = scmp.eq.s32.totalorder %s81, 1
      %p330 = por %p328, %p329
      %p331 = scmp.ne.s32.totalorder %s322, %s323
      %p332 = scmp.eq.s32.totalorder %s81, 0
      %p333 = por %p331, %p332
      %p334 = scmp.ne.s32.totalorder %s322, %s323
      %p335 = scmp.eq.s32.totalorder %s82, 1
      %p336 = por %p334, %p335
      %p338 = scmp.ne.s32.totalorder %s323, %s337
      %p339 = scmp.eq.s32.totalorder %s82, 0
      %p340 = por %p338, %p339
      %s342 = sadd.s32 %s341, 1
      %p345 = scmp.eq.s32.totalorder %s76, 1
      %p346 = scmp.ne.s32.totalorder %s341, %s343
      %p347 = scmp.eq.s32.totalorder %s76, 0
      %p348 = por %p346, %p347
      %p349 = scmp.ne.s32.totalorder %s341, %s343
      %p350 = scmp.eq.s32.totalorder %s81, 1
      %p351 = por %p349, %p350
      %p352 = scmp.ne.s32.totalorder %s343, %s344
      %p353 = scmp.eq.s32.totalorder %s81, 0
      %p354 = por %p352, %p353
      %p355 = scmp.ne.s32.totalorder %s343, %s344
      %p356 = scmp.eq.s32.totalorder %s82, 1
      %p357 = por %p355, %p356
      %p359 = scmp.ne.s32.totalorder %s344, %s358
      %p360 = scmp.eq.s32.totalorder %s82, 0
      %p361 = por %p359, %p360
      %s363 = sadd.s32 %s362, 1
      %p366 = scmp.eq.s32.totalorder %s76, 1
      %p367 = scmp.ne.s32.totalorder %s362, %s364
      %p368 = scmp.eq.s32.totalorder %s76, 0
      %p369 = por %p367, %p368
      %p370 = scmp.ne.s32.totalorder %s362, %s364
      %p371 = scmp.eq.s32.totalorder %s81, 1
      %p372 = por %p370, %p371
      %p373 = scmp.ne.s32.totalorder %s364, %s365
      %p374 = scmp.eq.s32.totalorder %s81, 0
      %p375 = por %p373, %p374
      %p376 = scmp.ne.s32.totalorder %s364, %s365
      %p377 = scmp.eq.s32.totalorder %s82, 1
      %p378 = por %p376, %p377
      %p380 = scmp.ne.s32.totalorder %s365, %s379
      %p381 = scmp.eq.s32.totalorder %s82, 0
      %p382 = por %p380, %p381
      %s384 = sadd.s32 %s383, 1
      %p387 = scmp.eq.s32.totalorder %s76, 1
      %p388 = scmp.ne.s32.totalorder %s383, %s385
      %p389 = scmp.eq.s32.totalorder %s76, 0
      %p390 = por %p388, %p389
      %p391 = scmp.ne.s32.totalorder %s383, %s385
      %p392 = scmp.eq.s32.totalorder %s81, 1
      %p393 = por %p391, %p392
      %p394 = scmp.ne.s32.totalorder %s385, %s386
      %p395 = scmp.eq.s32.totalorder %s81, 0
      %p396 = por %p394, %p395
      %p397 = scmp.ne.s32.totalorder %s385, %s386
      %p398 = scmp.eq.s32.totalorder %s82, 1
      %p399 = por %p397, %p398
      %p401 = scmp.ne.s32.totalorder %s386, %s400
      %p402 = scmp.eq.s32.totalorder %s82, 0
      %p403 = por %p401, %p402
      %s405 = sadd.s32 %s404, 1
      %p408 = scmp.eq.s32.totalorder %s76, 1
      %p409 = scmp.ne.s32.totalorder %s404, %s406
      %p410 = scmp.eq.s32.totalorder %s76, 0
      %p411 = por %p409, %p410
      %p412 = scmp.ne.s32.totalorder %s404, %s406
      %p413 = scmp.eq.s32.totalorder %s81, 1
      %p414 = por %p412, %p413
      %p415 = scmp.ne.s32.totalorder %s406, %s407
      %p416 = scmp.eq.s32.totalorder %s81, 0
      %p417 = por %p415, %p416
      %p418 = scmp.ne.s32.totalorder %s406, %s407
      %p419 = scmp.eq.s32.totalorder %s82, 1
      %p420 = por %p418, %p419
      %p422 = scmp.ne.s32.totalorder %s407, %s421
      %p423 = scmp.eq.s32.totalorder %s82, 0
      %p424 = por %p422, %p423
      %s426 = sadd.s32 %s425, 1
      %p429 = scmp.eq.s32.totalorder %s76, 1
      %p430 = scmp.ne.s32.totalorder %s425, %s427
      %p431 = scmp.eq.s32.totalorder %s76, 0
      %p432 = por %p430, %p431
      %p433 = scmp.ne.s32.totalorder %s425, %s427
      %p434 = scmp.eq.s32.totalorder %s81, 1
      %p435 = por %p433, %p434
      %p436 = scmp.ne.s32.totalorder %s427, %s428
      %p437 = scmp.eq.s32.totalorder %s81, 0
      %p438 = por %p436, %p437
      %p439 = scmp.ne.s32.totalorder %s427, %s428
      %p440 = scmp.eq.s32.totalorder %s82, 1
      %p441 = por %p439, %p440
      %p443 = scmp.ne.s32.totalorder %s428, %s442
      %p444 = scmp.eq.s32.totalorder %s82, 0
      %p445 = por %p443, %p444
      %s447 = sadd.s32 %s446, 1
      %p450 = scmp.eq.s32.totalorder %s76, 1
      %p451 = scmp.ne.s32.totalorder %s446, %s448
      %p452 = scmp.eq.s32.totalorder %s76, 0
      %p453 = por %p451, %p452
      %p454 = scmp.ne.s32.totalorder %s446, %s448
      %p455 = scmp.eq.s32.totalorder %s81, 1
      %p456 = por %p454, %p455
      %p457 = scmp.ne.s32.totalorder %s448, %s449
      %p458 = scmp.eq.s32.totalorder %s81, 0
      %p459 = por %p457, %p458
      %p460 = scmp.ne.s32.totalorder %s448, %s449
      %p461 = scmp.eq.s32.totalorder %s82, 1
      %p462 = por %p460, %p461
      %p464 = scmp.ne.s32.totalorder %s449, %s463
      %p465 = scmp.eq.s32.totalorder %s82, 0
      %p466 = por %p464, %p465
      %s468 = sadd.s32 %s467, 1
      %p471 = scmp.eq.s32.totalorder %s76, 1
      %p472 = scmp.ne.s32.totalorder %s467, %s469
      %p473 = scmp.eq.s32.totalorder %s76, 0
      %p474 = por %p472, %p473
      %p475 = scmp.ne.s32.totalorder %s467, %s469
      %p476 = scmp.eq.s32.totalorder %s81, 1
      %p477 = por %p475, %p476
      %p478 = scmp.ne.s32.totalorder %s469, %s470
      %p479 = scmp.eq.s32.totalorder %s81, 0
      %p480 = por %p478, %p479
      %p481 = scmp.ne.s32.totalorder %s469, %s470
      %p482 = scmp.eq.s32.totalorder %s82, 1
      %p483 = por %p481, %p482
      %p485 = scmp.ne.s32.totalorder %s470, %s484
      %p486 = scmp.eq.s32.totalorder %s82, 0
      %p487 = por %p485, %p486
      %s489 = sadd.s32 %s488, 1
      %p492 = scmp.eq.s32.totalorder %s76, 1
      %p493 = scmp.ne.s32.totalorder %s488, %s490
      %p494 = scmp.eq.s32.totalorder %s76, 0
      %p495 = por %p493, %p494
      %p496 = scmp.ne.s32.totalorder %s488, %s490
      %p497 = scmp.eq.s32.totalorder %s81, 1
      %p498 = por %p496, %p497
      %p499 = scmp.ne.s32.totalorder %s490, %s491
      %p500 = scmp.eq.s32.totalorder %s81, 0
      %p501 = por %p499, %p500
      %p502 = scmp.ne.s32.totalorder %s490, %s491
      %p503 = scmp.eq.s32.totalorder %s82, 1
      %p504 = por %p502, %p503
      %p506 = scmp.ne.s32.totalorder %s491, %s505
      %p507 = scmp.eq.s32.totalorder %s82, 0
      %p508 = por %p506, %p507
      %s510 = sadd.s32 %s509, 1
      %p513 = scmp.eq.s32.totalorder %s76, 1
      %p514 = scmp.ne.s32.totalorder %s509, %s511
      %p515 = scmp.eq.s32.totalorder %s76, 0
      %p516 = por %p514, %p515
      %p517 = scmp.ne.s32.totalorder %s509, %s511
      %p518 = scmp.eq.s32.totalorder %s81, 1
      %p519 = por %p517, %p518
      %p520 = scmp.ne.s32.totalorder %s511, %s512
      %p521 = scmp.eq.s32.totalorder %s81, 0
      %p522 = por %p520, %p521
      %p523 = scmp.ne.s32.totalorder %s511, %s512
      %p524 = scmp.eq.s32.totalorder %s82, 1
      %p525 = por %p523, %p524
      %p527 = scmp.ne.s32.totalorder %s512, %s526
      %p528 = scmp.eq.s32.totalorder %s82, 0
      %p529 = por %p527, %p528
      %s531 = sadd.s32 %s530, 1
      %p534 = scmp.eq.s32.totalorder %s76, 1
      %p535 = scmp.ne.s32.totalorder %s530, %s532
      %p536 = scmp.eq.s32.totalorder %s76, 0
      %p537 = por %p535, %p536
      %p538 = scmp.ne.s32.totalorder %s530, %s532
      %p539 = scmp.eq.s32.totalorder %s81, 1
      %p540 = por %p538, %p539
      %p541 = scmp.ne.s32.totalorder %s532, %s533
      %p542 = scmp.eq.s32.totalorder %s81, 0
      %p543 = por %p541, %p542
      %p544 = scmp.ne.s32.totalorder %s532, %s533
      %p545 = scmp.eq.s32.totalorder %s82, 1
      %p546 = por %p544, %p545
      %p548 = scmp.ne.s32.totalorder %s533, %s547
      %p549 = scmp.eq.s32.totalorder %s82, 0
      %p550 = por %p548, %p549
      %s552 = sadd.s32 %s551, 1
      %p555 = scmp.eq.s32.totalorder %s76, 1
      %p556 = scmp.ne.s32.totalorder %s551, %s553
      %p557 = scmp.eq.s32.totalorder %s76, 0
      %p558 = por %p556, %p557
      %p559 = scmp.ne.s32.totalorder %s551, %s553
      %p560 = scmp.eq.s32.totalorder %s81, 1
      %p561 = por %p559, %p560
      %p562 = scmp.ne.s32.totalorder %s553, %s554
      %p563 = scmp.eq.s32.totalorder %s81, 0
      %p564 = por %p562, %p563
      %p565 = scmp.ne.s32.totalorder %s553, %s554
      %p566 = scmp.eq.s32.totalorder %s82, 1
      %p567 = por %p565, %p566
      %p569 = scmp.ne.s32.totalorder %s554, %s568
      %p570 = scmp.eq.s32.totalorder %s82, 0
      %p571 = por %p569, %p570
      %s573 = sadd.s32 %s572, 1
      %p576 = scmp.eq.s32.totalorder %s76, 1
      %p577 = scmp.ne.s32.totalorder %s572, %s574
      %p578 = scmp.eq.s32.totalorder %s76, 0
      %p579 = por %p577, %p578
      %p580 = scmp.ne.s32.totalorder %s572, %s574
      %p581 = scmp.eq.s32.totalorder %s81, 1
      %p582 = por %p580, %p581
      %p583 = scmp.ne.s32.totalorder %s574, %s575
      %p584 = scmp.eq.s32.totalorder %s81, 0
      %p585 = por %p583, %p584
      %p586 = scmp.ne.s32.totalorder %s574, %s575
      %p587 = scmp.eq.s32.totalorder %s82, 1
      %p588 = por %p586, %p587
      %p590 = scmp.ne.s32.totalorder %s575, %s589
      %p591 = scmp.eq.s32.totalorder %s82, 0
      %p592 = por %p590, %p591
      %s594 = sadd.s32 %s593, 1
      %p597 = scmp.eq.s32.totalorder %s76, 1
      %p598 = scmp.ne.s32.totalorder %s593, %s595
      %p599 = scmp.eq.s32.totalorder %s76, 0
      %p600 = por %p598, %p599
      %p601 = scmp.ne.s32.totalorder %s593, %s595
      %p602 = scmp.eq.s32.totalorder %s81, 1
      %p603 = por %p601, %p602
      %p604 = scmp.ne.s32.totalorder %s595, %s596
      %p605 = scmp.eq.s32.totalorder %s81, 0
      %p606 = por %p604, %p605
      %p607 = scmp.ne.s32.totalorder %s595, %s596
      %p608 = scmp.eq.s32.totalorder %s82, 1
      %p609 = por %p607, %p608
      %p611 = scmp.ne.s32.totalorder %s596, %s610
      %p612 = scmp.eq.s32.totalorder %s82, 0
      %p613 = por %p611, %p612
      %s615 = sadd.s32 %s614, 1
      %p618 = scmp.eq.s32.totalorder %s76, 1
      %p619 = scmp.ne.s32.totalorder %s614, %s616
      %p620 = scmp.eq.s32.totalorder %s76, 0
      %p621 = por %p619, %p620
      %p622 = scmp.ne.s32.totalorder %s614, %s616
      %p623 = scmp.eq.s32.totalorder %s81, 1
      %p624 = por %p622, %p623
      %p625 = scmp.ne.s32.totalorder %s616, %s617
      %p626 = scmp.eq.s32.totalorder %s81, 0
      %p627 = por %p625, %p626
      %p628 = scmp.ne.s32.totalorder %s616, %s617
      %p629 = scmp.eq.s32.totalorder %s82, 1
      %p630 = por %p628, %p629
      %p632 = scmp.ne.s32.totalorder %s617, %s631
      %p633 = scmp.eq.s32.totalorder %s82, 0
      %p634 = por %p632, %p633
      %s636 = sadd.s32 %s635, 1
      %p639 = scmp.eq.s32.totalorder %s76, 1
      %p640 = scmp.ne.s32.totalorder %s635, %s637
      %p641 = scmp.eq.s32.totalorder %s76, 0
      %p642 = por %p640, %p641
      %p643 = scmp.ne.s32.totalorder %s635, %s637
      %p644 = scmp.eq.s32.totalorder %s81, 1
      %p645 = por %p643, %p644
      %p646 = scmp.ne.s32.totalorder %s637, %s638
      %p647 = scmp.eq.s32.totalorder %s81, 0
      %p648 = por %p646, %p647
      %p649 = scmp.ne.s32.totalorder %s637, %s638
      %p650 = scmp.eq.s32.totalorder %s82, 1
      %p651 = por %p649, %p650
      %p653 = scmp.ne.s32.totalorder %s638, %s652
      %p654 = scmp.eq.s32.totalorder %s82, 0
      %p655 = por %p653, %p654
      %s657 = sadd.s32 %s656, 1
      %p660 = scmp.eq.s32.totalorder %s76, 1
      %p661 = scmp.ne.s32.totalorder %s656, %s658
      %p662 = scmp.eq.s32.totalorder %s76, 0
      %p663 = por %p661, %p662
      %p664 = scmp.ne.s32.totalorder %s656, %s658
      %p665 = scmp.eq.s32.totalorder %s81, 1
      %p666 = por %p664, %p665
      %p667 = scmp.ne.s32.totalorder %s658, %s659
      %p668 = scmp.eq.s32.totalorder %s81, 0
      %p669 = por %p667, %p668
      %p670 = scmp.ne.s32.totalorder %s658, %s659
      %p671 = scmp.eq.s32.totalorder %s82, 1
      %p672 = por %p670, %p671
      %p674 = scmp.ne.s32.totalorder %s659, %s673
      %p675 = scmp.eq.s32.totalorder %s82, 0
      %p676 = por %p674, %p675
      %s678 = sadd.s32 %s677, 1
      %p681 = scmp.eq.s32.totalorder %s76, 1
      %p682 = scmp.ne.s32.totalorder %s677, %s679
      %p683 = scmp.eq.s32.totalorder %s76, 0
      %p684 = por %p682, %p683
      %p685 = scmp.ne.s32.totalorder %s677, %s679
      %p686 = scmp.eq.s32.totalorder %s81, 1
      %p687 = por %p685, %p686
      %p688 = scmp.ne.s32.totalorder %s679, %s680
      %p689 = scmp.eq.s32.totalorder %s81, 0
      %p690 = por %p688, %p689
      %p691 = scmp.ne.s32.totalorder %s679, %s680
      %p692 = scmp.eq.s32.totalorder %s82, 1
      %p693 = por %p691, %p692
      %p695 = scmp.ne.s32.totalorder %s680, %s694
      %p696 = scmp.eq.s32.totalorder %s82, 0
      %p697 = por %p695, %p696
      %s699 = sadd.s32 %s698, 1
      %p702 = scmp.eq.s32.totalorder %s76, 1
      %p703 = scmp.ne.s32.totalorder %s698, %s700
      %p704 = scmp.eq.s32.totalorder %s76, 0
      %p705 = por %p703, %p704
      %p706 = scmp.ne.s32.totalorder %s698, %s700
      %p707 = scmp.eq.s32.totalorder %s81, 1
      %p708 = por %p706, %p707
      %p709 = scmp.ne.s32.totalorder %s700, %s701
      %p710 = scmp.eq.s32.totalorder %s81, 0
      %p711 = por %p709, %p710
      %p712 = scmp.ne.s32.totalorder %s700, %s701
      %p713 = scmp.eq.s32.totalorder %s82, 1
      %p714 = por %p712, %p713
      %p716 = scmp.ne.s32.totalorder %s701, %s715
      %p717 = scmp.eq.s32.totalorder %s82, 0
      %p718 = por %p716, %p717
      %s720 = sadd.s32 %s719, 1
      %p723 = scmp.eq.s32.totalorder %s76, 1
      %p724 = scmp.ne.s32.totalorder %s719, %s721
      %p725 = scmp.eq.s32.totalorder %s76, 0
      %p726 = por %p724, %p725
      %p727 = scmp.ne.s32.totalorder %s719, %s721
      %p728 = scmp.eq.s32.totalorder %s81, 1
      %p729 = por %p727, %p728
      %p730 = scmp.ne.s32.totalorder %s721, %s722
      %p731 = scmp.eq.s32.totalorder %s81, 0
      %p732 = por %p730, %p731
      %p733 = scmp.ne.s32.totalorder %s721, %s722
      %p734 = scmp.eq.s32.totalorder %s82, 1
      %p735 = por %p733, %p734
      %p737 = scmp.ne.s32.totalorder %s722, %s736
      %p738 = scmp.eq.s32.totalorder %s82, 0
      %p739 = por %p737, %p738
      %s741 = sadd.s32 %s740, 1
      %p744 = scmp.eq.s32.totalorder %s76, 1
      %p745 = scmp.ne.s32.totalorder %s740, %s742
      %p746 = scmp.eq.s32.totalorder %s76, 0
      %p747 = por %p745, %p746
      %p748 = scmp.ne.s32.totalorder %s740, %s742
      %p749 = scmp.eq.s32.totalorder %s81, 1
      %p750 = por %p748, %p749
      %p751 = scmp.ne.s32.totalorder %s742, %s743
      %p752 = scmp.eq.s32.totalorder %s81, 0
      %p753 = por %p751, %p752
      %p754 = scmp.ne.s32.totalorder %s742, %s743
      %p755 = scmp.eq.s32.totalorder %s82, 1
      %p756 = por %p754, %p755
      %p758 = scmp.ne.s32.totalorder %s743, %s757
      %p759 = scmp.eq.s32.totalorder %s82, 0
      %p760 = por %p758, %p759
      %s762 = sadd.s32 %s761, 1
      %p765 = scmp.eq.s32.totalorder %s76, 1
      %p766 = scmp.ne.s32.totalorder %s761, %s763
      %p767 = scmp.eq.s32.totalorder %s76, 0
      %p768 = por %p766, %p767
      %p769 = scmp.ne.s32.totalorder %s761, %s763
      %p770 = scmp.eq.s32.totalorder %s81, 1
      %p771 = por %p769, %p770
      %p772 = scmp.ne.s32.totalorder %s763, %s764
      %p773 = scmp.eq.s32.totalorder %s81, 0
      %p774 = por %p772, %p773
      %p775 = scmp.ne.s32.totalorder %s763, %s764
      %p776 = scmp.eq.s32.totalorder %s82, 1
      %p777 = por %p775, %p776
      %p779 = scmp.ne.s32.totalorder %s764, %s778
      %p780 = scmp.eq.s32.totalorder %s82, 0
      %p781 = por %p779, %p780
      %s782 = ssub.s32 %s76, %s83
      %p783 = scmp.eq.s32.totalorder %s782, 0
      %s785 = sadd.s32 %s784, 1
      %s786 = scalar_select %p783, %s784, %s785
      %p789 = pneg %p783
      %p790 = scmp.eq.s32.totalorder %s76, 1
      %p791 = por %p789, %p790
      %p792 = scmp.ne.s32.totalorder %s784, %s787
      %p793 = scmp.eq.s32.totalorder %s76, 0
      %p794 = por %p792, %p793
      %p795 = scmp.ne.s32.totalorder %s784, %s787
      %p796 = scmp.eq.s32.totalorder %s81, 1
      %p797 = por %p795, %p796
      %p798 = scmp.ne.s32.totalorder %s787, %s788
      %p799 = scmp.eq.s32.totalorder %s81, 0
      %p800 = por %p798, %p799
      %p801 = scmp.ne.s32.totalorder %s787, %s788
      %p802 = scmp.eq.s32.totalorder %s82, 1
      %p803 = por %p801, %p802
      %p805 = scmp.ne.s32.totalorder %s788, %s804
      %p806 = scmp.eq.s32.totalorder %s82, 0
      %p807 = por %p805, %p806
      %p808 = scmp.le.s32.totalorder 1, %s76
      %p809 = scmp.lt.s32.totalorder %s76, 3
      %p810 = pnand %p808, %p809
      %p811 = pneg %p810
      // Predicated region
      $region9: #{_lambda_.1} parent=5 // pred_check
        _
      $region10: #{_lambda_.1} parent=5 // pred_check_branch
        %813 = sbr.rel (%p810) target = $region12
      $region11: #{_lambda_.1} parent=5 // pred_region
        %s814 = ssub.s32 %s76, 1
        // Predicated region
        $region13: #{_lambda_.1} parent=11 // pred_check
          %p815 = pneg %p123
        $region14: #{_lambda_.1} parent=11 // pred_check_branch
          %817 = sbr.rel (%p815) target = $region16
        $region15: #{_lambda_.1} parent=11 // pred_region
          _
        $region16: #{_lambda_.1} parent=11 // pred_fallthru
          _
        // Predicated region
        $region17: #{_lambda_.1} parent=11 // pred_check
          %p818 = pneg %p144
        $region18: #{_lambda_.1} parent=11 // pred_check_branch
          %820 = sbr.rel (%p818) target = $region20
        $region19: #{_lambda_.1} parent=11 // pred_region
          _
        $region20: #{_lambda_.1} parent=11 // pred_fallthru
          _
        // Predicated region
        $region21: #{_lambda_.1} parent=11 // pred_check
          %p821 = pneg %p165
        $region22: #{_lambda_.1} parent=11 // pred_check_branch
          %823 = sbr.rel (%p821) target = $region24
        $region23: #{_lambda_.1} parent=11 // pred_region
          _
        $region24: #{_lambda_.1} parent=11 // pred_fallthru
          _
        // Predicated region
        $region25: #{_lambda_.1} parent=11 // pred_check
          %p824 = pneg %p186
        $region26: #{_lambda_.1} parent=11 // pred_check_branch
          %826 = sbr.rel (%p824) target = $region28
        $region27: #{_lambda_.1} parent=11 // pred_region
          _
        $region28: #{_lambda_.1} parent=11 // pred_fallthru
          _
        // Predicated region
        $region29: #{_lambda_.1} parent=11 // pred_check
          %p827 = pneg %p207
        $region30: #{_lambda_.1} parent=11 // pred_check_branch
          %829 = sbr.rel (%p827) target = $region32
        $region31: #{_lambda_.1} parent=11 // pred_region
          _
        $region32: #{_lambda_.1} parent=11 // pred_fallthru
          _
        // Predicated region
        $region33: #{_lambda_.1} parent=11 // pred_check
          %p830 = pneg %p228
        $region34: #{_lambda_.1} parent=11 // pred_check_branch
          %832 = sbr.rel (%p830) target = $region36
        $region35: #{_lambda_.1} parent=11 // pred_region
          _
        $region36: #{_lambda_.1} parent=11 // pred_fallthru
          _
        // Predicated region
        $region37: #{_lambda_.1} parent=11 // pred_check
          %p833 = pneg %p249
        $region38: #{_lambda_.1} parent=11 // pred_check_branch
          %835 = sbr.rel (%p833) target = $region40
        $region39: #{_lambda_.1} parent=11 // pred_region
          _
        $region40: #{_lambda_.1} parent=11 // pred_fallthru
          _
        // Predicated region
        $region41: #{_lambda_.1} parent=11 // pred_check
          %p836 = pneg %p270
        $region42: #{_lambda_.1} parent=11 // pred_check_branch
          %838 = sbr.rel (%p836) target = $region44
        $region43: #{_lambda_.1} parent=11 // pred_region
          _
        $region44: #{_lambda_.1} parent=11 // pred_fallthru
          _
        // Predicated region
        $region45: #{_lambda_.1} parent=11 // pred_check
          %p839 = pneg %p291
        $region46: #{_lambda_.1} parent=11 // pred_check_branch
          %841 = sbr.rel (%p839) target = $region48
        $region47: #{_lambda_.1} parent=11 // pred_region
          _
        $region48: #{_lambda_.1} parent=11 // pred_fallthru
          _
        // Predicated region
        $region49: #{_lambda_.1} parent=11 // pred_check
          %p842 = pneg %p312
        $region50: #{_lambda_.1} parent=11 // pred_check_branch
          %844 = sbr.rel (%p842) target = $region52
        $region51: #{_lambda_.1} parent=11 // pred_region
          _
        $region52: #{_lambda_.1} parent=11 // pred_fallthru
          _
        // Predicated region
        $region53: #{_lambda_.1} parent=11 // pred_check
          %p845 = pneg %p333
        $region54: #{_lambda_.1} parent=11 // pred_check_branch
          %847 = sbr.rel (%p845) target = $region56
        $region55: #{_lambda_.1} parent=11 // pred_region
          _
        $region56: #{_lambda_.1} parent=11 // pred_fallthru
          _
        // Predicated region
        $region57: #{_lambda_.1} parent=11 // pred_check
          %p848 = pneg %p354
        $region58: #{_lambda_.1} parent=11 // pred_check_branch
          %850 = sbr.rel (%p848) target = $region60
        $region59: #{_lambda_.1} parent=11 // pred_region
          _
        $region60: #{_lambda_.1} parent=11 // pred_fallthru
          _
        // Predicated region
        $region61: #{_lambda_.1} parent=11 // pred_check
          %p851 = pneg %p375
        $region62: #{_lambda_.1} parent=11 // pred_check_branch
          %853 = sbr.rel (%p851) target = $region64
        $region63: #{_lambda_.1} parent=11 // pred_region
          _
        $region64: #{_lambda_.1} parent=11 // pred_fallthru
          _
        // Predicated region
        $region65: #{_lambda_.1} parent=11 // pred_check
          %p854 = pneg %p396
        $region66: #{_lambda_.1} parent=11 // pred_check_branch
          %856 = sbr.rel (%p854) target = $region68
        $region67: #{_lambda_.1} parent=11 // pred_region
          _
        $region68: #{_lambda_.1} parent=11 // pred_fallthru
          _
        // Predicated region
        $region69: #{_lambda_.1} parent=11 // pred_check
          %p857 = pneg %p417
        $region70: #{_lambda_.1} parent=11 // pred_check_branch
          %859 = sbr.rel (%p857) target = $region72
        $region71: #{_lambda_.1} parent=11 // pred_region
          _
        $region72: #{_lambda_.1} parent=11 // pred_fallthru
          _
        // Predicated region
        $region73: #{_lambda_.1} parent=11 // pred_check
          %p860 = pneg %p438
        $region74: #{_lambda_.1} parent=11 // pred_check_branch
          %862 = sbr.rel (%p860) target = $region76
        $region75: #{_lambda_.1} parent=11 // pred_region
          _
        $region76: #{_lambda_.1} parent=11 // pred_fallthru
          _
        // Predicated region
        $region77: #{_lambda_.1} parent=11 // pred_check
          %p863 = pneg %p459
        $region78: #{_lambda_.1} parent=11 // pred_check_branch
          %865 = sbr.rel (%p863) target = $region80
        $region79: #{_lambda_.1} parent=11 // pred_region
          _
        $region80: #{_lambda_.1} parent=11 // pred_fallthru
          _
        // Predicated region
        $region81: #{_lambda_.1} parent=11 // pred_check
          %p866 = pneg %p480
        $region82: #{_lambda_.1} parent=11 // pred_check_branch
          %868 = sbr.rel (%p866) target = $region84
        $region83: #{_lambda_.1} parent=11 // pred_region
          _
        $region84: #{_lambda_.1} parent=11 // pred_fallthru
          _
        // Predicated region
        $region85: #{_lambda_.1} parent=11 // pred_check
          %p869 = pneg %p501
        $region86: #{_lambda_.1} parent=11 // pred_check_branch
          %871 = sbr.rel (%p869) target = $region88
        $region87: #{_lambda_.1} parent=11 // pred_region
          _
        $region88: #{_lambda_.1} parent=11 // pred_fallthru
          _
        // Predicated region
        $region89: #{_lambda_.1} parent=11 // pred_check
          %p872 = pneg %p522
        $region90: #{_lambda_.1} parent=11 // pred_check_branch
          %874 = sbr.rel (%p872) target = $region92
        $region91: #{_lambda_.1} parent=11 // pred_region
          _
        $region92: #{_lambda_.1} parent=11 // pred_fallthru
          _
        // Predicated region
        $region93: #{_lambda_.1} parent=11 // pred_check
          %p875 = pneg %p543
        $region94: #{_lambda_.1} parent=11 // pred_check_branch
          %877 = sbr.rel (%p875) target = $region96
        $region95: #{_lambda_.1} parent=11 // pred_region
          _
        $region96: #{_lambda_.1} parent=11 // pred_fallthru
          _
        // Predicated region
        $region97: #{_lambda_.1} parent=11 // pred_check
          %p878 = pneg %p564
        $region98: #{_lambda_.1} parent=11 // pred_check_branch
          %880 = sbr.rel (%p878) target = $region100
        $region99: #{_lambda_.1} parent=11 // pred_region
          _
        $region100: #{_lambda_.1} parent=11 // pred_fallthru
          _
        // Predicated region
        $region101: #{_lambda_.1} parent=11 // pred_check
          %p881 = pneg %p585
        $region102: #{_lambda_.1} parent=11 // pred_check_branch
          %883 = sbr.rel (%p881) target = $region104
        $region103: #{_lambda_.1} parent=11 // pred_region
          _
        $region104: #{_lambda_.1} parent=11 // pred_fallthru
          _
        // Predicated region
        $region105: #{_lambda_.1} parent=11 // pred_check
          %p884 = pneg %p606
        $region106: #{_lambda_.1} parent=11 // pred_check_branch
          %886 = sbr.rel (%p884) target = $region108
        $region107: #{_lambda_.1} parent=11 // pred_region
          _
        $region108: #{_lambda_.1} parent=11 // pred_fallthru
          _
        // Predicated region
        $region109: #{_lambda_.1} parent=11 // pred_check
          %p887 = pneg %p627
        $region110: #{_lambda_.1} parent=11 // pred_check_branch
          %889 = sbr.rel (%p887) target = $region112
        $region111: #{_lambda_.1} parent=11 // pred_region
          _
        $region112: #{_lambda_.1} parent=11 // pred_fallthru
          _
        // Predicated region
        $region113: #{_lambda_.1} parent=11 // pred_check
          %p890 = pneg %p648
        $region114: #{_lambda_.1} parent=11 // pred_check_branch
          %892 = sbr.rel (%p890) target = $region116
        $region115: #{_lambda_.1} parent=11 // pred_region
          _
        $region116: #{_lambda_.1} parent=11 // pred_fallthru
          _
        // Predicated region
        $region117: #{_lambda_.1} parent=11 // pred_check
          %p893 = pneg %p669
        $region118: #{_lambda_.1} parent=11 // pred_check_branch
          %895 = sbr.rel (%p893) target = $region120
        $region119: #{_lambda_.1} parent=11 // pred_region
          _
        $region120: #{_lambda_.1} parent=11 // pred_fallthru
          _
        // Predicated region
        $region121: #{_lambda_.1} parent=11 // pred_check
          %p896 = pneg %p690
        $region122: #{_lambda_.1} parent=11 // pred_check_branch
          %898 = sbr.rel (%p896) target = $region124
        $region123: #{_lambda_.1} parent=11 // pred_region
          _
        $region124: #{_lambda_.1} parent=11 // pred_fallthru
          _
        // Predicated region
        $region125: #{_lambda_.1} parent=11 // pred_check
          %p899 = pneg %p711
        $region126: #{_lambda_.1} parent=11 // pred_check_branch
          %901 = sbr.rel (%p899) target = $region128
        $region127: #{_lambda_.1} parent=11 // pred_region
          _
        $region128: #{_lambda_.1} parent=11 // pred_fallthru
          _
        // Predicated region
        $region129: #{_lambda_.1} parent=11 // pred_check
          %p902 = pneg %p732
        $region130: #{_lambda_.1} parent=11 // pred_check_branch
          %904 = sbr.rel (%p902) target = $region132
        $region131: #{_lambda_.1} parent=11 // pred_region
          _
        $region132: #{_lambda_.1} parent=11 // pred_fallthru
          _
        // Predicated region
        $region133: #{_lambda_.1} parent=11 // pred_check
          %p905 = pneg %p753
        $region134: #{_lambda_.1} parent=11 // pred_check_branch
          %907 = sbr.rel (%p905) target = $region136
        $region135: #{_lambda_.1} parent=11 // pred_region
          _
        $region136: #{_lambda_.1} parent=11 // pred_fallthru
          _
        // Predicated region
        $region137: #{_lambda_.1} parent=11 // pred_check
          %p908 = pneg %p774
        $region138: #{_lambda_.1} parent=11 // pred_check_branch
          %910 = sbr.rel (%p908) target = $region140
        $region139: #{_lambda_.1} parent=11 // pred_region
          _
        $region140: #{_lambda_.1} parent=11 // pred_fallthru
          _
      $region12: #{_lambda_.1} parent=5 // pred_fallthru
        _
      %p911 = scmp.lt.s32.totalorder %s76, 2
      // Predicated region
      $region141: #{_lambda_.1} parent=5 // pred_check
        %p912 = pneg %p911
      $region142: #{_lambda_.1} parent=5 // pred_check_branch
        %914 = sbr.rel (%p912) target = $region144
      $region143: #{_lambda_.1} parent=5 // pred_region
        // Predicated region
        $region145: #{_lambda_.1} parent=143 // pred_check
          %p915 = pneg %p96
        $region146: #{_lambda_.1} parent=143 // pred_check_branch
          %917 = sbr.rel (%p915) target = $region148
        $region147: #{_lambda_.1} parent=143 // pred_region
          %p918 = scmp.lt.s32.totalorder %s76, 1
          %s919 = scalar_select %p918, %s76, 1
          %s920 = smul.addr %s919, 16
          %s921 = smul.addr %s920, 4
          %s922 = scalar_lea.vmem %s1, %s921
        $region148: #{_lambda_.1} parent=143 // pred_fallthru
          _
      $region144: #{_lambda_.1} parent=5 // pred_fallthru
        _
      %p923 = scmp.le.s32.totalorder 1, %s76
      %p924 = scmp.lt.s32.totalorder %s76, 3
      %p925 = pnand %p923, %p924
      %p926 = pneg %p925
      // Predicated region
      $region149: #{_lambda_.1} parent=5 // pred_check
        _
      $region150: #{_lambda_.1} parent=5 // pred_check_branch
        %928 = sbr.rel (%p925) target = $region152
      $region151: #{_lambda_.1} parent=5 // pred_region
        %s929 = ssub.s32 %s76, 1
        %p930 = scmp.lt.s32.totalorder %s81, 1
        %s931 = scalar_select %p930, %s81, 1
        %s932 = smul.addr %s931, 16
        %s933 = smul.addr %s932, 4
        %s934 = scalar_lea.vmem %s1, %s933
        %p935 = pneg %p102
        %p936 = pneg %p99
        %p937 = pneg %p123
        %p938 = pneg %p120
        %p939 = pneg %p144
        %p940 = pneg %p141
        %p941 = pneg %p165
        %p942 = pneg %p162
        %p943 = pneg %p186
        %p944 = pneg %p183
        %p945 = pneg %p207
        %p946 = pneg %p204
        %p947 = pneg %p228
        %p948 = pneg %p225
        %p949 = pneg %p249
        %p950 = pneg %p246
        %p951 = pneg %p270
        %p952 = pneg %p267
        %p953 = pneg %p291
        %p954 = pneg %p288
        %p955 = pneg %p312
        %p956 = pneg %p309
        %p957 = pneg %p333
        %p958 = pneg %p330
        %p959 = pneg %p354
        %p960 = pneg %p351
        %p961 = pneg %p375
        %p962 = pneg %p372
        %p963 = pneg %p396
        %p964 = pneg %p393
        %p965 = pneg %p417
        %p966 = pneg %p414
        %p967 = pneg %p438
        %p968 = pneg %p435
        %p969 = pneg %p459
        %p970 = pneg %p456
        %p971 = pneg %p480
        %p972 = pneg %p477
        %p973 = pneg %p501
        %p974 = pneg %p498
        %p975 = pneg %p522
        %p976 = pneg %p519
        %p977 = pneg %p543
        %p978 = pneg %p540
        %p979 = pneg %p564
        %p980 = pneg %p561
        %p981 = pneg %p585
        %p982 = pneg %p582
        %p983 = pneg %p606
        %p984 = pneg %p603
        %p985 = pneg %p627
        %p986 = pneg %p624
        %p987 = pneg %p648
        %p988 = pneg %p645
        %p989 = pneg %p669
        %p990 = pneg %p666
        %p991 = pneg %p690
        %p992 = pneg %p687
        %p993 = pneg %p711
        %p994 = pneg %p708
        %p995 = pneg %p732
        %p996 = pneg %p729
        %p997 = pneg %p753
        %p998 = pneg %p750
        %p999 = pneg %p774
        %p1000 = pneg %p771
        %p1001 = pneg %p800
        %p1002 = pneg %p797
        %s1003 = sand.u32 %s787, 1
        %s1004 = scalar_lea.sflag [#allocation3], %s1003
        %s1005 = sand.u32 %s787, 1
        %s1006 = scalar_lea.vmem [#allocation2], %s1005
        %p1007 = scmp.lt.s32.totalorder %s81, 1
        %s1008 = scalar_select %p1007, %s81, 1
        %s1009 = smul.addr %s1008, 16
        %s1010 = smul.addr %s1009, 4
        %s1011 = scalar_lea.vmem %s1, %s1010
        %v1013 = vld [vmem:[%s1011] sm:$0xff]
        %v1014 = vld [vmem:[%s1011 + $0x8] sm:$0xff]
        %v1015 = vld [vmem:[%s1011 + $0x10] sm:$0xff]
        %v1016 = vld [vmem:[%s1011 + $0x18] sm:$0xff]
        %v1017 = vld [vmem:[%s1011 + $0x20] sm:$0xff]
        %v1018 = vld [vmem:[%s1011 + $0x28] sm:$0xff]
        %v1019 = vld [vmem:[%s1011 + $0x30] sm:$0xff]
        %v1020 = vld [vmem:[%s1011 + $0x38] sm:$0xff]
        %v1021 = vld [vmem:[%s3] sm:$0xf]
        %v1022 = vld [vmem:[%s3 + $0x4] sm:$0xf]
        %v1023 = vld [vmem:[%s3 + $0x8] sm:$0xf]
        %v1024 = vld [vmem:[%s3 + $0xc] sm:$0xf]
        %v1025 = vld [vmem:[%s3 + $0x10] sm:$0xf]
        %v1026 = vld [vmem:[%s3 + $0x14] sm:$0xf]
        %v1027 = vld [vmem:[%s3 + $0x18] sm:$0xf]
        %v1028 = vld [vmem:[%s3 + $0x1c] sm:$0xf]
        %v1029 = vld [vmem:[%s3 + $0x20] sm:$0xf]
        %v1030 = vld [vmem:[%s3 + $0x24] sm:$0xf]
        %v1031 = vld [vmem:[%s3 + $0x28] sm:$0xf]
        %v1032 = vld [vmem:[%s3 + $0x2c] sm:$0xf]
        %v1033 = vld [vmem:[%s3 + $0x30] sm:$0xf]
        %v1034 = vld [vmem:[%s3 + $0x34] sm:$0xf]
        %v1035 = vld [vmem:[%s3 + $0x38] sm:$0xf]
        %v1036 = vld [vmem:[%s3 + $0x3c] sm:$0xf]
        %v1037 = vld [vmem:[%s3 + $0x40] sm:$0xf]
        %v1038 = vld [vmem:[%s3 + $0x44] sm:$0xf]
        %v1039 = vld [vmem:[%s3 + $0x48] sm:$0xf]
        %v1040 = vld [vmem:[%s3 + $0x4c] sm:$0xf]
        %v1041 = vld [vmem:[%s3 + $0x50] sm:$0xf]
        %v1042 = vld [vmem:[%s3 + $0x54] sm:$0xf]
        %v1043 = vld [vmem:[%s3 + $0x58] sm:$0xf]
        %v1044 = vld [vmem:[%s3 + $0x5c] sm:$0xf]
        %v1045 = vld [vmem:[%s3 + $0x60] sm:$0x3]
        %v1046 = vld [vmem:[%s5] sm:$0x1]
        %v1048 = vlaneseq
        %v1049 = vshrl.u32 %v1048, 7
        %v1050 = vsub.s32 0, %v1049
        %v1051 = vrot.slane %v1046, %v1050
        %v1061 = vunpack.c.l.b16 %v1013
        %v1062 = vunpack.c.h.b16 %v1013
        %v1063 = vunpack.c.l.b16 %v1014
        %v1064 = vunpack.c.h.b16 %v1014
        %v1065 = vunpack.c.l.b16 %v1015
        %v1066 = vunpack.c.h.b16 %v1015
        %v1067 = vunpack.c.l.b16 %v1016
        %v1068 = vunpack.c.h.b16 %v1016
        %v1069 = vunpack.c.l.b16 %v1017
        %v1070 = vunpack.c.h.b16 %v1017
        %v1071 = vunpack.c.l.b16 %v1018
        %v1072 = vunpack.c.h.b16 %v1018
        %v1073 = vunpack.c.l.b16 %v1019
        %v1074 = vunpack.c.h.b16 %v1019
        %v1075 = vunpack.c.l.b16 %v1020
        %v1076 = vunpack.c.h.b16 %v1020
        %v1077 = vpack.c.b16 %v1063, %v1061
        %v1078 = vpack.c.b16 %v1064, %v1062
        %v1079 = vpack.c.b16 %v1067, %v1065
        %v1080 = vpack.c.b16 %v1068, %v1066
        %v1081 = vpack.c.b16 %v1071, %v1069
        %v1082 = vpack.c.b16 %v1072, %v1070
        %v1083 = vpack.c.b16 %v1075, %v1073
        %v1084 = vpack.c.b16 %v1076, %v1074
        %v1114 = vunpack.c.l.b16 %v1021
        %v1115 = vunpack.c.l.b16 %v1022
        %v1116 = vunpack.c.l.b16 %v1023
        %v1117 = vunpack.c.l.b16 %v1024
        %v1118 = vunpack.c.l.b16 %v1025
        %v1119 = vunpack.c.l.b16 %v1026
        %v1120 = vunpack.c.l.b16 %v1027
        %v1121 = vunpack.c.l.b16 %v1028
        %v1122 = vunpack.c.l.b16 %v1029
        %v1123 = vunpack.c.l.b16 %v1030
        %v1124 = vunpack.c.l.b16 %v1031
        %v1125 = vunpack.c.l.b16 %v1032
        %v1126 = vunpack.c.l.b16 %v1033
        %v1127 = vunpack.c.l.b16 %v1034
        %v1128 = vunpack.c.l.b16 %v1035
        %v1129 = vunpack.c.l.b16 %v1036
        %v1130 = vunpack.c.l.b16 %v1037
        %v1131 = vunpack.c.l.b16 %v1038
        %v1132 = vunpack.c.l.b16 %v1039
        %v1133 = vunpack.c.l.b16 %v1040
        %v1134 = vunpack.c.l.b16 %v1041
        %v1135 = vunpack.c.l.b16 %v1042
        %v1136 = vunpack.c.l.b16 %v1043
        %v1137 = vunpack.c.l.b16 %v1044
        %v1138 = vunpack.c.l.b16 %v1045
        %v1139 = vpack.c.b16 %v1115, %v1114
        %v1140 = vpack.c.b16 %v1117, %v1116
        %v1141 = vpack.c.b16 %v1119, %v1118
        %v1142 = vpack.c.b16 %v1121, %v1120
        %v1143 = vpack.c.b16 %v1123, %v1122
        %v1144 = vpack.c.b16 %v1125, %v1124
        %v1145 = vpack.c.b16 %v1127, %v1126
        %v1146 = vpack.c.b16 %v1129, %v1128
        %v1147 = vpack.c.b16 %v1131, %v1130
        %v1148 = vpack.c.b16 %v1133, %v1132
        %v1149 = vpack.c.b16 %v1135, %v1134
        %v1150 = vpack.c.b16 %v1137, %v1136
        %v1151 = vpack.c.b16 %v1138, %v1138
        %vm1164 = vcmask 556032
        %v1166 = vsel %vm1164, %v1078, 0
        %v1169 = vsel %vm1164, %v1080, 0
        %v1172 = vsel %vm1164, %v1082, 0
        %v1175 = vsel %vm1164, %v1084, 0
        %vm1177 = vcmask 1041408
        %v1179 = vsel %vm1177, %v1151, 0
        %1181 = vmatprep.subr.bf16.mxu0 0
        %1182 = vmatpush1.bf16.msra.mxu0 %v1139
        %1183 = vmatprep.subr.bf16.mxu0 0
        %1184 = vmatpush1.bf16.msra.mxu0 %v1140
        %1185 = vmatprep.subr.bf16.mxu0 0
        %1186 = vmatpush1.bf16.msra.mxu0 %v1141
        %1187 = vmatprep.subr.bf16.mxu0 0
        %1188 = vmatpush1.bf16.msra.mxu0 %v1142
        %1189 = vmatprep.subr.bf16.mxu0 0
        %1190 = vmatpush1.bf16.msra.mxu0 %v1143
        %1191 = vmatprep.subr.bf16.mxu0 0
        %1192 = vmatpush1.bf16.msra.mxu0 %v1144
        %1193 = vmatprep.subr.bf16.mxu0 0
        %1194 = vmatpush1.bf16.msra.mxu0 %v1145
        %1195 = vmatprep.subr.bf16.mxu0 0
        %1196 = vmatpush1.bf16.msra.mxu0 %v1146
        %1197 = vmatprep.subr.bf16.mxu0 0
        %1198 = vmatpush1.bf16.msra.mxu0 %v1147
        %1199 = vmatprep.subr.bf16.mxu0 0
        %1200 = vmatpush1.bf16.msra.mxu0 %v1148
        %1201 = vmatprep.subr.bf16.mxu0 0
        %1202 = vmatpush1.bf16.msra.mxu0 %v1149
        %1203 = vmatprep.subr.bf16.mxu0 0
        %1204 = vmatpush1.bf16.msra.mxu0 %v1150
        %1205 = vmatprep.subr.bf16.mxu0 0
        %1206 = vmatpush1.bf16.msra.mxu0 %v1179
        %1207 = vmatprep.subr.bf16.mxu0 0
        %1208 = vmatpush1.bf16.msra.mxu0 0
        %1209 = vmatprep.subr.bf16.mxu0 0
        %1210 = vmatpush1.bf16.msra.mxu0 0
        %1211 = vmatprep.subr.bf16.mxu0 0
        %1212 = vmatpush1.bf16.msra.mxu0 0
        %1213 = vmatprep.mubr.bf16.mxu0 %v1166
        %1214 = vmatmul.mubr.bf16.gmra.mrb[0].mxu0 %v1077
        %v1215 = vpop.f32.mrb[0].mxu0
        %v1216 = vadd.f32 %v1051, %v1215
        %v1217 = vpop.f32.mrb[0].mxu0
        %v1218 = vpop.f32.mrb[0].mxu0
        %v1219 = vadd.f32 %v1051, %v1218
        %v1220 = vpop.f32.mrb[0].mxu0
        %1221 = vmatprep.mubr.bf16.mxu0 %v1169
        %1222 = vmatmul.mubr.bf16.gmra.mrb[0].mxu0 %v1079
        %v1223 = vpop.f32.mrb[0].mxu0
        %v1224 = vadd.f32 %v1051, %v1223
        %v1225 = vpop.f32.mrb[0].mxu0
        %v1226 = vpop.f32.mrb[0].mxu0
        %v1227 = vadd.f32 %v1051, %v1226
        %v1228 = vpop.f32.mrb[0].mxu0
        %1229 = vmatprep.mubr.bf16.mxu0 %v1172
        %1230 = vmatmul.mubr.bf16.gmra.mrb[0].mxu0 %v1081
        %v1231 = vpop.f32.mrb[0].mxu0
        %v1232 = vadd.f32 %v1051, %v1231
        %v1233 = vpop.f32.mrb[0].mxu0
        %v1234 = vpop.f32.mrb[0].mxu0
        %v1235 = vadd.f32 %v1051, %v1234
        %v1236 = vpop.f32.mrb[0].mxu0
        %1237 = vmatprep.mubr.bf16.mxu0 %v1175
        %1238 = vmatmul.mubr.bf16.gmra.mrb[0].mxu0 %v1083
        %v1239 = vpop.f32.mrb[0].mxu0
        %v1240 = vadd.f32 %v1051, %v1239
        %v1241 = vpop.f32.mrb[0].mxu0
        %v1242 = vpop.f32.mrb[0].mxu0
        %v1243 = vadd.f32 %v1051, %v1242
        %v1244 = vpop.f32.mrb[0].mxu0
        %1245 = vdwg.mxu0
        %v1246 = vmax.f32 %v1216, 0.0
        %v1247 = vmax.f32 %v1219, 0.0
        %v1248 = vmax.f32 %v1224, 0.0
        %v1249 = vmax.f32 %v1227, 0.0
        %v1250 = vmax.f32 %v1232, 0.0
        %v1251 = vmax.f32 %v1235, 0.0
        %v1252 = vmax.f32 %v1240, 0.0
        %v1253 = vmax.f32 %v1243, 0.0
        %v1254 = vpack.c.bf16 %v1247, %v1246
        %v1255 = vpack.c.bf16 %v1249, %v1248
        %v1256 = vpack.c.bf16 %v1251, %v1250
        %v1257 = vpack.c.bf16 %v1253, %v1252
        %v1258 = vld [vmem:[%s7] sm:$0xf]
        %v1259 = vld [vmem:[%s7 + $0x4] sm:$0xf]
        %v1262 = vunpack.c.l.b16 %v1258
        %v1263 = vunpack.c.l.b16 %v1259
        %v1264 = vpack.c.b16 %v1263, %v1262
        %vm1265 = vcmask 523264
        %v1267 = vsel %vm1265, %v1264, 0
        %1269 = vmatprep.subr.bf16.mxu0 0
        %1270 = vmatpush1.bf16.msra.mxu0 %v1254
        %1271 = vmatprep.subr.bf16.mxu0 0
        %1272 = vmatpush1.bf16.msra.mxu0 %v1255
        %1273 = vmatprep.subr.bf16.mxu0 0
        %1274 = vmatpush1.bf16.msra.mxu0 %v1256
        %1275 = vmatprep.subr.bf16.mxu0 0
        %1276 = vmatpush1.bf16.msra.mxu0 %v1257
        %1277 = vmatprep.subr.bf16.mxu0 0
        %1278 = vmatpush1.bf16.msra.mxu0 0
        %1279 = vmatprep.subr.bf16.mxu0 0
        %1280 = vmatpush1.bf16.msra.mxu0 0
        %1281 = vmatprep.subr.bf16.mxu0 0
        %1282 = vmatpush1.bf16.msra.mxu0 0
        %1283 = vmatprep.subr.bf16.mxu0 0
        %1284 = vmatpush1.bf16.msra.mxu0 0
        %1285 = vmatprep.subr.bf16.mxu0 0
        %1286 = vmatpush1.bf16.msra.mxu0 0
        %1287 = vmatprep.subr.bf16.mxu0 0
        %1288 = vmatpush1.bf16.msra.mxu0 0
        %1289 = vmatprep.subr.bf16.mxu0 0
        %1290 = vmatpush1.bf16.msra.mxu0 0
        %1291 = vmatprep.subr.bf16.mxu0 0
        %1292 = vmatpush1.bf16.msra.mxu0 0
        %1293 = vmatprep.subr.bf16.mxu0 0
        %1294 = vmatpush1.bf16.msra.mxu0 0
        %1295 = vmatprep.subr.bf16.mxu0 0
        %1296 = vmatpush1.bf16.msra.mxu0 0
        %1297 = vmatprep.subr.bf16.mxu0 0
        %1298 = vmatpush1.bf16.msra.mxu0 0
        %1299 = vmatprep.subr.bf16.mxu0 0
        %1300 = vmatpush1.bf16.msra.mxu0 0
        %1301 = vmatprep.mubr.bf16.mxu0 0
        %1302 = vmatmul.mubr.bf16.gmra.mrb[0].mxu0 %v1267
        %v1303 = vpop.f32.mrb[0].mxu0
        %v1304 = vadd.f32 0.0, %v1303
        %v1305 = vpop.f32.mrb[0].mxu0
        %v1306 = vpop.f32.mrb[0].mxu0
        %v1307 = vadd.f32 0.0, %v1306
        %v1308 = vpop.f32.mrb[0].mxu0
        %1309 = vdwg.mxu0
        %s1310 = scalar_lea.vmem %s7, 8
        %v1311 = vld [vmem:[%s1310] sm:$0xf]
        %v1312 = vld [vmem:[%s1310 + $0x4] sm:$0xf]
        %v1315 = vunpack.c.l.b16 %v1311
        %v1316 = vunpack.c.l.b16 %v1312
        %v1317 = vpack.c.b16 %v1316, %v1315
        %v1319 = vsel %vm1265, %v1317, 0
        %1321 = vmatprep.subr.bf16.mxu0 0
        %1322 = vmatpush1.bf16.msra.mxu0 %v1254
        %1323 = vmatprep.subr.bf16.mxu0 0
        %1324 = vmatpush1.bf16.msra.mxu0 %v1255
        %1325 = vmatprep.subr.bf16.mxu0 0
        %1326 = vmatpush1.bf16.msra.mxu0 %v1256
        %1327 = vmatprep.subr.bf16.mxu0 0
        %1328 = vmatpush1.bf16.msra.mxu0 %v1257
        %1329 = vmatprep.subr.bf16.mxu0 0
        %1330 = vmatpush1.bf16.msra.mxu0 0
        %1331 = vmatprep.subr.bf16.mxu0 0
        %1332 = vmatpush1.bf16.msra.mxu0 0
        %1333 = vmatprep.subr.bf16.mxu0 0
        %1334 = vmatpush1.bf16.msra.mxu0 0
        %1335 = vmatprep.subr.bf16.mxu0 0
        %1336 = vmatpush1.bf16.msra.mxu0 0
        %1337 = vmatprep.subr.bf16.mxu0 0
        %1338 = vmatpush1.bf16.msra.mxu0 0
        %1339 = vmatprep.subr.bf16.mxu0 0
        %1340 = vmatpush1.bf16.msra.mxu0 0
        %1341 = vmatprep.subr.bf16.mxu0 0
        %1342 = vmatpush1.bf16.msra.mxu0 0
        %1343 = vmatprep.subr.bf16.mxu0 0
        %1344 = vmatpush1.bf16.msra.mxu0 0
        %1345 = vmatprep.subr.bf16.mxu0 0
        %1346 = vmatpush1.bf16.msra.mxu0 0
        %1347 = vmatprep.subr.bf16.mxu0 0
        %1348 = vmatpush1.bf16.msra.mxu0 0
        %1349 = vmatprep.subr.bf16.mxu0 0
        %1350 = vmatpush1.bf16.msra.mxu0 0
        %1351 = vmatprep.subr.bf16.mxu0 0
        %1352 = vmatpush1.bf16.msra.mxu0 0
        %1353 = vmatprep.mubr.bf16.mxu0 0
        %1354 = vmatmul.mubr.bf16.gmra.mrb[0].mxu0 %v1319
        %v1355 = vpop.f32.mrb[0].mxu0
        %v1356 = vadd.f32 0.0, %v1355
        %v1357 = vpop.f32.mrb[0].mxu0
        %v1358 = vpop.f32.mrb[0].mxu0
        %v1359 = vadd.f32 0.0, %v1358
        %v1360 = vpop.f32.mrb[0].mxu0
        %1361 = vdwg.mxu0
        %v1362 = vmax.f32 %v1304, %v1356
        %v1363 = vmax.f32 %v1307, %v1359
        %s1364 = scalar_lea.vmem %s7, 16
        %v1365 = vld [vmem:[%s1364] sm:$0xf]
        %v1366 = vld [vmem:[%s1364 + $0x4] sm:$0xf]
        %v1369 = vunpack.c.l.b16 %v1365
        %v1370 = vunpack.c.l.b16 %v1366
        %v1371 = vpack.c.b16 %v1370, %v1369
        %v1373 = vsel %vm1265, %v1371, 0
        %1375 = vmatprep.subr.bf16.mxu0 0
        %1376 = vmatpush1.bf16.msra.mxu0 %v1254
        %1377 = vmatprep.subr.bf16.mxu0 0
        %1378 = vmatpush1.bf16.msra.mxu0 %v1255
        %1379 = vmatprep.subr.bf16.mxu0 0
        %1380 = vmatpush1.bf16.msra.mxu0 %v1256
        %1381 = vmatprep.subr.bf16.mxu0 0
        %1382 = vmatpush1.bf16.msra.mxu0 %v1257
        %1383 = vmatprep.subr.bf16.mxu0 0
        %1384 = vmatpush1.bf16.msra.mxu0 0
        %1385 = vmatprep.subr.bf16.mxu0 0
        %1386 = vmatpush1.bf16.msra.mxu0 0
        %1387 = vmatprep.subr.bf16.mxu0 0
        %1388 = vmatpush1.bf16.msra.mxu0 0
        %1389 = vmatprep.subr.bf16.mxu0 0
        %1390 = vmatpush1.bf16.msra.mxu0 0
        %1391 = vmatprep.subr.bf16.mxu0 0
        %1392 = vmatpush1.bf16.msra.mxu0 0
        %1393 = vmatprep.subr.bf16.mxu0 0
        %1394 = vmatpush1.bf16.msra.mxu0 0
        %1395 = vmatprep.subr.bf16.mxu0 0
        %1396 = vmatpush1.bf16.msra.mxu0 0
        %1397 = vmatprep.subr.bf16.mxu0 0
        %1398 = vmatpush1.bf16.msra.mxu0 0
        %1399 = vmatprep.subr.bf16.mxu0 0
        %1400 = vmatpush1.bf16.msra.mxu0 0
        %1401 = vmatprep.subr.bf16.mxu0 0
        %1402 = vmatpush1.bf16.msra.mxu0 0
        %1403 = vmatprep.subr.bf16.mxu0 0
        %1404 = vmatpush1.bf16.msra.mxu0 0
        %1405 = vmatprep.subr.bf16.mxu0 0
        %1406 = vmatpush1.bf16.msra.mxu0 0
        %1407 = vmatprep.mubr.bf16.mxu0 0
        %1408 = vmatmul.mubr.bf16.gmra.mrb[0].mxu0 %v1373
        %v1409 = vpop.f32.mrb[0].mxu0
        %v1410 = vadd.f32 0.0, %v1409
        %v1411 = vpop.f32.mrb[0].mxu0
        %v1412 = vpop.f32.mrb[0].mxu0
        %v1413 = vadd.f32 0.0, %v1412
        %v1414 = vpop.f32.mrb[0].mxu0
        %1415 = vdwg.mxu0
        %v1416 = vmax.f32 %v1362, %v1410
        %v1417 = vmax.f32 %v1363, %v1413
        %s1418 = scalar_lea.vmem %s7, 24
        %v1419 = vld [vmem:[%s1418] sm:$0xf]
        %v1420 = vld [vmem:[%s1418 + $0x4] sm:$0xf]
        %v1423 = vunpack.c.l.b16 %v1419
        %v1424 = vunpack.c.l.b16 %v1420
        %v1425 = vpack.c.b16 %v1424, %v1423
        %v1427 = vsel %vm1265, %v1425, 0
        %1429 = vmatprep.subr.bf16.mxu0 0
        %1430 = vmatpush1.bf16.msra.mxu0 %v1254
        %1431 = vmatprep.subr.bf16.mxu0 0
        %1432 = vmatpush1.bf16.msra.mxu0 %v1255
        %1433 = vmatprep.subr.bf16.mxu0 0
        %1434 = vmatpush1.bf16.msra.mxu0 %v1256
        %1435 = vmatprep.subr.bf16.mxu0 0
        %1436 = vmatpush1.bf16.msra.mxu0 %v1257
        %1437 = vmatprep.subr.bf16.mxu0 0
        %1438 = vmatpush1.bf16.msra.mxu0 0
        %1439 = vmatprep.subr.bf16.mxu0 0
        %1440 = vmatpush1.bf16.msra.mxu0 0
        %1441 = vmatprep.subr.bf16.mxu0 0
        %1442 = vmatpush1.bf16.msra.mxu0 0
        %1443 = vmatprep.subr.bf16.mxu0 0
        %1444 = vmatpush1.bf16.msra.mxu0 0
        %1445 = vmatprep.subr.bf16.mxu0 0
        %1446 = vmatpush1.bf16.msra.mxu0 0
        %1447 = vmatprep.subr.bf16.mxu0 0
        %1448 = vmatpush1.bf16.msra.mxu0 0
        %1449 = vmatprep.subr.bf16.mxu0 0
        %1450 = vmatpush1.bf16.msra.mxu0 0
        %1451 = vmatprep.subr.bf16.mxu0 0
        %1452 = vmatpush1.bf16.msra.mxu0 0
        %1453 = vmatprep.subr.bf16.mxu0 0
        %1454 = vmatpush1.bf16.msra.mxu0 0
        %1455 = vmatprep.subr.bf16.mxu0 0
        %1456 = vmatpush1.bf16.msra.mxu0 0
        %1457 = vmatprep.subr.bf16.mxu0 0
        %1458 = vmatpush1.bf16.msra.mxu0 0
        %1459 = vmatprep.subr.bf16.mxu0 0
        %1460 = vmatpush1.bf16.msra.mxu0 0
        %1461 = vmatprep.mubr.bf16.mxu0 0
        %1462 = vmatmul.mubr.bf16.gmra.mrb[0].mxu0 %v1427
        %v1463 = vpop.f32.mrb[0].mxu0
        %v1464 = vadd.f32 0.0, %v1463
        %v1465 = vpop.f32.mrb[0].mxu0
        %v1466 = vpop.f32.mrb[0].mxu0
        %v1467 = vadd.f32 0.0, %v1466
        %v1468 = vpop.f32.mrb[0].mxu0
        %1469 = vdwg.mxu0
        %v1470 = vmax.f32 %v1416, %v1464
        %v1471 = vmax.f32 %v1417, %v1467
        %s1472 = scalar_lea.vmem %s7, 32
        %v1473 = vld [vmem:[%s1472] sm:$0xf]
        %v1474 = vld [vmem:[%s1472 + $0x4] sm:$0xf]
        %v1477 = vunpack.c.l.b16 %v1473
        %v1478 = vunpack.c.l.b16 %v1474
        %v1479 = vpack.c.b16 %v1478, %v1477
        %v1481 = vsel %vm1265, %v1479, 0
        %1483 = vmatprep.subr.bf16.mxu0 0
        %1484 = vmatpush1.bf16.msra.mxu0 %v1254
        %1485 = vmatprep.subr.bf16.mxu0 0
        %1486 = vmatpush1.bf16.msra.mxu0 %v1255
        %1487 = vmatprep.subr.bf16.mxu0 0
        %1488 = vmatpush1.bf16.msra.mxu0 %v1256
        %1489 = vmatprep.subr.bf16.mxu0 0
        %1490 = vmatpush1.bf16.msra.mxu0 %v1257
        %1491 = vmatprep.subr.bf16.mxu0 0
        %1492 = vmatpush1.bf16.msra.mxu0 0
        %1493 = vmatprep.subr.bf16.mxu0 0
        %1494 = vmatpush1.bf16.msra.mxu0 0
        %1495 = vmatprep.subr.bf16.mxu0 0
        %1496 = vmatpush1.bf16.msra.mxu0 0
        %1497 = vmatprep.subr.bf16.mxu0 0
        %1498 = vmatpush1.bf16.msra.mxu0 0
        %1499 = vmatprep.subr.bf16.mxu0 0
        %1500 = vmatpush1.bf16.msra.mxu0 0
        %1501 = vmatprep.subr.bf16.mxu0 0
        %1502 = vmatpush1.bf16.msra.mxu0 0
        %1503 = vmatprep.subr.bf16.mxu0 0
        %1504 = vmatpush1.bf16.msra.mxu0 0
        %1505 = vmatprep.subr.bf16.mxu0 0
        %1506 = vmatpush1.bf16.msra.mxu0 0
        %1507 = vmatprep.subr.bf16.mxu0 0
        %1508 = vmatpush1.bf16.msra.mxu0 0
        %1509 = vmatprep.subr.bf16.mxu0 0
        %1510 = vmatpush1.bf16.msra.mxu0 0
        %1511 = vmatprep.subr.bf16.mxu0 0
        %1512 = vmatpush1.bf16.msra.mxu0 0
        %1513 = vmatprep.subr.bf16.mxu0 0
        %1514 = vmatpush1.bf16.msra.mxu0 0
        %1515 = vmatprep.mubr.bf16.mxu0 0
        %1516 = vmatmul.mubr.bf16.gmra.mrb[0].mxu0 %v1481
        %v1517 = vpop.f32.mrb[0].mxu0
        %v1518 = vadd.f32 0.0, %v1517
        %v1519 = vpop.f32.mrb[0].mxu0
        %v1520 = vpop.f32.mrb[0].mxu0
        %v1521 = vadd.f32 0.0, %v1520
        %v1522 = vpop.f32.mrb[0].mxu0
        %1523 = vdwg.mxu0
        %v1524 = vmax.f32 %v1470, %v1518
        %v1525 = vmax.f32 %v1471, %v1521
        %s1526 = scalar_lea.vmem %s7, 40
        %v1527 = vld [vmem:[%s1526] sm:$0xf]
        %v1528 = vld [vmem:[%s1526 + $0x4] sm:$0xf]
        %v1531 = vunpack.c.l.b16 %v1527
        %v1532 = vunpack.c.l.b16 %v1528
        %v1533 = vpack.c.b16 %v1532, %v1531
        %v1535 = vsel %vm1265, %v1533, 0
        %1537 = vmatprep.subr.bf16.mxu0 0
        %1538 = vmatpush1.bf16.msra.mxu0 %v1254
        %1539 = vmatprep.subr.bf16.mxu0 0
        %1540 = vmatpush1.bf16.msra.mxu0 %v1255
        %1541 = vmatprep.subr.bf16.mxu0 0
        %1542 = vmatpush1.bf16.msra.mxu0 %v1256
        %1543 = vmatprep.subr.bf16.mxu0 0
        %1544 = vmatpush1.bf16.msra.mxu0 %v1257
        %1545 = vmatprep.subr.bf16.mxu0 0
        %1546 = vmatpush1.bf16.msra.mxu0 0
        %1547 = vmatprep.subr.bf16.mxu0 0
        %1548 = vmatpush1.bf16.msra.mxu0 0
        %1549 = vmatprep.subr.bf16.mxu0 0
        %1550 = vmatpush1.bf16.msra.mxu0 0
        %1551 = vmatprep.subr.bf16.mxu0 0
        %1552 = vmatpush1.bf16.msra.mxu0 0
        %1553 = vmatprep.subr.bf16.mxu0 0
        %1554 = vmatpush1.bf16.msra.mxu0 0
        %1555 = vmatprep.subr.bf16.mxu0 0
        %1556 = vmatpush1.bf16.msra.mxu0 0
        %1557 = vmatprep.subr.bf16.mxu0 0
        %1558 = vmatpush1.bf16.msra.mxu0 0
        %1559 = vmatprep.subr.bf16.mxu0 0
        %1560 = vmatpush1.bf16.msra.mxu0 0
        %1561 = vmatprep.subr.bf16.mxu0 0
        %1562 = vmatpush1.bf16.msra.mxu0 0
        %1563 = vmatprep.subr.bf16.mxu0 0
        %1564 = vmatpush1.bf16.msra.mxu0 0
        %1565 = vmatprep.subr.bf16.mxu0 0
        %1566 = vmatpush1.bf16.msra.mxu0 0
        %1567 = vmatprep.subr.bf16.mxu0 0
        %1568 = vmatpush1.bf16.msra.mxu0 0
        %1569 = vmatprep.mubr.bf16.mxu0 0
        %1570 = vmatmul.mubr.bf16.gmra.mrb[0].mxu0 %v1535
        %v1571 = vpop.f32.mrb[0].mxu0
        %v1572 = vadd.f32 0.0, %v1571
        %v1573 = vpop.f32.mrb[0].mxu0
        %v1574 = vpop.f32.mrb[0].mxu0
        %v1575 = vadd.f32 0.0, %v1574
        %v1576 = vpop.f32.mrb[0].mxu0
        %1577 = vdwg.mxu0
        %v1578 = vmax.f32 %v1524, %v1572
        %v1579 = vmax.f32 %v1525, %v1575
        %s1580 = scalar_lea.vmem %s7, 48
        %v1581 = vld [vmem:[%s1580] sm:$0xf]
        %v1582 = vld [vmem:[%s1580 + $0x4] sm:$0xf]
        %v1585 = vunpack.c.l.b16 %v1581
        %v1586 = vunpack.c.l.b16 %v1582
        %v1587 = vpack.c.b16 %v1586, %v1585
        %v1589 = vsel %vm1265, %v1587, 0
        %1591 = vmatprep.subr.bf16.mxu0 0
        %1592 = vmatpush1.bf16.msra.mxu0 %v1254
        %1593 = vmatprep.subr.bf16.mxu0 0
        %1594 = vmatpush1.bf16.msra.mxu0 %v1255
        %1595 = vmatprep.subr.bf16.mxu0 0
        %1596 = vmatpush1.bf16.msra.mxu0 %v1256
        %1597 = vmatprep.subr.bf16.mxu0 0
        %1598 = vmatpush1.bf16.msra.mxu0 %v1257
        %1599 = vmatprep.subr.bf16.mxu0 0
        %1600 = vmatpush1.bf16.msra.mxu0 0
        %1601 = vmatprep.subr.bf16.mxu0 0
        %1602 = vmatpush1.bf16.msra.mxu0 0
        %1603 = vmatprep.subr.bf16.mxu0 0
        %1604 = vmatpush1.bf16.msra.mxu0 0
        %1605 = vmatprep.subr.bf16.mxu0 0
        %1606 = vmatpush1.bf16.msra.mxu0 0
        %1607 = vmatprep.subr.bf16.mxu0 0
        %1608 = vmatpush1.bf16.msra.mxu0 0
        %1609 = vmatprep.subr.bf16.mxu0 0
        %1610 = vmatpush1.bf16.msra.mxu0 0
        %1611 = vmatprep.subr.bf16.mxu0 0
        %1612 = vmatpush1.bf16.msra.mxu0 0
        %1613 = vmatprep.subr.bf16.mxu0 0
        %1614 = vmatpush1.bf16.msra.mxu0 0
        %1615 = vmatprep.subr.bf16.mxu0 0
        %1616 = vmatpush1.bf16.msra.mxu0 0
        %1617 = vmatprep.subr.bf16.mxu0 0
        %1618 = vmatpush1.bf16.msra.mxu0 0
        %1619 = vmatprep.subr.bf16.mxu0 0
        %1620 = vmatpush1.bf16.msra.mxu0 0
        %1621 = vmatprep.subr.bf16.mxu0 0
        %1622 = vmatpush1.bf16.msra.mxu0 0
        %1623 = vmatprep.mubr.bf16.mxu0 0
        %1624 = vmatmul.mubr.bf16.gmra.mrb[0].mxu0 %v1589
        %v1625 = vpop.f32.mrb[0].mxu0
        %v1626 = vadd.f32 0.0, %v1625
        %v1627 = vpop.f32.mrb[0].mxu0
        %v1628 = vpop.f32.mrb[0].mxu0
        %v1629 = vadd.f32 0.0, %v1628
        %v1630 = vpop.f32.mrb[0].mxu0
        %1631 = vdwg.mxu0
        %v1632 = vmax.f32 %v1578, %v1626
        %v1633 = vmax.f32 %v1579, %v1629
        %s1634 = scalar_lea.vmem %s7, 56
        %v1635 = vld [vmem:[%s1634] sm:$0xf]
        %v1636 = vld [vmem:[%s1634 + $0x4] sm:$0xf]
        %v1639 = vunpack.c.l.b16 %v1635
        %v1640 = vunpack.c.l.b16 %v1636
        %v1641 = vpack.c.b16 %v1640, %v1639
        %v1643 = vsel %vm1265, %v1641, 0
        %1645 = vmatprep.subr.bf16.mxu0 0
        %1646 = vmatpush1.bf16.msra.mxu0 %v1254
        %1647 = vmatprep.subr.bf16.mxu0 0
        %1648 = vmatpush1.bf16.msra.mxu0 %v1255
        %1649 = vmatprep.subr.bf16.mxu0 0
        %1650 = vmatpush1.bf16.msra.mxu0 %v1256
        %1651 = vmatprep.subr.bf16.mxu0 0
        %1652 = vmatpush1.bf16.msra.mxu0 %v1257
        %1653 = vmatprep.subr.bf16.mxu0 0
        %1654 = vmatpush1.bf16.msra.mxu0 0
        %1655 = vmatprep.subr.bf16.mxu0 0
        %1656 = vmatpush1.bf16.msra.mxu0 0
        %1657 = vmatprep.subr.bf16.mxu0 0
        %1658 = vmatpush1.bf16.msra.mxu0 0
        %1659 = vmatprep.subr.bf16.mxu0 0
        %1660 = vmatpush1.bf16.msra.mxu0 0
        %1661 = vmatprep.subr.bf16.mxu0 0
        %1662 = vmatpush1.bf16.msra.mxu0 0
        %1663 = vmatprep.subr.bf16.mxu0 0
        %1664 = vmatpush1.bf16.msra.mxu0 0
        %1665 = vmatprep.subr.bf16.mxu0 0
        %1666 = vmatpush1.bf16.msra.mxu0 0
        %1667 = vmatprep.subr.bf16.mxu0 0
        %1668 = vmatpush1.bf16.msra.mxu0 0
        %1669 = vmatprep.subr.bf16.mxu0 0
        %1670 = vmatpush1.bf16.msra.mxu0 0
        %1671 = vmatprep.subr.bf16.mxu0 0
        %1672 = vmatpush1.bf16.msra.mxu0 0
        %1673 = vmatprep.subr.bf16.mxu0 0
        %1674 = vmatpush1.bf16.msra.mxu0 0
        %1675 = vmatprep.subr.bf16.mxu0 0
        %1676 = vmatpush1.bf16.msra.mxu0 0
        %1677 = vmatprep.mubr.bf16.mxu0 0
        %1678 = vmatmul.mubr.bf16.gmra.mrb[0].mxu0 %v1643
        %v1679 = vpop.f32.mrb[0].mxu0
        %v1680 = vadd.f32 0.0, %v1679
        %v1681 = vpop.f32.mrb[0].mxu0
        %v1682 = vpop.f32.mrb[0].mxu0
        %v1683 = vadd.f32 0.0, %v1682
        %v1684 = vpop.f32.mrb[0].mxu0
        %1685 = vdwg.mxu0
        %v1686 = vmax.f32 %v1632, %v1680
        %v1687 = vmax.f32 %v1633, %v1683
        %s1688 = scalar_lea.vmem %s7, 64
        %v1689 = vld [vmem:[%s1688] sm:$0xf]
        %v1690 = vld [vmem:[%s1688 + $0x4] sm:$0xf]
        %v1693 = vunpack.c.l.b16 %v1689
        %v1694 = vunpack.c.l.b16 %v1690
        %v1695 = vpack.c.b16 %v1694, %v1693
        %v1697 = vsel %vm1265, %v1695, 0
        %1699 = vmatprep.subr.bf16.mxu0 0
        %1700 = vmatpush1.bf16.msra.mxu0 %v1254
        %1701 = vmatprep.subr.bf16.mxu0 0
        %1702 = vmatpush1.bf16.msra.mxu0 %v1255
        %1703 = vmatprep.subr.bf16.mxu0 0
        %1704 = vmatpush1.bf16.msra.mxu0 %v1256
        %1705 = vmatprep.subr.bf16.mxu0 0
        %1706 = vmatpush1.bf16.msra.mxu0 %v1257
        %1707 = vmatprep.subr.bf16.mxu0 0
        %1708 = vmatpush1.bf16.msra.mxu0 0
        %1709 = vmatprep.subr.bf16.mxu0 0
        %1710 = vmatpush1.bf16.msra.mxu0 0
        %1711 = vmatprep.subr.bf16.mxu0 0
        %1712 = vmatpush1.bf16.msra.mxu0 0
        %1713 = vmatprep.subr.bf16.mxu0 0
        %1714 = vmatpush1.bf16.msra.mxu0 0
        %1715 = vmatprep.subr.bf16.mxu0 0
        %1716 = vmatpush1.bf16.msra.mxu0 0
        %1717 = vmatprep.subr.bf16.mxu0 0
        %1718 = vmatpush1.bf16.msra.mxu0 0
        %1719 = vmatprep.subr.bf16.mxu0 0
        %1720 = vmatpush1.bf16.msra.mxu0 0
        %1721 = vmatprep.subr.bf16.mxu0 0
        %1722 = vmatpush1.bf16.msra.mxu0 0
        %1723 = vmatprep.subr.bf16.mxu0 0
        %1724 = vmatpush1.bf16.msra.mxu0 0
        %1725 = vmatprep.subr.bf16.mxu0 0
        %1726 = vmatpush1.bf16.msra.mxu0 0
        %1727 = vmatprep.subr.bf16.mxu0 0
        %1728 = vmatpush1.bf16.msra.mxu0 0
        %1729 = vmatprep.subr.bf16.mxu0 0
        %1730 = vmatpush1.bf16.msra.mxu0 0
        %1731 = vmatprep.mubr.bf16.mxu0 0
        %1732 = vmatmul.mubr.bf16.gmra.mrb[0].mxu0 %v1697
        %v1733 = vpop.f32.mrb[0].mxu0
        %v1734 = vadd.f32 0.0, %v1733
        %v1735 = vpop.f32.mrb[0].mxu0
        %v1736 = vpop.f32.mrb[0].mxu0
        %v1737 = vadd.f32 0.0, %v1736
        %v1738 = vpop.f32.mrb[0].mxu0
        %1739 = vdwg.mxu0
        %v1740 = vmax.f32 %v1686, %v1734
        %v1741 = vmax.f32 %v1687, %v1737
        %v1742 = vpack.c.bf16 %v1741, %v1740
        %v1743 = vld [vmem:[%s9] sm:$0xf]
        %v1744 = vld [vmem:[%s11] sm:$0x1]
        %v1746 = vlaneseq
        %v1747 = vshrl.u32 %v1746, 7
        %v1748 = vsub.s32 0, %v1747
        %v1749 = vrot.slane %v1744, %v1748
        %vm1751 = vcmask 64512
        %v1753 = vsel %vm1751, %v1742, 0
        %vm1755 = vcmask 1043456
        %v1757 = vsel %vm1755, %v1743, 0
        %1759 = vmatprep.subr.bf16.mxu0 0
        %1760 = vmatpush1.bf16.msra.mxu0 %v1757
        %1761 = vmatprep.subr.bf16.mxu0 0
        %1762 = vmatpush1.bf16.msra.mxu0 0
        %1763 = vmatprep.subr.bf16.mxu0 0
        %1764 = vmatpush1.bf16.msra.mxu0 0
        %1765 = vmatprep.subr.bf16.mxu0 0
        %1766 = vmatpush1.bf16.msra.mxu0 0
        %1767 = vmatprep.subr.bf16.mxu0 0
        %1768 = vmatpush1.bf16.msra.mxu0 0
        %1769 = vmatprep.subr.bf16.mxu0 0
        %1770 = vmatpush1.bf16.msra.mxu0 0
        %1771 = vmatprep.subr.bf16.mxu0 0
        %1772 = vmatpush1.bf16.msra.mxu0 0
        %1773 = vmatprep.subr.bf16.mxu0 0
        %1774 = vmatpush1.bf16.msra.mxu0 0
        %1775 = vmatprep.subr.bf16.mxu0 0
        %1776 = vmatpush1.bf16.msra.mxu0 0
        %1777 = vmatprep.subr.bf16.mxu0 0
        %1778 = vmatpush1.bf16.msra.mxu0 0
        %1779 = vmatprep.subr.bf16.mxu0 0
        %1780 = vmatpush1.bf16.msra.mxu0 0
        %1781 = vmatprep.subr.bf16.mxu0 0
        %1782 = vmatpush1.bf16.msra.mxu0 0
        %1783 = vmatprep.subr.bf16.mxu0 0
        %1784 = vmatpush1.bf16.msra.mxu0 0
        %1785 = vmatprep.subr.bf16.mxu0 0
        %1786 = vmatpush1.bf16.msra.mxu0 0
        %1787 = vmatprep.subr.bf16.mxu0 0
        %1788 = vmatpush1.bf16.msra.mxu0 0
        %1789 = vmatprep.subr.bf16.mxu0 0
        %1790 = vmatpush1.bf16.msra.mxu0 0
        %1791 = vmatprep.mubr.bf16.mxu0 0
        %1792 = vmatmul.mubr.bf16.gmra.mrb[0].mxu0 %v1753
        %v1793 = vpop.f32.mrb[0].mxu0
        %v1794 = vadd.f32 %v1749, %v1793
        %v1795 = vpop.f32.mrb[0].mxu0
        %v1796 = vpop.f32.mrb[0].mxu0
        %v1797 = vadd.f32 %v1749, %v1796
        %v1798 = vpop.f32.mrb[0].mxu0
        %1799 = vdwg.mxu0
        %v1800 = vmax.f32 %v1794, 0.0
        %v1801 = vmax.f32 %v1797, 0.0
        %v1802 = vpack.c.bf16 %v1801, %v1800
        %v1803 = vld [vmem:[%s17] sm:$0xf]
        %v1804 = vld [vmem:[%s17 + $0x4] sm:$0xf]
        %v1807 = vunpack.c.l.b16 %v1803
        %v1808 = vunpack.c.l.b16 %v1804
        %v1809 = vpack.c.b16 %v1808, %v1807
        %vm1810 = vcmask 130048
        %v1812 = vsel %vm1810, %v1809, 0
        %1814 = vmatprep.subr.bf16.mxu0 0
        %1815 = vmatpush1.bf16.msra.mxu0 %v1802
        %1816 = vmatprep.subr.bf16.mxu0 0
        %1817 = vmatpush1.bf16.msra.mxu0 0
        %1818 = vmatprep.subr.bf16.mxu0 0
        %1819 = vmatpush1.bf16.msra.mxu0 0
        %1820 = vmatprep.subr.bf16.mxu0 0
        %1821 = vmatpush1.bf16.msra.mxu0 0
        %1822 = vmatprep.subr.bf16.mxu0 0
        %1823 = vmatpush1.bf16.msra.mxu0 0
        %1824 = vmatprep.subr.bf16.mxu0 0
        %1825 = vmatpush1.bf16.msra.mxu0 0
        %1826 = vmatprep.subr.bf16.mxu0 0
        %1827 = vmatpush1.bf16.msra.mxu0 0
        %1828 = vmatprep.subr.bf16.mxu0 0
        %1829 = vmatpush1.bf16.msra.mxu0 0
        %1830 = vmatprep.subr.bf16.mxu0 0
        %1831 = vmatpush1.bf16.msra.mxu0 0
        %1832 = vmatprep.subr.bf16.mxu0 0
        %1833 = vmatpush1.bf16.msra.mxu0 0
        %1834 = vmatprep.subr.bf16.mxu0 0
        %1835 = vmatpush1.bf16.msra.mxu0 0
        %1836 = vmatprep.subr.bf16.mxu0 0
        %1837 = vmatpush1.bf16.msra.mxu0 0
        %1838 = vmatprep.subr.bf16.mxu0 0
        %1839 = vmatpush1.bf16.msra.mxu0 0
        %1840 = vmatprep.subr.bf16.mxu0 0
        %1841 = vmatpush1.bf16.msra.mxu0 0
        %1842 = vmatprep.subr.bf16.mxu0 0
        %1843 = vmatpush1.bf16.msra.mxu0 0
        %1844 = vmatprep.subr.bf16.mxu0 0
        %1845 = vmatpush1.bf16.msra.mxu0 0
        %1846 = vmatprep.mubr.bf16.mxu0 0
        %1847 = vmatmul.mubr.bf16.gmra.mrb[0].mxu0 %v1812
        %v1848 = vpop.f32.mrb[0].mxu0
        %v1849 = vadd.f32 0.0, %v1848
        %v1850 = vpop.f32.mrb[0].mxu0
        %v1851 = vpop.f32.mrb[0].mxu0
        %v1852 = vadd.f32 0.0, %v1851
        %v1853 = vpop.f32.mrb[0].mxu0
        %1854 = vdwg.mxu0
        %v1855 = vpack.c.bf16 %v1852, %v1849
        %v1856 = vld [vmem:[%s13] sm:$0xf]
        %s1857 = scalar_lea.vmem %s17, 8
        %v1858 = vld [vmem:[%s1857] sm:$0xf]
        %v1859 = vld [vmem:[%s1857 + $0x4] sm:$0xf]
        %v1862 = vunpack.c.l.b16 %v1858
        %v1863 = vunpack.c.l.b16 %v1859
        %v1864 = vpack.c.b16 %v1863, %v1862
        %v1866 = vsel %vm1810, %v1864, 0
        %1868 = vmatprep.subr.bf16.mxu0 0
        %1869 = vmatpush1.bf16.msra.mxu0 %v1802
        %1870 = vmatprep.subr.bf16.mxu0 0
        %1871 = vmatpush1.bf16.msra.mxu0 0
        %1872 = vmatprep.subr.bf16.mxu0 0
        %1873 = vmatpush1.bf16.msra.mxu0 0
        %1874 = vmatprep.subr.bf16.mxu0 0
        %1875 = vmatpush1.bf16.msra.mxu0 0
        %1876 = vmatprep.subr.bf16.mxu0 0
        %1877 = vmatpush1.bf16.msra.mxu0 0
        %1878 = vmatprep.subr.bf16.mxu0 0
        %1879 = vmatpush1.bf16.msra.mxu0 0
        %1880 = vmatprep.subr.bf16.mxu0 0
        %1881 = vmatpush1.bf16.msra.mxu0 0
        %1882 = vmatprep.subr.bf16.mxu0 0
        %1883 = vmatpush1.bf16.msra.mxu0 0
        %1884 = vmatprep.subr.bf16.mxu0 0
        %1885 = vmatpush1.bf16.msra.mxu0 0
        %1886 = vmatprep.subr.bf16.mxu0 0
        %1887 = vmatpush1.bf16.msra.mxu0 0
        %1888 = vmatprep.subr.bf16.mxu0 0
        %1889 = vmatpush1.bf16.msra.mxu0 0
        %1890 = vmatprep.subr.bf16.mxu0 0
        %1891 = vmatpush1.bf16.msra.mxu0 0
        %1892 = vmatprep.subr.bf16.mxu0 0
        %1893 = vmatpush1.bf16.msra.mxu0 0
        %1894 = vmatprep.subr.bf16.mxu0 0
        %1895 = vmatpush1.bf16.msra.mxu0 0
        %1896 = vmatprep.subr.bf16.mxu0 0
        %1897 = vmatpush1.bf16.msra.mxu0 0
        %1898 = vmatprep.subr.bf16.mxu0 0
        %1899 = vmatpush1.bf16.msra.mxu0 0
        %1900 = vmatprep.mubr.bf16.mxu0 0
        %1901 = vmatmul.mubr.bf16.gmra.mrb[0].mxu0 %v1866
        %v1902 = vpop.f32.mrb[0].mxu0
        %v1903 = vadd.f32 0.0, %v1902
        %v1904 = vpop.f32.mrb[0].mxu0
        %v1905 = vpop.f32.mrb[0].mxu0
        %v1906 = vadd.f32 0.0, %v1905
        %v1907 = vpop.f32.mrb[0].mxu0
        %1908 = vdwg.mxu0
        %v1909 = vpack.c.bf16 %v1906, %v1903
        %s1910 = scalar_lea.vmem %s13, 4
        %v1911 = vld [vmem:[%s1910] sm:$0xf]
        %v1913 = vsel %vm1751, %v1909, 0
        %v1916 = vsel %vm1755, %v1911, 0
        %1918 = vmatprep.subr.bf16.mxu0 0
        %1919 = vmatpush1.bf16.msra.mxu0 %v1916
        %1920 = vmatprep.subr.bf16.mxu0 0
        %1921 = vmatpush1.bf16.msra.mxu0 0
        %1922 = vmatprep.subr.bf16.mxu0 0
        %1923 = vmatpush1.bf16.msra.mxu0 0
        %1924 = vmatprep.subr.bf16.mxu0 0
        %1925 = vmatpush1.bf16.msra.mxu0 0
        %1926 = vmatprep.subr.bf16.mxu0 0
        %1927 = vmatpush1.bf16.msra.mxu0 0
        %1928 = vmatprep.subr.bf16.mxu0 0
        %1929 = vmatpush1.bf16.msra.mxu0 0
        %1930 = vmatprep.subr.bf16.mxu0 0
        %1931 = vmatpush1.bf16.msra.mxu0 0
        %1932 = vmatprep.subr.bf16.mxu0 0
        %1933 = vmatpush1.bf16.msra.mxu0 0
        %1934 = vmatprep.subr.bf16.mxu0 0
        %1935 = vmatpush1.bf16.msra.mxu0 0
        %1936 = vmatprep.subr.bf16.mxu0 0
        %1937 = vmatpush1.bf16.msra.mxu0 0
        %1938 = vmatprep.subr.bf16.mxu0 0
        %1939 = vmatpush1.bf16.msra.mxu0 0
        %1940 = vmatprep.subr.bf16.mxu0 0
        %1941 = vmatpush1.bf16.msra.mxu0 0
        %1942 = vmatprep.subr.bf16.mxu0 0
        %1943 = vmatpush1.bf16.msra.mxu0 0
        %1944 = vmatprep.subr.bf16.mxu0 0
        %1945 = vmatpush1.bf16.msra.mxu0 0
        %1946 = vmatprep.subr.bf16.mxu0 0
        %1947 = vmatpush1.bf16.msra.mxu0 0
        %1948 = vmatprep.subr.bf16.mxu0 0
        %1949 = vmatpush1.bf16.msra.mxu0 0
        %1950 = vmatprep.mubr.bf16.mxu0 0
        %1951 = vmatmul.mubr.bf16.gmra.mrb[0].mxu0 %v1913
        %v1952 = vpop.f32.mrb[0].mxu0
        %v1953 = vadd.f32 0.0, %v1952
        %v1954 = vpop.f32.mrb[0].mxu0
        %v1955 = vpop.f32.mrb[0].mxu0
        %v1956 = vadd.f32 0.0, %v1955
        %v1957 = vpop.f32.mrb[0].mxu0
        %1958 = vdwg.mxu0
        %v1960 = vsel %vm1751, %v1855, 0
        %v1963 = vsel %vm1755, %v1856, 0
        %1965 = vmatprep.subr.bf16.mxu0 0
        %1966 = vmatpush1.bf16.msra.mxu0 %v1963
        %1967 = vmatprep.subr.bf16.mxu0 0
        %1968 = vmatpush1.bf16.msra.mxu0 0
        %1969 = vmatprep.subr.bf16.mxu0 0
        %1970 = vmatpush1.bf16.msra.mxu0 0
        %1971 = vmatprep.subr.bf16.mxu0 0
        %1972 = vmatpush1.bf16.msra.mxu0 0
        %1973 = vmatprep.subr.bf16.mxu0 0
        %1974 = vmatpush1.bf16.msra.mxu0 0
        %1975 = vmatprep.subr.bf16.mxu0 0
        %1976 = vmatpush1.bf16.msra.mxu0 0
        %1977 = vmatprep.subr.bf16.mxu0 0
        %1978 = vmatpush1.bf16.msra.mxu0 0
        %1979 = vmatprep.subr.bf16.mxu0 0
        %1980 = vmatpush1.bf16.msra.mxu0 0
        %1981 = vmatprep.subr.bf16.mxu0 0
        %1982 = vmatpush1.bf16.msra.mxu0 0
        %1983 = vmatprep.subr.bf16.mxu0 0
        %1984 = vmatpush1.bf16.msra.mxu0 0
        %1985 = vmatprep.subr.bf16.mxu0 0
        %1986 = vmatpush1.bf16.msra.mxu0 0
        %1987 = vmatprep.subr.bf16.mxu0 0
        %1988 = vmatpush1.bf16.msra.mxu0 0
        %1989 = vmatprep.subr.bf16.mxu0 0
        %1990 = vmatpush1.bf16.msra.mxu0 0
        %1991 = vmatprep.subr.bf16.mxu0 0
        %1992 = vmatpush1.bf16.msra.mxu0 0
        %1993 = vmatprep.subr.bf16.mxu0 0
        %1994 = vmatpush1.bf16.msra.mxu0 0
        %1995 = vmatprep.subr.bf16.mxu0 0
        %1996 = vmatpush1.bf16.msra.mxu0 0
        %1997 = vmatprep.mubr.bf16.mxu0 0
        %1998 = vmatmul.mubr.bf16.gmra.mrb[0].mxu0 %v1960
        %v1999 = vpop.f32.mrb[0].mxu0
        %v2000 = vadd.f32 %v1953, %v1999
        %v2001 = vpop.f32.mrb[0].mxu0
        %v2002 = vpop.f32.mrb[0].mxu0
        %v2003 = vadd.f32 %v1956, %v2002
        %v2004 = vpop.f32.mrb[0].mxu0
        %2005 = vdwg.mxu0
        %s2006 = scalar_lea.vmem %s17, 16
        %v2007 = vld [vmem:[%s2006] sm:$0xf]
        %v2008 = vld [vmem:[%s2006 + $0x4] sm:$0xf]
        %v2011 = vunpack.c.l.b16 %v2007
        %v2012 = vunpack.c.l.b16 %v2008
        %v2013 = vpack.c.b16 %v2012, %v2011
        %v2015 = vsel %vm1810, %v2013, 0
        %2017 = vmatprep.subr.bf16.mxu0 0
        %2018 = vmatpush1.bf16.msra.mxu0 %v1802
        %2019 = vmatprep.subr.bf16.mxu0 0
        %2020 = vmatpush1.bf16.msra.mxu0 0
        %2021 = vmatprep.subr.bf16.mxu0 0
        %2022 = vmatpush1.bf16.msra.mxu0 0
        %2023 = vmatprep.subr.bf16.mxu0 0
        %2024 = vmatpush1.bf16.msra.mxu0 0
        %2025 = vmatprep.subr.bf16.mxu0 0
        %2026 = vmatpush1.bf16.msra.mxu0 0
        %2027 = vmatprep.subr.bf16.mxu0 0
        %2028 = vmatpush1.bf16.msra.mxu0 0
        %2029 = vmatprep.subr.bf16.mxu0 0
        %2030 = vmatpush1.bf16.msra.mxu0 0
        %2031 = vmatprep.subr.bf16.mxu0 0
        %2032 = vmatpush1.bf16.msra.mxu0 0
        %2033 = vmatprep.subr.bf16.mxu0 0
        %2034 = vmatpush1.bf16.msra.mxu0 0
        %2035 = vmatprep.subr.bf16.mxu0 0
        %2036 = vmatpush1.bf16.msra.mxu0 0
        %2037 = vmatprep.subr.bf16.mxu0 0
        %2038 = vmatpush1.bf16.msra.mxu0 0
        %2039 = vmatprep.subr.bf16.mxu0 0
        %2040 = vmatpush1.bf16.msra.mxu0 0
        %2041 = vmatprep.subr.bf16.mxu0 0
        %2042 = vmatpush1.bf16.msra.mxu0 0
        %2043 = vmatprep.subr.bf16.mxu0 0
        %2044 = vmatpush1.bf16.msra.mxu0 0
        %2045 = vmatprep.subr.bf16.mxu0 0
        %2046 = vmatpush1.bf16.msra.mxu0 0
        %2047 = vmatprep.subr.bf16.mxu0 0
        %2048 = vmatpush1.bf16.msra.mxu0 0
        %2049 = vmatprep.mubr.bf16.mxu0 0
        %2050 = vmatmul.mubr.bf16.gmra.mrb[0].mxu0 %v2015
        %v2051 = vpop.f32.mrb[0].mxu0
        %v2052 = vadd.f32 0.0, %v2051
        %v2053 = vpop.f32.mrb[0].mxu0
        %v2054 = vpop.f32.mrb[0].mxu0
        %v2055 = vadd.f32 0.0, %v2054
        %v2056 = vpop.f32.mrb[0].mxu0
        %2057 = vdwg.mxu0
        %v2058 = vpack.c.bf16 %v2055, %v2052
        %s2059 = scalar_lea.vmem %s13, 8
        %v2060 = vld [vmem:[%s2059] sm:$0xf]
        %v2062 = vsel %vm1751, %v2058, 0
        %v2065 = vsel %vm1755, %v2060, 0
        %2067 = vmatprep.subr.bf16.mxu0 0
        %2068 = vmatpush1.bf16.msra.mxu0 %v2065
        %2069 = vmatprep.subr.bf16.mxu0 0
        %2070 = vmatpush1.bf16.msra.mxu0 0
        %2071 = vmatprep.subr.bf16.mxu0 0
        %2072 = vmatpush1.bf16.msra.mxu0 0
        %2073 = vmatprep.subr.bf16.mxu0 0
        %2074 = vmatpush1.bf16.msra.mxu0 0
        %2075 = vmatprep.subr.bf16.mxu0 0
        %2076 = vmatpush1.bf16.msra.mxu0 0
        %2077 = vmatprep.subr.bf16.mxu0 0
        %2078 = vmatpush1.bf16.msra.mxu0 0
        %2079 = vmatprep.subr.bf16.mxu0 0
        %2080 = vmatpush1.bf16.msra.mxu0 0
        %2081 = vmatprep.subr.bf16.mxu0 0
        %2082 = vmatpush1.bf16.msra.mxu0 0
        %2083 = vmatprep.subr.bf16.mxu0 0
        %2084 = vmatpush1.bf16.msra.mxu0 0
        %2085 = vmatprep.subr.bf16.mxu0 0
        %2086 = vmatpush1.bf16.msra.mxu0 0
        %2087 = vmatprep.subr.bf16.mxu0 0
        %2088 = vmatpush1.bf16.msra.mxu0 0
        %2089 = vmatprep.subr.bf16.mxu0 0
        %2090 = vmatpush1.bf16.msra.mxu0 0
        %2091 = vmatprep.subr.bf16.mxu0 0
        %2092 = vmatpush1.bf16.msra.mxu0 0
        %2093 = vmatprep.subr.bf16.mxu0 0
        %2094 = vmatpush1.bf16.msra.mxu0 0
        %2095 = vmatprep.subr.bf16.mxu0 0
        %2096 = vmatpush1.bf16.msra.mxu0 0
        %2097 = vmatprep.subr.bf16.mxu0 0
        %2098 = vmatpush1.bf16.msra.mxu0 0
        %2099 = vmatprep.mubr.bf16.mxu0 0
        %2100 = vmatmul.mubr.bf16.gmra.mrb[0].mxu0 %v2062
        %v2101 = vpop.f32.mrb[0].mxu0
        %v2102 = vadd.f32 0.0, %v2101
        %v2103 = vpop.f32.mrb[0].mxu0
        %v2104 = vpop.f32.mrb[0].mxu0
        %v2105 = vadd.f32 0.0, %v2104
        %v2106 = vpop.f32.mrb[0].mxu0
        %2107 = vdwg.mxu0
        %v2108 = vadd.f32 %v2000, %v2102
        %v2109 = vadd.f32 %v2003, %v2105
        %s2110 = scalar_lea.vmem %s17, 24
        %v2111 = vld [vmem:[%s2110] sm:$0xf]
        %v2112 = vld [vmem:[%s2110 + $0x4] sm:$0xf]
        %v2115 = vunpack.c.l.b16 %v2111
        %v2116 = vunpack.c.l.b16 %v2112
        %v2117 = vpack.c.b16 %v2116, %v2115
        %v2119 = vsel %vm1810, %v2117, 0
        %2121 = vmatprep.subr.bf16.mxu0 0
        %2122 = vmatpush1.bf16.msra.mxu0 %v1802
        %2123 = vmatprep.subr.bf16.mxu0 0
        %2124 = vmatpush1.bf16.msra.mxu0 0
        %2125 = vmatprep.subr.bf16.mxu0 0
        %2126 = vmatpush1.bf16.msra.mxu0 0
        %2127 = vmatprep.subr.bf16.mxu0 0
        %2128 = vmatpush1.bf16.msra.mxu0 0
        %2129 = vmatprep.subr.bf16.mxu0 0
        %2130 = vmatpush1.bf16.msra.mxu0 0
        %2131 = vmatprep.subr.bf16.mxu0 0
        %2132 = vmatpush1.bf16.msra.mxu0 0
        %2133 = vmatprep.subr.bf16.mxu0 0
        %2134 = vmatpush1.bf16.msra.mxu0 0
        %2135 = vmatprep.subr.bf16.mxu0 0
        %2136 = vmatpush1.bf16.msra.mxu0 0
        %2137 = vmatprep.subr.bf16.mxu0 0
        %2138 = vmatpush1.bf16.msra.mxu0 0
        %2139 = vmatprep.subr.bf16.mxu0 0
        %2140 = vmatpush1.bf16.msra.mxu0 0
        %2141 = vmatprep.subr.bf16.mxu0 0
        %2142 = vmatpush1.bf16.msra.mxu0 0
        %2143 = vmatprep.subr.bf16.mxu0 0
        %2144 = vmatpush1.bf16.msra.mxu0 0
        %2145 = vmatprep.subr.bf16.mxu0 0
        %2146 = vmatpush1.bf16.msra.mxu0 0
        %2147 = vmatprep.subr.bf16.mxu0 0
        %2148 = vmatpush1.bf16.msra.mxu0 0
        %2149 = vmatprep.subr.bf16.mxu0 0
        %2150 = vmatpush1.bf16.msra.mxu0 0
        %2151 = vmatprep.subr.bf16.mxu0 0
        %2152 = vmatpush1.bf16.msra.mxu0 0
        %2153 = vmatprep.mubr.bf16.mxu0 0
        %2154 = vmatmul.mubr.bf16.gmra.mrb[0].mxu0 %v2119
        %v2155 = vpop.f32.mrb[0].mxu0
        %v2156 = vadd.f32 0.0, %v2155
        %v2157 = vpop.f32.mrb[0].mxu0
        %v2158 = vpop.f32.mrb[0].mxu0
        %v2159 = vadd.f32 0.0, %v2158
        %v2160 = vpop.f32.mrb[0].mxu0
        %2161 = vdwg.mxu0
        %v2162 = vpack.c.bf16 %v2159, %v2156
        %s2163 = scalar_lea.vmem %s13, 12
        %v2164 = vld [vmem:[%s2163] sm:$0xf]
        %v2166 = vsel %vm1751, %v2162, 0
        %v2169 = vsel %vm1755, %v2164, 0
        %2171 = vmatprep.subr.bf16.mxu0 0
        %2172 = vmatpush1.bf16.msra.mxu0 %v2169
        %2173 = vmatprep.subr.bf16.mxu0 0
        %2174 = vmatpush1.bf16.msra.mxu0 0
        %2175 = vmatprep.subr.bf16.mxu0 0
        %2176 = vmatpush1.bf16.msra.mxu0 0
        %2177 = vmatprep.subr.bf16.mxu0 0
        %2178 = vmatpush1.bf16.msra.mxu0 0
        %2179 = vmatprep.subr.bf16.mxu0 0
        %2180 = vmatpush1.bf16.msra.mxu0 0
        %2181 = vmatprep.subr.bf16.mxu0 0
        %2182 = vmatpush1.bf16.msra.mxu0 0
        %2183 = vmatprep.subr.bf16.mxu0 0
        %2184 = vmatpush1.bf16.msra.mxu0 0
        %2185 = vmatprep.subr.bf16.mxu0 0
        %2186 = vmatpush1.bf16.msra.mxu0 0
        %2187 = vmatprep.subr.bf16.mxu0 0
        %2188 = vmatpush1.bf16.msra.mxu0 0
        %2189 = vmatprep.subr.bf16.mxu0 0
        %2190 = vmatpush1.bf16.msra.mxu0 0
        %2191 = vmatprep.subr.bf16.mxu0 0
        %2192 = vmatpush1.bf16.msra.mxu0 0
        %2193 = vmatprep.subr.bf16.mxu0 0
        %2194 = vmatpush1.bf16.msra.mxu0 0
        %2195 = vmatprep.subr.bf16.mxu0 0
        %2196 = vmatpush1.bf16.msra.mxu0 0
        %2197 = vmatprep.subr.bf16.mxu0 0
        %2198 = vmatpush1.bf16.msra.mxu0 0
        %2199 = vmatprep.subr.bf16.mxu0 0
        %2200 = vmatpush1.bf16.msra.mxu0 0
        %2201 = vmatprep.subr.bf16.mxu0 0
        %2202 = vmatpush1.bf16.msra.mxu0 0
        %2203 = vmatprep.mubr.bf16.mxu0 0
        %2204 = vmatmul.mubr.bf16.gmra.mrb[0].mxu0 %v2166
        %v2205 = vpop.f32.mrb[0].mxu0
        %v2206 = vadd.f32 0.0, %v2205
        %v2207 = vpop.f32.mrb[0].mxu0
        %v2208 = vpop.f32.mrb[0].mxu0
        %v2209 = vadd.f32 0.0, %v2208
        %v2210 = vpop.f32.mrb[0].mxu0
        %2211 = vdwg.mxu0
        %v2212 = vadd.f32 %v2108, %v2206
        %v2213 = vadd.f32 %v2109, %v2209
        %s2214 = scalar_lea.vmem %s17, 32
        %v2215 = vld [vmem:[%s2214] sm:$0xf]
        %v2216 = vld [vmem:[%s2214 + $0x4] sm:$0xf]
        %v2219 = vunpack.c.l.b16 %v2215
        %v2220 = vunpack.c.l.b16 %v2216
        %v2221 = vpack.c.b16 %v2220, %v2219
        %v2223 = vsel %vm1810, %v2221, 0
        %2225 = vmatprep.subr.bf16.mxu0 0
        %2226 = vmatpush1.bf16.msra.mxu0 %v1802
        %2227 = vmatprep.subr.bf16.mxu0 0
        %2228 = vmatpush1.bf16.msra.mxu0 0
        %2229 = vmatprep.subr.bf16.mxu0 0
        %2230 = vmatpush1.bf16.msra.mxu0 0
        %2231 = vmatprep.subr.bf16.mxu0 0
        %2232 = vmatpush1.bf16.msra.mxu0 0
        %2233 = vmatprep.subr.bf16.mxu0 0
        %2234 = vmatpush1.bf16.msra.mxu0 0
        %2235 = vmatprep.subr.bf16.mxu0 0
        %2236 = vmatpush1.bf16.msra.mxu0 0
        %2237 = vmatprep.subr.bf16.mxu0 0
        %2238 = vmatpush1.bf16.msra.mxu0 0
        %2239 = vmatprep.subr.bf16.mxu0 0
        %2240 = vmatpush1.bf16.msra.mxu0 0
        %2241 = vmatprep.subr.bf16.mxu0 0
        %2242 = vmatpush1.bf16.msra.mxu0 0
        %2243 = vmatprep.subr.bf16.mxu0 0
        %2244 = vmatpush1.bf16.msra.mxu0 0
        %2245 = vmatprep.subr.bf16.mxu0 0
        %2246 = vmatpush1.bf16.msra.mxu0 0
        %2247 = vmatprep.subr.bf16.mxu0 0
        %2248 = vmatpush1.bf16.msra.mxu0 0
        %2249 = vmatprep.subr.bf16.mxu0 0
        %2250 = vmatpush1.bf16.msra.mxu0 0
        %2251 = vmatprep.subr.bf16.mxu0 0
        %2252 = vmatpush1.bf16.msra.mxu0 0
        %2253 = vmatprep.subr.bf16.mxu0 0
        %2254 = vmatpush1.bf16.msra.mxu0 0
        %2255 = vmatprep.subr.bf16.mxu0 0
        %2256 = vmatpush1.bf16.msra.mxu0 0
        %2257 = vmatprep.mubr.bf16.mxu0 0
        %2258 = vmatmul.mubr.bf16.gmra.mrb[0].mxu0 %v2223
        %v2259 = vpop.f32.mrb[0].mxu0
        %v2260 = vadd.f32 0.0, %v2259
        %v2261 = vpop.f32.mrb[0].mxu0
        %v2262 = vpop.f32.mrb[0].mxu0
        %v2263 = vadd.f32 0.0, %v2262
        %v2264 = vpop.f32.mrb[0].mxu0
        %2265 = vdwg.mxu0
        %v2266 = vpack.c.bf16 %v2263, %v2260
        %s2267 = scalar_lea.vmem %s13, 16
        %v2268 = vld [vmem:[%s2267] sm:$0xf]
        %v2270 = vsel %vm1751, %v2266, 0
        %v2273 = vsel %vm1755, %v2268, 0
        %2275 = vmatprep.subr.bf16.mxu0 0
        %2276 = vmatpush1.bf16.msra.mxu0 %v2273
        %2277 = vmatprep.subr.bf16.mxu0 0
        %2278 = vmatpush1.bf16.msra.mxu0 0
        %2279 = vmatprep.subr.bf16.mxu0 0
        %2280 = vmatpush1.bf16.msra.mxu0 0
        %2281 = vmatprep.subr.bf16.mxu0 0
        %2282 = vmatpush1.bf16.msra.mxu0 0
        %2283 = vmatprep.subr.bf16.mxu0 0
        %2284 = vmatpush1.bf16.msra.mxu0 0
        %2285 = vmatprep.subr.bf16.mxu0 0
        %2286 = vmatpush1.bf16.msra.mxu0 0
        %2287 = vmatprep.subr.bf16.mxu0 0
        %2288 = vmatpush1.bf16.msra.mxu0 0
        %2289 = vmatprep.subr.bf16.mxu0 0
        %2290 = vmatpush1.bf16.msra.mxu0 0
        %2291 = vmatprep.subr.bf16.mxu0 0
        %2292 = vmatpush1.bf16.msra.mxu0 0
        %2293 = vmatprep.subr.bf16.mxu0 0
        %2294 = vmatpush1.bf16.msra.mxu0 0
        %2295 = vmatprep.subr.bf16.mxu0 0
        %2296 = vmatpush1.bf16.msra.mxu0 0
        %2297 = vmatprep.subr.bf16.mxu0 0
        %2298 = vmatpush1.bf16.msra.mxu0 0
        %2299 = vmatprep.subr.bf16.mxu0 0
        %2300 = vmatpush1.bf16.msra.mxu0 0
        %2301 = vmatprep.subr.bf16.mxu0 0
        %2302 = vmatpush1.bf16.msra.mxu0 0
        %2303 = vmatprep.subr.bf16.mxu0 0
        %2304 = vmatpush1.bf16.msra.mxu0 0
        %2305 = vmatprep.subr.bf16.mxu0 0
        %2306 = vmatpush1.bf16.msra.mxu0 0
        %2307 = vmatprep.mubr.bf16.mxu0 0
        %2308 = vmatmul.mubr.bf16.gmra.mrb[0].mxu0 %v2270
        %v2309 = vpop.f32.mrb[0].mxu0
        %v2310 = vadd.f32 0.0, %v2309
        %v2311 = vpop.f32.mrb[0].mxu0
        %v2312 = vpop.f32.mrb[0].mxu0
        %v2313 = vadd.f32 0.0, %v2312
        %v2314 = vpop.f32.mrb[0].mxu0
        %2315 = vdwg.mxu0
        %v2316 = vadd.f32 %v2212, %v2310
        %v2317 = vadd.f32 %v2213, %v2313
        %s2318 = scalar_lea.vmem %s17, 40
        %v2319 = vld [vmem:[%s2318] sm:$0xf]
        %v2320 = vld [vmem:[%s2318 + $0x4] sm:$0xf]
        %v2323 = vunpack.c.l.b16 %v2319
        %v2324 = vunpack.c.l.b16 %v2320
        %v2325 = vpack.c.b16 %v2324, %v2323
        %v2327 = vsel %vm1810, %v2325, 0
        %2329 = vmatprep.subr.bf16.mxu0 0
        %2330 = vmatpush1.bf16.msra.mxu0 %v1802
        %2331 = vmatprep.subr.bf16.mxu0 0
        %2332 = vmatpush1.bf16.msra.mxu0 0
        %2333 = vmatprep.subr.bf16.mxu0 0
        %2334 = vmatpush1.bf16.msra.mxu0 0
        %2335 = vmatprep.subr.bf16.mxu0 0
        %2336 = vmatpush1.bf16.msra.mxu0 0
        %2337 = vmatprep.subr.bf16.mxu0 0
        %2338 = vmatpush1.bf16.msra.mxu0 0
        %2339 = vmatprep.subr.bf16.mxu0 0
        %2340 = vmatpush1.bf16.msra.mxu0 0
        %2341 = vmatprep.subr.bf16.mxu0 0
        %2342 = vmatpush1.bf16.msra.mxu0 0
        %2343 = vmatprep.subr.bf16.mxu0 0
        %2344 = vmatpush1.bf16.msra.mxu0 0
        %2345 = vmatprep.subr.bf16.mxu0 0
        %2346 = vmatpush1.bf16.msra.mxu0 0
        %2347 = vmatprep.subr.bf16.mxu0 0
        %2348 = vmatpush1.bf16.msra.mxu0 0
        %2349 = vmatprep.subr.bf16.mxu0 0
        %2350 = vmatpush1.bf16.msra.mxu0 0
        %2351 = vmatprep.subr.bf16.mxu0 0
        %2352 = vmatpush1.bf16.msra.mxu0 0
        %2353 = vmatprep.subr.bf16.mxu0 0
        %2354 = vmatpush1.bf16.msra.mxu0 0
        %2355 = vmatprep.subr.bf16.mxu0 0
        %2356 = vmatpush1.bf16.msra.mxu0 0
        %2357 = vmatprep.subr.bf16.mxu0 0
        %2358 = vmatpush1.bf16.msra.mxu0 0
        %2359 = vmatprep.subr.bf16.mxu0 0
        %2360 = vmatpush1.bf16.msra.mxu0 0
        %2361 = vmatprep.mubr.bf16.mxu0 0
        %2362 = vmatmul.mubr.bf16.gmra.mrb[0].mxu0 %v2327
        %v2363 = vpop.f32.mrb[0].mxu0
        %v2364 = vadd.f32 0.0, %v2363
        %v2365 = vpop.f32.mrb[0].mxu0
        %v2366 = vpop.f32.mrb[0].mxu0
        %v2367 = vadd.f32 0.0, %v2366
        %v2368 = vpop.f32.mrb[0].mxu0
        %2369 = vdwg.mxu0
        %v2370 = vpack.c.bf16 %v2367, %v2364
        %s2371 = scalar_lea.vmem %s13, 20
        %v2372 = vld [vmem:[%s2371] sm:$0xf]
        %v2374 = vsel %vm1751, %v2370, 0
        %v2377 = vsel %vm1755, %v2372, 0
        %2379 = vmatprep.subr.bf16.mxu0 0
        %2380 = vmatpush1.bf16.msra.mxu0 %v2377
        %2381 = vmatprep.subr.bf16.mxu0 0
        %2382 = vmatpush1.bf16.msra.mxu0 0
        %2383 = vmatprep.subr.bf16.mxu0 0
        %2384 = vmatpush1.bf16.msra.mxu0 0
        %2385 = vmatprep.subr.bf16.mxu0 0
        %2386 = vmatpush1.bf16.msra.mxu0 0
        %2387 = vmatprep.subr.bf16.mxu0 0
        %2388 = vmatpush1.bf16.msra.mxu0 0
        %2389 = vmatprep.subr.bf16.mxu0 0
        %2390 = vmatpush1.bf16.msra.mxu0 0
        %2391 = vmatprep.subr.bf16.mxu0 0
        %2392 = vmatpush1.bf16.msra.mxu0 0
        %2393 = vmatprep.subr.bf16.mxu0 0
        %2394 = vmatpush1.bf16.msra.mxu0 0
        %2395 = vmatprep.subr.bf16.mxu0 0
        %2396 = vmatpush1.bf16.msra.mxu0 0
        %2397 = vmatprep.subr.bf16.mxu0 0
        %2398 = vmatpush1.bf16.msra.mxu0 0
        %2399 = vmatprep.subr.bf16.mxu0 0
        %2400 = vmatpush1.bf16.msra.mxu0 0
        %2401 = vmatprep.subr.bf16.mxu0 0
        %2402 = vmatpush1.bf16.msra.mxu0 0
        %2403 = vmatprep.subr.bf16.mxu0 0
        %2404 = vmatpush1.bf16.msra.mxu0 0
        %2405 = vmatprep.subr.bf16.mxu0 0
        %2406 = vmatpush1.bf16.msra.mxu0 0
        %2407 = vmatprep.subr.bf16.mxu0 0
        %2408 = vmatpush1.bf16.msra.mxu0 0
        %2409 = vmatprep.subr.bf16.mxu0 0
        %2410 = vmatpush1.bf16.msra.mxu0 0
        %2411 = vmatprep.mubr.bf16.mxu0 0
        %2412 = vmatmul.mubr.bf16.gmra.mrb[0].mxu0 %v2374
        %v2413 = vpop.f32.mrb[0].mxu0
        %v2414 = vadd.f32 0.0, %v2413
        %v2415 = vpop.f32.mrb[0].mxu0
        %v2416 = vpop.f32.mrb[0].mxu0
        %v2417 = vadd.f32 0.0, %v2416
        %v2418 = vpop.f32.mrb[0].mxu0
        %2419 = vdwg.mxu0
        %v2420 = vadd.f32 %v2316, %v2414
        %v2421 = vadd.f32 %v2317, %v2417
        %s2422 = scalar_lea.vmem %s17, 48
        %v2423 = vld [vmem:[%s2422] sm:$0xf]
        %v2424 = vld [vmem:[%s2422 + $0x4] sm:$0xf]
        %v2427 = vunpack.c.l.b16 %v2423
        %v2428 = vunpack.c.l.b16 %v2424
        %v2429 = vpack.c.b16 %v2428, %v2427
        %v2431 = vsel %vm1810, %v2429, 0
        %2433 = vmatprep.subr.bf16.mxu0 0
        %2434 = vmatpush1.bf16.msra.mxu0 %v1802
        %2435 = vmatprep.subr.bf16.mxu0 0
        %2436 = vmatpush1.bf16.msra.mxu0 0
        %2437 = vmatprep.subr.bf16.mxu0 0
        %2438 = vmatpush1.bf16.msra.mxu0 0
        %2439 = vmatprep.subr.bf16.mxu0 0
        %2440 = vmatpush1.bf16.msra.mxu0 0
        %2441 = vmatprep.subr.bf16.mxu0 0
        %2442 = vmatpush1.bf16.msra.mxu0 0
        %2443 = vmatprep.subr.bf16.mxu0 0
        %2444 = vmatpush1.bf16.msra.mxu0 0
        %2445 = vmatprep.subr.bf16.mxu0 0
        %2446 = vmatpush1.bf16.msra.mxu0 0
        %2447 = vmatprep.subr.bf16.mxu0 0
        %2448 = vmatpush1.bf16.msra.mxu0 0
        %2449 = vmatprep.subr.bf16.mxu0 0
        %2450 = vmatpush1.bf16.msra.mxu0 0
        %2451 = vmatprep.subr.bf16.mxu0 0
        %2452 = vmatpush1.bf16.msra.mxu0 0
        %2453 = vmatprep.subr.bf16.mxu0 0
        %2454 = vmatpush1.bf16.msra.mxu0 0
        %2455 = vmatprep.subr.bf16.mxu0 0
        %2456 = vmatpush1.bf16.msra.mxu0 0
        %2457 = vmatprep.subr.bf16.mxu0 0
        %2458 = vmatpush1.bf16.msra.mxu0 0
        %2459 = vmatprep.subr.bf16.mxu0 0
        %2460 = vmatpush1.bf16.msra.mxu0 0
        %2461 = vmatprep.subr.bf16.mxu0 0
        %2462 = vmatpush1.bf16.msra.mxu0 0
        %2463 = vmatprep.subr.bf16.mxu0 0
        %2464 = vmatpush1.bf16.msra.mxu0 0
        %2465 = vmatprep.mubr.bf16.mxu0 0
        %2466 = vmatmul.mubr.bf16.gmra.mrb[0].mxu0 %v2431
        %v2467 = vpop.f32.mrb[0].mxu0
        %v2468 = vadd.f32 0.0, %v2467
        %v2469 = vpop.f32.mrb[0].mxu0
        %v2470 = vpop.f32.mrb[0].mxu0
        %v2471 = vadd.f32 0.0, %v2470
        %v2472 = vpop.f32.mrb[0].mxu0
        %2473 = vdwg.mxu0
        %v2474 = vpack.c.bf16 %v2471, %v2468
        %s2475 = scalar_lea.vmem %s13, 24
        %v2476 = vld [vmem:[%s2475] sm:$0xf]
        %v2478 = vsel %vm1751, %v2474, 0
        %v2481 = vsel %vm1755, %v2476, 0
        %2483 = vmatprep.subr.bf16.mxu0 0
        %2484 = vmatpush1.bf16.msra.mxu0 %v2481
        %2485 = vmatprep.subr.bf16.mxu0 0
        %2486 = vmatpush1.bf16.msra.mxu0 0
        %2487 = vmatprep.subr.bf16.mxu0 0
        %2488 = vmatpush1.bf16.msra.mxu0 0
        %2489 = vmatprep.subr.bf16.mxu0 0
        %2490 = vmatpush1.bf16.msra.mxu0 0
        %2491 = vmatprep.subr.bf16.mxu0 0
        %2492 = vmatpush1.bf16.msra.mxu0 0
        %2493 = vmatprep.subr.bf16.mxu0 0
        %2494 = vmatpush1.bf16.msra.mxu0 0
        %2495 = vmatprep.subr.bf16.mxu0 0
        %2496 = vmatpush1.bf16.msra.mxu0 0
        %2497 = vmatprep.subr.bf16.mxu0 0
        %2498 = vmatpush1.bf16.msra.mxu0 0
        %2499 = vmatprep.subr.bf16.mxu0 0
        %2500 = vmatpush1.bf16.msra.mxu0 0
        %2501 = vmatprep.subr.bf16.mxu0 0
        %2502 = vmatpush1.bf16.msra.mxu0 0
        %2503 = vmatprep.subr.bf16.mxu0 0
        %2504 = vmatpush1.bf16.msra.mxu0 0
        %2505 = vmatprep.subr.bf16.mxu0 0
        %2506 = vmatpush1.bf16.msra.mxu0 0
        %2507 = vmatprep.subr.bf16.mxu0 0
        %2508 = vmatpush1.bf16.msra.mxu0 0
        %2509 = vmatprep.subr.bf16.mxu0 0
        %2510 = vmatpush1.bf16.msra.mxu0 0
        %2511 = vmatprep.subr.bf16.mxu0 0
        %2512 = vmatpush1.bf16.msra.mxu0 0
        %2513 = vmatprep.subr.bf16.mxu0 0
        %2514 = vmatpush1.bf16.msra.mxu0 0
        %2515 = vmatprep.mubr.bf16.mxu0 0
        %2516 = vmatmul.mubr.bf16.gmra.mrb[0].mxu0 %v2478
        %v2517 = vpop.f32.mrb[0].mxu0
        %v2518 = vadd.f32 0.0, %v2517
        %v2519 = vpop.f32.mrb[0].mxu0
        %v2520 = vpop.f32.mrb[0].mxu0
        %v2521 = vadd.f32 0.0, %v2520
        %v2522 = vpop.f32.mrb[0].mxu0
        %2523 = vdwg.mxu0
        %v2524 = vadd.f32 %v2420, %v2518
        %v2525 = vadd.f32 %v2421, %v2521
        %s2526 = scalar_lea.vmem %s17, 56
        %v2527 = vld [vmem:[%s2526] sm:$0xf]
        %v2528 = vld [vmem:[%s2526 + $0x4] sm:$0xf]
        %v2531 = vunpack.c.l.b16 %v2527
        %v2532 = vunpack.c.l.b16 %v2528
        %v2533 = vpack.c.b16 %v2532, %v2531
        %v2535 = vsel %vm1810, %v2533, 0
        %2537 = vmatprep.subr.bf16.mxu0 0
        %2538 = vmatpush1.bf16.msra.mxu0 %v1802
        %2539 = vmatprep.subr.bf16.mxu0 0
        %2540 = vmatpush1.bf16.msra.mxu0 0
        %2541 = vmatprep.subr.bf16.mxu0 0
        %2542 = vmatpush1.bf16.msra.mxu0 0
        %2543 = vmatprep.subr.bf16.mxu0 0
        %2544 = vmatpush1.bf16.msra.mxu0 0
        %2545 = vmatprep.subr.bf16.mxu0 0
        %2546 = vmatpush1.bf16.msra.mxu0 0
        %2547 = vmatprep.subr.bf16.mxu0 0
        %2548 = vmatpush1.bf16.msra.mxu0 0
        %2549 = vmatprep.subr.bf16.mxu0 0
        %2550 = vmatpush1.bf16.msra.mxu0 0
        %2551 = vmatprep.subr.bf16.mxu0 0
        %2552 = vmatpush1.bf16.msra.mxu0 0
        %2553 = vmatprep.subr.bf16.mxu0 0
        %2554 = vmatpush1.bf16.msra.mxu0 0
        %2555 = vmatprep.subr.bf16.mxu0 0
        %2556 = vmatpush1.bf16.msra.mxu0 0
        %2557 = vmatprep.subr.bf16.mxu0 0
        %2558 = vmatpush1.bf16.msra.mxu0 0
        %2559 = vmatprep.subr.bf16.mxu0 0
        %2560 = vmatpush1.bf16.msra.mxu0 0
        %2561 = vmatprep.subr.bf16.mxu0 0
        %2562 = vmatpush1.bf16.msra.mxu0 0
        %2563 = vmatprep.subr.bf16.mxu0 0
        %2564 = vmatpush1.bf16.msra.mxu0 0
        %2565 = vmatprep.subr.bf16.mxu0 0
        %2566 = vmatpush1.bf16.msra.mxu0 0
        %2567 = vmatprep.subr.bf16.mxu0 0
        %2568 = vmatpush1.bf16.msra.mxu0 0
        %2569 = vmatprep.mubr.bf16.mxu0 0
        %2570 = vmatmul.mubr.bf16.gmra.mrb[0].mxu0 %v2535
        %v2571 = vpop.f32.mrb[0].mxu0
        %v2572 = vadd.f32 0.0, %v2571
        %v2573 = vpop.f32.mrb[0].mxu0
        %v2574 = vpop.f32.mrb[0].mxu0
        %v2575 = vadd.f32 0.0, %v2574
        %v2576 = vpop.f32.mrb[0].mxu0
        %2577 = vdwg.mxu0
        %v2578 = vpack.c.bf16 %v2575, %v2572
        %s2579 = scalar_lea.vmem %s13, 28
        %v2580 = vld [vmem:[%s2579] sm:$0xf]
        %v2582 = vsel %vm1751, %v2578, 0
        %v2585 = vsel %vm1755, %v2580, 0
        %2587 = vmatprep.subr.bf16.mxu0 0
        %2588 = vmatpush1.bf16.msra.mxu0 %v2585
        %2589 = vmatprep.subr.bf16.mxu0 0
        %2590 = vmatpush1.bf16.msra.mxu0 0
        %2591 = vmatprep.subr.bf16.mxu0 0
        %2592 = vmatpush1.bf16.msra.mxu0 0
        %2593 = vmatprep.subr.bf16.mxu0 0
        %2594 = vmatpush1.bf16.msra.mxu0 0
        %2595 = vmatprep.subr.bf16.mxu0 0
        %2596 = vmatpush1.bf16.msra.mxu0 0
        %2597 = vmatprep.subr.bf16.mxu0 0
        %2598 = vmatpush1.bf16.msra.mxu0 0
        %2599 = vmatprep.subr.bf16.mxu0 0
        %2600 = vmatpush1.bf16.msra.mxu0 0
        %2601 = vmatprep.subr.bf16.mxu0 0
        %2602 = vmatpush1.bf16.msra.mxu0 0
        %2603 = vmatprep.subr.bf16.mxu0 0
        %2604 = vmatpush1.bf16.msra.mxu0 0
        %2605 = vmatprep.subr.bf16.mxu0 0
        %2606 = vmatpush1.bf16.msra.mxu0 0
        %2607 = vmatprep.subr.bf16.mxu0 0
        %2608 = vmatpush1.bf16.msra.mxu0 0
        %2609 = vmatprep.subr.bf16.mxu0 0
        %2610 = vmatpush1.bf16.msra.mxu0 0
        %2611 = vmatprep.subr.bf16.mxu0 0
        %2612 = vmatpush1.bf16.msra.mxu0 0
        %2613 = vmatprep.subr.bf16.mxu0 0
        %2614 = vmatpush1.bf16.msra.mxu0 0
        %2615 = vmatprep.subr.bf16.mxu0 0
        %2616 = vmatpush1.bf16.msra.mxu0 0
        %2617 = vmatprep.subr.bf16.mxu0 0
        %2618 = vmatpush1.bf16.msra.mxu0 0
        %2619 = vmatprep.mubr.bf16.mxu0 0
        %2620 = vmatmul.mubr.bf16.gmra.mrb[0].mxu0 %v2582
        %v2621 = vpop.f32.mrb[0].mxu0
        %v2622 = vadd.f32 0.0, %v2621
        %v2623 = vpop.f32.mrb[0].mxu0
        %v2624 = vpop.f32.mrb[0].mxu0
        %v2625 = vadd.f32 0.0, %v2624
        %v2626 = vpop.f32.mrb[0].mxu0
        %2627 = vdwg.mxu0
        %v2628 = vadd.f32 %v2524, %v2622
        %v2629 = vadd.f32 %v2525, %v2625
        %s2630 = scalar_lea.vmem %s17, 64
        %v2631 = vld [vmem:[%s2630] sm:$0xf]
        %v2632 = vld [vmem:[%s2630 + $0x4] sm:$0xf]
        %v2635 = vunpack.c.l.b16 %v2631
        %v2636 = vunpack.c.l.b16 %v2632
        %v2637 = vpack.c.b16 %v2636, %v2635
        %v2639 = vsel %vm1810, %v2637, 0
        %2641 = vmatprep.subr.bf16.mxu0 0
        %2642 = vmatpush1.bf16.msra.mxu0 %v1802
        %2643 = vmatprep.subr.bf16.mxu0 0
        %2644 = vmatpush1.bf16.msra.mxu0 0
        %2645 = vmatprep.subr.bf16.mxu0 0
        %2646 = vmatpush1.bf16.msra.mxu0 0
        %2647 = vmatprep.subr.bf16.mxu0 0
        %2648 = vmatpush1.bf16.msra.mxu0 0
        %2649 = vmatprep.subr.bf16.mxu0 0
        %2650 = vmatpush1.bf16.msra.mxu0 0
        %2651 = vmatprep.subr.bf16.mxu0 0
        %2652 = vmatpush1.bf16.msra.mxu0 0
        %2653 = vmatprep.subr.bf16.mxu0 0
        %2654 = vmatpush1.bf16.msra.mxu0 0
        %2655 = vmatprep.subr.bf16.mxu0 0
        %2656 = vmatpush1.bf16.msra.mxu0 0
        %2657 = vmatprep.subr.bf16.mxu0 0
        %2658 = vmatpush1.bf16.msra.mxu0 0
        %2659 = vmatprep.subr.bf16.mxu0 0
        %2660 = vmatpush1.bf16.msra.mxu0 0
        %2661 = vmatprep.subr.bf16.mxu0 0
        %2662 = vmatpush1.bf16.msra.mxu0 0
        %2663 = vmatprep.subr.bf16.mxu0 0
        %2664 = vmatpush1.bf16.msra.mxu0 0
        %2665 = vmatprep.subr.bf16.mxu0 0
        %2666 = vmatpush1.bf16.msra.mxu0 0
        %2667 = vmatprep.subr.bf16.mxu0 0
        %2668 = vmatpush1.bf16.msra.mxu0 0
        %2669 = vmatprep.subr.bf16.mxu0 0
        %2670 = vmatpush1.bf16.msra.mxu0 0
        %2671 = vmatprep.subr.bf16.mxu0 0
        %2672 = vmatpush1.bf16.msra.mxu0 0
        %2673 = vmatprep.mubr.bf16.mxu0 0
        %2674 = vmatmul.mubr.bf16.gmra.mrb[0].mxu0 %v2639
        %v2675 = vpop.f32.mrb[0].mxu0
        %v2676 = vadd.f32 0.0, %v2675
        %v2677 = vpop.f32.mrb[0].mxu0
        %v2678 = vpop.f32.mrb[0].mxu0
        %v2679 = vadd.f32 0.0, %v2678
        %v2680 = vpop.f32.mrb[0].mxu0
        %2681 = vdwg.mxu0
        %v2682 = vpack.c.bf16 %v2679, %v2676
        %s2683 = scalar_lea.vmem %s13, 32
        %v2684 = vld [vmem:[%s2683] sm:$0xf]
        %v2686 = vsel %vm1751, %v2682, 0
        %v2689 = vsel %vm1755, %v2684, 0
        %2691 = vmatprep.subr.bf16.mxu0 0
        %2692 = vmatpush1.bf16.msra.mxu0 %v2689
        %2693 = vmatprep.subr.bf16.mxu0 0
        %2694 = vmatpush1.bf16.msra.mxu0 0
        %2695 = vmatprep.subr.bf16.mxu0 0
        %2696 = vmatpush1.bf16.msra.mxu0 0
        %2697 = vmatprep.subr.bf16.mxu0 0
        %2698 = vmatpush1.bf16.msra.mxu0 0
        %2699 = vmatprep.subr.bf16.mxu0 0
        %2700 = vmatpush1.bf16.msra.mxu0 0
        %2701 = vmatprep.subr.bf16.mxu0 0
        %2702 = vmatpush1.bf16.msra.mxu0 0
        %2703 = vmatprep.subr.bf16.mxu0 0
        %2704 = vmatpush1.bf16.msra.mxu0 0
        %2705 = vmatprep.subr.bf16.mxu0 0
        %2706 = vmatpush1.bf16.msra.mxu0 0
        %2707 = vmatprep.subr.bf16.mxu0 0
        %2708 = vmatpush1.bf16.msra.mxu0 0
        %2709 = vmatprep.subr.bf16.mxu0 0
        %2710 = vmatpush1.bf16.msra.mxu0 0
        %2711 = vmatprep.subr.bf16.mxu0 0
        %2712 = vmatpush1.bf16.msra.mxu0 0
        %2713 = vmatprep.subr.bf16.mxu0 0
        %2714 = vmatpush1.bf16.msra.mxu0 0
        %2715 = vmatprep.subr.bf16.mxu0 0
        %2716 = vmatpush1.bf16.msra.mxu0 0
        %2717 = vmatprep.subr.bf16.mxu0 0
        %2718 = vmatpush1.bf16.msra.mxu0 0
        %2719 = vmatprep.subr.bf16.mxu0 0
        %2720 = vmatpush1.bf16.msra.mxu0 0
        %2721 = vmatprep.subr.bf16.mxu0 0
        %2722 = vmatpush1.bf16.msra.mxu0 0
        %2723 = vmatprep.mubr.bf16.mxu0 0
        %2724 = vmatmul.mubr.bf16.gmra.mrb[0].mxu0 %v2686
        %v2725 = vpop.f32.mrb[0].mxu0
        %v2726 = vadd.f32 0.0, %v2725
        %v2727 = vpop.f32.mrb[0].mxu0
        %v2728 = vpop.f32.mrb[0].mxu0
        %v2729 = vadd.f32 0.0, %v2728
        %v2730 = vpop.f32.mrb[0].mxu0
        %2731 = vdwg.mxu0
        %v2732 = vadd.f32 %v2628, %v2726
        %v2733 = vadd.f32 %v2629, %v2729
        %v2734 = vld [vmem:[%s15] sm:$0x1]
        %v2736 = vlaneseq
        %v2737 = vshrl.u32 %v2736, 7
        %v2738 = vsub.s32 0, %v2737
        %v2739 = vrot.slane %v2734, %v2738
        %v2741 = vadd.f32 %v2732, %v2739
        %v2742 = vadd.f32 %v2733, %v2739
        %v2743 = vmax.f32 %v2741, 0.0
        %v2744 = vmax.f32 %v2742, 0.0
        %v2745 = vpack.c.bf16 %v2744, %v2743
        %v2746 = vld [vmem:[%s23] sm:$0xf]
        %v2747 = vld [vmem:[%s25] sm:$0x1]
        %v2749 = vlaneseq
        %v2750 = vshrl.u32 %v2749, 7
        %v2751 = vsub.s32 0, %v2750
        %v2752 = vrot.slane %v2747, %v2751
        %v2755 = vsel %vm1755, %v2746, 0
        %2757 = vmatprep.subr.bf16.mxu0 0
        %2758 = vmatpush1.bf16.msra.mxu0 %v2755
        %2759 = vmatprep.subr.bf16.mxu0 0
        %2760 = vmatpush1.bf16.msra.mxu0 0
        %2761 = vmatprep.subr.bf16.mxu0 0
        %2762 = vmatpush1.bf16.msra.mxu0 0
        %2763 = vmatprep.subr.bf16.mxu0 0
        %2764 = vmatpush1.bf16.msra.mxu0 0
        %2765 = vmatprep.subr.bf16.mxu0 0
        %2766 = vmatpush1.bf16.msra.mxu0 0
        %2767 = vmatprep.subr.bf16.mxu0 0
        %2768 = vmatpush1.bf16.msra.mxu0 0
        %2769 = vmatprep.subr.bf16.mxu0 0
        %2770 = vmatpush1.bf16.msra.mxu0 0
        %2771 = vmatprep.subr.bf16.mxu0 0
        %2772 = vmatpush1.bf16.msra.mxu0 0
        %2773 = vmatprep.subr.bf16.mxu0 0
        %2774 = vmatpush1.bf16.msra.mxu0 0
        %2775 = vmatprep.subr.bf16.mxu0 0
        %2776 = vmatpush1.bf16.msra.mxu0 0
        %2777 = vmatprep.subr.bf16.mxu0 0
        %2778 = vmatpush1.bf16.msra.mxu0 0
        %2779 = vmatprep.subr.bf16.mxu0 0
        %2780 = vmatpush1.bf16.msra.mxu0 0
        %2781 = vmatprep.subr.bf16.mxu0 0
        %2782 = vmatpush1.bf16.msra.mxu0 0
        %2783 = vmatprep.subr.bf16.mxu0 0
        %2784 = vmatpush1.bf16.msra.mxu0 0
        %2785 = vmatprep.subr.bf16.mxu0 0
        %2786 = vmatpush1.bf16.msra.mxu0 0
        %2787 = vmatprep.subr.bf16.mxu0 0
        %2788 = vmatpush1.bf16.msra.mxu0 0
        %2789 = vmatprep.mubr.bf16.mxu0 0
        %2790 = vmatmul.mubr.bf16.gmra.mrb[0].mxu0 %v1753
        %v2791 = vpop.f32.mrb[0].mxu0
        %v2792 = vadd.f32 %v2752, %v2791
        %v2793 = vpop.f32.mrb[0].mxu0
        %v2794 = vpop.f32.mrb[0].mxu0
        %v2795 = vadd.f32 %v2752, %v2794
        %v2796 = vpop.f32.mrb[0].mxu0
        %2797 = vdwg.mxu0
        %v2798 = vld [vmem:[%s19] sm:$0xf]
        %v2799 = vld [vmem:[%s21] sm:$0x1]
        %v2801 = vlaneseq
        %v2802 = vshrl.u32 %v2801, 7
        %v2803 = vsub.s32 0, %v2802
        %v2804 = vrot.slane %v2799, %v2803
        %v2807 = vsel %vm1751, %v2745, 0
        %v2810 = vsel %vm1755, %v2798, 0
        %2812 = vmatprep.subr.bf16.mxu0 0
        %2813 = vmatpush1.bf16.msra.mxu0 %v2810
        %2814 = vmatprep.subr.bf16.mxu0 0
        %2815 = vmatpush1.bf16.msra.mxu0 0
        %2816 = vmatprep.subr.bf16.mxu0 0
        %2817 = vmatpush1.bf16.msra.mxu0 0
        %2818 = vmatprep.subr.bf16.mxu0 0
        %2819 = vmatpush1.bf16.msra.mxu0 0
        %2820 = vmatprep.subr.bf16.mxu0 0
        %2821 = vmatpush1.bf16.msra.mxu0 0
        %2822 = vmatprep.subr.bf16.mxu0 0
        %2823 = vmatpush1.bf16.msra.mxu0 0
        %2824 = vmatprep.subr.bf16.mxu0 0
        %2825 = vmatpush1.bf16.msra.mxu0 0
        %2826 = vmatprep.subr.bf16.mxu0 0
        %2827 = vmatpush1.bf16.msra.mxu0 0
        %2828 = vmatprep.subr.bf16.mxu0 0
        %2829 = vmatpush1.bf16.msra.mxu0 0
        %2830 = vmatprep.subr.bf16.mxu0 0
        %2831 = vmatpush1.bf16.msra.mxu0 0
        %2832 = vmatprep.subr.bf16.mxu0 0
        %2833 = vmatpush1.bf16.msra.mxu0 0
        %2834 = vmatprep.subr.bf16.mxu0 0
        %2835 = vmatpush1.bf16.msra.mxu0 0
        %2836 = vmatprep.subr.bf16.mxu0 0
        %2837 = vmatpush1.bf16.msra.mxu0 0
        %2838 = vmatprep.subr.bf16.mxu0 0
        %2839 = vmatpush1.bf16.msra.mxu0 0
        %2840 = vmatprep.subr.bf16.mxu0 0
        %2841 = vmatpush1.bf16.msra.mxu0 0
        %2842 = vmatprep.subr.bf16.mxu0 0
        %2843 = vmatpush1.bf16.msra.mxu0 0
        %2844 = vmatprep.mubr.bf16.mxu0 0
        %2845 = vmatmul.mubr.bf16.gmra.mrb[0].mxu0 %v2807
        %v2846 = vpop.f32.mrb[0].mxu0
        %v2847 = vadd.f32 %v2804, %v2846
        %v2848 = vpop.f32.mrb[0].mxu0
        %v2849 = vpop.f32.mrb[0].mxu0
        %v2850 = vadd.f32 %v2804, %v2849
        %v2851 = vpop.f32.mrb[0].mxu0
        %2852 = vdwg.mxu0
        %v2853 = vadd.f32 %v2847, %v2792
        %v2854 = vadd.f32 %v2850, %v2795
        %v2855 = vmax.f32 %v2853, 0.0
        %v2856 = vmax.f32 %v2854, 0.0
        %v2857 = vpack.c.bf16 %v2856, %v2855
        %v2858 = vld [vmem:[%s27] sm:$0xf]
        %v2859 = vld [vmem:[%s27 + $0x4] sm:$0xf]
        %v2860 = vld [vmem:[%s27 + $0x8] sm:$0xf]
        %v2861 = vld [vmem:[%s27 + $0xc] sm:$0xf]
        %v2862 = vld [vmem:[%s29] sm:$0x1]
        %v2864 = vlaneseq
        %v2865 = vshrl.u32 %v2864, 7
        %v2866 = vsub.s32 0, %v2865
        %v2867 = vrot.slane %v2862, %v2866
        %v2873 = vunpack.c.l.b16 %v2858
        %v2874 = vunpack.c.l.b16 %v2859
        %v2875 = vunpack.c.l.b16 %v2860
        %v2876 = vunpack.c.l.b16 %v2861
        %v2877 = vpack.c.b16 %v2874, %v2873
        %v2878 = vpack.c.b16 %v2876, %v2875
        %vm2881 = vcmask 261120
        %v2883 = vsel %vm2881, %v2857, 0
        %2885 = vmatprep.subr.bf16.mxu0 0
        %2886 = vmatpush1.bf16.msra.mxu0 %v2877
        %2887 = vmatprep.subr.bf16.mxu0 0
        %2888 = vmatpush1.bf16.msra.mxu0 %v2878
        %2889 = vmatprep.subr.bf16.mxu0 0
        %2890 = vmatpush1.bf16.msra.mxu0 0
        %2891 = vmatprep.subr.bf16.mxu0 0
        %2892 = vmatpush1.bf16.msra.mxu0 0
        %2893 = vmatprep.subr.bf16.mxu0 0
        %2894 = vmatpush1.bf16.msra.mxu0 0
        %2895 = vmatprep.subr.bf16.mxu0 0
        %2896 = vmatpush1.bf16.msra.mxu0 0
        %2897 = vmatprep.subr.bf16.mxu0 0
        %2898 = vmatpush1.bf16.msra.mxu0 0
        %2899 = vmatprep.subr.bf16.mxu0 0
        %2900 = vmatpush1.bf16.msra.mxu0 0
        %2901 = vmatprep.subr.bf16.mxu0 0
        %2902 = vmatpush1.bf16.msra.mxu0 0
        %2903 = vmatprep.subr.bf16.mxu0 0
        %2904 = vmatpush1.bf16.msra.mxu0 0
        %2905 = vmatprep.subr.bf16.mxu0 0
        %2906 = vmatpush1.bf16.msra.mxu0 0
        %2907 = vmatprep.subr.bf16.mxu0 0
        %2908 = vmatpush1.bf16.msra.mxu0 0
        %2909 = vmatprep.subr.bf16.mxu0 0
        %2910 = vmatpush1.bf16.msra.mxu0 0
        %2911 = vmatprep.subr.bf16.mxu0 0
        %2912 = vmatpush1.bf16.msra.mxu0 0
        %2913 = vmatprep.subr.bf16.mxu0 0
        %2914 = vmatpush1.bf16.msra.mxu0 0
        %2915 = vmatprep.subr.bf16.mxu0 0
        %2916 = vmatpush1.bf16.msra.mxu0 0
        %2917 = vmatprep.mubr.bf16.mxu0 0
        %2918 = vmatmul.mubr.bf16.gmra.mrb[0].mxu0 %v2883
        %v2919 = vpop.f32.mrb[0].mxu0
        %v2920 = vadd.f32 %v2867, %v2919
        %v2921 = vpop.f32.mrb[0].mxu0
        %v2922 = vpop.f32.mrb[0].mxu0
        %v2923 = vadd.f32 %v2867, %v2922
        %v2924 = vpop.f32.mrb[0].mxu0
        %2925 = vdwg.mxu0
        %v2926 = vmax.f32 %v2920, 0.0
        %v2927 = vmax.f32 %v2923, 0.0
        %v2928 = vpack.c.bf16 %v2927, %v2926
        %v2929 = vld [vmem:[%s35] sm:$0x3]
        %v2931 = vsel %vm1810, %v2929, 0
        %2933 = vmatprep.subr.bf16.mxu0 0
        %2934 = vmatpush1.bf16.msra.mxu0 %v2928
        %2935 = vmatprep.subr.bf16.mxu0 0
        %2936 = vmatpush1.bf16.msra.mxu0 0
        %2937 = vmatprep.subr.bf16.mxu0 0
        %2938 = vmatpush1.bf16.msra.mxu0 0
        %2939 = vmatprep.subr.bf16.mxu0 0
        %2940 = vmatpush1.bf16.msra.mxu0 0
        %2941 = vmatprep.subr.bf16.mxu0 0
        %2942 = vmatpush1.bf16.msra.mxu0 0
        %2943 = vmatprep.subr.bf16.mxu0 0
        %2944 = vmatpush1.bf16.msra.mxu0 0
        %2945 = vmatprep.subr.bf16.mxu0 0
        %2946 = vmatpush1.bf16.msra.mxu0 0
        %2947 = vmatprep.subr.bf16.mxu0 0
        %2948 = vmatpush1.bf16.msra.mxu0 0
        %2949 = vmatprep.subr.bf16.mxu0 0
        %2950 = vmatpush1.bf16.msra.mxu0 0
        %2951 = vmatprep.subr.bf16.mxu0 0
        %2952 = vmatpush1.bf16.msra.mxu0 0
        %2953 = vmatprep.subr.bf16.mxu0 0
        %2954 = vmatpush1.bf16.msra.mxu0 0
        %2955 = vmatprep.subr.bf16.mxu0 0
        %2956 = vmatpush1.bf16.msra.mxu0 0
        %2957 = vmatprep.subr.bf16.mxu0 0
        %2958 = vmatpush1.bf16.msra.mxu0 0
        %2959 = vmatprep.subr.bf16.mxu0 0
        %2960 = vmatpush1.bf16.msra.mxu0 0
        %2961 = vmatprep.subr.bf16.mxu0 0
        %2962 = vmatpush1.bf16.msra.mxu0 0
        %2963 = vmatprep.subr.bf16.mxu0 0
        %2964 = vmatpush1.bf16.msra.mxu0 0
        %2965 = vmatprep.mubr.bf16.mxu0 0
        %2966 = vmatmul.mubr.bf16.gmra.mrb[0].mxu0 %v2931
        %v2967 = vpop.f32.mrb[0].mxu0
        %v2968 = vadd.f32 0.0, %v2967
        %v2969 = vpop.f32.mrb[0].mxu0
        %v2970 = vpop.f32.mrb[0].mxu0
        %v2971 = vpop.f32.mrb[0].mxu0
        %2972 = vdwg.mxu0
        %v2973 = vpack.c.bf16 %v2968, %v2968
        %v2974 = vld [vmem:[%s31] sm:$0xf]
        %v2975 = vld [vmem:[%s31 + $0x4] sm:$0xf]
        %s2976 = scalar_lea.vmem %s35, 2
        %v2977 = vld [vmem:[%s2976] sm:$0x3]
        %v2979 = vsel %vm1810, %v2977, 0
        %2981 = vmatprep.subr.bf16.mxu0 0
        %2982 = vmatpush1.bf16.msra.mxu0 %v2928
        %2983 = vmatprep.subr.bf16.mxu0 0
        %2984 = vmatpush1.bf16.msra.mxu0 0
        %2985 = vmatprep.subr.bf16.mxu0 0
        %2986 = vmatpush1.bf16.msra.mxu0 0
        %2987 = vmatprep.subr.bf16.mxu0 0
        %2988 = vmatpush1.bf16.msra.mxu0 0
        %2989 = vmatprep.subr.bf16.mxu0 0
        %2990 = vmatpush1.bf16.msra.mxu0 0
        %2991 = vmatprep.subr.bf16.mxu0 0
        %2992 = vmatpush1.bf16.msra.mxu0 0
        %2993 = vmatprep.subr.bf16.mxu0 0
        %2994 = vmatpush1.bf16.msra.mxu0 0
        %2995 = vmatprep.subr.bf16.mxu0 0
        %2996 = vmatpush1.bf16.msra.mxu0 0
        %2997 = vmatprep.subr.bf16.mxu0 0
        %2998 = vmatpush1.bf16.msra.mxu0 0
        %2999 = vmatprep.subr.bf16.mxu0 0
        %3000 = vmatpush1.bf16.msra.mxu0 0
        %3001 = vmatprep.subr.bf16.mxu0 0
        %3002 = vmatpush1.bf16.msra.mxu0 0
        %3003 = vmatprep.subr.bf16.mxu0 0
        %3004 = vmatpush1.bf16.msra.mxu0 0
        %3005 = vmatprep.subr.bf16.mxu0 0
        %3006 = vmatpush1.bf16.msra.mxu0 0
        %3007 = vmatprep.subr.bf16.mxu0 0
        %3008 = vmatpush1.bf16.msra.mxu0 0
        %3009 = vmatprep.subr.bf16.mxu0 0
        %3010 = vmatpush1.bf16.msra.mxu0 0
        %3011 = vmatprep.subr.bf16.mxu0 0
        %3012 = vmatpush1.bf16.msra.mxu0 0
        %3013 = vmatprep.mubr.bf16.mxu0 0
        %3014 = vmatmul.mubr.bf16.gmra.mrb[0].mxu0 %v2979
        %v3015 = vpop.f32.mrb[0].mxu0
        %v3016 = vadd.f32 0.0, %v3015
        %v3017 = vpop.f32.mrb[0].mxu0
        %v3018 = vpop.f32.mrb[0].mxu0
        %v3019 = vpop.f32.mrb[0].mxu0
        %3020 = vdwg.mxu0
        %v3021 = vpack.c.bf16 %v3016, %v3016
        %s3022 = scalar_lea.vmem %s31, 8
        %v3023 = vld [vmem:[%s3022] sm:$0xf]
        %v3024 = vld [vmem:[%s3022 + $0x4] sm:$0xf]
        %v3027 = vunpack.c.l.b16 %v3023
        %v3028 = vunpack.c.l.b16 %v3024
        %v3029 = vpack.c.b16 %v3028, %v3027
        %v3032 = vsel %vm1810, %v3021, 0
        %3034 = vmatprep.subr.bf16.mxu0 0
        %3035 = vmatpush1.bf16.msra.mxu0 %v3029
        %3036 = vmatprep.subr.bf16.mxu0 0
        %3037 = vmatpush1.bf16.msra.mxu0 0
        %3038 = vmatprep.subr.bf16.mxu0 0
        %3039 = vmatpush1.bf16.msra.mxu0 0
        %3040 = vmatprep.subr.bf16.mxu0 0
        %3041 = vmatpush1.bf16.msra.mxu0 0
        %3042 = vmatprep.subr.bf16.mxu0 0
        %3043 = vmatpush1.bf16.msra.mxu0 0
        %3044 = vmatprep.subr.bf16.mxu0 0
        %3045 = vmatpush1.bf16.msra.mxu0 0
        %3046 = vmatprep.subr.bf16.mxu0 0
        %3047 = vmatpush1.bf16.msra.mxu0 0
        %3048 = vmatprep.subr.bf16.mxu0 0
        %3049 = vmatpush1.bf16.msra.mxu0 0
        %3050 = vmatprep.subr.bf16.mxu0 0
        %3051 = vmatpush1.bf16.msra.mxu0 0
        %3052 = vmatprep.subr.bf16.mxu0 0
        %3053 = vmatpush1.bf16.msra.mxu0 0
        %3054 = vmatprep.subr.bf16.mxu0 0
        %3055 = vmatpush1.bf16.msra.mxu0 0
        %3056 = vmatprep.subr.bf16.mxu0 0
        %3057 = vmatpush1.bf16.msra.mxu0 0
        %3058 = vmatprep.subr.bf16.mxu0 0
        %3059 = vmatpush1.bf16.msra.mxu0 0
        %3060 = vmatprep.subr.bf16.mxu0 0
        %3061 = vmatpush1.bf16.msra.mxu0 0
        %3062 = vmatprep.subr.bf16.mxu0 0
        %3063 = vmatpush1.bf16.msra.mxu0 0
        %3064 = vmatprep.subr.bf16.mxu0 0
        %3065 = vmatpush1.bf16.msra.mxu0 0
        %3066 = vmatprep.mubr.bf16.mxu0 0
        %3067 = vmatmul.mubr.bf16.gmra.mrb[0].mxu0 %v3032
        %v3068 = vpop.f32.mrb[0].mxu0
        %v3069 = vadd.f32 0.0, %v3068
        %v3070 = vpop.f32.mrb[0].mxu0
        %v3071 = vpop.f32.mrb[0].mxu0
        %v3072 = vpop.f32.mrb[0].mxu0
        %3073 = vdwg.mxu0
        %v3076 = vunpack.c.l.b16 %v2974
        %v3077 = vunpack.c.l.b16 %v2975
        %v3078 = vpack.c.b16 %v3077, %v3076
        %v3081 = vsel %vm1810, %v2973, 0
        %3083 = vmatprep.subr.bf16.mxu0 0
        %3084 = vmatpush1.bf16.msra.mxu0 %v3078
        %3085 = vmatprep.subr.bf16.mxu0 0
        %3086 = vmatpush1.bf16.msra.mxu0 0
        %3087 = vmatprep.subr.bf16.mxu0 0
        %3088 = vmatpush1.bf16.msra.mxu0 0
        %3089 = vmatprep.subr.bf16.mxu0 0
        %3090 = vmatpush1.bf16.msra.mxu0 0
        %3091 = vmatprep.subr.bf16.mxu0 0
        %3092 = vmatpush1.bf16.msra.mxu0 0
        %3093 = vmatprep.subr.bf16.mxu0 0
        %3094 = vmatpush1.bf16.msra.mxu0 0
        %3095 = vmatprep.subr.bf16.mxu0 0
        %3096 = vmatpush1.bf16.msra.mxu0 0
        %3097 = vmatprep.subr.bf16.mxu0 0
        %3098 = vmatpush1.bf16.msra.mxu0 0
        %3099 = vmatprep.subr.bf16.mxu0 0
        %3100 = vmatpush1.bf16.msra.mxu0 0
        %3101 = vmatprep.subr.bf16.mxu0 0
        %3102 = vmatpush1.bf16.msra.mxu0 0
        %3103 = vmatprep.subr.bf16.mxu0 0
        %3104 = vmatpush1.bf16.msra.mxu0 0
        %3105 = vmatprep.subr.bf16.mxu0 0
        %3106 = vmatpush1.bf16.msra.mxu0 0
        %3107 = vmatprep.subr.bf16.mxu0 0
        %3108 = vmatpush1.bf16.msra.mxu0 0
        %3109 = vmatprep.subr.bf16.mxu0 0
        %3110 = vmatpush1.bf16.msra.mxu0 0
        %3111 = vmatprep.subr.bf16.mxu0 0
        %3112 = vmatpush1.bf16.msra.mxu0 0
        %3113 = vmatprep.subr.bf16.mxu0 0
        %3114 = vmatpush1.bf16.msra.mxu0 0
        %3115 = vmatprep.mubr.bf16.mxu0 0
        %3116 = vmatmul.mubr.bf16.gmra.mrb[0].mxu0 %v3081
        %v3117 = vpop.f32.mrb[0].mxu0
        %v3118 = vadd.f32 %v3069, %v3117
        %v3119 = vpop.f32.mrb[0].mxu0
        %v3120 = vpop.f32.mrb[0].mxu0
        %v3121 = vpop.f32.mrb[0].mxu0
        %3122 = vdwg.mxu0
        %s3123 = scalar_lea.vmem %s35, 4
        %v3124 = vld [vmem:[%s3123] sm:$0x3]
        %v3126 = vsel %vm1810, %v3124, 0
        %3128 = vmatprep.subr.bf16.mxu0 0
        %3129 = vmatpush1.bf16.msra.mxu0 %v2928
        %3130 = vmatprep.subr.bf16.mxu0 0
        %3131 = vmatpush1.bf16.msra.mxu0 0
        %3132 = vmatprep.subr.bf16.mxu0 0
        %3133 = vmatpush1.bf16.msra.mxu0 0
        %3134 = vmatprep.subr.bf16.mxu0 0
        %3135 = vmatpush1.bf16.msra.mxu0 0
        %3136 = vmatprep.subr.bf16.mxu0 0
        %3137 = vmatpush1.bf16.msra.mxu0 0
        %3138 = vmatprep.subr.bf16.mxu0 0
        %3139 = vmatpush1.bf16.msra.mxu0 0
        %3140 = vmatprep.subr.bf16.mxu0 0
        %3141 = vmatpush1.bf16.msra.mxu0 0
        %3142 = vmatprep.subr.bf16.mxu0 0
        %3143 = vmatpush1.bf16.msra.mxu0 0
        %3144 = vmatprep.subr.bf16.mxu0 0
        %3145 = vmatpush1.bf16.msra.mxu0 0
        %3146 = vmatprep.subr.bf16.mxu0 0
        %3147 = vmatpush1.bf16.msra.mxu0 0
        %3148 = vmatprep.subr.bf16.mxu0 0
        %3149 = vmatpush1.bf16.msra.mxu0 0
        %3150 = vmatprep.subr.bf16.mxu0 0
        %3151 = vmatpush1.bf16.msra.mxu0 0
        %3152 = vmatprep.subr.bf16.mxu0 0
        %3153 = vmatpush1.bf16.msra.mxu0 0
        %3154 = vmatprep.subr.bf16.mxu0 0
        %3155 = vmatpush1.bf16.msra.mxu0 0
        %3156 = vmatprep.subr.bf16.mxu0 0
        %3157 = vmatpush1.bf16.msra.mxu0 0
        %3158 = vmatprep.subr.bf16.mxu0 0
        %3159 = vmatpush1.bf16.msra.mxu0 0
        %3160 = vmatprep.mubr.bf16.mxu0 0
        %3161 = vmatmul.mubr.bf16.gmra.mrb[0].mxu0 %v3126
        %v3162 = vpop.f32.mrb[0].mxu0
        %v3163 = vadd.f32 0.0, %v3162
        %v3164 = vpop.f32.mrb[0].mxu0
        %v3165 = vpop.f32.mrb[0].mxu0
        %v3166 = vpop.f32.mrb[0].mxu0
        %3167 = vdwg.mxu0
        %v3168 = vpack.c.bf16 %v3163, %v3163
        %s3169 = scalar_lea.vmem %s31, 16
        %v3170 = vld [vmem:[%s3169] sm:$0xf]
        %v3171 = vld [vmem:[%s3169 + $0x4] sm:$0xf]
        %v3174 = vunpack.c.l.b16 %v3170
        %v3175 = vunpack.c.l.b16 %v3171
        %v3176 = vpack.c.b16 %v3175, %v3174
        %v3179 = vsel %vm1810, %v3168, 0
        %3181 = vmatprep.subr.bf16.mxu0 0
        %3182 = vmatpush1.bf16.msra.mxu0 %v3176
        %3183 = vmatprep.subr.bf16.mxu0 0
        %3184 = vmatpush1.bf16.msra.mxu0 0
        %3185 = vmatprep.subr.bf16.mxu0 0
        %3186 = vmatpush1.bf16.msra.mxu0 0
        %3187 = vmatprep.subr.bf16.mxu0 0
        %3188 = vmatpush1.bf16.msra.mxu0 0
        %3189 = vmatprep.subr.bf16.mxu0 0
        %3190 = vmatpush1.bf16.msra.mxu0 0
        %3191 = vmatprep.subr.bf16.mxu0 0
        %3192 = vmatpush1.bf16.msra.mxu0 0
        %3193 = vmatprep.subr.bf16.mxu0 0
        %3194 = vmatpush1.bf16.msra.mxu0 0
        %3195 = vmatprep.subr.bf16.mxu0 0
        %3196 = vmatpush1.bf16.msra.mxu0 0
        %3197 = vmatprep.subr.bf16.mxu0 0
        %3198 = vmatpush1.bf16.msra.mxu0 0
        %3199 = vmatprep.subr.bf16.mxu0 0
        %3200 = vmatpush1.bf16.msra.mxu0 0
        %3201 = vmatprep.subr.bf16.mxu0 0
        %3202 = vmatpush1.bf16.msra.mxu0 0
        %3203 = vmatprep.subr.bf16.mxu0 0
        %3204 = vmatpush1.bf16.msra.mxu0 0
        %3205 = vmatprep.subr.bf16.mxu0 0
        %3206 = vmatpush1.bf16.msra.mxu0 0
        %3207 = vmatprep.subr.bf16.mxu0 0
        %3208 = vmatpush1.bf16.msra.mxu0 0
        %3209 = vmatprep.subr.bf16.mxu0 0
        %3210 = vmatpush1.bf16.msra.mxu0 0
        %3211 = vmatprep.subr.bf16.mxu0 0
        %3212 = vmatpush1.bf16.msra.mxu0 0
        %3213 = vmatprep.mubr.bf16.mxu0 0
        %3214 = vmatmul.mubr.bf16.gmra.mrb[0].mxu0 %v3179
        %v3215 = vpop.f32.mrb[0].mxu0
        %v3216 = vadd.f32 0.0, %v3215
        %v3217 = vpop.f32.mrb[0].mxu0
        %v3218 = vpop.f32.mrb[0].mxu0
        %v3219 = vpop.f32.mrb[0].mxu0
        %3220 = vdwg.mxu0
        %v3221 = vadd.f32 %v3118, %v3216
        %s3222 = scalar_lea.vmem %s35, 6
        %v3223 = vld [vmem:[%s3222] sm:$0x3]
        %v3225 = vsel %vm1810, %v3223, 0
        %3227 = vmatprep.subr.bf16.mxu0 0
        %3228 = vmatpush1.bf16.msra.mxu0 %v2928
        %3229 = vmatprep.subr.bf16.mxu0 0
        %3230 = vmatpush1.bf16.msra.mxu0 0
        %3231 = vmatprep.subr.bf16.mxu0 0
        %3232 = vmatpush1.bf16.msra.mxu0 0
        %3233 = vmatprep.subr.bf16.mxu0 0
        %3234 = vmatpush1.bf16.msra.mxu0 0
        %3235 = vmatprep.subr.bf16.mxu0 0
        %3236 = vmatpush1.bf16.msra.mxu0 0
        %3237 = vmatprep.subr.bf16.mxu0 0
        %3238 = vmatpush1.bf16.msra.mxu0 0
        %3239 = vmatprep.subr.bf16.mxu0 0
        %3240 = vmatpush1.bf16.msra.mxu0 0
        %3241 = vmatprep.subr.bf16.mxu0 0
        %3242 = vmatpush1.bf16.msra.mxu0 0
        %3243 = vmatprep.subr.bf16.mxu0 0
        %3244 = vmatpush1.bf16.msra.mxu0 0
        %3245 = vmatprep.subr.bf16.mxu0 0
        %3246 = vmatpush1.bf16.msra.mxu0 0
        %3247 = vmatprep.subr.bf16.mxu0 0
        %3248 = vmatpush1.bf16.msra.mxu0 0
        %3249 = vmatprep.subr.bf16.mxu0 0
        %3250 = vmatpush1.bf16.msra.mxu0 0
        %3251 = vmatprep.subr.bf16.mxu0 0
        %3252 = vmatpush1.bf16.msra.mxu0 0
        %3253 = vmatprep.subr.bf16.mxu0 0
        %3254 = vmatpush1.bf16.msra.mxu0 0
        %3255 = vmatprep.subr.bf16.mxu0 0
        %3256 = vmatpush1.bf16.msra.mxu0 0
        %3257 = vmatprep.subr.bf16.mxu0 0
        %3258 = vmatpush1.bf16.msra.mxu0 0
        %3259 = vmatprep.mubr.bf16.mxu0 0
        %3260 = vmatmul.mubr.bf16.gmra.mrb[0].mxu0 %v3225
        %v3261 = vpop.f32.mrb[0].mxu0
        %v3262 = vadd.f32 0.0, %v3261
        %v3263 = vpop.f32.mrb[0].mxu0
        %v3264 = vpop.f32.mrb[0].mxu0
        %v3265 = vpop.f32.mrb[0].mxu0
        %3266 = vdwg.mxu0
        %v3267 = vpack.c.bf16 %v3262, %v3262
        %s3268 = scalar_lea.vmem %s31, 24
        %v3269 = vld [vmem:[%s3268] sm:$0xf]
        %v3270 = vld [vmem:[%s3268 + $0x4] sm:$0xf]
        %v3273 = vunpack.c.l.b16 %v3269
        %v3274 = vunpack.c.l.b16 %v3270
        %v3275 = vpack.c.b16 %v3274, %v3273
        %v3278 = vsel %vm1810, %v3267, 0
        %3280 = vmatprep.subr.bf16.mxu0 0
        %3281 = vmatpush1.bf16.msra.mxu0 %v3275
        %3282 = vmatprep.subr.bf16.mxu0 0
        %3283 = vmatpush1.bf16.msra.mxu0 0
        %3284 = vmatprep.subr.bf16.mxu0 0
        %3285 = vmatpush1.bf16.msra.mxu0 0
        %3286 = vmatprep.subr.bf16.mxu0 0
        %3287 = vmatpush1.bf16.msra.mxu0 0
        %3288 = vmatprep.subr.bf16.mxu0 0
        %3289 = vmatpush1.bf16.msra.mxu0 0
        %3290 = vmatprep.subr.bf16.mxu0 0
        %3291 = vmatpush1.bf16.msra.mxu0 0
        %3292 = vmatprep.subr.bf16.mxu0 0
        %3293 = vmatpush1.bf16.msra.mxu0 0
        %3294 = vmatprep.subr.bf16.mxu0 0
        %3295 = vmatpush1.bf16.msra.mxu0 0
        %3296 = vmatprep.subr.bf16.mxu0 0
        %3297 = vmatpush1.bf16.msra.mxu0 0
        %3298 = vmatprep.subr.bf16.mxu0 0
        %3299 = vmatpush1.bf16.msra.mxu0 0
        %3300 = vmatprep.subr.bf16.mxu0 0
        %3301 = vmatpush1.bf16.msra.mxu0 0
        %3302 = vmatprep.subr.bf16.mxu0 0
        %3303 = vmatpush1.bf16.msra.mxu0 0
        %3304 = vmatprep.subr.bf16.mxu0 0
        %3305 = vmatpush1.bf16.msra.mxu0 0
        %3306 = vmatprep.subr.bf16.mxu0 0
        %3307 = vmatpush1.bf16.msra.mxu0 0
        %3308 = vmatprep.subr.bf16.mxu0 0
        %3309 = vmatpush1.bf16.msra.mxu0 0
        %3310 = vmatprep.subr.bf16.mxu0 0
        %3311 = vmatpush1.bf16.msra.mxu0 0
        %3312 = vmatprep.mubr.bf16.mxu0 0
        %3313 = vmatmul.mubr.bf16.gmra.mrb[0].mxu0 %v3278
        %v3314 = vpop.f32.mrb[0].mxu0
        %v3315 = vadd.f32 0.0, %v3314
        %v3316 = vpop.f32.mrb[0].mxu0
        %v3317 = vpop.f32.mrb[0].mxu0
        %v3318 = vpop.f32.mrb[0].mxu0
        %3319 = vdwg.mxu0
        %v3320 = vadd.f32 %v3221, %v3315
        %s3321 = scalar_lea.vmem %s35, 8
        %v3322 = vld [vmem:[%s3321] sm:$0x3]
        %v3324 = vsel %vm1810, %v3322, 0
        %3326 = vmatprep.subr.bf16.mxu0 0
        %3327 = vmatpush1.bf16.msra.mxu0 %v2928
        %3328 = vmatprep.subr.bf16.mxu0 0
        %3329 = vmatpush1.bf16.msra.mxu0 0
        %3330 = vmatprep.subr.bf16.mxu0 0
        %3331 = vmatpush1.bf16.msra.mxu0 0
        %3332 = vmatprep.subr.bf16.mxu0 0
        %3333 = vmatpush1.bf16.msra.mxu0 0
        %3334 = vmatprep.subr.bf16.mxu0 0
        %3335 = vmatpush1.bf16.msra.mxu0 0
        %3336 = vmatprep.subr.bf16.mxu0 0
        %3337 = vmatpush1.bf16.msra.mxu0 0
        %3338 = vmatprep.subr.bf16.mxu0 0
        %3339 = vmatpush1.bf16.msra.mxu0 0
        %3340 = vmatprep.subr.bf16.mxu0 0
        %3341 = vmatpush1.bf16.msra.mxu0 0
        %3342 = vmatprep.subr.bf16.mxu0 0
        %3343 = vmatpush1.bf16.msra.mxu0 0
        %3344 = vmatprep.subr.bf16.mxu0 0
        %3345 = vmatpush1.bf16.msra.mxu0 0
        %3346 = vmatprep.subr.bf16.mxu0 0
        %3347 = vmatpush1.bf16.msra.mxu0 0
        %3348 = vmatprep.subr.bf16.mxu0 0
        %3349 = vmatpush1.bf16.msra.mxu0 0
        %3350 = vmatprep.subr.bf16.mxu0 0
        %3351 = vmatpush1.bf16.msra.mxu0 0
        %3352 = vmatprep.subr.bf16.mxu0 0
        %3353 = vmatpush1.bf16.msra.mxu0 0
        %3354 = vmatprep.subr.bf16.mxu0 0
        %3355 = vmatpush1.bf16.msra.mxu0 0
        %3356 = vmatprep.subr.bf16.mxu0 0
        %3357 = vmatpush1.bf16.msra.mxu0 0
        %3358 = vmatprep.mubr.bf16.mxu0 0
        %3359 = vmatmul.mubr.bf16.gmra.mrb[0].mxu0 %v3324
        %v3360 = vpop.f32.mrb[0].mxu0
        %v3361 = vadd.f32 0.0, %v3360
        %v3362 = vpop.f32.mrb[0].mxu0
        %v3363 = vpop.f32.mrb[0].mxu0
        %v3364 = vpop.f32.mrb[0].mxu0
        %3365 = vdwg.mxu0
        %v3366 = vpack.c.bf16 %v3361, %v3361
        %s3367 = scalar_lea.vmem %s31, 32
        %v3368 = vld [vmem:[%s3367] sm:$0xf]
        %v3369 = vld [vmem:[%s3367 + $0x4] sm:$0xf]
        %v3372 = vunpack.c.l.b16 %v3368
        %v3373 = vunpack.c.l.b16 %v3369
        %v3374 = vpack.c.b16 %v3373, %v3372
        %v3377 = vsel %vm1810, %v3366, 0
        %3379 = vmatprep.subr.bf16.mxu0 0
        %3380 = vmatpush1.bf16.msra.mxu0 %v3374
        %3381 = vmatprep.subr.bf16.mxu0 0
        %3382 = vmatpush1.bf16.msra.mxu0 0
        %3383 = vmatprep.subr.bf16.mxu0 0
        %3384 = vmatpush1.bf16.msra.mxu0 0
        %3385 = vmatprep.subr.bf16.mxu0 0
        %3386 = vmatpush1.bf16.msra.mxu0 0
        %3387 = vmatprep.subr.bf16.mxu0 0
        %3388 = vmatpush1.bf16.msra.mxu0 0
        %3389 = vmatprep.subr.bf16.mxu0 0
        %3390 = vmatpush1.bf16.msra.mxu0 0
        %3391 = vmatprep.subr.bf16.mxu0 0
        %3392 = vmatpush1.bf16.msra.mxu0 0
        %3393 = vmatprep.subr.bf16.mxu0 0
        %3394 = vmatpush1.bf16.msra.mxu0 0
        %3395 = vmatprep.subr.bf16.mxu0 0
        %3396 = vmatpush1.bf16.msra.mxu0 0
        %3397 = vmatprep.subr.bf16.mxu0 0
        %3398 = vmatpush1.bf16.msra.mxu0 0
        %3399 = vmatprep.subr.bf16.mxu0 0
        %3400 = vmatpush1.bf16.msra.mxu0 0
        %3401 = vmatprep.subr.bf16.mxu0 0
        %3402 = vmatpush1.bf16.msra.mxu0 0
        %3403 = vmatprep.subr.bf16.mxu0 0
        %3404 = vmatpush1.bf16.msra.mxu0 0
        %3405 = vmatprep.subr.bf16.mxu0 0
        %3406 = vmatpush1.bf16.msra.mxu0 0
        %3407 = vmatprep.subr.bf16.mxu0 0
        %3408 = vmatpush1.bf16.msra.mxu0 0
        %3409 = vmatprep.subr.bf16.mxu0 0
        %3410 = vmatpush1.bf16.msra.mxu0 0
        %3411 = vmatprep.mubr.bf16.mxu0 0
        %3412 = vmatmul.mubr.bf16.gmra.mrb[0].mxu0 %v3377
        %v3413 = vpop.f32.mrb[0].mxu0
        %v3414 = vadd.f32 0.0, %v3413
        %v3415 = vpop.f32.mrb[0].mxu0
        %v3416 = vpop.f32.mrb[0].mxu0
        %v3417 = vpop.f32.mrb[0].mxu0
        %3418 = vdwg.mxu0
        %v3419 = vadd.f32 %v3320, %v3414
        %s3420 = scalar_lea.vmem %s35, 10
        %v3421 = vld [vmem:[%s3420] sm:$0x3]
        %v3423 = vsel %vm1810, %v3421, 0
        %3425 = vmatprep.subr.bf16.mxu0 0
        %3426 = vmatpush1.bf16.msra.mxu0 %v2928
        %3427 = vmatprep.subr.bf16.mxu0 0
        %3428 = vmatpush1.bf16.msra.mxu0 0
        %3429 = vmatprep.subr.bf16.mxu0 0
        %3430 = vmatpush1.bf16.msra.mxu0 0
        %3431 = vmatprep.subr.bf16.mxu0 0
        %3432 = vmatpush1.bf16.msra.mxu0 0
        %3433 = vmatprep.subr.bf16.mxu0 0
        %3434 = vmatpush1.bf16.msra.mxu0 0
        %3435 = vmatprep.subr.bf16.mxu0 0
        %3436 = vmatpush1.bf16.msra.mxu0 0
        %3437 = vmatprep.subr.bf16.mxu0 0
        %3438 = vmatpush1.bf16.msra.mxu0 0
        %3439 = vmatprep.subr.bf16.mxu0 0
        %3440 = vmatpush1.bf16.msra.mxu0 0
        %3441 = vmatprep.subr.bf16.mxu0 0
        %3442 = vmatpush1.bf16.msra.mxu0 0
        %3443 = vmatprep.subr.bf16.mxu0 0
        %3444 = vmatpush1.bf16.msra.mxu0 0
        %3445 = vmatprep.subr.bf16.mxu0 0
        %3446 = vmatpush1.bf16.msra.mxu0 0
        %3447 = vmatprep.subr.bf16.mxu0 0
        %3448 = vmatpush1.bf16.msra.mxu0 0
        %3449 = vmatprep.subr.bf16.mxu0 0
        %3450 = vmatpush1.bf16.msra.mxu0 0
        %3451 = vmatprep.subr.bf16.mxu0 0
        %3452 = vmatpush1.bf16.msra.mxu0 0
        %3453 = vmatprep.subr.bf16.mxu0 0
        %3454 = vmatpush1.bf16.msra.mxu0 0
        %3455 = vmatprep.subr.bf16.mxu0 0
        %3456 = vmatpush1.bf16.msra.mxu0 0
        %3457 = vmatprep.mubr.bf16.mxu0 0
        %3458 = vmatmul.mubr.bf16.gmra.mrb[0].mxu0 %v3423
        %v3459 = vpop.f32.mrb[0].mxu0
        %v3460 = vadd.f32 0.0, %v3459
        %v3461 = vpop.f32.mrb[0].mxu0
        %v3462 = vpop.f32.mrb[0].mxu0
        %v3463 = vpop.f32.mrb[0].mxu0
        %3464 = vdwg.mxu0
        %v3465 = vpack.c.bf16 %v3460, %v3460
        %s3466 = scalar_lea.vmem %s31, 40
        %v3467 = vld [vmem:[%s3466] sm:$0xf]
        %v3468 = vld [vmem:[%s3466 + $0x4] sm:$0xf]
        %v3471 = vunpack.c.l.b16 %v3467
        %v3472 = vunpack.c.l.b16 %v3468
        %v3473 = vpack.c.b16 %v3472, %v3471
        %v3476 = vsel %vm1810, %v3465, 0
        %3478 = vmatprep.subr.bf16.mxu0 0
        %3479 = vmatpush1.bf16.msra.mxu0 %v3473
        %3480 = vmatprep.subr.bf16.mxu0 0
        %3481 = vmatpush1.bf16.msra.mxu0 0
        %3482 = vmatprep.subr.bf16.mxu0 0
        %3483 = vmatpush1.bf16.msra.mxu0 0
        %3484 = vmatprep.subr.bf16.mxu0 0
        %3485 = vmatpush1.bf16.msra.mxu0 0
        %3486 = vmatprep.subr.bf16.mxu0 0
        %3487 = vmatpush1.bf16.msra.mxu0 0
        %3488 = vmatprep.subr.bf16.mxu0 0
        %3489 = vmatpush1.bf16.msra.mxu0 0
        %3490 = vmatprep.subr.bf16.mxu0 0
        %3491 = vmatpush1.bf16.msra.mxu0 0
        %3492 = vmatprep.subr.bf16.mxu0 0
        %3493 = vmatpush1.bf16.msra.mxu0 0
        %3494 = vmatprep.subr.bf16.mxu0 0
        %3495 = vmatpush1.bf16.msra.mxu0 0
        %3496 = vmatprep.subr.bf16.mxu0 0
        %3497 = vmatpush1.bf16.msra.mxu0 0
        %3498 = vmatprep.subr.bf16.mxu0 0
        %3499 = vmatpush1.bf16.msra.mxu0 0
        %3500 = vmatprep.subr.bf16.mxu0 0
        %3501 = vmatpush1.bf16.msra.mxu0 0
        %3502 = vmatprep.subr.bf16.mxu0 0
        %3503 = vmatpush1.bf16.msra.mxu0 0
        %3504 = vmatprep.subr.bf16.mxu0 0
        %3505 = vmatpush1.bf16.msra.mxu0 0
        %3506 = vmatprep.subr.bf16.mxu0 0
        %3507 = vmatpush1.bf16.msra.mxu0 0
        %3508 = vmatprep.subr.bf16.mxu0 0
        %3509 = vmatpush1.bf16.msra.mxu0 0
        %3510 = vmatprep.mubr.bf16.mxu0 0
        %3511 = vmatmul.mubr.bf16.gmra.mrb[0].mxu0 %v3476
        %v3512 = vpop.f32.mrb[0].mxu0
        %v3513 = vadd.f32 0.0, %v3512
        %v3514 = vpop.f32.mrb[0].mxu0
        %v3515 = vpop.f32.mrb[0].mxu0
        %v3516 = vpop.f32.mrb[0].mxu0
        %3517 = vdwg.mxu0
        %v3518 = vadd.f32 %v3419, %v3513
        %s3519 = scalar_lea.vmem %s35, 12
        %v3520 = vld [vmem:[%s3519] sm:$0x3]
        %v3522 = vsel %vm1810, %v3520, 0
        %3524 = vmatprep.subr.bf16.mxu0 0
        %3525 = vmatpush1.bf16.msra.mxu0 %v2928
        %3526 = vmatprep.subr.bf16.mxu0 0
        %3527 = vmatpush1.bf16.msra.mxu0 0
        %3528 = vmatprep.subr.bf16.mxu0 0
        %3529 = vmatpush1.bf16.msra.mxu0 0
        %3530 = vmatprep.subr.bf16.mxu0 0
        %3531 = vmatpush1.bf16.msra.mxu0 0
        %3532 = vmatprep.subr.bf16.mxu0 0
        %3533 = vmatpush1.bf16.msra.mxu0 0
        %3534 = vmatprep.subr.bf16.mxu0 0
        %3535 = vmatpush1.bf16.msra.mxu0 0
        %3536 = vmatprep.subr.bf16.mxu0 0
        %3537 = vmatpush1.bf16.msra.mxu0 0
        %3538 = vmatprep.subr.bf16.mxu0 0
        %3539 = vmatpush1.bf16.msra.mxu0 0
        %3540 = vmatprep.subr.bf16.mxu0 0
        %3541 = vmatpush1.bf16.msra.mxu0 0
        %3542 = vmatprep.subr.bf16.mxu0 0
        %3543 = vmatpush1.bf16.msra.mxu0 0
        %3544 = vmatprep.subr.bf16.mxu0 0
        %3545 = vmatpush1.bf16.msra.mxu0 0
        %3546 = vmatprep.subr.bf16.mxu0 0
        %3547 = vmatpush1.bf16.msra.mxu0 0
        %3548 = vmatprep.subr.bf16.mxu0 0
        %3549 = vmatpush1.bf16.msra.mxu0 0
        %3550 = vmatprep.subr.bf16.mxu0 0
        %3551 = vmatpush1.bf16.msra.mxu0 0
        %3552 = vmatprep.subr.bf16.mxu0 0
        %3553 = vmatpush1.bf16.msra.mxu0 0
        %3554 = vmatprep.subr.bf16.mxu0 0
        %3555 = vmatpush1.bf16.msra.mxu0 0
        %3556 = vmatprep.mubr.bf16.mxu0 0
        %3557 = vmatmul.mubr.bf16.gmra.mrb[0].mxu0 %v3522
        %v3558 = vpop.f32.mrb[0].mxu0
        %v3559 = vadd.f32 0.0, %v3558
        %v3560 = vpop.f32.mrb[0].mxu0
        %v3561 = vpop.f32.mrb[0].mxu0
        %v3562 = vpop.f32.mrb[0].mxu0
        %3563 = vdwg.mxu0
        %v3564 = vpack.c.bf16 %v3559, %v3559
        %s3565 = scalar_lea.vmem %s31, 48
        %v3566 = vld [vmem:[%s3565] sm:$0xf]
        %v3567 = vld [vmem:[%s3565 + $0x4] sm:$0xf]
        %v3570 = vunpack.c.l.b16 %v3566
        %v3571 = vunpack.c.l.b16 %v3567
        %v3572 = vpack.c.b16 %v3571, %v3570
        %v3575 = vsel %vm1810, %v3564, 0
        %3577 = vmatprep.subr.bf16.mxu0 0
        %3578 = vmatpush1.bf16.msra.mxu0 %v3572
        %3579 = vmatprep.subr.bf16.mxu0 0
        %3580 = vmatpush1.bf16.msra.mxu0 0
        %3581 = vmatprep.subr.bf16.mxu0 0
        %3582 = vmatpush1.bf16.msra.mxu0 0
        %3583 = vmatprep.subr.bf16.mxu0 0
        %3584 = vmatpush1.bf16.msra.mxu0 0
        %3585 = vmatprep.subr.bf16.mxu0 0
        %3586 = vmatpush1.bf16.msra.mxu0 0
        %3587 = vmatprep.subr.bf16.mxu0 0
        %3588 = vmatpush1.bf16.msra.mxu0 0
        %3589 = vmatprep.subr.bf16.mxu0 0
        %3590 = vmatpush1.bf16.msra.mxu0 0
        %3591 = vmatprep.subr.bf16.mxu0 0
        %3592 = vmatpush1.bf16.msra.mxu0 0
        %3593 = vmatprep.subr.bf16.mxu0 0
        %3594 = vmatpush1.bf16.msra.mxu0 0
        %3595 = vmatprep.subr.bf16.mxu0 0
        %3596 = vmatpush1.bf16.msra.mxu0 0
        %3597 = vmatprep.subr.bf16.mxu0 0
        %3598 = vmatpush1.bf16.msra.mxu0 0
        %3599 = vmatprep.subr.bf16.mxu0 0
        %3600 = vmatpush1.bf16.msra.mxu0 0
        %3601 = vmatprep.subr.bf16.mxu0 0
        %3602 = vmatpush1.bf16.msra.mxu0 0
        %3603 = vmatprep.subr.bf16.mxu0 0
        %3604 = vmatpush1.bf16.msra.mxu0 0
        %3605 = vmatprep.subr.bf16.mxu0 0
        %3606 = vmatpush1.bf16.msra.mxu0 0
        %3607 = vmatprep.subr.bf16.mxu0 0
        %3608 = vmatpush1.bf16.msra.mxu0 0
        %3609 = vmatprep.mubr.bf16.mxu0 0
        %3610 = vmatmul.mubr.bf16.gmra.mrb[0].mxu0 %v3575
        %v3611 = vpop.f32.mrb[0].mxu0
        %v3612 = vadd.f32 0.0, %v3611
        %v3613 = vpop.f32.mrb[0].mxu0
        %v3614 = vpop.f32.mrb[0].mxu0
        %v3615 = vpop.f32.mrb[0].mxu0
        %3616 = vdwg.mxu0
        %v3617 = vadd.f32 %v3518, %v3612
        %s3618 = scalar_lea.vmem %s35, 14
        %v3619 = vld [vmem:[%s3618] sm:$0x3]
        %v3621 = vsel %vm1810, %v3619, 0
        %3623 = vmatprep.subr.bf16.mxu0 0
        %3624 = vmatpush1.bf16.msra.mxu0 %v2928
        %3625 = vmatprep.subr.bf16.mxu0 0
        %3626 = vmatpush1.bf16.msra.mxu0 0
        %3627 = vmatprep.subr.bf16.mxu0 0
        %3628 = vmatpush1.bf16.msra.mxu0 0
        %3629 = vmatprep.subr.bf16.mxu0 0
        %3630 = vmatpush1.bf16.msra.mxu0 0
        %3631 = vmatprep.subr.bf16.mxu0 0
        %3632 = vmatpush1.bf16.msra.mxu0 0
        %3633 = vmatprep.subr.bf16.mxu0 0
        %3634 = vmatpush1.bf16.msra.mxu0 0
        %3635 = vmatprep.subr.bf16.mxu0 0
        %3636 = vmatpush1.bf16.msra.mxu0 0
        %3637 = vmatprep.subr.bf16.mxu0 0
        %3638 = vmatpush1.bf16.msra.mxu0 0
        %3639 = vmatprep.subr.bf16.mxu0 0
        %3640 = vmatpush1.bf16.msra.mxu0 0
        %3641 = vmatprep.subr.bf16.mxu0 0
        %3642 = vmatpush1.bf16.msra.mxu0 0
        %3643 = vmatprep.subr.bf16.mxu0 0
        %3644 = vmatpush1.bf16.msra.mxu0 0
        %3645 = vmatprep.subr.bf16.mxu0 0
        %3646 = vmatpush1.bf16.msra.mxu0 0
        %3647 = vmatprep.subr.bf16.mxu0 0
        %3648 = vmatpush1.bf16.msra.mxu0 0
        %3649 = vmatprep.subr.bf16.mxu0 0
        %3650 = vmatpush1.bf16.msra.mxu0 0
        %3651 = vmatprep.subr.bf16.mxu0 0
        %3652 = vmatpush1.bf16.msra.mxu0 0
        %3653 = vmatprep.subr.bf16.mxu0 0
        %3654 = vmatpush1.bf16.msra.mxu0 0
        %3655 = vmatprep.mubr.bf16.mxu0 0
        %3656 = vmatmul.mubr.bf16.gmra.mrb[0].mxu0 %v3621
        %v3657 = vpop.f32.mrb[0].mxu0
        %v3658 = vadd.f32 0.0, %v3657
        %v3659 = vpop.f32.mrb[0].mxu0
        %v3660 = vpop.f32.mrb[0].mxu0
        %v3661 = vpop.f32.mrb[0].mxu0
        %3662 = vdwg.mxu0
        %v3663 = vpack.c.bf16 %v3658, %v3658
        %s3664 = scalar_lea.vmem %s31, 56
        %v3665 = vld [vmem:[%s3664] sm:$0xf]
        %v3666 = vld [vmem:[%s3664 + $0x4] sm:$0xf]
        %v3669 = vunpack.c.l.b16 %v3665
        %v3670 = vunpack.c.l.b16 %v3666
        %v3671 = vpack.c.b16 %v3670, %v3669
        %v3674 = vsel %vm1810, %v3663, 0
        %3676 = vmatprep.subr.bf16.mxu0 0
        %3677 = vmatpush1.bf16.msra.mxu0 %v3671
        %3678 = vmatprep.subr.bf16.mxu0 0
        %3679 = vmatpush1.bf16.msra.mxu0 0
        %3680 = vmatprep.subr.bf16.mxu0 0
        %3681 = vmatpush1.bf16.msra.mxu0 0
        %3682 = vmatprep.subr.bf16.mxu0 0
        %3683 = vmatpush1.bf16.msra.mxu0 0
        %3684 = vmatprep.subr.bf16.mxu0 0
        %3685 = vmatpush1.bf16.msra.mxu0 0
        %3686 = vmatprep.subr.bf16.mxu0 0
        %3687 = vmatpush1.bf16.msra.mxu0 0
        %3688 = vmatprep.subr.bf16.mxu0 0
        %3689 = vmatpush1.bf16.msra.mxu0 0
        %3690 = vmatprep.subr.bf16.mxu0 0
        %3691 = vmatpush1.bf16.msra.mxu0 0
        %3692 = vmatprep.subr.bf16.mxu0 0
        %3693 = vmatpush1.bf16.msra.mxu0 0
        %3694 = vmatprep.subr.bf16.mxu0 0
        %3695 = vmatpush1.bf16.msra.mxu0 0
        %3696 = vmatprep.subr.bf16.mxu0 0
        %3697 = vmatpush1.bf16.msra.mxu0 0
        %3698 = vmatprep.subr.bf16.mxu0 0
        %3699 = vmatpush1.bf16.msra.mxu0 0
        %3700 = vmatprep.subr.bf16.mxu0 0
        %3701 = vmatpush1.bf16.msra.mxu0 0
        %3702 = vmatprep.subr.bf16.mxu0 0
        %3703 = vmatpush1.bf16.msra.mxu0 0
        %3704 = vmatprep.subr.bf16.mxu0 0
        %3705 = vmatpush1.bf16.msra.mxu0 0
        %3706 = vmatprep.subr.bf16.mxu0 0
        %3707 = vmatpush1.bf16.msra.mxu0 0
        %3708 = vmatprep.mubr.bf16.mxu0 0
        %3709 = vmatmul.mubr.bf16.gmra.mrb[0].mxu0 %v3674
        %v3710 = vpop.f32.mrb[0].mxu0
        %v3711 = vadd.f32 0.0, %v3710
        %v3712 = vpop.f32.mrb[0].mxu0
        %v3713 = vpop.f32.mrb[0].mxu0
        %v3714 = vpop.f32.mrb[0].mxu0
        %3715 = vdwg.mxu0
        %v3716 = vadd.f32 %v3617, %v3711
        %s3717 = scalar_lea.vmem %s35, 16
        %v3718 = vld [vmem:[%s3717] sm:$0x3]
        %v3720 = vsel %vm1810, %v3718, 0
        %3722 = vmatprep.subr.bf16.mxu0 0
        %3723 = vmatpush1.bf16.msra.mxu0 %v2928
        %3724 = vmatprep.subr.bf16.mxu0 0
        %3725 = vmatpush1.bf16.msra.mxu0 0
        %3726 = vmatprep.subr.bf16.mxu0 0
        %3727 = vmatpush1.bf16.msra.mxu0 0
        %3728 = vmatprep.subr.bf16.mxu0 0
        %3729 = vmatpush1.bf16.msra.mxu0 0
        %3730 = vmatprep.subr.bf16.mxu0 0
        %3731 = vmatpush1.bf16.msra.mxu0 0
        %3732 = vmatprep.subr.bf16.mxu0 0
        %3733 = vmatpush1.bf16.msra.mxu0 0
        %3734 = vmatprep.subr.bf16.mxu0 0
        %3735 = vmatpush1.bf16.msra.mxu0 0
        %3736 = vmatprep.subr.bf16.mxu0 0
        %3737 = vmatpush1.bf16.msra.mxu0 0
        %3738 = vmatprep.subr.bf16.mxu0 0
        %3739 = vmatpush1.bf16.msra.mxu0 0
        %3740 = vmatprep.subr.bf16.mxu0 0
        %3741 = vmatpush1.bf16.msra.mxu0 0
        %3742 = vmatprep.subr.bf16.mxu0 0
        %3743 = vmatpush1.bf16.msra.mxu0 0
        %3744 = vmatprep.subr.bf16.mxu0 0
        %3745 = vmatpush1.bf16.msra.mxu0 0
        %3746 = vmatprep.subr.bf16.mxu0 0
        %3747 = vmatpush1.bf16.msra.mxu0 0
        %3748 = vmatprep.subr.bf16.mxu0 0
        %3749 = vmatpush1.bf16.msra.mxu0 0
        %3750 = vmatprep.subr.bf16.mxu0 0
        %3751 = vmatpush1.bf16.msra.mxu0 0
        %3752 = vmatprep.subr.bf16.mxu0 0
        %3753 = vmatpush1.bf16.msra.mxu0 0
        %3754 = vmatprep.mubr.bf16.mxu0 0
        %3755 = vmatmul.mubr.bf16.gmra.mrb[0].mxu0 %v3720
        %v3756 = vpop.f32.mrb[0].mxu0
        %v3757 = vadd.f32 0.0, %v3756
        %v3758 = vpop.f32.mrb[0].mxu0
        %v3759 = vpop.f32.mrb[0].mxu0
        %v3760 = vpop.f32.mrb[0].mxu0
        %3761 = vdwg.mxu0
        %v3762 = vpack.c.bf16 %v3757, %v3757
        %s3763 = scalar_lea.vmem %s31, 64
        %v3764 = vld [vmem:[%s3763] sm:$0xf]
        %v3765 = vld [vmem:[%s3763 + $0x4] sm:$0xf]
        %v3768 = vunpack.c.l.b16 %v3764
        %v3769 = vunpack.c.l.b16 %v3765
        %v3770 = vpack.c.b16 %v3769, %v3768
        %v3773 = vsel %vm1810, %v3762, 0
        %3775 = vmatprep.subr.bf16.mxu0 0
        %3776 = vmatpush1.bf16.msra.mxu0 %v3770
        %3777 = vmatprep.subr.bf16.mxu0 0
        %3778 = vmatpush1.bf16.msra.mxu0 0
        %3779 = vmatprep.subr.bf16.mxu0 0
        %3780 = vmatpush1.bf16.msra.mxu0 0
        %3781 = vmatprep.subr.bf16.mxu0 0
        %3782 = vmatpush1.bf16.msra.mxu0 0
        %3783 = vmatprep.subr.bf16.mxu0 0
        %3784 = vmatpush1.bf16.msra.mxu0 0
        %3785 = vmatprep.subr.bf16.mxu0 0
        %3786 = vmatpush1.bf16.msra.mxu0 0
        %3787 = vmatprep.subr.bf16.mxu0 0
        %3788 = vmatpush1.bf16.msra.mxu0 0
        %3789 = vmatprep.subr.bf16.mxu0 0
        %3790 = vmatpush1.bf16.msra.mxu0 0
        %3791 = vmatprep.subr.bf16.mxu0 0
        %3792 = vmatpush1.bf16.msra.mxu0 0
        %3793 = vmatprep.subr.bf16.mxu0 0
        %3794 = vmatpush1.bf16.msra.mxu0 0
        %3795 = vmatprep.subr.bf16.mxu0 0
        %3796 = vmatpush1.bf16.msra.mxu0 0
        %3797 = vmatprep.subr.bf16.mxu0 0
        %3798 = vmatpush1.bf16.msra.mxu0 0
        %3799 = vmatprep.subr.bf16.mxu0 0
        %3800 = vmatpush1.bf16.msra.mxu0 0
        %3801 = vmatprep.subr.bf16.mxu0 0
        %3802 = vmatpush1.bf16.msra.mxu0 0
        %3803 = vmatprep.subr.bf16.mxu0 0
        %3804 = vmatpush1.bf16.msra.mxu0 0
        %3805 = vmatprep.subr.bf16.mxu0 0
        %3806 = vmatpush1.bf16.msra.mxu0 0
        %3807 = vmatprep.mubr.bf16.mxu0 0
        %3808 = vmatmul.mubr.bf16.gmra.mrb[0].mxu0 %v3773
        %v3809 = vpop.f32.mrb[0].mxu0
        %v3810 = vadd.f32 0.0, %v3809
        %v3811 = vpop.f32.mrb[0].mxu0
        %v3812 = vpop.f32.mrb[0].mxu0
        %v3813 = vpop.f32.mrb[0].mxu0
        %3814 = vdwg.mxu0
        %v3815 = vadd.f32 %v3716, %v3810
        %v3816 = vld [vmem:[%s33] sm:$0x1]
        %v3818 = vlaneseq
        %v3819 = vshrl.u32 %v3818, 7
        %v3820 = vsub.s32 0, %v3819
        %v3821 = vrot.slane %v3816, %v3820
        %v3823 = vadd.f32 %v3815, %v3821
        %v3824 = vmax.f32 %v3823, 0.0
        %v3825 = vpack.c.bf16 %v3824, %v3824
        %v3826 = vld [vmem:[%s45] sm:$0x3]
        %v3828 = vsel %vm1810, %v3826, 0
        %3830 = vmatprep.subr.bf16.mxu0 0
        %3831 = vmatpush1.bf16.msra.mxu0 %v2857
        %3832 = vmatprep.subr.bf16.mxu0 0
        %3833 = vmatpush1.bf16.msra.mxu0 0
        %3834 = vmatprep.subr.bf16.mxu0 0
        %3835 = vmatpush1.bf16.msra.mxu0 0
        %3836 = vmatprep.subr.bf16.mxu0 0
        %3837 = vmatpush1.bf16.msra.mxu0 0
        %3838 = vmatprep.subr.bf16.mxu0 0
        %3839 = vmatpush1.bf16.msra.mxu0 0
        %3840 = vmatprep.subr.bf16.mxu0 0
        %3841 = vmatpush1.bf16.msra.mxu0 0
        %3842 = vmatprep.subr.bf16.mxu0 0
        %3843 = vmatpush1.bf16.msra.mxu0 0
        %3844 = vmatprep.subr.bf16.mxu0 0
        %3845 = vmatpush1.bf16.msra.mxu0 0
        %3846 = vmatprep.subr.bf16.mxu0 0
        %3847 = vmatpush1.bf16.msra.mxu0 0
        %3848 = vmatprep.subr.bf16.mxu0 0
        %3849 = vmatpush1.bf16.msra.mxu0 0
        %3850 = vmatprep.subr.bf16.mxu0 0
        %3851 = vmatpush1.bf16.msra.mxu0 0
        %3852 = vmatprep.subr.bf16.mxu0 0
        %3853 = vmatpush1.bf16.msra.mxu0 0
        %3854 = vmatprep.subr.bf16.mxu0 0
        %3855 = vmatpush1.bf16.msra.mxu0 0
        %3856 = vmatprep.subr.bf16.mxu0 0
        %3857 = vmatpush1.bf16.msra.mxu0 0
        %3858 = vmatprep.subr.bf16.mxu0 0
        %3859 = vmatpush1.bf16.msra.mxu0 0
        %3860 = vmatprep.subr.bf16.mxu0 0
        %3861 = vmatpush1.bf16.msra.mxu0 0
        %3862 = vmatprep.mubr.bf16.mxu0 0
        %3863 = vmatmul.mubr.bf16.gmra.mrb[0].mxu0 %v3828
        %v3864 = vpop.f32.mrb[0].mxu0
        %v3865 = vadd.f32 0.0, %v3864
        %v3866 = vpop.f32.mrb[0].mxu0
        %v3867 = vpop.f32.mrb[0].mxu0
        %v3868 = vpop.f32.mrb[0].mxu0
        %3869 = vdwg.mxu0
        %v3870 = vpack.c.bf16 %v3865, %v3865
        %v3871 = vld [vmem:[%s41] sm:$0xf]
        %v3872 = vld [vmem:[%s41 + $0x4] sm:$0xf]
        %v3873 = vld [vmem:[%s41 + $0x8] sm:$0xf]
        %v3874 = vld [vmem:[%s41 + $0xc] sm:$0xf]
        %v3875 = vld [vmem:[%s43] sm:$0x1]
        %v3877 = vlaneseq
        %v3878 = vshrl.u32 %v3877, 7
        %v3879 = vsub.s32 0, %v3878
        %v3880 = vrot.slane %v3875, %v3879
        %v3886 = vunpack.c.l.b16 %v3871
        %v3887 = vunpack.c.l.b16 %v3872
        %v3888 = vunpack.c.l.b16 %v3873
        %v3889 = vunpack.c.l.b16 %v3874
        %v3890 = vpack.c.b16 %v3887, %v3886
        %v3891 = vpack.c.b16 %v3889, %v3888
        %v3895 = vsel %vm2881, %v3870, 0
        %3897 = vmatprep.subr.bf16.mxu0 0
        %3898 = vmatpush1.bf16.msra.mxu0 %v3890
        %3899 = vmatprep.subr.bf16.mxu0 0
        %3900 = vmatpush1.bf16.msra.mxu0 %v3891
        %3901 = vmatprep.subr.bf16.mxu0 0
        %3902 = vmatpush1.bf16.msra.mxu0 0
        %3903 = vmatprep.subr.bf16.mxu0 0
        %3904 = vmatpush1.bf16.msra.mxu0 0
        %3905 = vmatprep.subr.bf16.mxu0 0
        %3906 = vmatpush1.bf16.msra.mxu0 0
        %3907 = vmatprep.subr.bf16.mxu0 0
        %3908 = vmatpush1.bf16.msra.mxu0 0
        %3909 = vmatprep.subr.bf16.mxu0 0
        %3910 = vmatpush1.bf16.msra.mxu0 0
        %3911 = vmatprep.subr.bf16.mxu0 0
        %3912 = vmatpush1.bf16.msra.mxu0 0
        %3913 = vmatprep.subr.bf16.mxu0 0
        %3914 = vmatpush1.bf16.msra.mxu0 0
        %3915 = vmatprep.subr.bf16.mxu0 0
        %3916 = vmatpush1.bf16.msra.mxu0 0
        %3917 = vmatprep.subr.bf16.mxu0 0
        %3918 = vmatpush1.bf16.msra.mxu0 0
        %3919 = vmatprep.subr.bf16.mxu0 0
        %3920 = vmatpush1.bf16.msra.mxu0 0
        %3921 = vmatprep.subr.bf16.mxu0 0
        %3922 = vmatpush1.bf16.msra.mxu0 0
        %3923 = vmatprep.subr.bf16.mxu0 0
        %3924 = vmatpush1.bf16.msra.mxu0 0
        %3925 = vmatprep.subr.bf16.mxu0 0
        %3926 = vmatpush1.bf16.msra.mxu0 0
        %3927 = vmatprep.subr.bf16.mxu0 0
        %3928 = vmatpush1.bf16.msra.mxu0 0
        %3929 = vmatprep.mubr.bf16.mxu0 0
        %3930 = vmatmul.mubr.bf16.gmra.mrb[0].mxu0 %v3895
        %v3931 = vpop.f32.mrb[0].mxu0
        %v3932 = vadd.f32 %v3880, %v3931
        %v3933 = vpop.f32.mrb[0].mxu0
        %v3934 = vpop.f32.mrb[0].mxu0
        %v3935 = vpop.f32.mrb[0].mxu0
        %3936 = vdwg.mxu0
        %v3937 = vld [vmem:[%s37] sm:$0xf]
        %v3938 = vld [vmem:[%s37 + $0x4] sm:$0xf]
        %v3939 = vld [vmem:[%s39] sm:$0x1]
        %v3941 = vlaneseq
        %v3942 = vshrl.u32 %v3941, 7
        %v3943 = vsub.s32 0, %v3942
        %v3944 = vrot.slane %v3939, %v3943
        %v3948 = vunpack.c.l.b16 %v3937
        %v3949 = vunpack.c.l.b16 %v3938
        %v3950 = vpack.c.b16 %v3949, %v3948
        %v3953 = vsel %vm1810, %v3825, 0
        %3955 = vmatprep.subr.bf16.mxu0 0
        %3956 = vmatpush1.bf16.msra.mxu0 %v3950
        %3957 = vmatprep.subr.bf16.mxu0 0
        %3958 = vmatpush1.bf16.msra.mxu0 0
        %3959 = vmatprep.subr.bf16.mxu0 0
        %3960 = vmatpush1.bf16.msra.mxu0 0
        %3961 = vmatprep.subr.bf16.mxu0 0
        %3962 = vmatpush1.bf16.msra.mxu0 0
        %3963 = vmatprep.subr.bf16.mxu0 0
        %3964 = vmatpush1.bf16.msra.mxu0 0
        %3965 = vmatprep.subr.bf16.mxu0 0
        %3966 = vmatpush1.bf16.msra.mxu0 0
        %3967 = vmatprep.subr.bf16.mxu0 0
        %3968 = vmatpush1.bf16.msra.mxu0 0
        %3969 = vmatprep.subr.bf16.mxu0 0
        %3970 = vmatpush1.bf16.msra.mxu0 0
        %3971 = vmatprep.subr.bf16.mxu0 0
        %3972 = vmatpush1.bf16.msra.mxu0 0
        %3973 = vmatprep.subr.bf16.mxu0 0
        %3974 = vmatpush1.bf16.msra.mxu0 0
        %3975 = vmatprep.subr.bf16.mxu0 0
        %3976 = vmatpush1.bf16.msra.mxu0 0
        %3977 = vmatprep.subr.bf16.mxu0 0
        %3978 = vmatpush1.bf16.msra.mxu0 0
        %3979 = vmatprep.subr.bf16.mxu0 0
        %3980 = vmatpush1.bf16.msra.mxu0 0
        %3981 = vmatprep.subr.bf16.mxu0 0
        %3982 = vmatpush1.bf16.msra.mxu0 0
        %3983 = vmatprep.subr.bf16.mxu0 0
        %3984 = vmatpush1.bf16.msra.mxu0 0
        %3985 = vmatprep.subr.bf16.mxu0 0
        %3986 = vmatpush1.bf16.msra.mxu0 0
        %3987 = vmatprep.mubr.bf16.mxu0 0
        %3988 = vmatmul.mubr.bf16.gmra.mrb[0].mxu0 %v3953
        %v3989 = vpop.f32.mrb[0].mxu0
        %v3990 = vadd.f32 %v3944, %v3989
        %v3991 = vpop.f32.mrb[0].mxu0
        %v3992 = vpop.f32.mrb[0].mxu0
        %v3993 = vpop.f32.mrb[0].mxu0
        %3994 = vdwg.mxu0
        %v3995 = vadd.f32 %v3990, %v3932
        %v3996 = vmax.f32 %v3995, 0.0
        %v3997 = vpack.c.bf16 %v3996, %v3996
        %v3998 = vld [vmem:[%s47] sm:$0xf]
        %v3999 = vld [vmem:[%s47 + $0x4] sm:$0xf]
        %v4000 = vld [vmem:[%s47 + $0x8] sm:$0xf]
        %v4001 = vld [vmem:[%s47 + $0xc] sm:$0xf]
        %v4002 = vld [vmem:[%s47 + $0x10] sm:$0xf]
        %v4003 = vld [vmem:[%s47 + $0x14] sm:$0xf]
        %v4004 = vld [vmem:[%s47 + $0x18] sm:$0xf]
        %v4005 = vld [vmem:[%s47 + $0x1c] sm:$0xf]
        %v4006 = vld [vmem:[%s49] sm:$0x1]
        %v4008 = vlaneseq
        %v4009 = vshrl.u32 %v4008, 7
        %v4010 = vsub.s32 0, %v4009
        %v4011 = vrot.slane %v4006, %v4010
        %v4021 = vunpack.c.l.b16 %v3998
        %v4022 = vunpack.c.l.b16 %v3999
        %v4023 = vunpack.c.l.b16 %v4000
        %v4024 = vunpack.c.l.b16 %v4001
        %v4025 = vunpack.c.l.b16 %v4002
        %v4026 = vunpack.c.l.b16 %v4003
        %v4027 = vunpack.c.l.b16 %v4004
        %v4028 = vunpack.c.l.b16 %v4005
        %v4029 = vpack.c.b16 %v4022, %v4021
        %v4030 = vpack.c.b16 %v4024, %v4023
        %v4031 = vpack.c.b16 %v4026, %v4025
        %v4032 = vpack.c.b16 %v4028, %v4027
        %v4038 = vsel %vm1265, %v3997, 0
        %4040 = vmatprep.subr.bf16.mxu0 0
        %4041 = vmatpush1.bf16.msra.mxu0 %v4029
        %4042 = vmatprep.subr.bf16.mxu0 0
        %4043 = vmatpush1.bf16.msra.mxu0 %v4030
        %4044 = vmatprep.subr.bf16.mxu0 0
        %4045 = vmatpush1.bf16.msra.mxu0 %v4031
        %4046 = vmatprep.subr.bf16.mxu0 0
        %4047 = vmatpush1.bf16.msra.mxu0 %v4032
        %4048 = vmatprep.subr.bf16.mxu0 0
        %4049 = vmatpush1.bf16.msra.mxu0 0
        %4050 = vmatprep.subr.bf16.mxu0 0
        %4051 = vmatpush1.bf16.msra.mxu0 0
        %4052 = vmatprep.subr.bf16.mxu0 0
        %4053 = vmatpush1.bf16.msra.mxu0 0
        %4054 = vmatprep.subr.bf16.mxu0 0
        %4055 = vmatpush1.bf16.msra.mxu0 0
        %4056 = vmatprep.subr.bf16.mxu0 0
        %4057 = vmatpush1.bf16.msra.mxu0 0
        %4058 = vmatprep.subr.bf16.mxu0 0
        %4059 = vmatpush1.bf16.msra.mxu0 0
        %4060 = vmatprep.subr.bf16.mxu0 0
        %4061 = vmatpush1.bf16.msra.mxu0 0
        %4062 = vmatprep.subr.bf16.mxu0 0
        %4063 = vmatpush1.bf16.msra.mxu0 0
        %4064 = vmatprep.subr.bf16.mxu0 0
        %4065 = vmatpush1.bf16.msra.mxu0 0
        %4066 = vmatprep.subr.bf16.mxu0 0
        %4067 = vmatpush1.bf16.msra.mxu0 0
        %4068 = vmatprep.subr.bf16.mxu0 0
        %4069 = vmatpush1.bf16.msra.mxu0 0
        %4070 = vmatprep.subr.bf16.mxu0 0
        %4071 = vmatpush1.bf16.msra.mxu0 0
        %4072 = vmatprep.mubr.bf16.mxu0 0
        %4073 = vmatmul.mubr.bf16.gmra.mrb[0].mxu0 %v4038
        %v4074 = vpop.f32.mrb[0].mxu0
        %v4075 = vadd.f32 %v4011, %v4074
        %v4076 = vpop.f32.mrb[0].mxu0
        %v4077 = vpop.f32.mrb[0].mxu0
        %v4078 = vpop.f32.mrb[0].mxu0
        %4079 = vdwg.mxu0
        %v4080 = vmax.f32 %v4075, 0.0
        %v4081 = vpack.c.bf16 %v4080, %v4080
        %v4082 = vld [vmem:[%s55] sm:$0x1]
        %vm4083 = vcmask 31744
        %v4085 = vsel %vm4083, %v4082, 0
        %v4088 = vsel %vm1177, %v4081, 0
        %4090 = vmatprep.subr.bf16.mxu0 0
        %4091 = vmatpush1.bf16.msra.mxu0 %v4088
        %4092 = vmatprep.subr.bf16.mxu0 0
        %4093 = vmatpush1.bf16.msra.mxu0 0
        %4094 = vmatprep.subr.bf16.mxu0 0
        %4095 = vmatpush1.bf16.msra.mxu0 0
        %4096 = vmatprep.subr.bf16.mxu0 0
        %4097 = vmatpush1.bf16.msra.mxu0 0
        %4098 = vmatprep.subr.bf16.mxu0 0
        %4099 = vmatpush1.bf16.msra.mxu0 0
        %4100 = vmatprep.subr.bf16.mxu0 0
        %4101 = vmatpush1.bf16.msra.mxu0 0
        %4102 = vmatprep.subr.bf16.mxu0 0
        %4103 = vmatpush1.bf16.msra.mxu0 0
        %4104 = vmatprep.subr.bf16.mxu0 0
        %4105 = vmatpush1.bf16.msra.mxu0 0
        %4106 = vmatprep.subr.bf16.mxu0 0
        %4107 = vmatpush1.bf16.msra.mxu0 0
        %4108 = vmatprep.subr.bf16.mxu0 0
        %4109 = vmatpush1.bf16.msra.mxu0 0
        %4110 = vmatprep.subr.bf16.mxu0 0
        %4111 = vmatpush1.bf16.msra.mxu0 0
        %4112 = vmatprep.subr.bf16.mxu0 0
        %4113 = vmatpush1.bf16.msra.mxu0 0
        %4114 = vmatprep.subr.bf16.mxu0 0
        %4115 = vmatpush1.bf16.msra.mxu0 0
        %4116 = vmatprep.subr.bf16.mxu0 0
        %4117 = vmatpush1.bf16.msra.mxu0 0
        %4118 = vmatprep.subr.bf16.mxu0 0
        %4119 = vmatpush1.bf16.msra.mxu0 0
        %4120 = vmatprep.subr.bf16.mxu0 0
        %4121 = vmatpush1.bf16.msra.mxu0 0
        %4122 = vmatprep.mubr.bf16.mxu0 0
        %4123 = vmatmul.mubr.bf16.gmra.mrb[0].mxu0 %v4085
        %v4124 = vpop.f32.mrb[0].mxu0
        %v4125 = vadd.f32 0.0, %v4124
        %v4126 = vpop.f32.mrb[0].mxu0
        %v4127 = vpop.f32.mrb[0].mxu0
        %v4128 = vpop.f32.mrb[0].mxu0
        %4129 = vdwg.mxu0
        %v4130 = vpack.c.bf16 %v4125, %v4125
        %v4131 = vld [vmem:[%s51] sm:$0xf]
        %v4132 = vld [vmem:[%s51 + $0x4] sm:$0xf]
        %v4133 = vld [vmem:[%s51 + $0x8] sm:$0xf]
        %v4134 = vld [vmem:[%s51 + $0xc] sm:$0xf]
        %s4135 = scalar_lea.vmem %s55, 1
        %v4136 = vld [vmem:[%s4135] sm:$0x1]
        %v4138 = vsel %vm4083, %v4136, 0
        %4140 = vmatprep.subr.bf16.mxu0 0
        %4141 = vmatpush1.bf16.msra.mxu0 %v4088
        %4142 = vmatprep.subr.bf16.mxu0 0
        %4143 = vmatpush1.bf16.msra.mxu0 0
        %4144 = vmatprep.subr.bf16.mxu0 0
        %4145 = vmatpush1.bf16.msra.mxu0 0
        %4146 = vmatprep.subr.bf16.mxu0 0
        %4147 = vmatpush1.bf16.msra.mxu0 0
        %4148 = vmatprep.subr.bf16.mxu0 0
        %4149 = vmatpush1.bf16.msra.mxu0 0
        %4150 = vmatprep.subr.bf16.mxu0 0
        %4151 = vmatpush1.bf16.msra.mxu0 0
        %4152 = vmatprep.subr.bf16.mxu0 0
        %4153 = vmatpush1.bf16.msra.mxu0 0
        %4154 = vmatprep.subr.bf16.mxu0 0
        %4155 = vmatpush1.bf16.msra.mxu0 0
        %4156 = vmatprep.subr.bf16.mxu0 0
        %4157 = vmatpush1.bf16.msra.mxu0 0
        %4158 = vmatprep.subr.bf16.mxu0 0
        %4159 = vmatpush1.bf16.msra.mxu0 0
        %4160 = vmatprep.subr.bf16.mxu0 0
        %4161 = vmatpush1.bf16.msra.mxu0 0
        %4162 = vmatprep.subr.bf16.mxu0 0
        %4163 = vmatpush1.bf16.msra.mxu0 0
        %4164 = vmatprep.subr.bf16.mxu0 0
        %4165 = vmatpush1.bf16.msra.mxu0 0
        %4166 = vmatprep.subr.bf16.mxu0 0
        %4167 = vmatpush1.bf16.msra.mxu0 0
        %4168 = vmatprep.subr.bf16.mxu0 0
        %4169 = vmatpush1.bf16.msra.mxu0 0
        %4170 = vmatprep.subr.bf16.mxu0 0
        %4171 = vmatpush1.bf16.msra.mxu0 0
        %4172 = vmatprep.mubr.bf16.mxu0 0
        %4173 = vmatmul.mubr.bf16.gmra.mrb[0].mxu0 %v4138
        %v4174 = vpop.f32.mrb[0].mxu0
        %v4175 = vadd.f32 0.0, %v4174
        %v4176 = vpop.f32.mrb[0].mxu0
        %v4177 = vpop.f32.mrb[0].mxu0
        %v4178 = vpop.f32.mrb[0].mxu0
        %4179 = vdwg.mxu0
        %v4180 = vpack.c.bf16 %v4175, %v4175
        %s4181 = scalar_lea.vmem %s51, 16
        %v4182 = vld [vmem:[%s4181] sm:$0xf]
        %v4183 = vld [vmem:[%s4181 + $0x4] sm:$0xf]
        %v4184 = vld [vmem:[%s4181 + $0x8] sm:$0xf]
        %v4185 = vld [vmem:[%s4181 + $0xc] sm:$0xf]
        %v4190 = vunpack.c.l.b16 %v4182
        %v4191 = vunpack.c.l.b16 %v4183
        %v4192 = vunpack.c.l.b16 %v4184
        %v4193 = vunpack.c.l.b16 %v4185
        %v4194 = vpack.c.b16 %v4191, %v4190
        %v4195 = vpack.c.b16 %v4193, %v4192
        %v4199 = vsel %vm2881, %v4180, 0
        %4201 = vmatprep.subr.bf16.mxu0 0
        %4202 = vmatpush1.bf16.msra.mxu0 %v4194
        %4203 = vmatprep.subr.bf16.mxu0 0
        %4204 = vmatpush1.bf16.msra.mxu0 %v4195
        %4205 = vmatprep.subr.bf16.mxu0 0
        %4206 = vmatpush1.bf16.msra.mxu0 0
        %4207 = vmatprep.subr.bf16.mxu0 0
        %4208 = vmatpush1.bf16.msra.mxu0 0
        %4209 = vmatprep.subr.bf16.mxu0 0
        %4210 = vmatpush1.bf16.msra.mxu0 0
        %4211 = vmatprep.subr.bf16.mxu0 0
        %4212 = vmatpush1.bf16.msra.mxu0 0
        %4213 = vmatprep.subr.bf16.mxu0 0
        %4214 = vmatpush1.bf16.msra.mxu0 0
        %4215 = vmatprep.subr.bf16.mxu0 0
        %4216 = vmatpush1.bf16.msra.mxu0 0
        %4217 = vmatprep.subr.bf16.mxu0 0
        %4218 = vmatpush1.bf16.msra.mxu0 0
        %4219 = vmatprep.subr.bf16.mxu0 0
        %4220 = vmatpush1.bf16.msra.mxu0 0
        %4221 = vmatprep.subr.bf16.mxu0 0
        %4222 = vmatpush1.bf16.msra.mxu0 0
        %4223 = vmatprep.subr.bf16.mxu0 0
        %4224 = vmatpush1.bf16.msra.mxu0 0
        %4225 = vmatprep.subr.bf16.mxu0 0
        %4226 = vmatpush1.bf16.msra.mxu0 0
        %4227 = vmatprep.subr.bf16.mxu0 0
        %4228 = vmatpush1.bf16.msra.mxu0 0
        %4229 = vmatprep.subr.bf16.mxu0 0
        %4230 = vmatpush1.bf16.msra.mxu0 0
        %4231 = vmatprep.subr.bf16.mxu0 0
        %4232 = vmatpush1.bf16.msra.mxu0 0
        %4233 = vmatprep.mubr.bf16.mxu0 0
        %4234 = vmatmul.mubr.bf16.gmra.mrb[0].mxu0 %v4199
        %v4235 = vpop.f32.mrb[0].mxu0
        %v4236 = vadd.f32 0.0, %v4235
        %v4237 = vpop.f32.mrb[0].mxu0
        %v4238 = vpop.f32.mrb[0].mxu0
        %v4239 = vpop.f32.mrb[0].mxu0
        %4240 = vdwg.mxu0
        %v4245 = vunpack.c.l.b16 %v4131
        %v4246 = vunpack.c.l.b16 %v4132
        %v4247 = vunpack.c.l.b16 %v4133
        %v4248 = vunpack.c.l.b16 %v4134
        %v4249 = vpack.c.b16 %v4246, %v4245
        %v4250 = vpack.c.b16 %v4248, %v4247
        %v4254 = vsel %vm2881, %v4130, 0
        %4256 = vmatprep.subr.bf16.mxu0 0
        %4257 = vmatpush1.bf16.msra.mxu0 %v4249
        %4258 = vmatprep.subr.bf16.mxu0 0
        %4259 = vmatpush1.bf16.msra.mxu0 %v4250
        %4260 = vmatprep.subr.bf16.mxu0 0
        %4261 = vmatpush1.bf16.msra.mxu0 0
        %4262 = vmatprep.subr.bf16.mxu0 0
        %4263 = vmatpush1.bf16.msra.mxu0 0
        %4264 = vmatprep.subr.bf16.mxu0 0
        %4265 = vmatpush1.bf16.msra.mxu0 0
        %4266 = vmatprep.subr.bf16.mxu0 0
        %4267 = vmatpush1.bf16.msra.mxu0 0
        %4268 = vmatprep.subr.bf16.mxu0 0
        %4269 = vmatpush1.bf16.msra.mxu0 0
        %4270 = vmatprep.subr.bf16.mxu0 0
        %4271 = vmatpush1.bf16.msra.mxu0 0
        %4272 = vmatprep.subr.bf16.mxu0 0
        %4273 = vmatpush1.bf16.msra.mxu0 0
        %4274 = vmatprep.subr.bf16.mxu0 0
        %4275 = vmatpush1.bf16.msra.mxu0 0
        %4276 = vmatprep.subr.bf16.mxu0 0
        %4277 = vmatpush1.bf16.msra.mxu0 0
        %4278 = vmatprep.subr.bf16.mxu0 0
        %4279 = vmatpush1.bf16.msra.mxu0 0
        %4280 = vmatprep.subr.bf16.mxu0 0
        %4281 = vmatpush1.bf16.msra.mxu0 0
        %4282 = vmatprep.subr.bf16.mxu0 0
        %4283 = vmatpush1.bf16.msra.mxu0 0
        %4284 = vmatprep.subr.bf16.mxu0 0
        %4285 = vmatpush1.bf16.msra.mxu0 0
        %4286 = vmatprep.subr.bf16.mxu0 0
        %4287 = vmatpush1.bf16.msra.mxu0 0
        %4288 = vmatprep.mubr.bf16.mxu0 0
        %4289 = vmatmul.mubr.bf16.gmra.mrb[0].mxu0 %v4254
        %v4290 = vpop.f32.mrb[0].mxu0
        %v4291 = vadd.f32 %v4236, %v4290
        %v4292 = vpop.f32.mrb[0].mxu0
        %v4293 = vpop.f32.mrb[0].mxu0
        %v4294 = vpop.f32.mrb[0].mxu0
        %4295 = vdwg.mxu0
        %s4296 = scalar_lea.vmem %s55, 2
        %v4297 = vld [vmem:[%s4296] sm:$0x1]
        %v4299 = vsel %vm4083, %v4297, 0
        %4301 = vmatprep.subr.bf16.mxu0 0
        %4302 = vmatpush1.bf16.msra.mxu0 %v4088
        %4303 = vmatprep.subr.bf16.mxu0 0
        %4304 = vmatpush1.bf16.msra.mxu0 0
        %4305 = vmatprep.subr.bf16.mxu0 0
        %4306 = vmatpush1.bf16.msra.mxu0 0
        %4307 = vmatprep.subr.bf16.mxu0 0
        %4308 = vmatpush1.bf16.msra.mxu0 0
        %4309 = vmatprep.subr.bf16.mxu0 0
        %4310 = vmatpush1.bf16.msra.mxu0 0
        %4311 = vmatprep.subr.bf16.mxu0 0
        %4312 = vmatpush1.bf16.msra.mxu0 0
        %4313 = vmatprep.subr.bf16.mxu0 0
        %4314 = vmatpush1.bf16.msra.mxu0 0
        %4315 = vmatprep.subr.bf16.mxu0 0
        %4316 = vmatpush1.bf16.msra.mxu0 0
        %4317 = vmatprep.subr.bf16.mxu0 0
        %4318 = vmatpush1.bf16.msra.mxu0 0
        %4319 = vmatprep.subr.bf16.mxu0 0
        %4320 = vmatpush1.bf16.msra.mxu0 0
        %4321 = vmatprep.subr.bf16.mxu0 0
        %4322 = vmatpush1.bf16.msra.mxu0 0
        %4323 = vmatprep.subr.bf16.mxu0 0
        %4324 = vmatpush1.bf16.msra.mxu0 0
        %4325 = vmatprep.subr.bf16.mxu0 0
        %4326 = vmatpush1.bf16.msra.mxu0 0
        %4327 = vmatprep.subr.bf16.mxu0 0
        %4328 = vmatpush1.bf16.msra.mxu0 0
        %4329 = vmatprep.subr.bf16.mxu0 0
        %4330 = vmatpush1.bf16.msra.mxu0 0
        %4331 = vmatprep.subr.bf16.mxu0 0
        %4332 = vmatpush1.bf16.msra.mxu0 0
        %4333 = vmatprep.mubr.bf16.mxu0 0
        %4334 = vmatmul.mubr.bf16.gmra.mrb[0].mxu0 %v4299
        %v4335 = vpop.f32.mrb[0].mxu0
        %v4336 = vadd.f32 0.0, %v4335
        %v4337 = vpop.f32.mrb[0].mxu0
        %v4338 = vpop.f32.mrb[0].mxu0
        %v4339 = vpop.f32.mrb[0].mxu0
        %4340 = vdwg.mxu0
        %v4341 = vpack.c.bf16 %v4336, %v4336
        %s4342 = scalar_lea.vmem %s51, 32
        %v4343 = vld [vmem:[%s4342] sm:$0xf]
        %v4344 = vld [vmem:[%s4342 + $0x4] sm:$0xf]
        %v4345 = vld [vmem:[%s4342 + $0x8] sm:$0xf]
        %v4346 = vld [vmem:[%s4342 + $0xc] sm:$0xf]
        %v4351 = vunpack.c.l.b16 %v4343
        %v4352 = vunpack.c.l.b16 %v4344
        %v4353 = vunpack.c.l.b16 %v4345
        %v4354 = vunpack.c.l.b16 %v4346
        %v4355 = vpack.c.b16 %v4352, %v4351
        %v4356 = vpack.c.b16 %v4354, %v4353
        %v4360 = vsel %vm2881, %v4341, 0
        %4362 = vmatprep.subr.bf16.mxu0 0
        %4363 = vmatpush1.bf16.msra.mxu0 %v4355
        %4364 = vmatprep.subr.bf16.mxu0 0
        %4365 = vmatpush1.bf16.msra.mxu0 %v4356
        %4366 = vmatprep.subr.bf16.mxu0 0
        %4367 = vmatpush1.bf16.msra.mxu0 0
        %4368 = vmatprep.subr.bf16.mxu0 0
        %4369 = vmatpush1.bf16.msra.mxu0 0
        %4370 = vmatprep.subr.bf16.mxu0 0
        %4371 = vmatpush1.bf16.msra.mxu0 0
        %4372 = vmatprep.subr.bf16.mxu0 0
        %4373 = vmatpush1.bf16.msra.mxu0 0
        %4374 = vmatprep.subr.bf16.mxu0 0
        %4375 = vmatpush1.bf16.msra.mxu0 0
        %4376 = vmatprep.subr.bf16.mxu0 0
        %4377 = vmatpush1.bf16.msra.mxu0 0
        %4378 = vmatprep.subr.bf16.mxu0 0
        %4379 = vmatpush1.bf16.msra.mxu0 0
        %4380 = vmatprep.subr.bf16.mxu0 0
        %4381 = vmatpush1.bf16.msra.mxu0 0
        %4382 = vmatprep.subr.bf16.mxu0 0
        %4383 = vmatpush1.bf16.msra.mxu0 0
        %4384 = vmatprep.subr.bf16.mxu0 0
        %4385 = vmatpush1.bf16.msra.mxu0 0
        %4386 = vmatprep.subr.bf16.mxu0 0
        %4387 = vmatpush1.bf16.msra.mxu0 0
        %4388 = vmatprep.subr.bf16.mxu0 0
        %4389 = vmatpush1.bf16.msra.mxu0 0
        %4390 = vmatprep.subr.bf16.mxu0 0
        %4391 = vmatpush1.bf16.msra.mxu0 0
        %4392 = vmatprep.subr.bf16.mxu0 0
        %4393 = vmatpush1.bf16.msra.mxu0 0
        %4394 = vmatprep.mubr.bf16.mxu0 0
        %4395 = vmatmul.mubr.bf16.gmra.mrb[0].mxu0 %v4360
        %v4396 = vpop.f32.mrb[0].mxu0
        %v4397 = vadd.f32 0.0, %v4396
        %v4398 = vpop.f32.mrb[0].mxu0
        %v4399 = vpop.f32.mrb[0].mxu0
        %v4400 = vpop.f32.mrb[0].mxu0
        %4401 = vdwg.mxu0
        %v4402 = vadd.f32 %v4291, %v4397
        %s4403 = scalar_lea.vmem %s55, 3
        %v4404 = vld [vmem:[%s4403] sm:$0x1]
        %v4406 = vsel %vm4083, %v4404, 0
        %4408 = vmatprep.subr.bf16.mxu0 0
        %4409 = vmatpush1.bf16.msra.mxu0 %v4088
        %4410 = vmatprep.subr.bf16.mxu0 0
        %4411 = vmatpush1.bf16.msra.mxu0 0
        %4412 = vmatprep.subr.bf16.mxu0 0
        %4413 = vmatpush1.bf16.msra.mxu0 0
        %4414 = vmatprep.subr.bf16.mxu0 0
        %4415 = vmatpush1.bf16.msra.mxu0 0
        %4416 = vmatprep.subr.bf16.mxu0 0
        %4417 = vmatpush1.bf16.msra.mxu0 0
        %4418 = vmatprep.subr.bf16.mxu0 0
        %4419 = vmatpush1.bf16.msra.mxu0 0
        %4420 = vmatprep.subr.bf16.mxu0 0
        %4421 = vmatpush1.bf16.msra.mxu0 0
        %4422 = vmatprep.subr.bf16.mxu0 0
        %4423 = vmatpush1.bf16.msra.mxu0 0
        %4424 = vmatprep.subr.bf16.mxu0 0
        %4425 = vmatpush1.bf16.msra.mxu0 0
        %4426 = vmatprep.subr.bf16.mxu0 0
        %4427 = vmatpush1.bf16.msra.mxu0 0
        %4428 = vmatprep.subr.bf16.mxu0 0
        %4429 = vmatpush1.bf16.msra.mxu0 0
        %4430 = vmatprep.subr.bf16.mxu0 0
        %4431 = vmatpush1.bf16.msra.mxu0 0
        %4432 = vmatprep.subr.bf16.mxu0 0
        %4433 = vmatpush1.bf16.msra.mxu0 0
        %4434 = vmatprep.subr.bf16.mxu0 0
        %4435 = vmatpush1.bf16.msra.mxu0 0
        %4436 = vmatprep.subr.bf16.mxu0 0
        %4437 = vmatpush1.bf16.msra.mxu0 0
        %4438 = vmatprep.subr.bf16.mxu0 0
        %4439 = vmatpush1.bf16.msra.mxu0 0
        %4440 = vmatprep.mubr.bf16.mxu0 0
        %4441 = vmatmul.mubr.bf16.gmra.mrb[0].mxu0 %v4406
        %v4442 = vpop.f32.mrb[0].mxu0
        %v4443 = vadd.f32 0.0, %v4442
        %v4444 = vpop.f32.mrb[0].mxu0
        %v4445 = vpop.f32.mrb[0].mxu0
        %v4446 = vpop.f32.mrb[0].mxu0
        %4447 = vdwg.mxu0
        %v4448 = vpack.c.bf16 %v4443, %v4443
        %s4449 = scalar_lea.vmem %s51, 48
        %v4450 = vld [vmem:[%s4449] sm:$0xf]
        %v4451 = vld [vmem:[%s4449 + $0x4] sm:$0xf]
        %v4452 = vld [vmem:[%s4449 + $0x8] sm:$0xf]
        %v4453 = vld [vmem:[%s4449 + $0xc] sm:$0xf]
        %v4458 = vunpack.c.l.b16 %v4450
        %v4459 = vunpack.c.l.b16 %v4451
        %v4460 = vunpack.c.l.b16 %v4452
        %v4461 = vunpack.c.l.b16 %v4453
        %v4462 = vpack.c.b16 %v4459, %v4458
        %v4463 = vpack.c.b16 %v4461, %v4460
        %v4467 = vsel %vm2881, %v4448, 0
        %4469 = vmatprep.subr.bf16.mxu0 0
        %4470 = vmatpush1.bf16.msra.mxu0 %v4462
        %4471 = vmatprep.subr.bf16.mxu0 0
        %4472 = vmatpush1.bf16.msra.mxu0 %v4463
        %4473 = vmatprep.subr.bf16.mxu0 0
        %4474 = vmatpush1.bf16.msra.mxu0 0
        %4475 = vmatprep.subr.bf16.mxu0 0
        %4476 = vmatpush1.bf16.msra.mxu0 0
        %4477 = vmatprep.subr.bf16.mxu0 0
        %4478 = vmatpush1.bf16.msra.mxu0 0
        %4479 = vmatprep.subr.bf16.mxu0 0
        %4480 = vmatpush1.bf16.msra.mxu0 0
        %4481 = vmatprep.subr.bf16.mxu0 0
        %4482 = vmatpush1.bf16.msra.mxu0 0
        %4483 = vmatprep.subr.bf16.mxu0 0
        %4484 = vmatpush1.bf16.msra.mxu0 0
        %4485 = vmatprep.subr.bf16.mxu0 0
        %4486 = vmatpush1.bf16.msra.mxu0 0
        %4487 = vmatprep.subr.bf16.mxu0 0
        %4488 = vmatpush1.bf16.msra.mxu0 0
        %4489 = vmatprep.subr.bf16.mxu0 0
        %4490 = vmatpush1.bf16.msra.mxu0 0
        %4491 = vmatprep.subr.bf16.mxu0 0
        %4492 = vmatpush1.bf16.msra.mxu0 0
        %4493 = vmatprep.subr.bf16.mxu0 0
        %4494 = vmatpush1.bf16.msra.mxu0 0
        %4495 = vmatprep.subr.bf16.mxu0 0
        %4496 = vmatpush1.bf16.msra.mxu0 0
        %4497 = vmatprep.subr.bf16.mxu0 0
        %4498 = vmatpush1.bf16.msra.mxu0 0
        %4499 = vmatprep.subr.bf16.mxu0 0
        %4500 = vmatpush1.bf16.msra.mxu0 0
        %4501 = vmatprep.mubr.bf16.mxu0 0
        %4502 = vmatmul.mubr.bf16.gmra.mrb[0].mxu0 %v4467
        %v4503 = vpop.f32.mrb[0].mxu0
        %v4504 = vadd.f32 0.0, %v4503
        %v4505 = vpop.f32.mrb[0].mxu0
        %v4506 = vpop.f32.mrb[0].mxu0
        %v4507 = vpop.f32.mrb[0].mxu0
        %4508 = vdwg.mxu0
        %v4509 = vadd.f32 %v4402, %v4504
        %s4510 = scalar_lea.vmem %s55, 4
        %v4511 = vld [vmem:[%s4510] sm:$0x1]
        %v4513 = vsel %vm4083, %v4511, 0
        %4515 = vmatprep.subr.bf16.mxu0 0
        %4516 = vmatpush1.bf16.msra.mxu0 %v4088
        %4517 = vmatprep.subr.bf16.mxu0 0
        %4518 = vmatpush1.bf16.msra.mxu0 0
        %4519 = vmatprep.subr.bf16.mxu0 0
        %4520 = vmatpush1.bf16.msra.mxu0 0
        %4521 = vmatprep.subr.bf16.mxu0 0
        %4522 = vmatpush1.bf16.msra.mxu0 0
        %4523 = vmatprep.subr.bf16.mxu0 0
        %4524 = vmatpush1.bf16.msra.mxu0 0
        %4525 = vmatprep.subr.bf16.mxu0 0
        %4526 = vmatpush1.bf16.msra.mxu0 0
        %4527 = vmatprep.subr.bf16.mxu0 0
        %4528 = vmatpush1.bf16.msra.mxu0 0
        %4529 = vmatprep.subr.bf16.mxu0 0
        %4530 = vmatpush1.bf16.msra.mxu0 0
        %4531 = vmatprep.subr.bf16.mxu0 0
        %4532 = vmatpush1.bf16.msra.mxu0 0
        %4533 = vmatprep.subr.bf16.mxu0 0
        %4534 = vmatpush1.bf16.msra.mxu0 0
        %4535 = vmatprep.subr.bf16.mxu0 0
        %4536 = vmatpush1.bf16.msra.mxu0 0
        %4537 = vmatprep.subr.bf16.mxu0 0
        %4538 = vmatpush1.bf16.msra.mxu0 0
        %4539 = vmatprep.subr.bf16.mxu0 0
        %4540 = vmatpush1.bf16.msra.mxu0 0
        %4541 = vmatprep.subr.bf16.mxu0 0
        %4542 = vmatpush1.bf16.msra.mxu0 0
        %4543 = vmatprep.subr.bf16.mxu0 0
        %4544 = vmatpush1.bf16.msra.mxu0 0
        %4545 = vmatprep.subr.bf16.mxu0 0
        %4546 = vmatpush1.bf16.msra.mxu0 0
        %4547 = vmatprep.mubr.bf16.mxu0 0
        %4548 = vmatmul.mubr.bf16.gmra.mrb[0].mxu0 %v4513
        %v4549 = vpop.f32.mrb[0].mxu0
        %v4550 = vadd.f32 0.0, %v4549
        %v4551 = vpop.f32.mrb[0].mxu0
        %v4552 = vpop.f32.mrb[0].mxu0
        %v4553 = vpop.f32.mrb[0].mxu0
        %4554 = vdwg.mxu0
        %v4555 = vpack.c.bf16 %v4550, %v4550
        %s4556 = scalar_lea.vmem %s51, 64
        %v4557 = vld [vmem:[%s4556] sm:$0xf]
        %v4558 = vld [vmem:[%s4556 + $0x4] sm:$0xf]
        %v4559 = vld [vmem:[%s4556 + $0x8] sm:$0xf]
        %v4560 = vld [vmem:[%s4556 + $0xc] sm:$0xf]
        %v4565 = vunpack.c.l.b16 %v4557
        %v4566 = vunpack.c.l.b16 %v4558
        %v4567 = vunpack.c.l.b16 %v4559
        %v4568 = vunpack.c.l.b16 %v4560
        %v4569 = vpack.c.b16 %v4566, %v4565
        %v4570 = vpack.c.b16 %v4568, %v4567
        %v4574 = vsel %vm2881, %v4555, 0
        %4576 = vmatprep.subr.bf16.mxu0 0
        %4577 = vmatpush1.bf16.msra.mxu0 %v4569
        %4578 = vmatprep.subr.bf16.mxu0 0
        %4579 = vmatpush1.bf16.msra.mxu0 %v4570
        %4580 = vmatprep.subr.bf16.mxu0 0
        %4581 = vmatpush1.bf16.msra.mxu0 0
        %4582 = vmatprep.subr.bf16.mxu0 0
        %4583 = vmatpush1.bf16.msra.mxu0 0
        %4584 = vmatprep.subr.bf16.mxu0 0
        %4585 = vmatpush1.bf16.msra.mxu0 0
        %4586 = vmatprep.subr.bf16.mxu0 0
        %4587 = vmatpush1.bf16.msra.mxu0 0
        %4588 = vmatprep.subr.bf16.mxu0 0
        %4589 = vmatpush1.bf16.msra.mxu0 0
        %4590 = vmatprep.subr.bf16.mxu0 0
        %4591 = vmatpush1.bf16.msra.mxu0 0
        %4592 = vmatprep.subr.bf16.mxu0 0
        %4593 = vmatpush1.bf16.msra.mxu0 0
        %4594 = vmatprep.subr.bf16.mxu0 0
        %4595 = vmatpush1.bf16.msra.mxu0 0
        %4596 = vmatprep.subr.bf16.mxu0 0
        %4597 = vmatpush1.bf16.msra.mxu0 0
        %4598 = vmatprep.subr.bf16.mxu0 0
        %4599 = vmatpush1.bf16.msra.mxu0 0
        %4600 = vmatprep.subr.bf16.mxu0 0
        %4601 = vmatpush1.bf16.msra.mxu0 0
        %4602 = vmatprep.subr.bf16.mxu0 0
        %4603 = vmatpush1.bf16.msra.mxu0 0
        %4604 = vmatprep.subr.bf16.mxu0 0
        %4605 = vmatpush1.bf16.msra.mxu0 0
        %4606 = vmatprep.subr.bf16.mxu0 0
        %4607 = vmatpush1.bf16.msra.mxu0 0
        %4608 = vmatprep.mubr.bf16.mxu0 0
        %4609 = vmatmul.mubr.bf16.gmra.mrb[0].mxu0 %v4574
        %v4610 = vpop.f32.mrb[0].mxu0
        %v4611 = vadd.f32 0.0, %v4610
        %v4612 = vpop.f32.mrb[0].mxu0
        %v4613 = vpop.f32.mrb[0].mxu0
        %v4614 = vpop.f32.mrb[0].mxu0
        %4615 = vdwg.mxu0
        %v4616 = vadd.f32 %v4509, %v4611
        %s4617 = scalar_lea.vmem %s55, 5
        %v4618 = vld [vmem:[%s4617] sm:$0x1]
        %v4620 = vsel %vm4083, %v4618, 0
        %4622 = vmatprep.subr.bf16.mxu0 0
        %4623 = vmatpush1.bf16.msra.mxu0 %v4088
        %4624 = vmatprep.subr.bf16.mxu0 0
        %4625 = vmatpush1.bf16.msra.mxu0 0
        %4626 = vmatprep.subr.bf16.mxu0 0
        %4627 = vmatpush1.bf16.msra.mxu0 0
        %4628 = vmatprep.subr.bf16.mxu0 0
        %4629 = vmatpush1.bf16.msra.mxu0 0
        %4630 = vmatprep.subr.bf16.mxu0 0
        %4631 = vmatpush1.bf16.msra.mxu0 0
        %4632 = vmatprep.subr.bf16.mxu0 0
        %4633 = vmatpush1.bf16.msra.mxu0 0
        %4634 = vmatprep.subr.bf16.mxu0 0
        %4635 = vmatpush1.bf16.msra.mxu0 0
        %4636 = vmatprep.subr.bf16.mxu0 0
        %4637 = vmatpush1.bf16.msra.mxu0 0
        %4638 = vmatprep.subr.bf16.mxu0 0
        %4639 = vmatpush1.bf16.msra.mxu0 0
        %4640 = vmatprep.subr.bf16.mxu0 0
        %4641 = vmatpush1.bf16.msra.mxu0 0
        %4642 = vmatprep.subr.bf16.mxu0 0
        %4643 = vmatpush1.bf16.msra.mxu0 0
        %4644 = vmatprep.subr.bf16.mxu0 0
        %4645 = vmatpush1.bf16.msra.mxu0 0
        %4646 = vmatprep.subr.bf16.mxu0 0
        %4647 = vmatpush1.bf16.msra.mxu0 0
        %4648 = vmatprep.subr.bf16.mxu0 0
        %4649 = vmatpush1.bf16.msra.mxu0 0
        %4650 = vmatprep.subr.bf16.mxu0 0
        %4651 = vmatpush1.bf16.msra.mxu0 0
        %4652 = vmatprep.subr.bf16.mxu0 0
        %4653 = vmatpush1.bf16.msra.mxu0 0
        %4654 = vmatprep.mubr.bf16.mxu0 0
        %4655 = vmatmul.mubr.bf16.gmra.mrb[0].mxu0 %v4620
        %v4656 = vpop.f32.mrb[0].mxu0
        %v4657 = vadd.f32 0.0, %v4656
        %v4658 = vpop.f32.mrb[0].mxu0
        %v4659 = vpop.f32.mrb[0].mxu0
        %v4660 = vpop.f32.mrb[0].mxu0
        %4661 = vdwg.mxu0
        %v4662 = vpack.c.bf16 %v4657, %v4657
        %s4663 = scalar_lea.vmem %s51, 80
        %v4664 = vld [vmem:[%s4663] sm:$0xf]
        %v4665 = vld [vmem:[%s4663 + $0x4] sm:$0xf]
        %v4666 = vld [vmem:[%s4663 + $0x8] sm:$0xf]
        %v4667 = vld [vmem:[%s4663 + $0xc] sm:$0xf]
        %v4672 = vunpack.c.l.b16 %v4664
        %v4673 = vunpack.c.l.b16 %v4665
        %v4674 = vunpack.c.l.b16 %v4666
        %v4675 = vunpack.c.l.b16 %v4667
        %v4676 = vpack.c.b16 %v4673, %v4672
        %v4677 = vpack.c.b16 %v4675, %v4674
        %v4681 = vsel %vm2881, %v4662, 0
        %4683 = vmatprep.subr.bf16.mxu0 0
        %4684 = vmatpush1.bf16.msra.mxu0 %v4676
        %4685 = vmatprep.subr.bf16.mxu0 0
        %4686 = vmatpush1.bf16.msra.mxu0 %v4677
        %4687 = vmatprep.subr.bf16.mxu0 0
        %4688 = vmatpush1.bf16.msra.mxu0 0
        %4689 = vmatprep.subr.bf16.mxu0 0
        %4690 = vmatpush1.bf16.msra.mxu0 0
        %4691 = vmatprep.subr.bf16.mxu0 0
        %4692 = vmatpush1.bf16.msra.mxu0 0
        %4693 = vmatprep.subr.bf16.mxu0 0
        %4694 = vmatpush1.bf16.msra.mxu0 0
        %4695 = vmatprep.subr.bf16.mxu0 0
        %4696 = vmatpush1.bf16.msra.mxu0 0
        %4697 = vmatprep.subr.bf16.mxu0 0
        %4698 = vmatpush1.bf16.msra.mxu0 0
        %4699 = vmatprep.subr.bf16.mxu0 0
        %4700 = vmatpush1.bf16.msra.mxu0 0
        %4701 = vmatprep.subr.bf16.mxu0 0
        %4702 = vmatpush1.bf16.msra.mxu0 0
        %4703 = vmatprep.subr.bf16.mxu0 0
        %4704 = vmatpush1.bf16.msra.mxu0 0
        %4705 = vmatprep.subr.bf16.mxu0 0
        %4706 = vmatpush1.bf16.msra.mxu0 0
        %4707 = vmatprep.subr.bf16.mxu0 0
        %4708 = vmatpush1.bf16.msra.mxu0 0
        %4709 = vmatprep.subr.bf16.mxu0 0
        %4710 = vmatpush1.bf16.msra.mxu0 0
        %4711 = vmatprep.subr.bf16.mxu0 0
        %4712 = vmatpush1.bf16.msra.mxu0 0
        %4713 = vmatprep.subr.bf16.mxu0 0
        %4714 = vmatpush1.bf16.msra.mxu0 0
        %4715 = vmatprep.mubr.bf16.mxu0 0
        %4716 = vmatmul.mubr.bf16.gmra.mrb[0].mxu0 %v4681
        %v4717 = vpop.f32.mrb[0].mxu0
        %v4718 = vadd.f32 0.0, %v4717
        %v4719 = vpop.f32.mrb[0].mxu0
        %v4720 = vpop.f32.mrb[0].mxu0
        %v4721 = vpop.f32.mrb[0].mxu0
        %4722 = vdwg.mxu0
        %v4723 = vadd.f32 %v4616, %v4718
        %s4724 = scalar_lea.vmem %s55, 6
        %v4725 = vld [vmem:[%s4724] sm:$0x1]
        %v4727 = vsel %vm4083, %v4725, 0
        %4729 = vmatprep.subr.bf16.mxu0 0
        %4730 = vmatpush1.bf16.msra.mxu0 %v4088
        %4731 = vmatprep.subr.bf16.mxu0 0
        %4732 = vmatpush1.bf16.msra.mxu0 0
        %4733 = vmatprep.subr.bf16.mxu0 0
        %4734 = vmatpush1.bf16.msra.mxu0 0
        %4735 = vmatprep.subr.bf16.mxu0 0
        %4736 = vmatpush1.bf16.msra.mxu0 0
        %4737 = vmatprep.subr.bf16.mxu0 0
        %4738 = vmatpush1.bf16.msra.mxu0 0
        %4739 = vmatprep.subr.bf16.mxu0 0
        %4740 = vmatpush1.bf16.msra.mxu0 0
        %4741 = vmatprep.subr.bf16.mxu0 0
        %4742 = vmatpush1.bf16.msra.mxu0 0
        %4743 = vmatprep.subr.bf16.mxu0 0
        %4744 = vmatpush1.bf16.msra.mxu0 0
        %4745 = vmatprep.subr.bf16.mxu0 0
        %4746 = vmatpush1.bf16.msra.mxu0 0
        %4747 = vmatprep.subr.bf16.mxu0 0
        %4748 = vmatpush1.bf16.msra.mxu0 0
        %4749 = vmatprep.subr.bf16.mxu0 0
        %4750 = vmatpush1.bf16.msra.mxu0 0
        %4751 = vmatprep.subr.bf16.mxu0 0
        %4752 = vmatpush1.bf16.msra.mxu0 0
        %4753 = vmatprep.subr.bf16.mxu0 0
        %4754 = vmatpush1.bf16.msra.mxu0 0
        %4755 = vmatprep.subr.bf16.mxu0 0
        %4756 = vmatpush1.bf16.msra.mxu0 0
        %4757 = vmatprep.subr.bf16.mxu0 0
        %4758 = vmatpush1.bf16.msra.mxu0 0
        %4759 = vmatprep.subr.bf16.mxu0 0
        %4760 = vmatpush1.bf16.msra.mxu0 0
        %4761 = vmatprep.mubr.bf16.mxu0 0
        %4762 = vmatmul.mubr.bf16.gmra.mrb[0].mxu0 %v4727
        %v4763 = vpop.f32.mrb[0].mxu0
        %v4764 = vadd.f32 0.0, %v4763
        %v4765 = vpop.f32.mrb[0].mxu0
        %v4766 = vpop.f32.mrb[0].mxu0
        %v4767 = vpop.f32.mrb[0].mxu0
        %4768 = vdwg.mxu0
        %v4769 = vpack.c.bf16 %v4764, %v4764
        %s4770 = scalar_lea.vmem %s51, 96
        %v4771 = vld [vmem:[%s4770] sm:$0xf]
        %v4772 = vld [vmem:[%s4770 + $0x4] sm:$0xf]
        %v4773 = vld [vmem:[%s4770 + $0x8] sm:$0xf]
        %v4774 = vld [vmem:[%s4770 + $0xc] sm:$0xf]
        %v4779 = vunpack.c.l.b16 %v4771
        %v4780 = vunpack.c.l.b16 %v4772
        %v4781 = vunpack.c.l.b16 %v4773
        %v4782 = vunpack.c.l.b16 %v4774
        %v4783 = vpack.c.b16 %v4780, %v4779
        %v4784 = vpack.c.b16 %v4782, %v4781
        %v4788 = vsel %vm2881, %v4769, 0
        %4790 = vmatprep.subr.bf16.mxu0 0
        %4791 = vmatpush1.bf16.msra.mxu0 %v4783
        %4792 = vmatprep.subr.bf16.mxu0 0
        %4793 = vmatpush1.bf16.msra.mxu0 %v4784
        %4794 = vmatprep.subr.bf16.mxu0 0
        %4795 = vmatpush1.bf16.msra.mxu0 0
        %4796 = vmatprep.subr.bf16.mxu0 0
        %4797 = vmatpush1.bf16.msra.mxu0 0
        %4798 = vmatprep.subr.bf16.mxu0 0
        %4799 = vmatpush1.bf16.msra.mxu0 0
        %4800 = vmatprep.subr.bf16.mxu0 0
        %4801 = vmatpush1.bf16.msra.mxu0 0
        %4802 = vmatprep.subr.bf16.mxu0 0
        %4803 = vmatpush1.bf16.msra.mxu0 0
        %4804 = vmatprep.subr.bf16.mxu0 0
        %4805 = vmatpush1.bf16.msra.mxu0 0
        %4806 = vmatprep.subr.bf16.mxu0 0
        %4807 = vmatpush1.bf16.msra.mxu0 0
        %4808 = vmatprep.subr.bf16.mxu0 0
        %4809 = vmatpush1.bf16.msra.mxu0 0
        %4810 = vmatprep.subr.bf16.mxu0 0
        %4811 = vmatpush1.bf16.msra.mxu0 0
        %4812 = vmatprep.subr.bf16.mxu0 0
        %4813 = vmatpush1.bf16.msra.mxu0 0
        %4814 = vmatprep.subr.bf16.mxu0 0
        %4815 = vmatpush1.bf16.msra.mxu0 0
        %4816 = vmatprep.subr.bf16.mxu0 0
        %4817 = vmatpush1.bf16.msra.mxu0 0
        %4818 = vmatprep.subr.bf16.mxu0 0
        %4819 = vmatpush1.bf16.msra.mxu0 0
        %4820 = vmatprep.subr.bf16.mxu0 0
        %4821 = vmatpush1.bf16.msra.mxu0 0
        %4822 = vmatprep.mubr.bf16.mxu0 0
        %4823 = vmatmul.mubr.bf16.gmra.mrb[0].mxu0 %v4788
        %v4824 = vpop.f32.mrb[0].mxu0
        %v4825 = vadd.f32 0.0, %v4824
        %v4826 = vpop.f32.mrb[0].mxu0
        %v4827 = vpop.f32.mrb[0].mxu0
        %v4828 = vpop.f32.mrb[0].mxu0
        %4829 = vdwg.mxu0
        %v4830 = vadd.f32 %v4723, %v4825
        %s4831 = scalar_lea.vmem %s55, 7
        %v4832 = vld [vmem:[%s4831] sm:$0x1]
        %v4834 = vsel %vm4083, %v4832, 0
        %4836 = vmatprep.subr.bf16.mxu0 0
        %4837 = vmatpush1.bf16.msra.mxu0 %v4088
        %4838 = vmatprep.subr.bf16.mxu0 0
        %4839 = vmatpush1.bf16.msra.mxu0 0
        %4840 = vmatprep.subr.bf16.mxu0 0
        %4841 = vmatpush1.bf16.msra.mxu0 0
        %4842 = vmatprep.subr.bf16.mxu0 0
        %4843 = vmatpush1.bf16.msra.mxu0 0
        %4844 = vmatprep.subr.bf16.mxu0 0
        %4845 = vmatpush1.bf16.msra.mxu0 0
        %4846 = vmatprep.subr.bf16.mxu0 0
        %4847 = vmatpush1.bf16.msra.mxu0 0
        %4848 = vmatprep.subr.bf16.mxu0 0
        %4849 = vmatpush1.bf16.msra.mxu0 0
        %4850 = vmatprep.subr.bf16.mxu0 0
        %4851 = vmatpush1.bf16.msra.mxu0 0
        %4852 = vmatprep.subr.bf16.mxu0 0
        %4853 = vmatpush1.bf16.msra.mxu0 0
        %4854 = vmatprep.subr.bf16.mxu0 0
        %4855 = vmatpush1.bf16.msra.mxu0 0
        %4856 = vmatprep.subr.bf16.mxu0 0
        %4857 = vmatpush1.bf16.msra.mxu0 0
        %4858 = vmatprep.subr.bf16.mxu0 0
        %4859 = vmatpush1.bf16.msra.mxu0 0
        %4860 = vmatprep.subr.bf16.mxu0 0
        %4861 = vmatpush1.bf16.msra.mxu0 0
        %4862 = vmatprep.subr.bf16.mxu0 0
        %4863 = vmatpush1.bf16.msra.mxu0 0
        %4864 = vmatprep.subr.bf16.mxu0 0
        %4865 = vmatpush1.bf16.msra.mxu0 0
        %4866 = vmatprep.subr.bf16.mxu0 0
        %4867 = vmatpush1.bf16.msra.mxu0 0
        %4868 = vmatprep.mubr.bf16.mxu0 0
        %4869 = vmatmul.mubr.bf16.gmra.mrb[0].mxu0 %v4834
        %v4870 = vpop.f32.mrb[0].mxu0
        %v4871 = vadd.f32 0.0, %v4870
        %v4872 = vpop.f32.mrb[0].mxu0
        %v4873 = vpop.f32.mrb[0].mxu0
        %v4874 = vpop.f32.mrb[0].mxu0
        %4875 = vdwg.mxu0
        %v4876 = vpack.c.bf16 %v4871, %v4871
        %s4877 = scalar_lea.vmem %s51, 112
        %v4878 = vld [vmem:[%s4877] sm:$0xf]
        %v4879 = vld [vmem:[%s4877 + $0x4] sm:$0xf]
        %v4880 = vld [vmem:[%s4877 + $0x8] sm:$0xf]
        %v4881 = vld [vmem:[%s4877 + $0xc] sm:$0xf]
        %v4886 = vunpack.c.l.b16 %v4878
        %v4887 = vunpack.c.l.b16 %v4879
        %v4888 = vunpack.c.l.b16 %v4880
        %v4889 = vunpack.c.l.b16 %v4881
        %v4890 = vpack.c.b16 %v4887, %v4886
        %v4891 = vpack.c.b16 %v4889, %v4888
        %v4895 = vsel %vm2881, %v4876, 0
        %4897 = vmatprep.subr.bf16.mxu0 0
        %4898 = vmatpush1.bf16.msra.mxu0 %v4890
        %4899 = vmatprep.subr.bf16.mxu0 0
        %4900 = vmatpush1.bf16.msra.mxu0 %v4891
        %4901 = vmatprep.subr.bf16.mxu0 0
        %4902 = vmatpush1.bf16.msra.mxu0 0
        %4903 = vmatprep.subr.bf16.mxu0 0
        %4904 = vmatpush1.bf16.msra.mxu0 0
        %4905 = vmatprep.subr.bf16.mxu0 0
        %4906 = vmatpush1.bf16.msra.mxu0 0
        %4907 = vmatprep.subr.bf16.mxu0 0
        %4908 = vmatpush1.bf16.msra.mxu0 0
        %4909 = vmatprep.subr.bf16.mxu0 0
        %4910 = vmatpush1.bf16.msra.mxu0 0
        %4911 = vmatprep.subr.bf16.mxu0 0
        %4912 = vmatpush1.bf16.msra.mxu0 0
        %4913 = vmatprep.subr.bf16.mxu0 0
        %4914 = vmatpush1.bf16.msra.mxu0 0
        %4915 = vmatprep.subr.bf16.mxu0 0
        %4916 = vmatpush1.bf16.msra.mxu0 0
        %4917 = vmatprep.subr.bf16.mxu0 0
        %4918 = vmatpush1.bf16.msra.mxu0 0
        %4919 = vmatprep.subr.bf16.mxu0 0
        %4920 = vmatpush1.bf16.msra.mxu0 0
        %4921 = vmatprep.subr.bf16.mxu0 0
        %4922 = vmatpush1.bf16.msra.mxu0 0
        %4923 = vmatprep.subr.bf16.mxu0 0
        %4924 = vmatpush1.bf16.msra.mxu0 0
        %4925 = vmatprep.subr.bf16.mxu0 0
        %4926 = vmatpush1.bf16.msra.mxu0 0
        %4927 = vmatprep.subr.bf16.mxu0 0
        %4928 = vmatpush1.bf16.msra.mxu0 0
        %4929 = vmatprep.mubr.bf16.mxu0 0
        %4930 = vmatmul.mubr.bf16.gmra.mrb[0].mxu0 %v4895
        %v4931 = vpop.f32.mrb[0].mxu0
        %v4932 = vadd.f32 0.0, %v4931
        %v4933 = vpop.f32.mrb[0].mxu0
        %v4934 = vpop.f32.mrb[0].mxu0
        %v4935 = vpop.f32.mrb[0].mxu0
        %4936 = vdwg.mxu0
        %v4937 = vadd.f32 %v4830, %v4932
        %s4938 = scalar_lea.vmem %s55, 8
        %v4939 = vld [vmem:[%s4938] sm:$0x1]
        %v4941 = vsel %vm4083, %v4939, 0
        %4943 = vmatprep.subr.bf16.mxu0 0
        %4944 = vmatpush1.bf16.msra.mxu0 %v4088
        %4945 = vmatprep.subr.bf16.mxu0 0
        %4946 = vmatpush1.bf16.msra.mxu0 0
        %4947 = vmatprep.subr.bf16.mxu0 0
        %4948 = vmatpush1.bf16.msra.mxu0 0
        %4949 = vmatprep.subr.bf16.mxu0 0
        %4950 = vmatpush1.bf16.msra.mxu0 0
        %4951 = vmatprep.subr.bf16.mxu0 0
        %4952 = vmatpush1.bf16.msra.mxu0 0
        %4953 = vmatprep.subr.bf16.mxu0 0
        %4954 = vmatpush1.bf16.msra.mxu0 0
        %4955 = vmatprep.subr.bf16.mxu0 0
        %4956 = vmatpush1.bf16.msra.mxu0 0
        %4957 = vmatprep.subr.bf16.mxu0 0
        %4958 = vmatpush1.bf16.msra.mxu0 0
        %4959 = vmatprep.subr.bf16.mxu0 0
        %4960 = vmatpush1.bf16.msra.mxu0 0
        %4961 = vmatprep.subr.bf16.mxu0 0
        %4962 = vmatpush1.bf16.msra.mxu0 0
        %4963 = vmatprep.subr.bf16.mxu0 0
        %4964 = vmatpush1.bf16.msra.mxu0 0
        %4965 = vmatprep.subr.bf16.mxu0 0
        %4966 = vmatpush1.bf16.msra.mxu0 0
        %4967 = vmatprep.subr.bf16.mxu0 0
        %4968 = vmatpush1.bf16.msra.mxu0 0
        %4969 = vmatprep.subr.bf16.mxu0 0
        %4970 = vmatpush1.bf16.msra.mxu0 0
        %4971 = vmatprep.subr.bf16.mxu0 0
        %4972 = vmatpush1.bf16.msra.mxu0 0
        %4973 = vmatprep.subr.bf16.mxu0 0
        %4974 = vmatpush1.bf16.msra.mxu0 0
        %4975 = vmatprep.mubr.bf16.mxu0 0
        %4976 = vmatmul.mubr.bf16.gmra.mrb[0].mxu0 %v4941
        %v4977 = vpop.f32.mrb[0].mxu0
        %v4978 = vadd.f32 0.0, %v4977
        %v4979 = vpop.f32.mrb[0].mxu0
        %v4980 = vpop.f32.mrb[0].mxu0
        %v4981 = vpop.f32.mrb[0].mxu0
        %4982 = vdwg.mxu0
        %v4983 = vpack.c.bf16 %v4978, %v4978
        %s4984 = scalar_lea.vmem %s51, 128
        %v4985 = vld [vmem:[%s4984] sm:$0xf]
        %v4986 = vld [vmem:[%s4984 + $0x4] sm:$0xf]
        %v4987 = vld [vmem:[%s4984 + $0x8] sm:$0xf]
        %v4988 = vld [vmem:[%s4984 + $0xc] sm:$0xf]
        %v4993 = vunpack.c.l.b16 %v4985
        %v4994 = vunpack.c.l.b16 %v4986
        %v4995 = vunpack.c.l.b16 %v4987
        %v4996 = vunpack.c.l.b16 %v4988
        %v4997 = vpack.c.b16 %v4994, %v4993
        %v4998 = vpack.c.b16 %v4996, %v4995
        %v5002 = vsel %vm2881, %v4983, 0
        %5004 = vmatprep.subr.bf16.mxu0 0
        %5005 = vmatpush1.bf16.msra.mxu0 %v4997
        %5006 = vmatprep.subr.bf16.mxu0 0
        %5007 = vmatpush1.bf16.msra.mxu0 %v4998
        %5008 = vmatprep.subr.bf16.mxu0 0
        %5009 = vmatpush1.bf16.msra.mxu0 0
        %5010 = vmatprep.subr.bf16.mxu0 0
        %5011 = vmatpush1.bf16.msra.mxu0 0
        %5012 = vmatprep.subr.bf16.mxu0 0
        %5013 = vmatpush1.bf16.msra.mxu0 0
        %5014 = vmatprep.subr.bf16.mxu0 0
        %5015 = vmatpush1.bf16.msra.mxu0 0
        %5016 = vmatprep.subr.bf16.mxu0 0
        %5017 = vmatpush1.bf16.msra.mxu0 0
        %5018 = vmatprep.subr.bf16.mxu0 0
        %5019 = vmatpush1.bf16.msra.mxu0 0
        %5020 = vmatprep.subr.bf16.mxu0 0
        %5021 = vmatpush1.bf16.msra.mxu0 0
        %5022 = vmatprep.subr.bf16.mxu0 0
        %5023 = vmatpush1.bf16.msra.mxu0 0
        %5024 = vmatprep.subr.bf16.mxu0 0
        %5025 = vmatpush1.bf16.msra.mxu0 0
        %5026 = vmatprep.subr.bf16.mxu0 0
        %5027 = vmatpush1.bf16.msra.mxu0 0
        %5028 = vmatprep.subr.bf16.mxu0 0
        %5029 = vmatpush1.bf16.msra.mxu0 0
        %5030 = vmatprep.subr.bf16.mxu0 0
        %5031 = vmatpush1.bf16.msra.mxu0 0
        %5032 = vmatprep.subr.bf16.mxu0 0
        %5033 = vmatpush1.bf16.msra.mxu0 0
        %5034 = vmatprep.subr.bf16.mxu0 0
        %5035 = vmatpush1.bf16.msra.mxu0 0
        %5036 = vmatprep.mubr.bf16.mxu0 0
        %5037 = vmatmul.mubr.bf16.gmra.mrb[0].mxu0 %v5002
        %v5038 = vpop.f32.mrb[0].mxu0
        %v5039 = vadd.f32 0.0, %v5038
        %v5040 = vpop.f32.mrb[0].mxu0
        %v5041 = vpop.f32.mrb[0].mxu0
        %v5042 = vpop.f32.mrb[0].mxu0
        %5043 = vdwg.mxu0
        %v5044 = vadd.f32 %v4937, %v5039
        %v5045 = vld [vmem:[%s53] sm:$0x1]
        %v5046 = vadd.f32 %v5044, %v5045
        %v5047 = vmax.f32 %v5046, 0.0
        %v5048 = vpack.c.bf16 %v5047, %v5047
        %v5049 = vld [vmem:[%s65] sm:$0x1]
        %v5051 = vsel %vm4083, %v5049, 0
        %v5053 = vsel %vm1177, %v3997, 0
        %5055 = vmatprep.subr.bf16.mxu0 0
        %5056 = vmatpush1.bf16.msra.mxu0 %v5053
        %5057 = vmatprep.subr.bf16.mxu0 0
        %5058 = vmatpush1.bf16.msra.mxu0 0
        %5059 = vmatprep.subr.bf16.mxu0 0
        %5060 = vmatpush1.bf16.msra.mxu0 0
        %5061 = vmatprep.subr.bf16.mxu0 0
        %5062 = vmatpush1.bf16.msra.mxu0 0
        %5063 = vmatprep.subr.bf16.mxu0 0
        %5064 = vmatpush1.bf16.msra.mxu0 0
        %5065 = vmatprep.subr.bf16.mxu0 0
        %5066 = vmatpush1.bf16.msra.mxu0 0
        %5067 = vmatprep.subr.bf16.mxu0 0
        %5068 = vmatpush1.bf16.msra.mxu0 0
        %5069 = vmatprep.subr.bf16.mxu0 0
        %5070 = vmatpush1.bf16.msra.mxu0 0
        %5071 = vmatprep.subr.bf16.mxu0 0
        %5072 = vmatpush1.bf16.msra.mxu0 0
        %5073 = vmatprep.subr.bf16.mxu0 0
        %5074 = vmatpush1.bf16.msra.mxu0 0
        %5075 = vmatprep.subr.bf16.mxu0 0
        %5076 = vmatpush1.bf16.msra.mxu0 0
        %5077 = vmatprep.subr.bf16.mxu0 0
        %5078 = vmatpush1.bf16.msra.mxu0 0
        %5079 = vmatprep.subr.bf16.mxu0 0
        %5080 = vmatpush1.bf16.msra.mxu0 0
        %5081 = vmatprep.subr.bf16.mxu0 0
        %5082 = vmatpush1.bf16.msra.mxu0 0
        %5083 = vmatprep.subr.bf16.mxu0 0
        %5084 = vmatpush1.bf16.msra.mxu0 0
        %5085 = vmatprep.subr.bf16.mxu0 0
        %5086 = vmatpush1.bf16.msra.mxu0 0
        %5087 = vmatprep.mubr.bf16.mxu0 0
        %5088 = vmatmul.mubr.bf16.gmra.mrb[0].mxu0 %v5051
        %v5089 = vpop.f32.mrb[0].mxu0
        %v5090 = vadd.f32 0.0, %v5089
        %v5091 = vpop.f32.mrb[0].mxu0
        %v5092 = vpop.f32.mrb[0].mxu0
        %v5093 = vpop.f32.mrb[0].mxu0
        %5094 = vdwg.mxu0
        %v5095 = vpack.c.bf16 %v5090, %v5090
        %v5096 = vld [vmem:[%s61] sm:$0xf]
        %v5097 = vld [vmem:[%s61 + $0x4] sm:$0xf]
        %v5098 = vld [vmem:[%s61 + $0x8] sm:$0xf]
        %v5099 = vld [vmem:[%s61 + $0xc] sm:$0xf]
        %v5100 = vld [vmem:[%s61 + $0x10] sm:$0xf]
        %v5101 = vld [vmem:[%s61 + $0x14] sm:$0xf]
        %v5102 = vld [vmem:[%s61 + $0x18] sm:$0xf]
        %v5103 = vld [vmem:[%s61 + $0x1c] sm:$0xf]
        %v5104 = vld [vmem:[%s63] sm:$0x1]
        %v5113 = vunpack.c.l.b16 %v5096
        %v5114 = vunpack.c.l.b16 %v5097
        %v5115 = vunpack.c.l.b16 %v5098
        %v5116 = vunpack.c.l.b16 %v5099
        %v5117 = vunpack.c.l.b16 %v5100
        %v5118 = vunpack.c.l.b16 %v5101
        %v5119 = vunpack.c.l.b16 %v5102
        %v5120 = vunpack.c.l.b16 %v5103
        %v5121 = vpack.c.b16 %v5114, %v5113
        %v5122 = vpack.c.b16 %v5116, %v5115
        %v5123 = vpack.c.b16 %v5118, %v5117
        %v5124 = vpack.c.b16 %v5120, %v5119
        %v5130 = vsel %vm1265, %v5095, 0
        %5132 = vmatprep.subr.bf16.mxu0 0
        %5133 = vmatpush1.bf16.msra.mxu0 %v5121
        %5134 = vmatprep.subr.bf16.mxu0 0
        %5135 = vmatpush1.bf16.msra.mxu0 %v5122
        %5136 = vmatprep.subr.bf16.mxu0 0
        %5137 = vmatpush1.bf16.msra.mxu0 %v5123
        %5138 = vmatprep.subr.bf16.mxu0 0
        %5139 = vmatpush1.bf16.msra.mxu0 %v5124
        %5140 = vmatprep.subr.bf16.mxu0 0
        %5141 = vmatpush1.bf16.msra.mxu0 0
        %5142 = vmatprep.subr.bf16.mxu0 0
        %5143 = vmatpush1.bf16.msra.mxu0 0
        %5144 = vmatprep.subr.bf16.mxu0 0
        %5145 = vmatpush1.bf16.msra.mxu0 0
        %5146 = vmatprep.subr.bf16.mxu0 0
        %5147 = vmatpush1.bf16.msra.mxu0 0
        %5148 = vmatprep.subr.bf16.mxu0 0
        %5149 = vmatpush1.bf16.msra.mxu0 0
        %5150 = vmatprep.subr.bf16.mxu0 0
        %5151 = vmatpush1.bf16.msra.mxu0 0
        %5152 = vmatprep.subr.bf16.mxu0 0
        %5153 = vmatpush1.bf16.msra.mxu0 0
        %5154 = vmatprep.subr.bf16.mxu0 0
        %5155 = vmatpush1.bf16.msra.mxu0 0
        %5156 = vmatprep.subr.bf16.mxu0 0
        %5157 = vmatpush1.bf16.msra.mxu0 0
        %5158 = vmatprep.subr.bf16.mxu0 0
        %5159 = vmatpush1.bf16.msra.mxu0 0
        %5160 = vmatprep.subr.bf16.mxu0 0
        %5161 = vmatpush1.bf16.msra.mxu0 0
        %5162 = vmatprep.subr.bf16.mxu0 0
        %5163 = vmatpush1.bf16.msra.mxu0 0
        %5164 = vmatprep.mubr.bf16.mxu0 0
        %5165 = vmatmul.mubr.bf16.gmra.mrb[0].mxu0 %v5130
        %v5166 = vpop.f32.mrb[0].mxu0
        %v5167 = vadd.f32 %v5104, %v5166
        %v5168 = vpop.f32.mrb[0].mxu0
        %v5169 = vpop.f32.mrb[0].mxu0
        %v5170 = vpop.f32.mrb[0].mxu0
        %5171 = vdwg.mxu0
        %v5172 = vld [vmem:[%s57] sm:$0xf]
        %v5173 = vld [vmem:[%s57 + $0x4] sm:$0xf]
        %v5174 = vld [vmem:[%s57 + $0x8] sm:$0xf]
        %v5175 = vld [vmem:[%s57 + $0xc] sm:$0xf]
        %v5176 = vld [vmem:[%s59] sm:$0x1]
        %v5181 = vunpack.c.l.b16 %v5172
        %v5182 = vunpack.c.l.b16 %v5173
        %v5183 = vunpack.c.l.b16 %v5174
        %v5184 = vunpack.c.l.b16 %v5175
        %v5185 = vpack.c.b16 %v5182, %v5181
        %v5186 = vpack.c.b16 %v5184, %v5183
        %v5190 = vsel %vm2881, %v5048, 0
        %5192 = vmatprep.subr.bf16.mxu0 0
        %5193 = vmatpush1.bf16.msra.mxu0 %v5185
        %5194 = vmatprep.subr.bf16.mxu0 0
        %5195 = vmatpush1.bf16.msra.mxu0 %v5186
        %5196 = vmatprep.subr.bf16.mxu0 0
        %5197 = vmatpush1.bf16.msra.mxu0 0
        %5198 = vmatprep.subr.bf16.mxu0 0
        %5199 = vmatpush1.bf16.msra.mxu0 0
        %5200 = vmatprep.subr.bf16.mxu0 0
        %5201 = vmatpush1.bf16.msra.mxu0 0
        %5202 = vmatprep.subr.bf16.mxu0 0
        %5203 = vmatpush1.bf16.msra.mxu0 0
        %5204 = vmatprep.subr.bf16.mxu0 0
        %5205 = vmatpush1.bf16.msra.mxu0 0
        %5206 = vmatprep.subr.bf16.mxu0 0
        %5207 = vmatpush1.bf16.msra.mxu0 0
        %5208 = vmatprep.subr.bf16.mxu0 0
        %5209 = vmatpush1.bf16.msra.mxu0 0
        %5210 = vmatprep.subr.bf16.mxu0 0
        %5211 = vmatpush1.bf16.msra.mxu0 0
        %5212 = vmatprep.subr.bf16.mxu0 0
        %5213 = vmatpush1.bf16.msra.mxu0 0
        %5214 = vmatprep.subr.bf16.mxu0 0
        %5215 = vmatpush1.bf16.msra.mxu0 0
        %5216 = vmatprep.subr.bf16.mxu0 0
        %5217 = vmatpush1.bf16.msra.mxu0 0
        %5218 = vmatprep.subr.bf16.mxu0 0
        %5219 = vmatpush1.bf16.msra.mxu0 0
        %5220 = vmatprep.subr.bf16.mxu0 0
        %5221 = vmatpush1.bf16.msra.mxu0 0
        %5222 = vmatprep.subr.bf16.mxu0 0
        %5223 = vmatpush1.bf16.msra.mxu0 0
        %5224 = vmatprep.mubr.bf16.mxu0 0
        %5225 = vmatmul.mubr.bf16.gmra.mrb[0].mxu0 %v5190
        %v5226 = vpop.f32.mrb[0].mxu0
        %v5227 = vadd.f32 %v5176, %v5226
        %v5228 = vpop.f32.mrb[0].mxu0
        %v5229 = vpop.f32.mrb[0].mxu0
        %v5230 = vpop.f32.mrb[0].mxu0
        %5231 = vdwg.mxu0
        %v5232 = vadd.f32 %v5227, %v5167
        %v5233 = vmax.f32 %v5232, 0.0
        %v5234 = vpack.c.bf16 %v5233, %v5233
        %v5235 = vunpack.c.l.bf16 %v5234
        %5236 = vst [vmem:[%s1006] sm:$0x1] %v5235
        %s5237 = sand.u32 %s787, 1
        %s5238 = scalar_lea.sflag [#allocation3], %s5237
        %s5239 = sand.u32 %s787, 1
        %s5240 = scalar_lea.vmem [#allocation2], %s5239
        // Predicated region
        $region153: #{_lambda_.1} parent=151 // pred_check
          %p5241 = pneg %p797
        $region154: #{_lambda_.1} parent=151 // pred_check_branch
          %5243 = sbr.rel (%p5241) target = $region156
        $region155: #{_lambda_.1} parent=151 // pred_region
          %s5245 = ssub.s32 16, 16
          %5246 = vsyncadd %s5238, %s5245
          %s5247 = smul.addr %s81, 16
          %s5248 = scalar_lea.hbm %s67, %s5247
          %s5250 = sshll.u32 %s5240, 4
          %s5251 = int_to_ptr.vmem [resolvable:$true] %s5250
          %5253 = dma.vmem_to_hbm [thread:$0]  %s5251, 16, %s5248, %s5238
        $region156: #{_lambda_.1} parent=151 // pred_fallthru
          _
      $region152: #{_lambda_.1} parent=5 // pred_fallthru
        _
      %p5254 = scmp.le.s32.totalorder 2, %s76
      // Predicated region
      $region157: #{_lambda_.1} parent=5 // pred_check
        %p5255 = pneg %p5254
      $region158: #{_lambda_.1} parent=5 // pred_check_branch
        %5257 = sbr.rel (%p5255) target = $region160
      $region159: #{_lambda_.1} parent=5 // pred_region
        %s5258 = ssub.s32 %s76, 2
        // Predicated region
        $region161: #{_lambda_.1} parent=159 // pred_check
          %p5259 = pneg %p803
        $region162: #{_lambda_.1} parent=159 // pred_check_branch
          %5261 = sbr.rel (%p5259) target = $region164
        $region163: #{_lambda_.1} parent=159 // pred_region
          %s5262 = sand.u32 %s788, 1
          %s5263 = scalar_lea.sflag [#allocation3], %s5262
          %s5264 = sand.u32 %s788, 1
          %s5265 = scalar_lea.vmem [#allocation2], %s5264
          %5266 = dma.done %s5263, 16
        $region164: #{_lambda_.1} parent=159 // pred_fallthru
          _
      $region160: #{_lambda_.1} parent=5 // pred_fallthru
        _
    $region6: #{_lambda_.1} parent=1 // loop_footer
      %s80 = sadd.s32 1, %s76
    $region7: #{_lambda_.1} parent=1 // loop_footer_branch
      %75 = sbr.rel target = $region3
    $region8: #{_lambda_.1} parent=1 // loop_exit
      _
    %5267 = vsyncpa [#allocation3], 1
    %s5268 = scalar_lea.sflag [#allocation3], 1
    %5269 = vsyncpa %s5268, 1

</llo_original>
